<compile_context>
chip_gen: v5e
topology: v5e:2x2
jax: 0.10.0
libtpu: 0.0.40
codegen_flags: <defaults>
</compile_context>

<pallas_src>
import math
import functools

import jax
import jax.numpy as jnp
from jax.experimental import pallas as pl
from jax.experimental.pallas import tpu as pltpu


def _round_up(a, b):
    return (a + b - 1) // b * b


# ----------------------------- Pallas kernel --------------------------------
def _deform_conv_kernel(lo_ref, hi_ref, u_ref, idx_ref, cw_ref, o_ref,
                        acc_ref, oh_ref, *, K, thw):
    # lo_ref/hi_ref: (N, n_p) int32 SMEM  min/max valid corner index per (n, p-tile)
    # u_ref : (1, C_out, K*thw) bf16   weight-folded input, column = k*thw + t
    # idx_ref: (1, 4K, TP)      int32  corner linear indices into HW (clamped)
    # cw_ref : (1, 4K, TP)      bf16   corner bilinear weights (0 for invalid)
    # o_ref  : (1, C_out, TP)   f32
    # acc_ref: (C_out, TP)      f32    VMEM accumulator across HW tiles
    # oh_ref : (K*thw, TP)      bf16   VMEM scratch: stacked per-tap onehot tiles
    n = pl.program_id(0)
    p = pl.program_id(1)
    h = pl.program_id(2)

    @pl.when(h == 0)
    def _init():
        acc_ref[...] = jnp.zeros_like(acc_ref)

    row0 = h * thw
    lo = lo_ref[n, p]
    hi = hi_ref[n, p]
    overlap = jnp.logical_and(lo < row0 + thw, hi >= row0)

    @pl.when(overlap)
    def _compute():
        # Global HW position of each row of this HW tile (column vector only).
        row = row0 + jax.lax.broadcasted_iota(jnp.int32, (thw, 1), 0)
        for k in range(K):                                   # static tap loop
            oh_k = None
            for c in range(4):
                r = 4 * k + c
                idx = idx_ref[0, r:r + 1, :]                 # (1, TP) int32
                wgt = cw_ref[0, r:r + 1, :]                  # (1, TP) bf16
                # Additive form is required: clamped OOB corners can alias a
                # valid corner's linear index; their weight is zero.
                term = (row == idx).astype(jnp.bfloat16) * wgt
                oh_k = term if oh_k is None else oh_k + term
            oh_ref[k * thw:(k + 1) * thw, :] = oh_k
        # One fused MXU matmul: contraction over all taps * HW-tile rows.
        acc_ref[...] += jnp.dot(u_ref[0], oh_ref[...],
                                preferred_element_type=jnp.float32)

    @pl.when(h == pl.num_programs(2) - 1)
    def _finish():
        o_ref[0] = acc_ref[...].astype(o_ref.dtype)


# ------------------------------ JAX glue -------------------------------------
def _sampling_coords(offset, kh, kw, stride, padding, dilation, Ho, Wo):
    """Per-output-pixel sampling coordinates (matches the CUDA im2col layout)."""
    N = offset.shape[0]
    K = kh * kw
    sh, sw = stride
    ph, pw = padding
    dh, dw = dilation
    off = offset.reshape(N, K, 2, Ho, Wo).astype(jnp.float32)
    dy, dx = off[:, :, 0], off[:, :, 1]                           # (N, K, Ho, Wo)
    ki, kj = jnp.meshgrid(jnp.arange(kh), jnp.arange(kw), indexing="ij")
    ki = ki.reshape(K).astype(jnp.float32)
    kj = kj.reshape(K).astype(jnp.float32)
    ho = jnp.arange(Ho, dtype=jnp.float32)
    wo = jnp.arange(Wo, dtype=jnp.float32)
    y = (ho * sh - ph)[None, None, :, None] + (ki * dh)[None, :, None, None] + dy
    x = (wo * sw - pw)[None, None, None, :] + (kj * dw)[None, :, None, None] + dx
    return y, x                                                   # (N, K, Ho, Wo)


def _corner_data(offset, H, W, kh, kw, stride, padding, dilation, Ho, Wo):
    """Compact bilinear sampling description: int32 indices + f32 weights, (N, 4K, P)."""
    y, x = _sampling_coords(offset, kh, kw, stride, padding, dilation, Ho, Wo)
    N, K = y.shape[:2]
    P = Ho * Wo
    y = y.reshape(N, K, P)
    x = x.reshape(N, K, P)
    y0, x0 = jnp.floor(y), jnp.floor(x)
    ly, lx = y - y0, x - x0
    hy, hx = 1.0 - ly, 1.0 - lx
    corners = ((y0, x0, hy * hx), (y0, x0 + 1, hy * lx),
               (y0 + 1, x0, ly * hx), (y0 + 1, x0 + 1, ly * lx))
    idxs, wgts = [], []
    for cy, cx, wgt in corners:
        valid = (cy >= 0) & (cy <= H - 1) & (cx >= 0) & (cx <= W - 1)
        lin = (jnp.clip(cy, 0, H - 1) * W + jnp.clip(cx, 0, W - 1)).astype(jnp.int32)
        idxs.append(lin)
        wgts.append(jnp.where(valid, wgt, 0.0))
    idx = jnp.stack(idxs, axis=2).reshape(N, 4 * K, P)            # row = 4*k + corner
    cw = jnp.stack(wgts, axis=2).reshape(N, 4 * K, P).astype(jnp.float32)
    return idx, cw


def deform_conv(x, offset, weight, stride=(1, 1), padding=(0, 0),
                dilation=(1, 1), groups=1, deformable_groups=1,
                *, tile_p=512, tile_hw=512):
    # TODO(synk): groups > 1 and deformable_groups > 1 are not implemented.
    assert groups == 1 and deformable_groups == 1
    N, C_in, H, W = x.shape
    C_out, _, kh, kw = weight.shape
    K = kh * kw
    sh, sw = stride
    ph, pw = padding
    dh, dw = dilation
    Ho = (H + 2 * ph - dh * (kh - 1) - 1) // sh + 1
    Wo = (W + 2 * pw - dw * (kw - 1) - 1) // sw + 1
    P, HW = Ho * Wo, H * W

    # Lane-dense tile sizes (multiples of 128), clamped to the padded problem.
    tp = min(tile_p, _round_up(P, 128))
    thw = min(tile_hw, _round_up(HW, 128))
    P_pad = _round_up(P, tp)
    HW_pad = _round_up(HW, thw)
    n_p = P_pad // tp
    n_h = HW_pad // thw

    # Compact sampling description; cw streamed as bf16, idx stays int32.
    idx, cw = _corner_data(offset, H, W, kh, kw, stride, padding, dilation, Ho, Wo)
    idx = jnp.pad(idx, ((0, 0), (0, 0), (0, P_pad - P)))
    cw = jnp.pad(cw, ((0, 0), (0, 0), (0, P_pad - P)))

    # Per-(n, p-tile) min/max valid corner linear index (scalar-prefetch window).
    valid = cw > 0.0
    idx_t = idx.reshape(N, 4 * K, n_p, tp)
    val_t = valid.reshape(N, 4 * K, n_p, tp)
    lo = jnp.min(jnp.where(val_t, idx_t, HW), axis=(1, 3)).astype(jnp.int32)   # (N, n_p)
    hi = jnp.max(jnp.where(val_t, idx_t, -1), axis=(1, 3)).astype(jnp.int32)   # (N, n_p)

    cw = cw.astype(jnp.bfloat16)

    # Precompute the weight-folded input u[n, o, k, hw] = sum_c W[o,c,k] x[n,c,hw]
    # (C_in is small -> better as one XLA matmul than a contraction-C_in MXU
    # matmul per grid step), then pre-chunk HW so each HW tile presents a
    # (C_out, K*thw) slab with column index k*thw + t.
    x_flat = x.reshape(N, C_in, HW).astype(jnp.float32)
    w_k = weight.reshape(C_out, C_in, K).astype(jnp.float32)
    u = jnp.einsum("ock,nch->nokh", w_k, x_flat)                  # (N, C_out, K, HW)
    u = jnp.pad(u, ((0, 0), (0, 0), (0, 0), (0, HW_pad - HW)))
    u = (u.reshape(N, C_out, K, n_h, thw)
          .transpose(0, 1, 3, 2, 4)
          .reshape(N, C_out, n_h * K * thw)
          .astype(jnp.bfloat16))

    kernel = functools.partial(_deform_conv_kernel, K=K, thw=thw)
    cost = pl.CostEstimate(
        flops=int(2.0 * N * C_out * K * HW_pad * P_pad),
        transcendentals=0,
        bytes_accessed=int(u.size * 2 * n_p + idx.size * 4 + cw.size * 2
                           + N * C_out * P_pad * 4))

    out = pl.pallas_call(
        kernel,
        out_shape=jax.ShapeDtypeStruct((N, C_out, P_pad), jnp.float32),
        grid_spec=pltpu.PrefetchScalarGridSpec(
            num_scalar_prefetch=2,
            grid=(N, n_p, n_h),
            in_specs=[
                pl.BlockSpec((1, C_out, K * thw), lambda n, p, h, lo, hi: (n, 0, h)),
                pl.BlockSpec((1, 4 * K, tp), lambda n, p, h, lo, hi: (n, 0, p)),
                pl.BlockSpec((1, 4 * K, tp), lambda n, p, h, lo, hi: (n, 0, p)),
            ],
            out_specs=pl.BlockSpec((1, C_out, tp), lambda n, p, h, lo, hi: (n, 0, p)),
            scratch_shapes=[
                pltpu.VMEM((C_out, tp), jnp.float32),          # accumulator
                pltpu.VMEM((K * thw, tp), jnp.bfloat16),       # stacked onehot
            ],
        ),
        compiler_params=pltpu.CompilerParams(
            dimension_semantics=("parallel", "parallel", "arbitrary")),
        cost_estimate=cost,
    )(lo, hi, u, idx, cw)
    return out[:, :, :P].reshape(N, C_out, Ho, Wo)


# ------------------------- pure-JAX reference check --------------------------
def _reference_deform_conv(x, offset, weight, stride, padding, dilation):
    N, C_in, H, W = x.shape
    C_out, _, kh, kw = weight.shape
    sh, sw = stride
    ph, pw = padding
    dh, dw = dilation
    Ho = (H + 2 * ph - dh * (kh - 1) - 1) // sh + 1
    Wo = (W + 2 * pw - dw * (kw - 1) - 1) // sw + 1
    y, xc = _sampling_coords(offset, kh, kw, stride, padding, dilation, Ho, Wo)
    y0, x0 = jnp.floor(y), jnp.floor(xc)
    ly, lx = y - y0, xc - x0
    hy, hx = 1.0 - ly, 1.0 - lx
    sampled = jnp.zeros((N, C_in, kh * kw, Ho, Wo), jnp.float32)
    corners = ((y0, x0, hy * hx), (y0, x0 + 1, hy * lx),
               (y0 + 1, x0, ly * hx), (y0 + 1, x0 + 1, ly * lx))
    for cy, cx, wgt in corners:
        valid = (cy >= 0) & (cy <= H - 1) & (cx >= 0) & (cx <= W - 1)
        cyi = jnp.clip(cy, 0, H - 1).astype(jnp.int32)
        cxi = jnp.clip(cx, 0, W - 1).astype(jnp.int32)
        v = x[jnp.arange(N)[:, None, None, None, None],
              jnp.arange(C_in)[None, :, None, None, None],
              cyi[:, None], cxi[:, None]]                      # (N, C, K, Ho, Wo)
        sampled = sampled + jnp.where(valid, wgt, 0.0)[:, None] * v
    cols = sampled.reshape(N, C_in * kh * kw, Ho * Wo)
    w = weight.reshape(C_out, C_in * kh * kw)
    return jnp.einsum("oc,ncp->nop", w, cols).reshape(N, C_out, Ho, Wo)


# --------------------------------- main ---------------------------------------
if __name__ == "__main__":
    key = jax.random.PRNGKey(0)
    k_w, k_x, k_o = jax.random.split(key, 3)

    N, C_in, H, W = 2, 4, 16, 16
    C_out, kh, kw = 8, 3, 3
    stride, padding, dilation = (1, 1), (1, 1), (1, 1)
    Ho = (H + 2 * padding[0] - dilation[0] * (kh - 1) - 1) // stride[0] + 1
    Wo = (W + 2 * padding[1] - dilation[1] * (kw - 1) - 1) // stride[1] + 1

    # weight init as in DeformConv.reset_parameters: uniform(-stdv, stdv)
    n_fan = C_in * kh * kw
    stdv = 1.0 / math.sqrt(n_fan)
    weight = jax.random.uniform(k_w, (C_out, C_in, kh, kw), jnp.float32,
                                minval=-stdv, maxval=stdv)
    x = jax.random.normal(k_x, (N, C_in, H, W), jnp.float32)
    offset = 0.5 * jax.random.normal(k_o, (N, 2 * kh * kw, Ho, Wo), jnp.float32)

    # Small tiles so the (N, P-tile, HW-reduction) grid, the scratch accumulator
    # and the scalar-prefetch HW-window skip are actually exercised
    # (grid = (2, 2, 2) at this toy size).
    out = deform_conv(x, offset, weight, stride, padding, dilation,
                      tile_p=128, tile_hw=128)
    out = jax.block_until_ready(out)
    assert out.shape == (N, C_out, Ho, Wo), out.shape

    ref = _reference_deform_conv(x, offset, weight, stride, padding, dilation)
    # bf16 matmul operands / bilinear weights -> slightly looser tolerance.
    assert bool(jnp.allclose(out, ref, rtol=2e-2, atol=2e-2)), (
        float(jnp.max(jnp.abs(out - ref))))

    print("KERNEL_OK")
</pallas_src>

<mosaic_0001>
module attributes {stable_mosaic.version = 11 : i64} {
  func.func @_deform_conv_kernel(%arg0: i32, %arg1: i32, %arg2: i32, %arg3: memref<2x2xi32, #tpu.memory_space<smem>>, %arg4: memref<2x2xi32, #tpu.memory_space<smem>>, %arg5: memref<1x8x1152xbf16, #tpu.memory_space<vmem>>, %arg6: memref<1x36x128xi32, #tpu.memory_space<vmem>>, %arg7: memref<1x36x128xbf16, #tpu.memory_space<vmem>>, %arg8: memref<1x8x128xf32, #tpu.memory_space<vmem>>, %arg9: memref<8x128xf32, #tpu.memory_space<vmem>>, %arg10: memref<1152x128xbf16, #tpu.memory_space<vmem>>) attributes {dimension_semantics = [#tpu.dimension_semantics<parallel>, #tpu.dimension_semantics<parallel>, #tpu.dimension_semantics<arbitrary>], iteration_bounds = array<i64: 2, 2, 2>, scalar_prefetch = 2 : i64, scratch_operands = 2 : i64, tpu.core_type = #tpu.core_type<tc>, window_params = [{transform_indices = @transform_0, window_bounds = array<i64: 1, 8, 1152>}, {transform_indices = @transform_1, window_bounds = array<i64: 1, 36, 128>}, {transform_indices = @transform_2, window_bounds = array<i64: 1, 36, 128>}, {transform_indices = @transform_3, window_bounds = array<i64: 1, 8, 128>}]} {
    %c0_i32 = arith.constant 0 : i32
    %0 = arith.cmpi eq, %arg2, %c0_i32 : i32
    %1 = arith.extui %0 : i1 to i32
    %c0_i32_0 = arith.constant 0 : i32
    %2 = arith.cmpi ne, %1, %c0_i32_0 : i32
    scf.if %2 {
      %cst = arith.constant 0.000000e+00 : f32
      %19 = vector.broadcast %cst : f32 to vector<8x128xf32>
      %c0 = arith.constant 0 : index
      %c0_4 = arith.constant 0 : index
      %20 = vector.load %arg9[%c0, %c0_4] : memref<8x128xf32, #tpu.memory_space<vmem>>, vector<8x128xf32>
      tpu.vector_store %arg9[%c0, %c0_4], %19 {strides = array<i32>} : memref<8x128xf32, #tpu.memory_space<vmem>>, vector<8x128xf32>,
    } else {
    }
    %c128_i32 = arith.constant 128 : i32
    %3 = arith.muli %arg2, %c128_i32 : i32
    %4 = arith.index_cast %arg0 : i32 to index
    %5 = arith.index_cast %arg1 : i32 to index
    %6 = memref.load %arg3[%4, %5] : memref<2x2xi32, #tpu.memory_space<smem>>
    %7 = arith.index_cast %arg0 : i32 to index
    %8 = arith.index_cast %arg1 : i32 to index
    %9 = memref.load %arg4[%7, %8] : memref<2x2xi32, #tpu.memory_space<smem>>
    %c128_i32_1 = arith.constant 128 : i32
    %10 = arith.addi %3, %c128_i32_1 : i32
    %11 = arith.cmpi slt, %6, %10 : i32
    %12 = arith.cmpi sge, %9, %3 : i32
    %13 = arith.andi %11, %12 : i1
    %14 = arith.extui %13 : i1 to i32
    %c0_i32_2 = arith.constant 0 : i32
    %15 = arith.cmpi ne, %14, %c0_i32_2 : i32
    scf.if %15 {
      %19 = tpu.iota {dimensions = array<i32: 0>} : vector<128x1xi32>
      %20 = vector.broadcast %3 : i32 to vector<128x1xi32>
      %21 = arith.addi %20, %19 : vector<128x1xi32>
      %c0 = arith.constant 0 : index
      %c0_4 = arith.constant 0 : index
      %c0_5 = arith.constant 0 : index
      %22 = vector.load %arg6[%c0, %c0_4, %c0_5] : memref<1x36x128xi32, #tpu.memory_space<vmem>>, vector<1x1x128xi32>
      %23 = vector.shape_cast %22 : vector<1x1x128xi32> to vector<1x128xi32>
      %c0_6 = arith.constant 0 : index
      %c0_7 = arith.constant 0 : index
      %c0_8 = arith.constant 0 : index
      %24 = vector.load %arg7[%c0_6, %c0_7, %c0_8] : memref<1x36x128xbf16, #tpu.memory_space<vmem>>, vector<1x1x128xbf16>
      %25 = vector.shape_cast %24 : vector<1x1x128xbf16> to vector<1x128xbf16>
      %26 = vector.broadcast %21 : vector<128x1xi32> to vector<128x128xi32>
      %27 = vector.broadcast %23 : vector<1x128xi32> to vector<128x128xi32>
      %28 = arith.cmpi eq, %26, %27 : vector<128x128xi32>
      %29 = arith.extui %28 : vector<128x128xi1> to vector<128x128xi32>
      %30 = arith.sitofp %29 : vector<128x128xi32> to vector<128x128xf32>
      %31 = arith.truncf %30 : vector<128x128xf32> to vector<128x128xbf16>
      %32 = vector.broadcast %25 : vector<1x128xbf16> to vector<128x128xbf16>
      %33 = arith.mulf %31, %32 : vector<128x128xbf16>
      %c0_9 = arith.constant 0 : index
      %c1 = arith.constant 1 : index
      %c0_10 = arith.constant 0 : index
      %34 = vector.load %arg6[%c0_9, %c1, %c0_10] : memref<1x36x128xi32, #tpu.memory_space<vmem>>, vector<1x1x128xi32>
      %35 = vector.shape_cast %34 : vector<1x1x128xi32> to vector<1x128xi32>
      %c0_11 = arith.constant 0 : index
      %c1_12 = arith.constant 1 : index
      %c0_13 = arith.constant 0 : index
      %36 = vector.load %arg7[%c0_11, %c1_12, %c0_13] : memref<1x36x128xbf16, #tpu.memory_space<vmem>>, vector<1x1x128xbf16>
      %37 = vector.shape_cast %36 : vector<1x1x128xbf16> to vector<1x128xbf16>
      %38 = vector.broadcast %21 : vector<128x1xi32> to vector<128x128xi32>
      %39 = vector.broadcast %35 : vector<1x128xi32> to vector<128x128xi32>
      %40 = arith.cmpi eq, %38, %39 : vector<128x128xi32>
      %41 = arith.extui %40 : vector<128x128xi1> to vector<128x128xi32>
      %42 = arith.sitofp %41 : vector<128x128xi32> to vector<128x128xf32>
      %43 = arith.truncf %42 : vector<128x128xf32> to vector<128x128xbf16>
      %44 = vector.broadcast %37 : vector<1x128xbf16> to vector<128x128xbf16>
      %45 = arith.mulf %43, %44 : vector<128x128xbf16>
      %46 = arith.addf %33, %45 : vector<128x128xbf16>
      %c0_14 = arith.constant 0 : index
      %c2 = arith.constant 2 : index
      %c0_15 = arith.constant 0 : index
      %47 = vector.load %arg6[%c0_14, %c2, %c0_15] : memref<1x36x128xi32, #tpu.memory_space<vmem>>, vector<1x1x128xi32>
      %48 = vector.shape_cast %47 : vector<1x1x128xi32> to vector<1x128xi32>
      %c0_16 = arith.constant 0 : index
      %c2_17 = arith.constant 2 : index
      %c0_18 = arith.constant 0 : index
      %49 = vector.load %arg7[%c0_16, %c2_17, %c0_18] : memref<1x36x128xbf16, #tpu.memory_space<vmem>>, vector<1x1x128xbf16>
      %50 = vector.shape_cast %49 : vector<1x1x128xbf16> to vector<1x128xbf16>
      %51 = vector.broadcast %21 : vector<128x1xi32> to vector<128x128xi32>
      %52 = vector.broadcast %48 : vector<1x128xi32> to vector<128x128xi32>
      %53 = arith.cmpi eq, %51, %52 : vector<128x128xi32>
      %54 = arith.extui %53 : vector<128x128xi1> to vector<128x128xi32>
      %55 = arith.sitofp %54 : vector<128x128xi32> to vector<128x128xf32>
      %56 = arith.truncf %55 : vector<128x128xf32> to vector<128x128xbf16>
      %57 = vector.broadcast %50 : vector<1x128xbf16> to vector<128x128xbf16>
      %58 = arith.mulf %56, %57 : vector<128x128xbf16>
      %59 = arith.addf %46, %58 : vector<128x128xbf16>
      %c0_19 = arith.constant 0 : index
      %c3 = arith.constant 3 : index
      %c0_20 = arith.constant 0 : index
      %60 = vector.load %arg6[%c0_19, %c3, %c0_20] : memref<1x36x128xi32, #tpu.memory_space<vmem>>, vector<1x1x128xi32>
      %61 = vector.shape_cast %60 : vector<1x1x128xi32> to vector<1x128xi32>
      %c0_21 = arith.constant 0 : index
      %c3_22 = arith.constant 3 : index
      %c0_23 = arith.constant 0 : index
      %62 = vector.load %arg7[%c0_21, %c3_22, %c0_23] : memref<1x36x128xbf16, #tpu.memory_space<vmem>>, vector<1x1x128xbf16>
      %63 = vector.shape_cast %62 : vector<1x1x128xbf16> to vector<1x128xbf16>
      %64 = vector.broadcast %21 : vector<128x1xi32> to vector<128x128xi32>
      %65 = vector.broadcast %61 : vector<1x128xi32> to vector<128x128xi32>
      %66 = arith.cmpi eq, %64, %65 : vector<128x128xi32>
      %67 = arith.extui %66 : vector<128x128xi1> to vector<128x128xi32>
      %68 = arith.sitofp %67 : vector<128x128xi32> to vector<128x128xf32>
      %69 = arith.truncf %68 : vector<128x128xf32> to vector<128x128xbf16>
      %70 = vector.broadcast %63 : vector<1x128xbf16> to vector<128x128xbf16>
      %71 = arith.mulf %69, %70 : vector<128x128xbf16>
      %72 = arith.addf %59, %71 : vector<128x128xbf16>
      %c0_24 = arith.constant 0 : index
      %c0_25 = arith.constant 0 : index
      %73 = vector.load %arg10[%c0_24, %c0_25] : memref<1152x128xbf16, #tpu.memory_space<vmem>>, vector<128x128xbf16>
      tpu.vector_store %arg10[%c0_24, %c0_25], %72 {strides = array<i32>} : memref<1152x128xbf16, #tpu.memory_space<vmem>>, vector<128x128xbf16>,
      %c0_26 = arith.constant 0 : index
      %c4 = arith.constant 4 : index
      %c0_27 = arith.constant 0 : index
      %74 = vector.load %arg6[%c0_26, %c4, %c0_27] : memref<1x36x128xi32, #tpu.memory_space<vmem>>, vector<1x1x128xi32>
      %75 = vector.shape_cast %74 : vector<1x1x128xi32> to vector<1x128xi32>
      %c0_28 = arith.constant 0 : index
      %c4_29 = arith.constant 4 : index
      %c0_30 = arith.constant 0 : index
      %76 = vector.load %arg7[%c0_28, %c4_29, %c0_30] : memref<1x36x128xbf16, #tpu.memory_space<vmem>>, vector<1x1x128xbf16>
      %77 = vector.shape_cast %76 : vector<1x1x128xbf16> to vector<1x128xbf16>
      %78 = vector.broadcast %21 : vector<128x1xi32> to vector<128x128xi32>
      %79 = vector.broadcast %75 : vector<1x128xi32> to vector<128x128xi32>
      %80 = arith.cmpi eq, %78, %79 : vector<128x128xi32>
      %81 = arith.extui %80 : vector<128x128xi1> to vector<128x128xi32>
      %82 = arith.sitofp %81 : vector<128x128xi32> to vector<128x128xf32>
      %83 = arith.truncf %82 : vector<128x128xf32> to vector<128x128xbf16>
      %84 = vector.broadcast %77 : vector<1x128xbf16> to vector<128x128xbf16>
      %85 = arith.mulf %83, %84 : vector<128x128xbf16>
      %c0_31 = arith.constant 0 : index
      %c5 = arith.constant 5 : index
      %c0_32 = arith.constant 0 : index
      %86 = vector.load %arg6[%c0_31, %c5, %c0_32] : memref<1x36x128xi32, #tpu.memory_space<vmem>>, vector<1x1x128xi32>
      %87 = vector.shape_cast %86 : vector<1x1x128xi32> to vector<1x128xi32>
      %c0_33 = arith.constant 0 : index
      %c5_34 = arith.constant 5 : index
      %c0_35 = arith.constant 0 : index
      %88 = vector.load %arg7[%c0_33, %c5_34, %c0_35] : memref<1x36x128xbf16, #tpu.memory_space<vmem>>, vector<1x1x128xbf16>
      %89 = vector.shape_cast %88 : vector<1x1x128xbf16> to vector<1x128xbf16>
      %90 = vector.broadcast %21 : vector<128x1xi32> to vector<128x128xi32>
      %91 = vector.broadcast %87 : vector<1x128xi32> to vector<128x128xi32>
      %92 = arith.cmpi eq, %90, %91 : vector<128x128xi32>
      %93 = arith.extui %92 : vector<128x128xi1> to vector<128x128xi32>
      %94 = arith.sitofp %93 : vector<128x128xi32> to vector<128x128xf32>
      %95 = arith.truncf %94 : vector<128x128xf32> to vector<128x128xbf16>
      %96 = vector.broadcast %89 : vector<1x128xbf16> to vector<128x128xbf16>
      %97 = arith.mulf %95, %96 : vector<128x128xbf16>
      %98 = arith.addf %85, %97 : vector<128x128xbf16>
      %c0_36 = arith.constant 0 : index
      %c6 = arith.constant 6 : index
      %c0_37 = arith.constant 0 : index
      %99 = vector.load %arg6[%c0_36, %c6, %c0_37] : memref<1x36x128xi32, #tpu.memory_space<vmem>>, vector<1x1x128xi32>
      %100 = vector.shape_cast %99 : vector<1x1x128xi32> to vector<1x128xi32>
      %c0_38 = arith.constant 0 : index
      %c6_39 = arith.constant 6 : index
      %c0_40 = arith.constant 0 : index
      %101 = vector.load %arg7[%c0_38, %c6_39, %c0_40] : memref<1x36x128xbf16, #tpu.memory_space<vmem>>, vector<1x1x128xbf16>
      %102 = vector.shape_cast %101 : vector<1x1x128xbf16> to vector<1x128xbf16>
      %103 = vector.broadcast %21 : vector<128x1xi32> to vector<128x128xi32>
      %104 = vector.broadcast %100 : vector<1x128xi32> to vector<128x128xi32>
      %105 = arith.cmpi eq, %103, %104 : vector<128x128xi32>
      %106 = arith.extui %105 : vector<128x128xi1> to vector<128x128xi32>
      %107 = arith.sitofp %106 : vector<128x128xi32> to vector<128x128xf32>
      %108 = arith.truncf %107 : vector<128x128xf32> to vector<128x128xbf16>
      %109 = vector.broadcast %102 : vector<1x128xbf16> to vector<128x128xbf16>
      %110 = arith.mulf %108, %109 : vector<128x128xbf16>
      %111 = arith.addf %98, %110 : vector<128x128xbf16>
      %c0_41 = arith.constant 0 : index
      %c7 = arith.constant 7 : index
      %c0_42 = arith.constant 0 : index
      %112 = vector.load %arg6[%c0_41, %c7, %c0_42] : memref<1x36x128xi32, #tpu.memory_space<vmem>>, vector<1x1x128xi32>
      %113 = vector.shape_cast %112 : vector<1x1x128xi32> to vector<1x128xi32>
      %c0_43 = arith.constant 0 : index
      %c7_44 = arith.constant 7 : index
      %c0_45 = arith.constant 0 : index
      %114 = vector.load %arg7[%c0_43, %c7_44, %c0_45] : memref<1x36x128xbf16, #tpu.memory_space<vmem>>, vector<1x1x128xbf16>
      %115 = vector.shape_cast %114 : vector<1x1x128xbf16> to vector<1x128xbf16>
      %116 = vector.broadcast %21 : vector<128x1xi32> to vector<128x128xi32>
      %117 = vector.broadcast %113 : vector<1x128xi32> to vector<128x128xi32>
      %118 = arith.cmpi eq, %116, %117 : vector<128x128xi32>
      %119 = arith.extui %118 : vector<128x128xi1> to vector<128x128xi32>
      %120 = arith.sitofp %119 : vector<128x128xi32> to vector<128x128xf32>
      %121 = arith.truncf %120 : vector<128x128xf32> to vector<128x128xbf16>
      %122 = vector.broadcast %115 : vector<1x128xbf16> to vector<128x128xbf16>
      %123 = arith.mulf %121, %122 : vector<128x128xbf16>
      %124 = arith.addf %111, %123 : vector<128x128xbf16>
      %c128 = arith.constant 128 : index
      %c0_46 = arith.constant 0 : index
      %125 = vector.load %arg10[%c128, %c0_46] : memref<1152x128xbf16, #tpu.memory_space<vmem>>, vector<128x128xbf16>
      tpu.vector_store %arg10[%c128, %c0_46], %124 {strides = array<i32>} : memref<1152x128xbf16, #tpu.memory_space<vmem>>, vector<128x128xbf16>,
      %c0_47 = arith.constant 0 : index
      %c8 = arith.constant 8 : index
      %c0_48 = arith.constant 0 : index
      %126 = vector.load %arg6[%c0_47, %c8, %c0_48] : memref<1x36x128xi32, #tpu.memory_space<vmem>>, vector<1x1x128xi32>
      %127 = vector.shape_cast %126 : vector<1x1x128xi32> to vector<1x128xi32>
      %c0_49 = arith.constant 0 : index
      %c8_50 = arith.constant 8 : index
      %c0_51 = arith.constant 0 : index
      %128 = vector.load %arg7[%c0_49, %c8_50, %c0_51] : memref<1x36x128xbf16, #tpu.memory_space<vmem>>, vector<1x1x128xbf16>
      %129 = vector.shape_cast %128 : vector<1x1x128xbf16> to vector<1x128xbf16>
      %130 = vector.broadcast %21 : vector<128x1xi32> to vector<128x128xi32>
      %131 = vector.broadcast %127 : vector<1x128xi32> to vector<128x128xi32>
      %132 = arith.cmpi eq, %130, %131 : vector<128x128xi32>
      %133 = arith.extui %132 : vector<128x128xi1> to vector<128x128xi32>
      %134 = arith.sitofp %133 : vector<128x128xi32> to vector<128x128xf32>
      %135 = arith.truncf %134 : vector<128x128xf32> to vector<128x128xbf16>
      %136 = vector.broadcast %129 : vector<1x128xbf16> to vector<128x128xbf16>
      %137 = arith.mulf %135, %136 : vector<128x128xbf16>
      %c0_52 = arith.constant 0 : index
      %c9 = arith.constant 9 : index
      %c0_53 = arith.constant 0 : index
      %138 = vector.load %arg6[%c0_52, %c9, %c0_53] : memref<1x36x128xi32, #tpu.memory_space<vmem>>, vector<1x1x128xi32>
      %139 = vector.shape_cast %138 : vector<1x1x128xi32> to vector<1x128xi32>
      %c0_54 = arith.constant 0 : index
      %c9_55 = arith.constant 9 : index
      %c0_56 = arith.constant 0 : index
      %140 = vector.load %arg7[%c0_54, %c9_55, %c0_56] : memref<1x36x128xbf16, #tpu.memory_space<vmem>>, vector<1x1x128xbf16>
      %141 = vector.shape_cast %140 : vector<1x1x128xbf16> to vector<1x128xbf16>
      %142 = vector.broadcast %21 : vector<128x1xi32> to vector<128x128xi32>
      %143 = vector.broadcast %139 : vector<1x128xi32> to vector<128x128xi32>
      %144 = arith.cmpi eq, %142, %143 : vector<128x128xi32>
      %145 = arith.extui %144 : vector<128x128xi1> to vector<128x128xi32>
      %146 = arith.sitofp %145 : vector<128x128xi32> to vector<128x128xf32>
      %147 = arith.truncf %146 : vector<128x128xf32> to vector<128x128xbf16>
      %148 = vector.broadcast %141 : vector<1x128xbf16> to vector<128x128xbf16>
      %149 = arith.mulf %147, %148 : vector<128x128xbf16>
      %150 = arith.addf %137, %149 : vector<128x128xbf16>
      %c0_57 = arith.constant 0 : index
      %c10 = arith.constant 10 : index
      %c0_58 = arith.constant 0 : index
      %151 = vector.load %arg6[%c0_57, %c10, %c0_58] : memref<1x36x128xi32, #tpu.memory_space<vmem>>, vector<1x1x128xi32>
      %152 = vector.shape_cast %151 : vector<1x1x128xi32> to vector<1x128xi32>
      %c0_59 = arith.constant 0 : index
      %c10_60 = arith.constant 10 : index
      %c0_61 = arith.constant 0 : index
      %153 = vector.load %arg7[%c0_59, %c10_60, %c0_61] : memref<1x36x128xbf16, #tpu.memory_space<vmem>>, vector<1x1x128xbf16>
      %154 = vector.shape_cast %153 : vector<1x1x128xbf16> to vector<1x128xbf16>
      %155 = vector.broadcast %21 : vector<128x1xi32> to vector<128x128xi32>
      %156 = vector.broadcast %152 : vector<1x128xi32> to vector<128x128xi32>
      %157 = arith.cmpi eq, %155, %156 : vector<128x128xi32>
      %158 = arith.extui %157 : vector<128x128xi1> to vector<128x128xi32>
      %159 = arith.sitofp %158 : vector<128x128xi32> to vector<128x128xf32>
      %160 = arith.truncf %159 : vector<128x128xf32> to vector<128x128xbf16>
      %161 = vector.broadcast %154 : vector<1x128xbf16> to vector<128x128xbf16>
      %162 = arith.mulf %160, %161 : vector<128x128xbf16>
      %163 = arith.addf %150, %162 : vector<128x128xbf16>
      %c0_62 = arith.constant 0 : index
      %c11 = arith.constant 11 : index
      %c0_63 = arith.constant 0 : index
      %164 = vector.load %arg6[%c0_62, %c11, %c0_63] : memref<1x36x128xi32, #tpu.memory_space<vmem>>, vector<1x1x128xi32>
      %165 = vector.shape_cast %164 : vector<1x1x128xi32> to vector<1x128xi32>
      %c0_64 = arith.constant 0 : index
      %c11_65 = arith.constant 11 : index
      %c0_66 = arith.constant 0 : index
      %166 = vector.load %arg7[%c0_64, %c11_65, %c0_66] : memref<1x36x128xbf16, #tpu.memory_space<vmem>>, vector<1x1x128xbf16>
      %167 = vector.shape_cast %166 : vector<1x1x128xbf16> to vector<1x128xbf16>
      %168 = vector.broadcast %21 : vector<128x1xi32> to vector<128x128xi32>
      %169 = vector.broadcast %165 : vector<1x128xi32> to vector<128x128xi32>
      %170 = arith.cmpi eq, %168, %169 : vector<128x128xi32>
      %171 = arith.extui %170 : vector<128x128xi1> to vector<128x128xi32>
      %172 = arith.sitofp %171 : vector<128x128xi32> to vector<128x128xf32>
      %173 = arith.truncf %172 : vector<128x128xf32> to vector<128x128xbf16>
      %174 = vector.broadcast %167 : vector<1x128xbf16> to vector<128x128xbf16>
      %175 = arith.mulf %173, %174 : vector<128x128xbf16>
      %176 = arith.addf %163, %175 : vector<128x128xbf16>
      %c256 = arith.constant 256 : index
      %c0_67 = arith.constant 0 : index
      %177 = vector.load %arg10[%c256, %c0_67] : memref<1152x128xbf16, #tpu.memory_space<vmem>>, vector<128x128xbf16>
      tpu.vector_store %arg10[%c256, %c0_67], %176 {strides = array<i32>} : memref<1152x128xbf16, #tpu.memory_space<vmem>>, vector<128x128xbf16>,
      %c0_68 = arith.constant 0 : index
      %c12 = arith.constant 12 : index
      %c0_69 = arith.constant 0 : index
      %178 = vector.load %arg6[%c0_68, %c12, %c0_69] : memref<1x36x128xi32, #tpu.memory_space<vmem>>, vector<1x1x128xi32>
      %179 = vector.shape_cast %178 : vector<1x1x128xi32> to vector<1x128xi32>
      %c0_70 = arith.constant 0 : index
      %c12_71 = arith.constant 12 : index
      %c0_72 = arith.constant 0 : index
      %180 = vector.load %arg7[%c0_70, %c12_71, %c0_72] : memref<1x36x128xbf16, #tpu.memory_space<vmem>>, vector<1x1x128xbf16>
      %181 = vector.shape_cast %180 : vector<1x1x128xbf16> to vector<1x128xbf16>
      %182 = vector.broadcast %21 : vector<128x1xi32> to vector<128x128xi32>
      %183 = vector.broadcast %179 : vector<1x128xi32> to vector<128x128xi32>
      %184 = arith.cmpi eq, %182, %183 : vector<128x128xi32>
      %185 = arith.extui %184 : vector<128x128xi1> to vector<128x128xi32>
      %186 = arith.sitofp %185 : vector<128x128xi32> to vector<128x128xf32>
      %187 = arith.truncf %186 : vector<128x128xf32> to vector<128x128xbf16>
      %188 = vector.broadcast %181 : vector<1x128xbf16> to vector<128x128xbf16>
      %189 = arith.mulf %187, %188 : vector<128x128xbf16>
      %c0_73 = arith.constant 0 : index
      %c13 = arith.constant 13 : index
      %c0_74 = arith.constant 0 : index
      %190 = vector.load %arg6[%c0_73, %c13, %c0_74] : memref<1x36x128xi32, #tpu.memory_space<vmem>>, vector<1x1x128xi32>
      %191 = vector.shape_cast %190 : vector<1x1x128xi32> to vector<1x128xi32>
      %c0_75 = arith.constant 0 : index
      %c13_76 = arith.constant 13 : index
      %c0_77 = arith.constant 0 : index
      %192 = vector.load %arg7[%c0_75, %c13_76, %c0_77] : memref<1x36x128xbf16, #tpu.memory_space<vmem>>, vector<1x1x128xbf16>
      %193 = vector.shape_cast %192 : vector<1x1x128xbf16> to vector<1x128xbf16>
      %194 = vector.broadcast %21 : vector<128x1xi32> to vector<128x128xi32>
      %195 = vector.broadcast %191 : vector<1x128xi32> to vector<128x128xi32>
      %196 = arith.cmpi eq, %194, %195 : vector<128x128xi32>
      %197 = arith.extui %196 : vector<128x128xi1> to vector<128x128xi32>
      %198 = arith.sitofp %197 : vector<128x128xi32> to vector<128x128xf32>
      %199 = arith.truncf %198 : vector<128x128xf32> to vector<128x128xbf16>
      %200 = vector.broadcast %193 : vector<1x128xbf16> to vector<128x128xbf16>
      %201 = arith.mulf %199, %200 : vector<128x128xbf16>
      %202 = arith.addf %189, %201 : vector<128x128xbf16>
      %c0_78 = arith.constant 0 : index
      %c14 = arith.constant 14 : index
      %c0_79 = arith.constant 0 : index
      %203 = vector.load %arg6[%c0_78, %c14, %c0_79] : memref<1x36x128xi32, #tpu.memory_space<vmem>>, vector<1x1x128xi32>
      %204 = vector.shape_cast %203 : vector<1x1x128xi32> to vector<1x128xi32>
      %c0_80 = arith.constant 0 : index
      %c14_81 = arith.constant 14 : index
      %c0_82 = arith.constant 0 : index
      %205 = vector.load %arg7[%c0_80, %c14_81, %c0_82] : memref<1x36x128xbf16, #tpu.memory_space<vmem>>, vector<1x1x128xbf16>
      %206 = vector.shape_cast %205 : vector<1x1x128xbf16> to vector<1x128xbf16>
      %207 = vector.broadcast %21 : vector<128x1xi32> to vector<128x128xi32>
      %208 = vector.broadcast %204 : vector<1x128xi32> to vector<128x128xi32>
      %209 = arith.cmpi eq, %207, %208 : vector<128x128xi32>
      %210 = arith.extui %209 : vector<128x128xi1> to vector<128x128xi32>
      %211 = arith.sitofp %210 : vector<128x128xi32> to vector<128x128xf32>
      %212 = arith.truncf %211 : vector<128x128xf32> to vector<128x128xbf16>
      %213 = vector.broadcast %206 : vector<1x128xbf16> to vector<128x128xbf16>
      %214 = arith.mulf %212, %213 : vector<128x128xbf16>
      %215 = arith.addf %202, %214 : vector<128x128xbf16>
      %c0_83 = arith.constant 0 : index
      %c15 = arith.constant 15 : index
      %c0_84 = arith.constant 0 : index
      %216 = vector.load %arg6[%c0_83, %c15, %c0_84] : memref<1x36x128xi32, #tpu.memory_space<vmem>>, vector<1x1x128xi32>
      %217 = vector.shape_cast %216 : vector<1x1x128xi32> to vector<1x128xi32>
      %c0_85 = arith.constant 0 : index
      %c15_86 = arith.constant 15 : index
      %c0_87 = arith.constant 0 : index
      %218 = vector.load %arg7[%c0_85, %c15_86, %c0_87] : memref<1x36x128xbf16, #tpu.memory_space<vmem>>, vector<1x1x128xbf16>
      %219 = vector.shape_cast %218 : vector<1x1x128xbf16> to vector<1x128xbf16>
      %220 = vector.broadcast %21 : vector<128x1xi32> to vector<128x128xi32>
      %221 = vector.broadcast %217 : vector<1x128xi32> to vector<128x128xi32>
      %222 = arith.cmpi eq, %220, %221 : vector<128x128xi32>
      %223 = arith.extui %222 : vector<128x128xi1> to vector<128x128xi32>
      %224 = arith.sitofp %223 : vector<128x128xi32> to vector<128x128xf32>
      %225 = arith.truncf %224 : vector<128x128xf32> to vector<128x128xbf16>
      %226 = vector.broadcast %219 : vector<1x128xbf16> to vector<128x128xbf16>
      %227 = arith.mulf %225, %226 : vector<128x128xbf16>
      %228 = arith.addf %215, %227 : vector<128x128xbf16>
      %c384 = arith.constant 384 : index
      %c0_88 = arith.constant 0 : index
      %229 = vector.load %arg10[%c384, %c0_88] : memref<1152x128xbf16, #tpu.memory_space<vmem>>, vector<128x128xbf16>
      tpu.vector_store %arg10[%c384, %c0_88], %228 {strides = array<i32>} : memref<1152x128xbf16, #tpu.memory_space<vmem>>, vector<128x128xbf16>,
      %c0_89 = arith.constant 0 : index
      %c16 = arith.constant 16 : index
      %c0_90 = arith.constant 0 : index
      %230 = vector.load %arg6[%c0_89, %c16, %c0_90] : memref<1x36x128xi32, #tpu.memory_space<vmem>>, vector<1x1x128xi32>
      %231 = vector.shape_cast %230 : vector<1x1x128xi32> to vector<1x128xi32>
      %c0_91 = arith.constant 0 : index
      %c16_92 = arith.constant 16 : index
      %c0_93 = arith.constant 0 : index
      %232 = vector.load %arg7[%c0_91, %c16_92, %c0_93] : memref<1x36x128xbf16, #tpu.memory_space<vmem>>, vector<1x1x128xbf16>
      %233 = vector.shape_cast %232 : vector<1x1x128xbf16> to vector<1x128xbf16>
      %234 = vector.broadcast %21 : vector<128x1xi32> to vector<128x128xi32>
      %235 = vector.broadcast %231 : vector<1x128xi32> to vector<128x128xi32>
      %236 = arith.cmpi eq, %234, %235 : vector<128x128xi32>
      %237 = arith.extui %236 : vector<128x128xi1> to vector<128x128xi32>
      %238 = arith.sitofp %237 : vector<128x128xi32> to vector<128x128xf32>
      %239 = arith.truncf %238 : vector<128x128xf32> to vector<128x128xbf16>
      %240 = vector.broadcast %233 : vector<1x128xbf16> to vector<128x128xbf16>
      %241 = arith.mulf %239, %240 : vector<128x128xbf16>
      %c0_94 = arith.constant 0 : index
      %c17 = arith.constant 17 : index
      %c0_95 = arith.constant 0 : index
      %242 = vector.load %arg6[%c0_94, %c17, %c0_95] : memref<1x36x128xi32, #tpu.memory_space<vmem>>, vector<1x1x128xi32>
      %243 = vector.shape_cast %242 : vector<1x1x128xi32> to vector<1x128xi32>
      %c0_96 = arith.constant 0 : index
      %c17_97 = arith.constant 17 : index
      %c0_98 = arith.constant 0 : index
      %244 = vector.load %arg7[%c0_96, %c17_97, %c0_98] : memref<1x36x128xbf16, #tpu.memory_space<vmem>>, vector<1x1x128xbf16>
      %245 = vector.shape_cast %244 : vector<1x1x128xbf16> to vector<1x128xbf16>
      %246 = vector.broadcast %21 : vector<128x1xi32> to vector<128x128xi32>
      %247 = vector.broadcast %243 : vector<1x128xi32> to vector<128x128xi32>
      %248 = arith.cmpi eq, %246, %247 : vector<128x128xi32>
      %249 = arith.extui %248 : vector<128x128xi1> to vector<128x128xi32>
      %250 = arith.sitofp %249 : vector<128x128xi32> to vector<128x128xf32>
      %251 = arith.truncf %250 : vector<128x128xf32> to vector<128x128xbf16>
      %252 = vector.broadcast %245 : vector<1x128xbf16> to vector<128x128xbf16>
      %253 = arith.mulf %251, %252 : vector<128x128xbf16>
      %254 = arith.addf %241, %253 : vector<128x128xbf16>
      %c0_99 = arith.constant 0 : index
      %c18 = arith.constant 18 : index
      %c0_100 = arith.constant 0 : index
      %255 = vector.load %arg6[%c0_99, %c18, %c0_100] : memref<1x36x128xi32, #tpu.memory_space<vmem>>, vector<1x1x128xi32>
      %256 = vector.shape_cast %255 : vector<1x1x128xi32> to vector<1x128xi32>
      %c0_101 = arith.constant 0 : index
      %c18_102 = arith.constant 18 : index
      %c0_103 = arith.constant 0 : index
      %257 = vector.load %arg7[%c0_101, %c18_102, %c0_103] : memref<1x36x128xbf16, #tpu.memory_space<vmem>>, vector<1x1x128xbf16>
      %258 = vector.shape_cast %257 : vector<1x1x128xbf16> to vector<1x128xbf16>
      %259 = vector.broadcast %21 : vector<128x1xi32> to vector<128x128xi32>
      %260 = vector.broadcast %256 : vector<1x128xi32> to vector<128x128xi32>
      %261 = arith.cmpi eq, %259, %260 : vector<128x128xi32>
      %262 = arith.extui %261 : vector<128x128xi1> to vector<128x128xi32>
      %263 = arith.sitofp %262 : vector<128x128xi32> to vector<128x128xf32>
      %264 = arith.truncf %263 : vector<128x128xf32> to vector<128x128xbf16>
      %265 = vector.broadcast %258 : vector<1x128xbf16> to vector<128x128xbf16>
      %266 = arith.mulf %264, %265 : vector<128x128xbf16>
      %267 = arith.addf %254, %266 : vector<128x128xbf16>
      %c0_104 = arith.constant 0 : index
      %c19 = arith.constant 19 : index
      %c0_105 = arith.constant 0 : index
      %268 = vector.load %arg6[%c0_104, %c19, %c0_105] : memref<1x36x128xi32, #tpu.memory_space<vmem>>, vector<1x1x128xi32>
      %269 = vector.shape_cast %268 : vector<1x1x128xi32> to vector<1x128xi32>
      %c0_106 = arith.constant 0 : index
      %c19_107 = arith.constant 19 : index
      %c0_108 = arith.constant 0 : index
      %270 = vector.load %arg7[%c0_106, %c19_107, %c0_108] : memref<1x36x128xbf16, #tpu.memory_space<vmem>>, vector<1x1x128xbf16>
      %271 = vector.shape_cast %270 : vector<1x1x128xbf16> to vector<1x128xbf16>
      %272 = vector.broadcast %21 : vector<128x1xi32> to vector<128x128xi32>
      %273 = vector.broadcast %269 : vector<1x128xi32> to vector<128x128xi32>
      %274 = arith.cmpi eq, %272, %273 : vector<128x128xi32>
      %275 = arith.extui %274 : vector<128x128xi1> to vector<128x128xi32>
      %276 = arith.sitofp %275 : vector<128x128xi32> to vector<128x128xf32>
      %277 = arith.truncf %276 : vector<128x128xf32> to vector<128x128xbf16>
      %278 = vector.broadcast %271 : vector<1x128xbf16> to vector<128x128xbf16>
      %279 = arith.mulf %277, %278 : vector<128x128xbf16>
      %280 = arith.addf %267, %279 : vector<128x128xbf16>
      %c512 = arith.constant 512 : index
      %c0_109 = arith.constant 0 : index
      %281 = vector.load %arg10[%c512, %c0_109] : memref<1152x128xbf16, #tpu.memory_space<vmem>>, vector<128x128xbf16>
      tpu.vector_store %arg10[%c512, %c0_109], %280 {strides = array<i32>} : memref<1152x128xbf16, #tpu.memory_space<vmem>>, vector<128x128xbf16>,
      %c0_110 = arith.constant 0 : index
      %c20 = arith.constant 20 : index
      %c0_111 = arith.constant 0 : index
      %282 = vector.load %arg6[%c0_110, %c20, %c0_111] : memref<1x36x128xi32, #tpu.memory_space<vmem>>, vector<1x1x128xi32>
      %283 = vector.shape_cast %282 : vector<1x1x128xi32> to vector<1x128xi32>
      %c0_112 = arith.constant 0 : index
      %c20_113 = arith.constant 20 : index
      %c0_114 = arith.constant 0 : index
      %284 = vector.load %arg7[%c0_112, %c20_113, %c0_114] : memref<1x36x128xbf16, #tpu.memory_space<vmem>>, vector<1x1x128xbf16>
      %285 = vector.shape_cast %284 : vector<1x1x128xbf16> to vector<1x128xbf16>
      %286 = vector.broadcast %21 : vector<128x1xi32> to vector<128x128xi32>
      %287 = vector.broadcast %283 : vector<1x128xi32> to vector<128x128xi32>
      %288 = arith.cmpi eq, %286, %287 : vector<128x128xi32>
      %289 = arith.extui %288 : vector<128x128xi1> to vector<128x128xi32>
      %290 = arith.sitofp %289 : vector<128x128xi32> to vector<128x128xf32>
      %291 = arith.truncf %290 : vector<128x128xf32> to vector<128x128xbf16>
      %292 = vector.broadcast %285 : vector<1x128xbf16> to vector<128x128xbf16>
      %293 = arith.mulf %291, %292 : vector<128x128xbf16>
      %c0_115 = arith.constant 0 : index
      %c21 = arith.constant 21 : index
      %c0_116 = arith.constant 0 : index
      %294 = vector.load %arg6[%c0_115, %c21, %c0_116] : memref<1x36x128xi32, #tpu.memory_space<vmem>>, vector<1x1x128xi32>
      %295 = vector.shape_cast %294 : vector<1x1x128xi32> to vector<1x128xi32>
      %c0_117 = arith.constant 0 : index
      %c21_118 = arith.constant 21 : index
      %c0_119 = arith.constant 0 : index
      %296 = vector.load %arg7[%c0_117, %c21_118, %c0_119] : memref<1x36x128xbf16, #tpu.memory_space<vmem>>, vector<1x1x128xbf16>
      %297 = vector.shape_cast %296 : vector<1x1x128xbf16> to vector<1x128xbf16>
      %298 = vector.broadcast %21 : vector<128x1xi32> to vector<128x128xi32>
      %299 = vector.broadcast %295 : vector<1x128xi32> to vector<128x128xi32>
      %300 = arith.cmpi eq, %298, %299 : vector<128x128xi32>
      %301 = arith.extui %300 : vector<128x128xi1> to vector<128x128xi32>
      %302 = arith.sitofp %301 : vector<128x128xi32> to vector<128x128xf32>
      %303 = arith.truncf %302 : vector<128x128xf32> to vector<128x128xbf16>
      %304 = vector.broadcast %297 : vector<1x128xbf16> to vector<128x128xbf16>
      %305 = arith.mulf %303, %304 : vector<128x128xbf16>
      %306 = arith.addf %293, %305 : vector<128x128xbf16>
      %c0_120 = arith.constant 0 : index
      %c22 = arith.constant 22 : index
      %c0_121 = arith.constant 0 : index
      %307 = vector.load %arg6[%c0_120, %c22, %c0_121] : memref<1x36x128xi32, #tpu.memory_space<vmem>>, vector<1x1x128xi32>
      %308 = vector.shape_cast %307 : vector<1x1x128xi32> to vector<1x128xi32>
      %c0_122 = arith.constant 0 : index
      %c22_123 = arith.constant 22 : index
      %c0_124 = arith.constant 0 : index
      %309 = vector.load %arg7[%c0_122, %c22_123, %c0_124] : memref<1x36x128xbf16, #tpu.memory_space<vmem>>, vector<1x1x128xbf16>
      %310 = vector.shape_cast %309 : vector<1x1x128xbf16> to vector<1x128xbf16>
      %311 = vector.broadcast %21 : vector<128x1xi32> to vector<128x128xi32>
      %312 = vector.broadcast %308 : vector<1x128xi32> to vector<128x128xi32>
      %313 = arith.cmpi eq, %311, %312 : vector<128x128xi32>
      %314 = arith.extui %313 : vector<128x128xi1> to vector<128x128xi32>
      %315 = arith.sitofp %314 : vector<128x128xi32> to vector<128x128xf32>
      %316 = arith.truncf %315 : vector<128x128xf32> to vector<128x128xbf16>
      %317 = vector.broadcast %310 : vector<1x128xbf16> to vector<128x128xbf16>
      %318 = arith.mulf %316, %317 : vector<128x128xbf16>
      %319 = arith.addf %306, %318 : vector<128x128xbf16>
      %c0_125 = arith.constant 0 : index
      %c23 = arith.constant 23 : index
      %c0_126 = arith.constant 0 : index
      %320 = vector.load %arg6[%c0_125, %c23, %c0_126] : memref<1x36x128xi32, #tpu.memory_space<vmem>>, vector<1x1x128xi32>
      %321 = vector.shape_cast %320 : vector<1x1x128xi32> to vector<1x128xi32>
      %c0_127 = arith.constant 0 : index
      %c23_128 = arith.constant 23 : index
      %c0_129 = arith.constant 0 : index
      %322 = vector.load %arg7[%c0_127, %c23_128, %c0_129] : memref<1x36x128xbf16, #tpu.memory_space<vmem>>, vector<1x1x128xbf16>
      %323 = vector.shape_cast %322 : vector<1x1x128xbf16> to vector<1x128xbf16>
      %324 = vector.broadcast %21 : vector<128x1xi32> to vector<128x128xi32>
      %325 = vector.broadcast %321 : vector<1x128xi32> to vector<128x128xi32>
      %326 = arith.cmpi eq, %324, %325 : vector<128x128xi32>
      %327 = arith.extui %326 : vector<128x128xi1> to vector<128x128xi32>
      %328 = arith.sitofp %327 : vector<128x128xi32> to vector<128x128xf32>
      %329 = arith.truncf %328 : vector<128x128xf32> to vector<128x128xbf16>
      %330 = vector.broadcast %323 : vector<1x128xbf16> to vector<128x128xbf16>
      %331 = arith.mulf %329, %330 : vector<128x128xbf16>
      %332 = arith.addf %319, %331 : vector<128x128xbf16>
      %c640 = arith.constant 640 : index
      %c0_130 = arith.constant 0 : index
      %333 = vector.load %arg10[%c640, %c0_130] : memref<1152x128xbf16, #tpu.memory_space<vmem>>, vector<128x128xbf16>
      tpu.vector_store %arg10[%c640, %c0_130], %332 {strides = array<i32>} : memref<1152x128xbf16, #tpu.memory_space<vmem>>, vector<128x128xbf16>,
      %c0_131 = arith.constant 0 : index
      %c24 = arith.constant 24 : index
      %c0_132 = arith.constant 0 : index
      %334 = vector.load %arg6[%c0_131, %c24, %c0_132] : memref<1x36x128xi32, #tpu.memory_space<vmem>>, vector<1x1x128xi32>
      %335 = vector.shape_cast %334 : vector<1x1x128xi32> to vector<1x128xi32>
      %c0_133 = arith.constant 0 : index
      %c24_134 = arith.constant 24 : index
      %c0_135 = arith.constant 0 : index
      %336 = vector.load %arg7[%c0_133, %c24_134, %c0_135] : memref<1x36x128xbf16, #tpu.memory_space<vmem>>, vector<1x1x128xbf16>
      %337 = vector.shape_cast %336 : vector<1x1x128xbf16> to vector<1x128xbf16>
      %338 = vector.broadcast %21 : vector<128x1xi32> to vector<128x128xi32>
      %339 = vector.broadcast %335 : vector<1x128xi32> to vector<128x128xi32>
      %340 = arith.cmpi eq, %338, %339 : vector<128x128xi32>
      %341 = arith.extui %340 : vector<128x128xi1> to vector<128x128xi32>
      %342 = arith.sitofp %341 : vector<128x128xi32> to vector<128x128xf32>
      %343 = arith.truncf %342 : vector<128x128xf32> to vector<128x128xbf16>
      %344 = vector.broadcast %337 : vector<1x128xbf16> to vector<128x128xbf16>
      %345 = arith.mulf %343, %344 : vector<128x128xbf16>
      %c0_136 = arith.constant 0 : index
      %c25 = arith.constant 25 : index
      %c0_137 = arith.constant 0 : index
      %346 = vector.load %arg6[%c0_136, %c25, %c0_137] : memref<1x36x128xi32, #tpu.memory_space<vmem>>, vector<1x1x128xi32>
      %347 = vector.shape_cast %346 : vector<1x1x128xi32> to vector<1x128xi32>
      %c0_138 = arith.constant 0 : index
      %c25_139 = arith.constant 25 : index
      %c0_140 = arith.constant 0 : index
      %348 = vector.load %arg7[%c0_138, %c25_139, %c0_140] : memref<1x36x128xbf16, #tpu.memory_space<vmem>>, vector<1x1x128xbf16>
      %349 = vector.shape_cast %348 : vector<1x1x128xbf16> to vector<1x128xbf16>
      %350 = vector.broadcast %21 : vector<128x1xi32> to vector<128x128xi32>
      %351 = vector.broadcast %347 : vector<1x128xi32> to vector<128x128xi32>
      %352 = arith.cmpi eq, %350, %351 : vector<128x128xi32>
      %353 = arith.extui %352 : vector<128x128xi1> to vector<128x128xi32>
      %354 = arith.sitofp %353 : vector<128x128xi32> to vector<128x128xf32>
      %355 = arith.truncf %354 : vector<128x128xf32> to vector<128x128xbf16>
      %356 = vector.broadcast %349 : vector<1x128xbf16> to vector<128x128xbf16>
      %357 = arith.mulf %355, %356 : vector<128x128xbf16>
      %358 = arith.addf %345, %357 : vector<128x128xbf16>
      %c0_141 = arith.constant 0 : index
      %c26 = arith.constant 26 : index
      %c0_142 = arith.constant 0 : index
      %359 = vector.load %arg6[%c0_141, %c26, %c0_142] : memref<1x36x128xi32, #tpu.memory_space<vmem>>, vector<1x1x128xi32>
      %360 = vector.shape_cast %359 : vector<1x1x128xi32> to vector<1x128xi32>
      %c0_143 = arith.constant 0 : index
      %c26_144 = arith.constant 26 : index
      %c0_145 = arith.constant 0 : index
      %361 = vector.load %arg7[%c0_143, %c26_144, %c0_145] : memref<1x36x128xbf16, #tpu.memory_space<vmem>>, vector<1x1x128xbf16>
      %362 = vector.shape_cast %361 : vector<1x1x128xbf16> to vector<1x128xbf16>
      %363 = vector.broadcast %21 : vector<128x1xi32> to vector<128x128xi32>
      %364 = vector.broadcast %360 : vector<1x128xi32> to vector<128x128xi32>
      %365 = arith.cmpi eq, %363, %364 : vector<128x128xi32>
      %366 = arith.extui %365 : vector<128x128xi1> to vector<128x128xi32>
      %367 = arith.sitofp %366 : vector<128x128xi32> to vector<128x128xf32>
      %368 = arith.truncf %367 : vector<128x128xf32> to vector<128x128xbf16>
      %369 = vector.broadcast %362 : vector<1x128xbf16> to vector<128x128xbf16>
      %370 = arith.mulf %368, %369 : vector<128x128xbf16>
      %371 = arith.addf %358, %370 : vector<128x128xbf16>
      %c0_146 = arith.constant 0 : index
      %c27 = arith.constant 27 : index
      %c0_147 = arith.constant 0 : index
      %372 = vector.load %arg6[%c0_146, %c27, %c0_147] : memref<1x36x128xi32, #tpu.memory_space<vmem>>, vector<1x1x128xi32>
      %373 = vector.shape_cast %372 : vector<1x1x128xi32> to vector<1x128xi32>
      %c0_148 = arith.constant 0 : index
      %c27_149 = arith.constant 27 : index
      %c0_150 = arith.constant 0 : index
      %374 = vector.load %arg7[%c0_148, %c27_149, %c0_150] : memref<1x36x128xbf16, #tpu.memory_space<vmem>>, vector<1x1x128xbf16>
      %375 = vector.shape_cast %374 : vector<1x1x128xbf16> to vector<1x128xbf16>
      %376 = vector.broadcast %21 : vector<128x1xi32> to vector<128x128xi32>
      %377 = vector.broadcast %373 : vector<1x128xi32> to vector<128x128xi32>
      %378 = arith.cmpi eq, %376, %377 : vector<128x128xi32>
      %379 = arith.extui %378 : vector<128x128xi1> to vector<128x128xi32>
      %380 = arith.sitofp %379 : vector<128x128xi32> to vector<128x128xf32>
      %381 = arith.truncf %380 : vector<128x128xf32> to vector<128x128xbf16>
      %382 = vector.broadcast %375 : vector<1x128xbf16> to vector<128x128xbf16>
      %383 = arith.mulf %381, %382 : vector<128x128xbf16>
      %384 = arith.addf %371, %383 : vector<128x128xbf16>
      %c768 = arith.constant 768 : index
      %c0_151 = arith.constant 0 : index
      %385 = vector.load %arg10[%c768, %c0_151] : memref<1152x128xbf16, #tpu.memory_space<vmem>>, vector<128x128xbf16>
      tpu.vector_store %arg10[%c768, %c0_151], %384 {strides = array<i32>} : memref<1152x128xbf16, #tpu.memory_space<vmem>>, vector<128x128xbf16>,
      %c0_152 = arith.constant 0 : index
      %c28 = arith.constant 28 : index
      %c0_153 = arith.constant 0 : index
      %386 = vector.load %arg6[%c0_152, %c28, %c0_153] : memref<1x36x128xi32, #tpu.memory_space<vmem>>, vector<1x1x128xi32>
      %387 = vector.shape_cast %386 : vector<1x1x128xi32> to vector<1x128xi32>
      %c0_154 = arith.constant 0 : index
      %c28_155 = arith.constant 28 : index
      %c0_156 = arith.constant 0 : index
      %388 = vector.load %arg7[%c0_154, %c28_155, %c0_156] : memref<1x36x128xbf16, #tpu.memory_space<vmem>>, vector<1x1x128xbf16>
      %389 = vector.shape_cast %388 : vector<1x1x128xbf16> to vector<1x128xbf16>
      %390 = vector.broadcast %21 : vector<128x1xi32> to vector<128x128xi32>
      %391 = vector.broadcast %387 : vector<1x128xi32> to vector<128x128xi32>
      %392 = arith.cmpi eq, %390, %391 : vector<128x128xi32>
      %393 = arith.extui %392 : vector<128x128xi1> to vector<128x128xi32>
      %394 = arith.sitofp %393 : vector<128x128xi32> to vector<128x128xf32>
      %395 = arith.truncf %394 : vector<128x128xf32> to vector<128x128xbf16>
      %396 = vector.broadcast %389 : vector<1x128xbf16> to vector<128x128xbf16>
      %397 = arith.mulf %395, %396 : vector<128x128xbf16>
      %c0_157 = arith.constant 0 : index
      %c29 = arith.constant 29 : index
      %c0_158 = arith.constant 0 : index
      %398 = vector.load %arg6[%c0_157, %c29, %c0_158] : memref<1x36x128xi32, #tpu.memory_space<vmem>>, vector<1x1x128xi32>
      %399 = vector.shape_cast %398 : vector<1x1x128xi32> to vector<1x128xi32>
      %c0_159 = arith.constant 0 : index
      %c29_160 = arith.constant 29 : index
      %c0_161 = arith.constant 0 : index
      %400 = vector.load %arg7[%c0_159, %c29_160, %c0_161] : memref<1x36x128xbf16, #tpu.memory_space<vmem>>, vector<1x1x128xbf16>
      %401 = vector.shape_cast %400 : vector<1x1x128xbf16> to vector<1x128xbf16>
      %402 = vector.broadcast %21 : vector<128x1xi32> to vector<128x128xi32>
      %403 = vector.broadcast %399 : vector<1x128xi32> to vector<128x128xi32>
      %404 = arith.cmpi eq, %402, %403 : vector<128x128xi32>
      %405 = arith.extui %404 : vector<128x128xi1> to vector<128x128xi32>
      %406 = arith.sitofp %405 : vector<128x128xi32> to vector<128x128xf32>
      %407 = arith.truncf %406 : vector<128x128xf32> to vector<128x128xbf16>
      %408 = vector.broadcast %401 : vector<1x128xbf16> to vector<128x128xbf16>
      %409 = arith.mulf %407, %408 : vector<128x128xbf16>
      %410 = arith.addf %397, %409 : vector<128x128xbf16>
      %c0_162 = arith.constant 0 : index
      %c30 = arith.constant 30 : index
      %c0_163 = arith.constant 0 : index
      %411 = vector.load %arg6[%c0_162, %c30, %c0_163] : memref<1x36x128xi32, #tpu.memory_space<vmem>>, vector<1x1x128xi32>
      %412 = vector.shape_cast %411 : vector<1x1x128xi32> to vector<1x128xi32>
      %c0_164 = arith.constant 0 : index
      %c30_165 = arith.constant 30 : index
      %c0_166 = arith.constant 0 : index
      %413 = vector.load %arg7[%c0_164, %c30_165, %c0_166] : memref<1x36x128xbf16, #tpu.memory_space<vmem>>, vector<1x1x128xbf16>
      %414 = vector.shape_cast %413 : vector<1x1x128xbf16> to vector<1x128xbf16>
      %415 = vector.broadcast %21 : vector<128x1xi32> to vector<128x128xi32>
      %416 = vector.broadcast %412 : vector<1x128xi32> to vector<128x128xi32>
      %417 = arith.cmpi eq, %415, %416 : vector<128x128xi32>
      %418 = arith.extui %417 : vector<128x128xi1> to vector<128x128xi32>
      %419 = arith.sitofp %418 : vector<128x128xi32> to vector<128x128xf32>
      %420 = arith.truncf %419 : vector<128x128xf32> to vector<128x128xbf16>
      %421 = vector.broadcast %414 : vector<1x128xbf16> to vector<128x128xbf16>
      %422 = arith.mulf %420, %421 : vector<128x128xbf16>
      %423 = arith.addf %410, %422 : vector<128x128xbf16>
      %c0_167 = arith.constant 0 : index
      %c31 = arith.constant 31 : index
      %c0_168 = arith.constant 0 : index
      %424 = vector.load %arg6[%c0_167, %c31, %c0_168] : memref<1x36x128xi32, #tpu.memory_space<vmem>>, vector<1x1x128xi32>
      %425 = vector.shape_cast %424 : vector<1x1x128xi32> to vector<1x128xi32>
      %c0_169 = arith.constant 0 : index
      %c31_170 = arith.constant 31 : index
      %c0_171 = arith.constant 0 : index
      %426 = vector.load %arg7[%c0_169, %c31_170, %c0_171] : memref<1x36x128xbf16, #tpu.memory_space<vmem>>, vector<1x1x128xbf16>
      %427 = vector.shape_cast %426 : vector<1x1x128xbf16> to vector<1x128xbf16>
      %428 = vector.broadcast %21 : vector<128x1xi32> to vector<128x128xi32>
      %429 = vector.broadcast %425 : vector<1x128xi32> to vector<128x128xi32>
      %430 = arith.cmpi eq, %428, %429 : vector<128x128xi32>
      %431 = arith.extui %430 : vector<128x128xi1> to vector<128x128xi32>
      %432 = arith.sitofp %431 : vector<128x128xi32> to vector<128x128xf32>
      %433 = arith.truncf %432 : vector<128x128xf32> to vector<128x128xbf16>
      %434 = vector.broadcast %427 : vector<1x128xbf16> to vector<128x128xbf16>
      %435 = arith.mulf %433, %434 : vector<128x128xbf16>
      %436 = arith.addf %423, %435 : vector<128x128xbf16>
      %c896 = arith.constant 896 : index
      %c0_172 = arith.constant 0 : index
      %437 = vector.load %arg10[%c896, %c0_172] : memref<1152x128xbf16, #tpu.memory_space<vmem>>, vector<128x128xbf16>
      tpu.vector_store %arg10[%c896, %c0_172], %436 {strides = array<i32>} : memref<1152x128xbf16, #tpu.memory_space<vmem>>, vector<128x128xbf16>,
      %c0_173 = arith.constant 0 : index
      %c32 = arith.constant 32 : index
      %c0_174 = arith.constant 0 : index
      %438 = vector.load %arg6[%c0_173, %c32, %c0_174] : memref<1x36x128xi32, #tpu.memory_space<vmem>>, vector<1x1x128xi32>
      %439 = vector.shape_cast %438 : vector<1x1x128xi32> to vector<1x128xi32>
      %c0_175 = arith.constant 0 : index
      %c32_176 = arith.constant 32 : index
      %c0_177 = arith.constant 0 : index
      %440 = vector.load %arg7[%c0_175, %c32_176, %c0_177] : memref<1x36x128xbf16, #tpu.memory_space<vmem>>, vector<1x1x128xbf16>
      %441 = vector.shape_cast %440 : vector<1x1x128xbf16> to vector<1x128xbf16>
      %442 = vector.broadcast %21 : vector<128x1xi32> to vector<128x128xi32>
      %443 = vector.broadcast %439 : vector<1x128xi32> to vector<128x128xi32>
      %444 = arith.cmpi eq, %442, %443 : vector<128x128xi32>
      %445 = arith.extui %444 : vector<128x128xi1> to vector<128x128xi32>
      %446 = arith.sitofp %445 : vector<128x128xi32> to vector<128x128xf32>
      %447 = arith.truncf %446 : vector<128x128xf32> to vector<128x128xbf16>
      %448 = vector.broadcast %441 : vector<1x128xbf16> to vector<128x128xbf16>
      %449 = arith.mulf %447, %448 : vector<128x128xbf16>
      %c0_178 = arith.constant 0 : index
      %c33 = arith.constant 33 : index
      %c0_179 = arith.constant 0 : index
      %450 = vector.load %arg6[%c0_178, %c33, %c0_179] : memref<1x36x128xi32, #tpu.memory_space<vmem>>, vector<1x1x128xi32>
      %451 = vector.shape_cast %450 : vector<1x1x128xi32> to vector<1x128xi32>
      %c0_180 = arith.constant 0 : index
      %c33_181 = arith.constant 33 : index
      %c0_182 = arith.constant 0 : index
      %452 = vector.load %arg7[%c0_180, %c33_181, %c0_182] : memref<1x36x128xbf16, #tpu.memory_space<vmem>>, vector<1x1x128xbf16>
      %453 = vector.shape_cast %452 : vector<1x1x128xbf16> to vector<1x128xbf16>
      %454 = vector.broadcast %21 : vector<128x1xi32> to vector<128x128xi32>
      %455 = vector.broadcast %451 : vector<1x128xi32> to vector<128x128xi32>
      %456 = arith.cmpi eq, %454, %455 : vector<128x128xi32>
      %457 = arith.extui %456 : vector<128x128xi1> to vector<128x128xi32>
      %458 = arith.sitofp %457 : vector<128x128xi32> to vector<128x128xf32>
      %459 = arith.truncf %458 : vector<128x128xf32> to vector<128x128xbf16>
      %460 = vector.broadcast %453 : vector<1x128xbf16> to vector<128x128xbf16>
      %461 = arith.mulf %459, %460 : vector<128x128xbf16>
      %462 = arith.addf %449, %461 : vector<128x128xbf16>
      %c0_183 = arith.constant 0 : index
      %c34 = arith.constant 34 : index
      %c0_184 = arith.constant 0 : index
      %463 = vector.load %arg6[%c0_183, %c34, %c0_184] : memref<1x36x128xi32, #tpu.memory_space<vmem>>, vector<1x1x128xi32>
      %464 = vector.shape_cast %463 : vector<1x1x128xi32> to vector<1x128xi32>
      %c0_185 = arith.constant 0 : index
      %c34_186 = arith.constant 34 : index
      %c0_187 = arith.constant 0 : index
      %465 = vector.load %arg7[%c0_185, %c34_186, %c0_187] : memref<1x36x128xbf16, #tpu.memory_space<vmem>>, vector<1x1x128xbf16>
      %466 = vector.shape_cast %465 : vector<1x1x128xbf16> to vector<1x128xbf16>
      %467 = vector.broadcast %21 : vector<128x1xi32> to vector<128x128xi32>
      %468 = vector.broadcast %464 : vector<1x128xi32> to vector<128x128xi32>
      %469 = arith.cmpi eq, %467, %468 : vector<128x128xi32>
      %470 = arith.extui %469 : vector<128x128xi1> to vector<128x128xi32>
      %471 = arith.sitofp %470 : vector<128x128xi32> to vector<128x128xf32>
      %472 = arith.truncf %471 : vector<128x128xf32> to vector<128x128xbf16>
      %473 = vector.broadcast %466 : vector<1x128xbf16> to vector<128x128xbf16>
      %474 = arith.mulf %472, %473 : vector<128x128xbf16>
      %475 = arith.addf %462, %474 : vector<128x128xbf16>
      %c0_188 = arith.constant 0 : index
      %c35 = arith.constant 35 : index
      %c0_189 = arith.constant 0 : index
      %476 = vector.load %arg6[%c0_188, %c35, %c0_189] : memref<1x36x128xi32, #tpu.memory_space<vmem>>, vector<1x1x128xi32>
      %477 = vector.shape_cast %476 : vector<1x1x128xi32> to vector<1x128xi32>
      %c0_190 = arith.constant 0 : index
      %c35_191 = arith.constant 35 : index
      %c0_192 = arith.constant 0 : index
      %478 = vector.load %arg7[%c0_190, %c35_191, %c0_192] : memref<1x36x128xbf16, #tpu.memory_space<vmem>>, vector<1x1x128xbf16>
      %479 = vector.shape_cast %478 : vector<1x1x128xbf16> to vector<1x128xbf16>
      %480 = vector.broadcast %21 : vector<128x1xi32> to vector<128x128xi32>
      %481 = vector.broadcast %477 : vector<1x128xi32> to vector<128x128xi32>
      %482 = arith.cmpi eq, %480, %481 : vector<128x128xi32>
      %483 = arith.extui %482 : vector<128x128xi1> to vector<128x128xi32>
      %484 = arith.sitofp %483 : vector<128x128xi32> to vector<128x128xf32>
      %485 = arith.truncf %484 : vector<128x128xf32> to vector<128x128xbf16>
      %486 = vector.broadcast %479 : vector<1x128xbf16> to vector<128x128xbf16>
      %487 = arith.mulf %485, %486 : vector<128x128xbf16>
      %488 = arith.addf %475, %487 : vector<128x128xbf16>
      %c1024 = arith.constant 1024 : index
      %c0_193 = arith.constant 0 : index
      %489 = vector.load %arg10[%c1024, %c0_193] : memref<1152x128xbf16, #tpu.memory_space<vmem>>, vector<128x128xbf16>
      tpu.vector_store %arg10[%c1024, %c0_193], %488 {strides = array<i32>} : memref<1152x128xbf16, #tpu.memory_space<vmem>>, vector<128x128xbf16>,
      %c0_194 = arith.constant 0 : index
      %c0_195 = arith.constant 0 : index
      %490 = vector.load %arg9[%c0_194, %c0_195] : memref<8x128xf32, #tpu.memory_space<vmem>>, vector<8x128xf32>
      %c0_196 = arith.constant 0 : index
      %c0_197 = arith.constant 0 : index
      %c0_198 = arith.constant 0 : index
      %491 = vector.load %arg5[%c0_196, %c0_197, %c0_198] : memref<1x8x1152xbf16, #tpu.memory_space<vmem>>, vector<1x8x1152xbf16>
      %492 = vector.shape_cast %491 : vector<1x8x1152xbf16> to vector<8x1152xbf16>
      %c0_199 = arith.constant 0 : index
      %c0_200 = arith.constant 0 : index
      %493 = vector.load %arg10[%c0_199, %c0_200] : memref<1152x128xbf16, #tpu.memory_space<vmem>>, vector<1152x128xbf16>
      %cst = arith.constant dense<0.000000e+00> : vector<8x128xf32>
      %494 = tpu.matmul %492, %493, %cst {dimension_numbers = #tpu.dot_dimension_numbers<[1], [0], [0], [1], [0, 0, 1, 1], [], []>} : vector<8x1152xbf16>, vector<1152x128xbf16>, vector<8x128xf32> -> vector<8x128xf32>
      %495 = arith.addf %490, %494 : vector<8x128xf32>
      %c0_201 = arith.constant 0 : index
      %c0_202 = arith.constant 0 : index
      %496 = vector.load %arg9[%c0_201, %c0_202] : memref<8x128xf32, #tpu.memory_space<vmem>>, vector<8x128xf32>
      tpu.vector_store %arg9[%c0_201, %c0_202], %495 {strides = array<i32>} : memref<8x128xf32, #tpu.memory_space<vmem>>, vector<8x128xf32>,
    } else {
    }
    %c1_i32 = arith.constant 1 : i32
    %16 = arith.cmpi eq, %arg2, %c1_i32 : i32
    %17 = arith.extui %16 : i1 to i32
    %c0_i32_3 = arith.constant 0 : i32
    %18 = arith.cmpi ne, %17, %c0_i32_3 : i32
    scf.if %18 {
      %c0 = arith.constant 0 : index
      %c0_4 = arith.constant 0 : index
      %19 = vector.load %arg9[%c0, %c0_4] : memref<8x128xf32, #tpu.memory_space<vmem>>, vector<8x128xf32>
      %c0_5 = arith.constant 0 : index
      %c0_6 = arith.constant 0 : index
      %c0_7 = arith.constant 0 : index
      %20 = vector.load %arg8[%c0_5, %c0_6, %c0_7] : memref<1x8x128xf32, #tpu.memory_space<vmem>>, vector<1x8x128xf32>
      %21 = vector.shape_cast %20 : vector<1x8x128xf32> to vector<8x128xf32>
      %22 = vector.shape_cast %19 : vector<8x128xf32> to vector<1x8x128xf32>
      tpu.vector_store %arg8[%c0_5, %c0_6, %c0_7], %22 {strides = array<i32>} : memref<1x8x128xf32, #tpu.memory_space<vmem>>, vector<1x8x128xf32>,
    } else {
    }
    return
  }
  func.func @transform_0(%arg0: i32, %arg1: i32, %arg2: i32, %arg3: memref<2x2xi32, #tpu.memory_space<smem>>, %arg4: memref<2x2xi32, #tpu.memory_space<smem>>) -> (i32, i32, i32) {
    %c0_i32 = arith.constant 0 : i32
    %c0_i32_0 = arith.constant 0 : i32
    return %arg0, %c0_i32, %arg2 : i32, i32, i32
  }
  func.func @transform_1(%arg0: i32, %arg1: i32, %arg2: i32, %arg3: memref<2x2xi32, #tpu.memory_space<smem>>, %arg4: memref<2x2xi32, #tpu.memory_space<smem>>) -> (i32, i32, i32) {
    %c0_i32 = arith.constant 0 : i32
    %c0_i32_0 = arith.constant 0 : i32
    return %arg0, %c0_i32, %arg1 : i32, i32, i32
  }
  func.func @transform_2(%arg0: i32, %arg1: i32, %arg2: i32, %arg3: memref<2x2xi32, #tpu.memory_space<smem>>, %arg4: memref<2x2xi32, #tpu.memory_space<smem>>) -> (i32, i32, i32) {
    %c0_i32 = arith.constant 0 : i32
    %c0_i32_0 = arith.constant 0 : i32
    return %arg0, %c0_i32, %arg1 : i32, i32, i32
  }
  func.func @transform_3(%arg0: i32, %arg1: i32, %arg2: i32, %arg3: memref<2x2xi32, #tpu.memory_space<smem>>, %arg4: memref<2x2xi32, #tpu.memory_space<smem>>) -> (i32, i32, i32) {
    %c0_i32 = arith.constant 0 : i32
    %c0_i32_0 = arith.constant 0 : i32
    return %arg0, %c0_i32, %arg1 : i32, i32, i32
  }
}

</mosaic_0001>

<llo_original>
// kernel: tpu_custom_call.1
$region0: #{tpu_custom_call.1}
  #allocation0 [shape = 'u32[]', space=smem, size = 0x4, offset = 0x4, fixed_abs, tag = 'smem constant byte address 0x4 - core index']
  #allocation1 [shape = 'u32[72,128]{1,0:T(1,128)}', space=vmem, size = 0x9000, scoped, tag = 'internal scratch']
  #allocation2 [shape = 'f32[8,128]{1,0:T(8,128)}', space=vmem, size = 0x1000, scoped, tag = 'scratch operand']
  #allocation3 [shape = 'bf16[1152,128]{1,0:T(8,128)(2,1)}', space=vmem, size = 0x48000, scoped, tag = 'scratch operand']
  #allocation4 [shape = 's32[1]{0}', space=sflag, size = 0x4, scoped, tag = 'scoped memory for tpu_custom_call.1']
  #allocation5 [shape = 'u8[1024]{0}', space=smem, size = 0x400, scoped, tag = 'prefetched SMEM operand 0']
  #allocation6 [shape = 'u8[1024]{0}', space=smem, size = 0x400, scoped, tag = 'prefetched SMEM operand 1']
  %s0 = inlined_call_operand.vmem [shape: s32[2,2], index: 0, kind: input, shape index: {}]
  %s1 = inlined_call_operand.vmem [shape: s32[2,2], index: 1, kind: input, shape index: {}]
  %s2 = inlined_call_operand.vmem [shape: bf16[2,8,2304], index: 2, kind: input, shape index: {}]
  %s3 = inlined_call_operand.vmem [shape: s32[2,36,256], index: 3, kind: input, shape index: {}]
  %s4 = inlined_call_operand.vmem [shape: bf16[2,36,256], index: 4, kind: input, shape index: {}]
  %s5 = inlined_call_operand.hbm [shape: f32[2,8,256], index: 5, kind: output, shape index: {}]
  %s6 = sld [smem:[#allocation0]]
  $region136: #{tpu_custom_call.1} parent=0
    _
  %s8 = ssub.s32 1, %s6
  %s9 = scalar_select 0, %s8, %s6
  %s11 = sshll.u32 %s0, 4
  %s12 = int_to_ptr.vmem [resolvable:$true] %s11
  %14 = dma.vmem_to_smem %s12, 32, [#allocation5], [#allocation4]
  %s16 = sshll.u32 %s1, 4
  %s17 = int_to_ptr.vmem [resolvable:$true] %s16
  %19 = dma.vmem_to_smem %s17, 32, [#allocation6], [#allocation4]
  %21 = dma.done [#allocation4], 64
  %22 = sfence
  $region1: #{tpu_custom_call.1} parent=0
    #allocation7 [shape = 'u8[40960]{0}', space=vmem, size = 0xa000, scoped, tag = 'input window, operand 3']
    #allocation8 [shape = 'u8[20480]{0}', space=vmem, size = 0x5000, scoped, tag = 'input window, operand 4']
    #allocation9 [shape = 'u8[8192]{0}', space=vmem, size = 0x2000, scoped, tag = 'output window, operand 0']
    #allocation10 [shape = 's32[2]{0}', space=sflag, size = 0x8, scoped, tag = 'scoped memory for tpu_custom_call.1']
    %23 = vsyncpa [#allocation10], 0
    %s24 = scalar_lea.sflag [#allocation10], 1
    %25 = vsyncpa %s24, 0
    loop: start=0, step=1, limit=10
    $region2: #{tpu_custom_call.1} parent=1 // loop_pre_header
      _
    $region3: #{tpu_custom_call.1} parent=1 // loop_header
      %s27 = sphi 0, %s31
      %p28 = scmp.ge.s32.totalorder %s27, 10
      %s34 = sphi 0, %s53
      %s35 = sphi 0, %s49
      %s36 = sphi 0, %s45
      %s37 = sphi 0, %s34
      %s38 = sphi 0, %s35
      %s39 = sphi 0, %s36
      %s40 = sphi 0, %s37
      %s41 = sphi 0, %s38
      %s42 = sphi 0, %s39
      %s58 = sphi 0, %s60
      %s61 = sphi 0, %s58
      %s62 = sphi 0, %s61
      %s78 = sphi 0, %s62
      %s86 = sphi 0, %s88
      %s89 = sphi 0, %s86
      %s90 = sphi 0, %s89
      %s106 = sphi 0, %s90
      %s114 = sphi 0, %s116
      %s117 = sphi 0, %s114
      %s118 = sphi 0, %s117
      %s134 = sphi 0, %s118
      %s142 = sphi 0, %s144
      %s145 = sphi 0, %s142
      %s146 = sphi 0, %s145
      %s162 = sphi 0, %s146
    $region4: #{tpu_custom_call.1} parent=1 // loop_header_branch
      %30 = sbr.rel (%p28) target = $region8
    $region5: #{tpu_custom_call.1} parent=1 // loop_body
      %s32 = ssub.s32 %s27, 1
      %s33 = ssub.s32 %s27, 2
      %s43 = sadd.s32 1, %s36
      %p44 = scmp.ge.s32.totalorder %s43, 2
      %s45 = scalar_select %p44, 0, %s43
      %s46 = sadd.s32 1, %s35
      %s47 = scalar_select %p44, %s46, %s35
      %p48 = scmp.ge.s32.totalorder %s47, 2
      %s49 = scalar_select %p48, 0, %s47
      %s50 = sadd.s32 1, %s34
      %s51 = scalar_select %p48, %s50, %s34
      %p52 = scmp.ge.s32.totalorder %s51, 2
      %s53 = scalar_select %p52, 0, %s51
      %s54 = ssub.s32 %s34, %s53
      %s55 = ssub.s32 %s36, %s45
      %s56 = sor.u32 %s54, %s55
      %p57 = scmp.eq.s32.totalorder %s56, 0
      %s59 = sadd.s32 %s58, 1
      %s60 = scalar_select %p57, %s58, %s59
      %p63 = pneg %p57
      %p64 = scmp.eq.s32.totalorder %s27, 7
      %p65 = por %p63, %p64
      %p66 = scmp.ne.s32.totalorder %s58, %s61
      %p67 = scmp.eq.s32.totalorder %s27, 0
      %p68 = por %p66, %p67
      %p69 = scmp.ne.s32.totalorder %s58, %s61
      %p70 = scmp.eq.s32.totalorder %s32, 7
      %p71 = por %p69, %p70
      %p72 = scmp.ne.s32.totalorder %s61, %s62
      %p73 = scmp.eq.s32.totalorder %s32, 0
      %p74 = por %p72, %p73
      %p75 = scmp.ne.s32.totalorder %s61, %s62
      %p76 = scmp.eq.s32.totalorder %s33, 7
      %p77 = por %p75, %p76
      %p79 = scmp.ne.s32.totalorder %s62, %s78
      %p80 = scmp.eq.s32.totalorder %s33, 0
      %p81 = por %p79, %p80
      %s82 = ssub.s32 %s34, %s53
      %s83 = ssub.s32 %s35, %s49
      %s84 = sor.u32 %s82, %s83
      %p85 = scmp.eq.s32.totalorder %s84, 0
      %s87 = sadd.s32 %s86, 1
      %s88 = scalar_select %p85, %s86, %s87
      %p91 = pneg %p85
      %p92 = scmp.eq.s32.totalorder %s27, 7
      %p93 = por %p91, %p92
      %p94 = scmp.ne.s32.totalorder %s86, %s89
      %p95 = scmp.eq.s32.totalorder %s27, 0
      %p96 = por %p94, %p95
      %p97 = scmp.ne.s32.totalorder %s86, %s89
      %p98 = scmp.eq.s32.totalorder %s32, 7
      %p99 = por %p97, %p98
      %p100 = scmp.ne.s32.totalorder %s89, %s90
      %p101 = scmp.eq.s32.totalorder %s32, 0
      %p102 = por %p100, %p101
      %p103 = scmp.ne.s32.totalorder %s89, %s90
      %p104 = scmp.eq.s32.totalorder %s33, 7
      %p105 = por %p103, %p104
      %p107 = scmp.ne.s32.totalorder %s90, %s106
      %p108 = scmp.eq.s32.totalorder %s33, 0
      %p109 = por %p107, %p108
      %s110 = ssub.s32 %s34, %s53
      %s111 = ssub.s32 %s35, %s49
      %s112 = sor.u32 %s110, %s111
      %p113 = scmp.eq.s32.totalorder %s112, 0
      %s115 = sadd.s32 %s114, 1
      %s116 = scalar_select %p113, %s114, %s115
      %p119 = pneg %p113
      %p120 = scmp.eq.s32.totalorder %s27, 7
      %p121 = por %p119, %p120
      %p122 = scmp.ne.s32.totalorder %s114, %s117
      %p123 = scmp.eq.s32.totalorder %s27, 0
      %p124 = por %p122, %p123
      %p125 = scmp.ne.s32.totalorder %s114, %s117
      %p126 = scmp.eq.s32.totalorder %s32, 7
      %p127 = por %p125, %p126
      %p128 = scmp.ne.s32.totalorder %s117, %s118
      %p129 = scmp.eq.s32.totalorder %s32, 0
      %p130 = por %p128, %p129
      %p131 = scmp.ne.s32.totalorder %s117, %s118
      %p132 = scmp.eq.s32.totalorder %s33, 7
      %p133 = por %p131, %p132
      %p135 = scmp.ne.s32.totalorder %s118, %s134
      %p136 = scmp.eq.s32.totalorder %s33, 0
      %p137 = por %p135, %p136
      %s138 = ssub.s32 %s34, %s53
      %s139 = ssub.s32 %s35, %s49
      %s140 = sor.u32 %s138, %s139
      %p141 = scmp.eq.s32.totalorder %s140, 0
      %s143 = sadd.s32 %s142, 1
      %s144 = scalar_select %p141, %s142, %s143
      %p147 = pneg %p141
      %p148 = scmp.eq.s32.totalorder %s27, 7
      %p149 = por %p147, %p148
      %p150 = scmp.ne.s32.totalorder %s142, %s145
      %p151 = scmp.eq.s32.totalorder %s27, 0
      %p152 = por %p150, %p151
      %p153 = scmp.ne.s32.totalorder %s142, %s145
      %p154 = scmp.eq.s32.totalorder %s32, 7
      %p155 = por %p153, %p154
      %p156 = scmp.ne.s32.totalorder %s145, %s146
      %p157 = scmp.eq.s32.totalorder %s32, 0
      %p158 = por %p156, %p157
      %p159 = scmp.ne.s32.totalorder %s145, %s146
      %p160 = scmp.eq.s32.totalorder %s33, 7
      %p161 = por %p159, %p160
      %p163 = scmp.ne.s32.totalorder %s146, %s162
      %p164 = scmp.eq.s32.totalorder %s33, 0
      %p165 = por %p163, %p164
      %p166 = scmp.le.s32.totalorder 1, %s27
      %p167 = scmp.lt.s32.totalorder %s27, 9
      %p168 = pnand %p166, %p167
      %p169 = pneg %p168
      // Predicated region
      $region9: #{tpu_custom_call.1} parent=5 // pred_check
        _
      $region10: #{tpu_custom_call.1} parent=5 // pred_check_branch
        %171 = sbr.rel (%p168) target = $region12
      $region11: #{tpu_custom_call.1} parent=5 // pred_region
        %s172 = ssub.s32 %s27, 1
      $region12: #{tpu_custom_call.1} parent=5 // pred_fallthru
        _
      %p173 = scmp.lt.s32.totalorder %s27, 8
      // Predicated region
      $region13: #{tpu_custom_call.1} parent=5 // pred_check
        %p174 = pneg %p173
      $region14: #{tpu_custom_call.1} parent=5 // pred_check_branch
        %176 = sbr.rel (%p174) target = $region16
      $region15: #{tpu_custom_call.1} parent=5 // pred_region
        // Predicated region
        $region17: #{tpu_custom_call.1} parent=15 // pred_check
          %p177 = pneg %p68
        $region18: #{tpu_custom_call.1} parent=15 // pred_check_branch
          %179 = sbr.rel (%p177) target = $region20
        $region19: #{tpu_custom_call.1} parent=15 // pred_region
          %s180 = smul.u32 9, %s36
          %p181 = scmp.lt.s32.totalorder %s34, 1
          %s182 = scalar_select %p181, %s34, 1
          %p183 = scmp.lt.s32.totalorder %s180, 17
          %s184 = scalar_select %p183, %s180, 17
          %s185 = smul.addr %s182, 18
          %s186 = sadd.s32 %s184, %s185
          %s187 = smul.addr %s186, 4
          %s188 = scalar_lea.vmem %s2, %s187
          %s189 = smul.u32 9, %s36
        $region20: #{tpu_custom_call.1} parent=15 // pred_fallthru
          _
        // Predicated region
        $region21: #{tpu_custom_call.1} parent=15 // pred_check
          %p190 = pneg %p96
        $region22: #{tpu_custom_call.1} parent=15 // pred_check_branch
          %192 = sbr.rel (%p190) target = $region24
        $region23: #{tpu_custom_call.1} parent=15 // pred_region
          %s193 = sand.u32 %s86, 1
          %s194 = sand.u32 %s86, 1
          %s195 = smul.addr %s194, 40
          %s196 = scalar_lea.vmem [#allocation7], %s195
          %s197 = smul.addr %s34, 10
          %s198 = sadd.s32 %s35, %s197
          %s199 = smul.addr %s198, 8
          %s200 = scalar_lea.vmem %s3, %s199
          // Predicated region
          $region25: #{tpu_custom_call.1} parent=23 // pred_check
            _
          $region26: #{tpu_custom_call.1} parent=23 // pred_check_branch
            %202 = sbr.rel (0) target = $region28
          $region27: #{tpu_custom_call.1} parent=23 // pred_region
            // Predicated region
            $region29: #{tpu_custom_call.1} parent=27 // pred_check
              _
            $region30: #{tpu_custom_call.1} parent=27 // pred_check_branch
              %204 = sbr.rel (0) target = $region32
            $region31: #{tpu_custom_call.1} parent=27 // pred_region
              // Predicated region
              $region44: #{tpu_custom_call.1} parent=31 // pred_check
                _
              $region45: #{tpu_custom_call.1} parent=31 // pred_check_branch
                %228 = sbr.rel (0) target = $region47
              $region46: #{tpu_custom_call.1} parent=31 // pred_region
                loop: start=0, step=1, limit=1
                $region48: #{tpu_custom_call.1} parent=46 // loop_pre_header
                  _
                $region49: #{tpu_custom_call.1} parent=46 // loop_header
                  %s230 = sphi 0, %s234
                  %p231 = scmp.ge.s32.totalorder %s230, 1
                  %s235 = sphi %s200, %s200
                  %s236 = sphi %s196, %s196
                $region50: #{tpu_custom_call.1} parent=46 // loop_header_branch
                  %233 = sbr.rel (%p231) target = $region54
                $region51: #{tpu_custom_call.1} parent=46 // loop_body
                  %v237 = vld [vmem:[%s235] sm:$0xff]
                  %238 = vst [vmem:[%s236] sm:$0xff] %v237
                  %v239 = vld [vmem:[%s235 + $0x10] sm:$0xff]
                  %240 = vst [vmem:[%s236 + $0x8] sm:$0xff] %v239
                  %v241 = vld [vmem:[%s235 + $0x20] sm:$0xff]
                  %242 = vst [vmem:[%s236 + $0x10] sm:$0xff] %v241
                  %v243 = vld [vmem:[%s235 + $0x30] sm:$0xff]
                  %244 = vst [vmem:[%s236 + $0x18] sm:$0xff] %v243
                  %v245 = vld [vmem:[%s235 + $0x40] sm:$0xff]
                  %246 = vst [vmem:[%s236 + $0x20] sm:$0xff] %v245
                $region52: #{tpu_custom_call.1} parent=46 // loop_footer
                  %s234 = sadd.s32 1, %s230
                $region53: #{tpu_custom_call.1} parent=46 // loop_footer_branch
                  %229 = sbr.rel target = $region49
                $region54: #{tpu_custom_call.1} parent=46 // loop_exit
                  _
              $region47: #{tpu_custom_call.1} parent=31 // pred_fallthru
                _
              // Predicated region
              $region55: #{tpu_custom_call.1} parent=31 // pred_check
                _
              $region56: #{tpu_custom_call.1} parent=31 // pred_check_branch
                %248 = sbr.rel target = $region58
              $region57: #{tpu_custom_call.1} parent=31 // pred_region
                _
              $region58: #{tpu_custom_call.1} parent=31 // pred_fallthru
                _
            $region32: #{tpu_custom_call.1} parent=27 // pred_fallthru
              _
            // Predicated region
            $region33: #{tpu_custom_call.1} parent=27 // pred_check
              _
            $region34: #{tpu_custom_call.1} parent=27 // pred_check_branch
              %206 = sbr.rel target = $region36
            $region35: #{tpu_custom_call.1} parent=27 // pred_region
              %s208 = ssub.s32 256, 1
              loop: start=0, step=1, limit=1
              $region37: #{tpu_custom_call.1} parent=35 // loop_pre_header
                _
              $region38: #{tpu_custom_call.1} parent=35 // loop_header
                %s210 = sphi 0, %s214
                %p211 = scmp.ge.s32.totalorder %s210, 1
                %s215 = sphi %s200, %s200
                %s216 = sphi %s196, %s196
              $region39: #{tpu_custom_call.1} parent=35 // loop_header_branch
                %213 = sbr.rel (%p211) target = $region43
              $region40: #{tpu_custom_call.1} parent=35 // loop_body
                %v217 = vld [vmem:[%s215] sm:%s208]
                %218 = vst [vmem:[%s216] sm:%s208] %v217
                %v219 = vld [vmem:[%s215 + $0x10] sm:%s208]
                %220 = vst [vmem:[%s216 + $0x8] sm:%s208] %v219
                %v221 = vld [vmem:[%s215 + $0x20] sm:%s208]
                %222 = vst [vmem:[%s216 + $0x10] sm:%s208] %v221
                %v223 = vld [vmem:[%s215 + $0x30] sm:%s208]
                %224 = vst [vmem:[%s216 + $0x18] sm:%s208] %v223
                %v225 = vld [vmem:[%s215 + $0x40] sm:%s208]
                %226 = vst [vmem:[%s216 + $0x20] sm:%s208] %v225
              $region41: #{tpu_custom_call.1} parent=35 // loop_footer
                %s214 = sadd.s32 1, %s210
              $region42: #{tpu_custom_call.1} parent=35 // loop_footer_branch
                %209 = sbr.rel target = $region38
              $region43: #{tpu_custom_call.1} parent=35 // loop_exit
                _
            $region36: #{tpu_custom_call.1} parent=27 // pred_fallthru
              _
          $region28: #{tpu_custom_call.1} parent=23 // pred_fallthru
            _
          %249 = vnop
        $region24: #{tpu_custom_call.1} parent=15 // pred_fallthru
          _
        // Predicated region
        $region59: #{tpu_custom_call.1} parent=15 // pred_check
          %p250 = pneg %p124
        $region60: #{tpu_custom_call.1} parent=15 // pred_check_branch
          %252 = sbr.rel (%p250) target = $region62
        $region61: #{tpu_custom_call.1} parent=15 // pred_region
          %s253 = sand.u32 %s114, 1
          %s254 = sand.u32 %s114, 1
          %s255 = smul.addr %s254, 20
          %s256 = scalar_lea.vmem [#allocation8], %s255
          %s257 = smul.addr %s34, 10
          %s258 = sadd.s32 %s35, %s257
          %s259 = smul.addr %s258, 4
          %s260 = scalar_lea.vmem %s4, %s259
          // Predicated region
          $region63: #{tpu_custom_call.1} parent=61 // pred_check
            _
          $region64: #{tpu_custom_call.1} parent=61 // pred_check_branch
            %262 = sbr.rel (0) target = $region66
          $region65: #{tpu_custom_call.1} parent=61 // pred_region
            // Predicated region
            $region67: #{tpu_custom_call.1} parent=65 // pred_check
              _
            $region68: #{tpu_custom_call.1} parent=65 // pred_check_branch
              %264 = sbr.rel target = $region70
            $region69: #{tpu_custom_call.1} parent=65 // pred_region
              // Predicated region
              $region82: #{tpu_custom_call.1} parent=69 // pred_check
                _
              $region83: #{tpu_custom_call.1} parent=69 // pred_check_branch
                %288 = sbr.rel (0) target = $region85
              $region84: #{tpu_custom_call.1} parent=69 // pred_region
                loop: start=0, step=1, limit=1
                $region86: #{tpu_custom_call.1} parent=84 // loop_pre_header
                  _
                $region87: #{tpu_custom_call.1} parent=84 // loop_header
                  %s290 = sphi 0, %s294
                  %p291 = scmp.ge.s32.totalorder %s290, 1
                  %s295 = sphi %s260, %s260
                  %s296 = sphi %s256, %s256
                $region88: #{tpu_custom_call.1} parent=84 // loop_header_branch
                  %293 = sbr.rel (%p291) target = $region92
                $region89: #{tpu_custom_call.1} parent=84 // loop_body
                  _
                $region90: #{tpu_custom_call.1} parent=84 // loop_footer
                  %s294 = sadd.s32 1, %s290
                $region91: #{tpu_custom_call.1} parent=84 // loop_footer_branch
                  %289 = sbr.rel target = $region87
                $region92: #{tpu_custom_call.1} parent=84 // loop_exit
                  _
                %s298 = ssub.s32 16, 1
                loop: start=0, step=1, limit=1
                $region93: #{tpu_custom_call.1} parent=84 // loop_pre_header
                  _
                $region94: #{tpu_custom_call.1} parent=84 // loop_header
                  %s300 = sphi 0, %s304
                  %p301 = scmp.ge.s32.totalorder %s300, 1
                  %s305 = sphi %s260, %s260
                  %s306 = sphi %s256, %s256
                $region95: #{tpu_custom_call.1} parent=84 // loop_header_branch
                  %303 = sbr.rel (%p301) target = $region99
                $region96: #{tpu_custom_call.1} parent=84 // loop_body
                  %v307 = vld [vmem:[%s305] sm:%s298]
                  %308 = vst [vmem:[%s306] sm:%s298] %v307
                  %v309 = vld [vmem:[%s305 + $0x8] sm:%s298]
                  %310 = vst [vmem:[%s306 + $0x4] sm:%s298] %v309
                  %v311 = vld [vmem:[%s305 + $0x10] sm:%s298]
                  %312 = vst [vmem:[%s306 + $0x8] sm:%s298] %v311
                  %v313 = vld [vmem:[%s305 + $0x18] sm:%s298]
                  %314 = vst [vmem:[%s306 + $0xc] sm:%s298] %v313
                  %v315 = vld [vmem:[%s305 + $0x20] sm:%s298]
                  %316 = vst [vmem:[%s306 + $0x10] sm:%s298] %v315
                $region97: #{tpu_custom_call.1} parent=84 // loop_footer
                  %s304 = sadd.s32 1, %s300
                $region98: #{tpu_custom_call.1} parent=84 // loop_footer_branch
                  %299 = sbr.rel target = $region94
                $region99: #{tpu_custom_call.1} parent=84 // loop_exit
                  _
              $region85: #{tpu_custom_call.1} parent=69 // pred_fallthru
                _
            $region70: #{tpu_custom_call.1} parent=65 // pred_fallthru
              _
            // Predicated region
            $region71: #{tpu_custom_call.1} parent=65 // pred_check
              _
            $region72: #{tpu_custom_call.1} parent=65 // pred_check_branch
              %266 = sbr.rel (0) target = $region74
            $region73: #{tpu_custom_call.1} parent=65 // pred_region
              %s268 = ssub.s32 16, 1
              loop: start=0, step=1, limit=1
              $region75: #{tpu_custom_call.1} parent=73 // loop_pre_header
                _
              $region76: #{tpu_custom_call.1} parent=73 // loop_header
                %s270 = sphi 0, %s274
                %p271 = scmp.ge.s32.totalorder %s270, 1
                %s275 = sphi %s260, %s260
                %s276 = sphi %s256, %s256
              $region77: #{tpu_custom_call.1} parent=73 // loop_header_branch
                %273 = sbr.rel (%p271) target = $region81
              $region78: #{tpu_custom_call.1} parent=73 // loop_body
                %v277 = vld [vmem:[%s275] sm:%s268]
                %278 = vst [vmem:[%s276] sm:%s268] %v277
                %v279 = vld [vmem:[%s275 + $0x8] sm:%s268]
                %280 = vst [vmem:[%s276 + $0x4] sm:%s268] %v279
                %v281 = vld [vmem:[%s275 + $0x10] sm:%s268]
                %282 = vst [vmem:[%s276 + $0x8] sm:%s268] %v281
                %v283 = vld [vmem:[%s275 + $0x18] sm:%s268]
                %284 = vst [vmem:[%s276 + $0xc] sm:%s268] %v283
                %v285 = vld [vmem:[%s275 + $0x20] sm:%s268]
                %286 = vst [vmem:[%s276 + $0x10] sm:%s268] %v285
              $region79: #{tpu_custom_call.1} parent=73 // loop_footer
                %s274 = sadd.s32 1, %s270
              $region80: #{tpu_custom_call.1} parent=73 // loop_footer_branch
                %269 = sbr.rel target = $region76
              $region81: #{tpu_custom_call.1} parent=73 // loop_exit
                _
            $region74: #{tpu_custom_call.1} parent=65 // pred_fallthru
              _
          $region66: #{tpu_custom_call.1} parent=61 // pred_fallthru
            _
          %317 = vnop
        $region62: #{tpu_custom_call.1} parent=15 // pred_fallthru
          _
      $region16: #{tpu_custom_call.1} parent=5 // pred_fallthru
        _
      %p318 = scmp.le.s32.totalorder 1, %s27
      %p319 = scmp.lt.s32.totalorder %s27, 9
      %p320 = pnand %p318, %p319
      %p321 = pneg %p320
      // Predicated region
      $region100: #{tpu_custom_call.1} parent=5 // pred_check
        _
      $region101: #{tpu_custom_call.1} parent=5 // pred_check_branch
        %323 = sbr.rel (%p320) target = $region103
      $region102: #{tpu_custom_call.1} parent=5 // pred_region
        %s324 = ssub.s32 %s27, 1
        %s325 = sand.u32 %s89, 1
        %s326 = sand.u32 %s89, 1
        %s327 = smul.addr %s326, 40
        %s328 = scalar_lea.vmem [#allocation7], %s327
        // Predicated region
        $region104: #{tpu_custom_call.1} parent=102 // pred_check
          %p329 = pneg %p102
        $region105: #{tpu_custom_call.1} parent=102 // pred_check_branch
          %331 = sbr.rel (%p329) target = $region107
        $region106: #{tpu_custom_call.1} parent=102 // pred_region
          _
        $region107: #{tpu_custom_call.1} parent=102 // pred_fallthru
          _
        %s332 = sand.u32 %s117, 1
        %s333 = sand.u32 %s117, 1
        %s334 = smul.addr %s333, 20
        %s335 = scalar_lea.vmem [#allocation8], %s334
        // Predicated region
        $region108: #{tpu_custom_call.1} parent=102 // pred_check
          %p336 = pneg %p130
        $region109: #{tpu_custom_call.1} parent=102 // pred_check_branch
          %338 = sbr.rel (%p336) target = $region111
        $region110: #{tpu_custom_call.1} parent=102 // pred_region
          _
        $region111: #{tpu_custom_call.1} parent=102 // pred_fallthru
          _
        %s339 = smul.u32 9, %s39
        %p340 = scmp.lt.s32.totalorder %s37, 1
        %s341 = scalar_select %p340, %s37, 1
        %p342 = scmp.lt.s32.totalorder %s339, 17
        %s343 = scalar_select %p342, %s339, 17
        %s344 = smul.addr %s341, 18
        %s345 = sadd.s32 %s343, %s344
        %s346 = smul.addr %s345, 4
        %s347 = scalar_lea.vmem %s2, %s346
        %p348 = pneg %p74
        %p349 = pneg %p71
        %s350 = sand.u32 %s89, 1
        %s351 = sand.u32 %s89, 1
        %s352 = smul.addr %s351, 40
        %s353 = scalar_lea.vmem [#allocation7], %s352
        %p354 = pneg %p102
        %p355 = pneg %p99
        %s356 = sand.u32 %s117, 1
        %s357 = sand.u32 %s117, 1
        %s358 = smul.addr %s357, 20
        %s359 = scalar_lea.vmem [#allocation8], %s358
        %p360 = pneg %p130
        %p361 = pneg %p127
        %p362 = pneg %p158
        %p363 = pneg %p155
        %s364 = sand.u32 %s145, 1
        %s365 = scalar_lea.sflag [#allocation10], %s364
        %s366 = sand.u32 %s145, 1
        %s367 = smul.addr %s366, 8
        %s368 = scalar_lea.vmem [#allocation9], %s367
        %s369 = smul.u32 9, %s39
        %p370 = scmp.lt.s32.totalorder %s37, 1
        %s371 = scalar_select %p370, %s37, 1
        %p372 = scmp.lt.s32.totalorder %s369, 17
        %s373 = scalar_select %p372, %s369, 17
        %s374 = smul.addr %s371, 18
        %s375 = sadd.s32 %s373, %s374
        %s376 = smul.addr %s375, 4
        %s377 = scalar_lea.vmem %s2, %s376
        %s378 = smul.u32 9, %s39
        %p379 = scmp.eq.s32.totalorder %s39, 0
        // Predicated region
        $region112: #{tpu_custom_call.1} parent=102 // pred_check
          %p380 = pneg %p379
        $region113: #{tpu_custom_call.1} parent=102 // pred_check_branch
          %382 = sbr.rel (%p380) target = $region115
        $region114: #{tpu_custom_call.1} parent=102 // pred_region
          %383 = vst [vmem:[#allocation2] sm:$0xff] 0.0
        $region115: #{tpu_custom_call.1} parent=102 // pred_fallthru
          _
        %s384 = smul.u32 %s39, 128
        %s385 = sshra.s32 %s38, 7
        %s386 = sand.u32 %s38, 127
        %s387 = sadd.s32 %s385, %s37
        %s388 = smul.u32 %s387, 128
        %s389 = sshra.s32 %s38, 7
        %s390 = sand.u32 %s38, 127
        %s391 = sadd.s32 %s388, %s390
        %s392 = sld [smem:[#allocation5 + %s391]]
        %s393 = sld [smem:[#allocation6 + %s391]]
        %s394 = sadd.s32 %s384, 128
        %p395 = scmp.lt.s32.totalorder %s392, %s394
        %p396 = scmp.ge.s32.totalorder %s393, %s384
        %p397 = pnand %p395, %p396
        %p398 = pneg %p397
        // Predicated region
        $region116: #{tpu_custom_call.1} parent=102 // pred_check
          _
        $region117: #{tpu_custom_call.1} parent=102 // pred_check_branch
          %400 = sbr.rel (%p397) target = $region119
        $region118: #{tpu_custom_call.1} parent=102 // pred_region
          %v401 = vlaneseq
          %v402 = vshrl.u32 %v401, 7
          %v403 = vadd.s32 %v402, 8
          %v404 = vadd.s32 %v402, 16
          %v405 = vadd.s32 %v402, 24
          %v406 = vadd.s32 %v402, 32
          %v407 = vadd.s32 %v402, 40
          %v408 = vadd.s32 %v402, 48
          %v409 = vadd.s32 %v402, 56
          %v410 = vadd.s32 %v402, 64
          %v411 = vadd.s32 %v402, 72
          %v412 = vadd.s32 %v402, 80
          %v413 = vadd.s32 %v402, 88
          %v414 = vadd.s32 %v402, 96
          %v415 = vadd.s32 %v402, 104
          %v416 = vadd.s32 %v402, 112
          %v417 = vadd.s32 %v402, 120
          %v418 = vstv %s384
          %v419 = vadd.s32 %v418, %v402
          %v420 = vadd.s32 %v418, %v403
          %v421 = vadd.s32 %v418, %v404
          %v422 = vadd.s32 %v418, %v405
          %v423 = vadd.s32 %v418, %v406
          %v424 = vadd.s32 %v418, %v407
          %v425 = vadd.s32 %v418, %v408
          %v426 = vadd.s32 %v418, %v409
          %v427 = vadd.s32 %v418, %v410
          %v428 = vadd.s32 %v418, %v411
          %v429 = vadd.s32 %v418, %v412
          %v430 = vadd.s32 %v418, %v413
          %v431 = vadd.s32 %v418, %v414
          %v432 = vadd.s32 %v418, %v415
          %v433 = vadd.s32 %v418, %v416
          %v434 = vadd.s32 %v418, %v417
          %v435 = vld [vmem:[%s328] sm:$0x1]
          %v436 = vld [vmem:[%s335] sm:$0x1]
          %v437 = vperm.slane %v435, 0
          %vm438 = vcmp.eq.s32.totalorder %v419, %v437
          %vm439 = vcmp.eq.s32.totalorder %v420, %v437
          %vm440 = vcmp.eq.s32.totalorder %v421, %v437
          %vm441 = vcmp.eq.s32.totalorder %v422, %v437
          %vm442 = vcmp.eq.s32.totalorder %v423, %v437
          %vm443 = vcmp.eq.s32.totalorder %v424, %v437
          %vm444 = vcmp.eq.s32.totalorder %v425, %v437
          %vm445 = vcmp.eq.s32.totalorder %v426, %v437
          %vm446 = vcmp.eq.s32.totalorder %v427, %v437
          %vm447 = vcmp.eq.s32.totalorder %v428, %v437
          %vm448 = vcmp.eq.s32.totalorder %v429, %v437
          %vm449 = vcmp.eq.s32.totalorder %v430, %v437
          %vm450 = vcmp.eq.s32.totalorder %v431, %v437
          %vm451 = vcmp.eq.s32.totalorder %v432, %v437
          %vm452 = vcmp.eq.s32.totalorder %v433, %v437
          %vm453 = vcmp.eq.s32.totalorder %v434, %v437
          %v454 = vsel %vm438, 1, 0
          %v455 = vsel %vm439, 1, 0
          %v456 = vsel %vm440, 1, 0
          %v457 = vsel %vm441, 1, 0
          %v458 = vsel %vm442, 1, 0
          %v459 = vsel %vm443, 1, 0
          %v460 = vsel %vm444, 1, 0
          %v461 = vsel %vm445, 1, 0
          %v462 = vsel %vm446, 1, 0
          %v463 = vsel %vm447, 1, 0
          %v464 = vsel %vm448, 1, 0
          %v465 = vsel %vm449, 1, 0
          %v466 = vsel %vm450, 1, 0
          %v467 = vsel %vm451, 1, 0
          %v468 = vsel %vm452, 1, 0
          %v469 = vsel %vm453, 1, 0
          %v470 = vcvt.s32.f32 %v454
          %v471 = vcvt.s32.f32 %v455
          %v472 = vcvt.s32.f32 %v456
          %v473 = vcvt.s32.f32 %v457
          %v474 = vcvt.s32.f32 %v458
          %v475 = vcvt.s32.f32 %v459
          %v476 = vcvt.s32.f32 %v460
          %v477 = vcvt.s32.f32 %v461
          %v478 = vcvt.s32.f32 %v462
          %v479 = vcvt.s32.f32 %v463
          %v480 = vcvt.s32.f32 %v464
          %v481 = vcvt.s32.f32 %v465
          %v482 = vcvt.s32.f32 %v466
          %v483 = vcvt.s32.f32 %v467
          %v484 = vcvt.s32.f32 %v468
          %v485 = vcvt.s32.f32 %v469
          %v486 = vpack.c.bf16 %v470, %v470
          %v487 = vpack.c.bf16 %v471, %v471
          %v488 = vpack.c.bf16 %v472, %v472
          %v489 = vpack.c.bf16 %v473, %v473
          %v490 = vpack.c.bf16 %v474, %v474
          %v491 = vpack.c.bf16 %v475, %v475
          %v492 = vpack.c.bf16 %v476, %v476
          %v493 = vpack.c.bf16 %v477, %v477
          %v494 = vpack.c.bf16 %v478, %v478
          %v495 = vpack.c.bf16 %v479, %v479
          %v496 = vpack.c.bf16 %v480, %v480
          %v497 = vpack.c.bf16 %v481, %v481
          %v498 = vpack.c.bf16 %v482, %v482
          %v499 = vpack.c.bf16 %v483, %v483
          %v500 = vpack.c.bf16 %v484, %v484
          %v501 = vpack.c.bf16 %v485, %v485
          %v503 = vpack.i.b16 %v436, %v436
          %v505 = vperm.slane %v503, 0
          %v506 = vunpack.c.l.bf16 %v486
          %v507 = vunpack.c.l.bf16 %v487
          %v508 = vunpack.c.l.bf16 %v488
          %v509 = vunpack.c.l.bf16 %v489
          %v510 = vunpack.c.l.bf16 %v490
          %v511 = vunpack.c.l.bf16 %v491
          %v512 = vunpack.c.l.bf16 %v492
          %v513 = vunpack.c.l.bf16 %v493
          %v514 = vunpack.c.l.bf16 %v494
          %v515 = vunpack.c.l.bf16 %v495
          %v516 = vunpack.c.l.bf16 %v496
          %v517 = vunpack.c.l.bf16 %v497
          %v518 = vunpack.c.l.bf16 %v498
          %v519 = vunpack.c.l.bf16 %v499
          %v520 = vunpack.c.l.bf16 %v500
          %v521 = vunpack.c.l.bf16 %v501
          %v522 = vunpack.c.l.bf16 %v505
          %v523 = vmul.f32 %v506, %v522
          %v524 = vmul.f32 %v507, %v522
          %v525 = vmul.f32 %v508, %v522
          %v526 = vmul.f32 %v509, %v522
          %v527 = vmul.f32 %v510, %v522
          %v528 = vmul.f32 %v511, %v522
          %v529 = vmul.f32 %v512, %v522
          %v530 = vmul.f32 %v513, %v522
          %v531 = vmul.f32 %v514, %v522
          %v532 = vmul.f32 %v515, %v522
          %v533 = vmul.f32 %v516, %v522
          %v534 = vmul.f32 %v517, %v522
          %v535 = vmul.f32 %v518, %v522
          %v536 = vmul.f32 %v519, %v522
          %v537 = vmul.f32 %v520, %v522
          %v538 = vmul.f32 %v521, %v522
          %v539 = vpack.c.bf16 %v523, %v523
          %v540 = vpack.c.bf16 %v524, %v524
          %v541 = vpack.c.bf16 %v525, %v525
          %v542 = vpack.c.bf16 %v526, %v526
          %v543 = vpack.c.bf16 %v527, %v527
          %v544 = vpack.c.bf16 %v528, %v528
          %v545 = vpack.c.bf16 %v529, %v529
          %v546 = vpack.c.bf16 %v530, %v530
          %v547 = vpack.c.bf16 %v531, %v531
          %v548 = vpack.c.bf16 %v532, %v532
          %v549 = vpack.c.bf16 %v533, %v533
          %v550 = vpack.c.bf16 %v534, %v534
          %v551 = vpack.c.bf16 %v535, %v535
          %v552 = vpack.c.bf16 %v536, %v536
          %v553 = vpack.c.bf16 %v537, %v537
          %v554 = vpack.c.bf16 %v538, %v538
          %v555 = vld [vmem:[%s328 + $0x1] sm:$0x1]
          %v556 = vperm.slane %v555, 0
          %vm557 = vcmp.eq.s32.totalorder %v419, %v556
          %vm558 = vcmp.eq.s32.totalorder %v420, %v556
          %vm559 = vcmp.eq.s32.totalorder %v421, %v556
          %vm560 = vcmp.eq.s32.totalorder %v422, %v556
          %vm561 = vcmp.eq.s32.totalorder %v423, %v556
          %vm562 = vcmp.eq.s32.totalorder %v424, %v556
          %vm563 = vcmp.eq.s32.totalorder %v425, %v556
          %vm564 = vcmp.eq.s32.totalorder %v426, %v556
          %vm565 = vcmp.eq.s32.totalorder %v427, %v556
          %vm566 = vcmp.eq.s32.totalorder %v428, %v556
          %vm567 = vcmp.eq.s32.totalorder %v429, %v556
          %vm568 = vcmp.eq.s32.totalorder %v430, %v556
          %vm569 = vcmp.eq.s32.totalorder %v431, %v556
          %vm570 = vcmp.eq.s32.totalorder %v432, %v556
          %vm571 = vcmp.eq.s32.totalorder %v433, %v556
          %vm572 = vcmp.eq.s32.totalorder %v434, %v556
          %v573 = vsel %vm557, 1, 0
          %v574 = vsel %vm558, 1, 0
          %v575 = vsel %vm559, 1, 0
          %v576 = vsel %vm560, 1, 0
          %v577 = vsel %vm561, 1, 0
          %v578 = vsel %vm562, 1, 0
          %v579 = vsel %vm563, 1, 0
          %v580 = vsel %vm564, 1, 0
          %v581 = vsel %vm565, 1, 0
          %v582 = vsel %vm566, 1, 0
          %v583 = vsel %vm567, 1, 0
          %v584 = vsel %vm568, 1, 0
          %v585 = vsel %vm569, 1, 0
          %v586 = vsel %vm570, 1, 0
          %v587 = vsel %vm571, 1, 0
          %v588 = vsel %vm572, 1, 0
          %v589 = vcvt.s32.f32 %v573
          %v590 = vcvt.s32.f32 %v574
          %v591 = vcvt.s32.f32 %v575
          %v592 = vcvt.s32.f32 %v576
          %v593 = vcvt.s32.f32 %v577
          %v594 = vcvt.s32.f32 %v578
          %v595 = vcvt.s32.f32 %v579
          %v596 = vcvt.s32.f32 %v580
          %v597 = vcvt.s32.f32 %v581
          %v598 = vcvt.s32.f32 %v582
          %v599 = vcvt.s32.f32 %v583
          %v600 = vcvt.s32.f32 %v584
          %v601 = vcvt.s32.f32 %v585
          %v602 = vcvt.s32.f32 %v586
          %v603 = vcvt.s32.f32 %v587
          %v604 = vcvt.s32.f32 %v588
          %v605 = vpack.c.bf16 %v589, %v589
          %v606 = vpack.c.bf16 %v590, %v590
          %v607 = vpack.c.bf16 %v591, %v591
          %v608 = vpack.c.bf16 %v592, %v592
          %v609 = vpack.c.bf16 %v593, %v593
          %v610 = vpack.c.bf16 %v594, %v594
          %v611 = vpack.c.bf16 %v595, %v595
          %v612 = vpack.c.bf16 %v596, %v596
          %v613 = vpack.c.bf16 %v597, %v597
          %v614 = vpack.c.bf16 %v598, %v598
          %v615 = vpack.c.bf16 %v599, %v599
          %v616 = vpack.c.bf16 %v600, %v600
          %v617 = vpack.c.bf16 %v601, %v601
          %v618 = vpack.c.bf16 %v602, %v602
          %v619 = vpack.c.bf16 %v603, %v603
          %v620 = vpack.c.bf16 %v604, %v604
          %v621 = vshrl.u32 %v436, 16
          %v622 = vpack.i.b16 %v621, %v621
          %v624 = vperm.slane %v622, 0
          %v625 = vunpack.c.l.bf16 %v605
          %v626 = vunpack.c.l.bf16 %v606
          %v627 = vunpack.c.l.bf16 %v607
          %v628 = vunpack.c.l.bf16 %v608
          %v629 = vunpack.c.l.bf16 %v609
          %v630 = vunpack.c.l.bf16 %v610
          %v631 = vunpack.c.l.bf16 %v611
          %v632 = vunpack.c.l.bf16 %v612
          %v633 = vunpack.c.l.bf16 %v613
          %v634 = vunpack.c.l.bf16 %v614
          %v635 = vunpack.c.l.bf16 %v615
          %v636 = vunpack.c.l.bf16 %v616
          %v637 = vunpack.c.l.bf16 %v617
          %v638 = vunpack.c.l.bf16 %v618
          %v639 = vunpack.c.l.bf16 %v619
          %v640 = vunpack.c.l.bf16 %v620
          %v641 = vunpack.c.l.bf16 %v624
          %v642 = vmul.f32 %v625, %v641
          %v643 = vmul.f32 %v626, %v641
          %v644 = vmul.f32 %v627, %v641
          %v645 = vmul.f32 %v628, %v641
          %v646 = vmul.f32 %v629, %v641
          %v647 = vmul.f32 %v630, %v641
          %v648 = vmul.f32 %v631, %v641
          %v649 = vmul.f32 %v632, %v641
          %v650 = vmul.f32 %v633, %v641
          %v651 = vmul.f32 %v634, %v641
          %v652 = vmul.f32 %v635, %v641
          %v653 = vmul.f32 %v636, %v641
          %v654 = vmul.f32 %v637, %v641
          %v655 = vmul.f32 %v638, %v641
          %v656 = vmul.f32 %v639, %v641
          %v657 = vmul.f32 %v640, %v641
          %v658 = vpack.c.bf16 %v642, %v642
          %v659 = vpack.c.bf16 %v643, %v643
          %v660 = vpack.c.bf16 %v644, %v644
          %v661 = vpack.c.bf16 %v645, %v645
          %v662 = vpack.c.bf16 %v646, %v646
          %v663 = vpack.c.bf16 %v647, %v647
          %v664 = vpack.c.bf16 %v648, %v648
          %v665 = vpack.c.bf16 %v649, %v649
          %v666 = vpack.c.bf16 %v650, %v650
          %v667 = vpack.c.bf16 %v651, %v651
          %v668 = vpack.c.bf16 %v652, %v652
          %v669 = vpack.c.bf16 %v653, %v653
          %v670 = vpack.c.bf16 %v654, %v654
          %v671 = vpack.c.bf16 %v655, %v655
          %v672 = vpack.c.bf16 %v656, %v656
          %v673 = vpack.c.bf16 %v657, %v657
          %v674 = vunpack.c.l.bf16 %v539
          %v675 = vunpack.c.l.bf16 %v540
          %v676 = vunpack.c.l.bf16 %v541
          %v677 = vunpack.c.l.bf16 %v542
          %v678 = vunpack.c.l.bf16 %v543
          %v679 = vunpack.c.l.bf16 %v544
          %v680 = vunpack.c.l.bf16 %v545
          %v681 = vunpack.c.l.bf16 %v546
          %v682 = vunpack.c.l.bf16 %v547
          %v683 = vunpack.c.l.bf16 %v548
          %v684 = vunpack.c.l.bf16 %v549
          %v685 = vunpack.c.l.bf16 %v550
          %v686 = vunpack.c.l.bf16 %v551
          %v687 = vunpack.c.l.bf16 %v552
          %v688 = vunpack.c.l.bf16 %v553
          %v689 = vunpack.c.l.bf16 %v554
          %v690 = vunpack.c.l.bf16 %v658
          %v691 = vunpack.c.l.bf16 %v659
          %v692 = vunpack.c.l.bf16 %v660
          %v693 = vunpack.c.l.bf16 %v661
          %v694 = vunpack.c.l.bf16 %v662
          %v695 = vunpack.c.l.bf16 %v663
          %v696 = vunpack.c.l.bf16 %v664
          %v697 = vunpack.c.l.bf16 %v665
          %v698 = vunpack.c.l.bf16 %v666
          %v699 = vunpack.c.l.bf16 %v667
          %v700 = vunpack.c.l.bf16 %v668
          %v701 = vunpack.c.l.bf16 %v669
          %v702 = vunpack.c.l.bf16 %v670
          %v703 = vunpack.c.l.bf16 %v671
          %v704 = vunpack.c.l.bf16 %v672
          %v705 = vunpack.c.l.bf16 %v673
          %v706 = vadd.f32 %v674, %v690
          %v707 = vadd.f32 %v675, %v691
          %v708 = vadd.f32 %v676, %v692
          %v709 = vadd.f32 %v677, %v693
          %v710 = vadd.f32 %v678, %v694
          %v711 = vadd.f32 %v679, %v695
          %v712 = vadd.f32 %v680, %v696
          %v713 = vadd.f32 %v681, %v697
          %v714 = vadd.f32 %v682, %v698
          %v715 = vadd.f32 %v683, %v699
          %v716 = vadd.f32 %v684, %v700
          %v717 = vadd.f32 %v685, %v701
          %v718 = vadd.f32 %v686, %v702
          %v719 = vadd.f32 %v687, %v703
          %v720 = vadd.f32 %v688, %v704
          %v721 = vadd.f32 %v689, %v705
          %v722 = vpack.c.bf16 %v706, %v706
          %v723 = vpack.c.bf16 %v707, %v707
          %v724 = vpack.c.bf16 %v708, %v708
          %v725 = vpack.c.bf16 %v709, %v709
          %v726 = vpack.c.bf16 %v710, %v710
          %v727 = vpack.c.bf16 %v711, %v711
          %v728 = vpack.c.bf16 %v712, %v712
          %v729 = vpack.c.bf16 %v713, %v713
          %v730 = vpack.c.bf16 %v714, %v714
          %v731 = vpack.c.bf16 %v715, %v715
          %v732 = vpack.c.bf16 %v716, %v716
          %v733 = vpack.c.bf16 %v717, %v717
          %v734 = vpack.c.bf16 %v718, %v718
          %v735 = vpack.c.bf16 %v719, %v719
          %v736 = vpack.c.bf16 %v720, %v720
          %v737 = vpack.c.bf16 %v721, %v721
          %v738 = vld [vmem:[%s328 + $0x2] sm:$0x1]
          %v739 = vld [vmem:[%s335] sm:$0x2]
          %v740 = vperm.slane %v738, 0
          %vm741 = vcmp.eq.s32.totalorder %v419, %v740
          %vm742 = vcmp.eq.s32.totalorder %v420, %v740
          %vm743 = vcmp.eq.s32.totalorder %v421, %v740
          %vm744 = vcmp.eq.s32.totalorder %v422, %v740
          %vm745 = vcmp.eq.s32.totalorder %v423, %v740
          %vm746 = vcmp.eq.s32.totalorder %v424, %v740
          %vm747 = vcmp.eq.s32.totalorder %v425, %v740
          %vm748 = vcmp.eq.s32.totalorder %v426, %v740
          %vm749 = vcmp.eq.s32.totalorder %v427, %v740
          %vm750 = vcmp.eq.s32.totalorder %v428, %v740
          %vm751 = vcmp.eq.s32.totalorder %v429, %v740
          %vm752 = vcmp.eq.s32.totalorder %v430, %v740
          %vm753 = vcmp.eq.s32.totalorder %v431, %v740
          %vm754 = vcmp.eq.s32.totalorder %v432, %v740
          %vm755 = vcmp.eq.s32.totalorder %v433, %v740
          %vm756 = vcmp.eq.s32.totalorder %v434, %v740
          %v757 = vsel %vm741, 1, 0
          %v758 = vsel %vm742, 1, 0
          %v759 = vsel %vm743, 1, 0
          %v760 = vsel %vm744, 1, 0
          %v761 = vsel %vm745, 1, 0
          %v762 = vsel %vm746, 1, 0
          %v763 = vsel %vm747, 1, 0
          %v764 = vsel %vm748, 1, 0
          %v765 = vsel %vm749, 1, 0
          %v766 = vsel %vm750, 1, 0
          %v767 = vsel %vm751, 1, 0
          %v768 = vsel %vm752, 1, 0
          %v769 = vsel %vm753, 1, 0
          %v770 = vsel %vm754, 1, 0
          %v771 = vsel %vm755, 1, 0
          %v772 = vsel %vm756, 1, 0
          %v773 = vcvt.s32.f32 %v757
          %v774 = vcvt.s32.f32 %v758
          %v775 = vcvt.s32.f32 %v759
          %v776 = vcvt.s32.f32 %v760
          %v777 = vcvt.s32.f32 %v761
          %v778 = vcvt.s32.f32 %v762
          %v779 = vcvt.s32.f32 %v763
          %v780 = vcvt.s32.f32 %v764
          %v781 = vcvt.s32.f32 %v765
          %v782 = vcvt.s32.f32 %v766
          %v783 = vcvt.s32.f32 %v767
          %v784 = vcvt.s32.f32 %v768
          %v785 = vcvt.s32.f32 %v769
          %v786 = vcvt.s32.f32 %v770
          %v787 = vcvt.s32.f32 %v771
          %v788 = vcvt.s32.f32 %v772
          %v789 = vpack.c.bf16 %v773, %v773
          %v790 = vpack.c.bf16 %v774, %v774
          %v791 = vpack.c.bf16 %v775, %v775
          %v792 = vpack.c.bf16 %v776, %v776
          %v793 = vpack.c.bf16 %v777, %v777
          %v794 = vpack.c.bf16 %v778, %v778
          %v795 = vpack.c.bf16 %v779, %v779
          %v796 = vpack.c.bf16 %v780, %v780
          %v797 = vpack.c.bf16 %v781, %v781
          %v798 = vpack.c.bf16 %v782, %v782
          %v799 = vpack.c.bf16 %v783, %v783
          %v800 = vpack.c.bf16 %v784, %v784
          %v801 = vpack.c.bf16 %v785, %v785
          %v802 = vpack.c.bf16 %v786, %v786
          %v803 = vpack.c.bf16 %v787, %v787
          %v804 = vpack.c.bf16 %v788, %v788
          %v806 = vpack.i.b16 %v739, %v739
          %v808 = vperm.slane %v806, 1
          %v809 = vunpack.c.l.bf16 %v789
          %v810 = vunpack.c.l.bf16 %v790
          %v811 = vunpack.c.l.bf16 %v791
          %v812 = vunpack.c.l.bf16 %v792
          %v813 = vunpack.c.l.bf16 %v793
          %v814 = vunpack.c.l.bf16 %v794
          %v815 = vunpack.c.l.bf16 %v795
          %v816 = vunpack.c.l.bf16 %v796
          %v817 = vunpack.c.l.bf16 %v797
          %v818 = vunpack.c.l.bf16 %v798
          %v819 = vunpack.c.l.bf16 %v799
          %v820 = vunpack.c.l.bf16 %v800
          %v821 = vunpack.c.l.bf16 %v801
          %v822 = vunpack.c.l.bf16 %v802
          %v823 = vunpack.c.l.bf16 %v803
          %v824 = vunpack.c.l.bf16 %v804
          %v825 = vunpack.c.l.bf16 %v808
          %v826 = vmul.f32 %v809, %v825
          %v827 = vmul.f32 %v810, %v825
          %v828 = vmul.f32 %v811, %v825
          %v829 = vmul.f32 %v812, %v825
          %v830 = vmul.f32 %v813, %v825
          %v831 = vmul.f32 %v814, %v825
          %v832 = vmul.f32 %v815, %v825
          %v833 = vmul.f32 %v816, %v825
          %v834 = vmul.f32 %v817, %v825
          %v835 = vmul.f32 %v818, %v825
          %v836 = vmul.f32 %v819, %v825
          %v837 = vmul.f32 %v820, %v825
          %v838 = vmul.f32 %v821, %v825
          %v839 = vmul.f32 %v822, %v825
          %v840 = vmul.f32 %v823, %v825
          %v841 = vmul.f32 %v824, %v825
          %v842 = vpack.c.bf16 %v826, %v826
          %v843 = vpack.c.bf16 %v827, %v827
          %v844 = vpack.c.bf16 %v828, %v828
          %v845 = vpack.c.bf16 %v829, %v829
          %v846 = vpack.c.bf16 %v830, %v830
          %v847 = vpack.c.bf16 %v831, %v831
          %v848 = vpack.c.bf16 %v832, %v832
          %v849 = vpack.c.bf16 %v833, %v833
          %v850 = vpack.c.bf16 %v834, %v834
          %v851 = vpack.c.bf16 %v835, %v835
          %v852 = vpack.c.bf16 %v836, %v836
          %v853 = vpack.c.bf16 %v837, %v837
          %v854 = vpack.c.bf16 %v838, %v838
          %v855 = vpack.c.bf16 %v839, %v839
          %v856 = vpack.c.bf16 %v840, %v840
          %v857 = vpack.c.bf16 %v841, %v841
          %v858 = vunpack.c.l.bf16 %v722
          %v859 = vunpack.c.l.bf16 %v723
          %v860 = vunpack.c.l.bf16 %v724
          %v861 = vunpack.c.l.bf16 %v725
          %v862 = vunpack.c.l.bf16 %v726
          %v863 = vunpack.c.l.bf16 %v727
          %v864 = vunpack.c.l.bf16 %v728
          %v865 = vunpack.c.l.bf16 %v729
          %v866 = vunpack.c.l.bf16 %v730
          %v867 = vunpack.c.l.bf16 %v731
          %v868 = vunpack.c.l.bf16 %v732
          %v869 = vunpack.c.l.bf16 %v733
          %v870 = vunpack.c.l.bf16 %v734
          %v871 = vunpack.c.l.bf16 %v735
          %v872 = vunpack.c.l.bf16 %v736
          %v873 = vunpack.c.l.bf16 %v737
          %v874 = vunpack.c.l.bf16 %v842
          %v875 = vunpack.c.l.bf16 %v843
          %v876 = vunpack.c.l.bf16 %v844
          %v877 = vunpack.c.l.bf16 %v845
          %v878 = vunpack.c.l.bf16 %v846
          %v879 = vunpack.c.l.bf16 %v847
          %v880 = vunpack.c.l.bf16 %v848
          %v881 = vunpack.c.l.bf16 %v849
          %v882 = vunpack.c.l.bf16 %v850
          %v883 = vunpack.c.l.bf16 %v851
          %v884 = vunpack.c.l.bf16 %v852
          %v885 = vunpack.c.l.bf16 %v853
          %v886 = vunpack.c.l.bf16 %v854
          %v887 = vunpack.c.l.bf16 %v855
          %v888 = vunpack.c.l.bf16 %v856
          %v889 = vunpack.c.l.bf16 %v857
          %v890 = vadd.f32 %v858, %v874
          %v891 = vadd.f32 %v859, %v875
          %v892 = vadd.f32 %v860, %v876
          %v893 = vadd.f32 %v861, %v877
          %v894 = vadd.f32 %v862, %v878
          %v895 = vadd.f32 %v863, %v879
          %v896 = vadd.f32 %v864, %v880
          %v897 = vadd.f32 %v865, %v881
          %v898 = vadd.f32 %v866, %v882
          %v899 = vadd.f32 %v867, %v883
          %v900 = vadd.f32 %v868, %v884
          %v901 = vadd.f32 %v869, %v885
          %v902 = vadd.f32 %v870, %v886
          %v903 = vadd.f32 %v871, %v887
          %v904 = vadd.f32 %v872, %v888
          %v905 = vadd.f32 %v873, %v889
          %v906 = vpack.c.bf16 %v890, %v890
          %v907 = vpack.c.bf16 %v891, %v891
          %v908 = vpack.c.bf16 %v892, %v892
          %v909 = vpack.c.bf16 %v893, %v893
          %v910 = vpack.c.bf16 %v894, %v894
          %v911 = vpack.c.bf16 %v895, %v895
          %v912 = vpack.c.bf16 %v896, %v896
          %v913 = vpack.c.bf16 %v897, %v897
          %v914 = vpack.c.bf16 %v898, %v898
          %v915 = vpack.c.bf16 %v899, %v899
          %v916 = vpack.c.bf16 %v900, %v900
          %v917 = vpack.c.bf16 %v901, %v901
          %v918 = vpack.c.bf16 %v902, %v902
          %v919 = vpack.c.bf16 %v903, %v903
          %v920 = vpack.c.bf16 %v904, %v904
          %v921 = vpack.c.bf16 %v905, %v905
          %v922 = vld [vmem:[%s328 + $0x3] sm:$0x1]
          %v923 = vperm.slane %v922, 0
          %vm924 = vcmp.eq.s32.totalorder %v419, %v923
          %vm925 = vcmp.eq.s32.totalorder %v420, %v923
          %vm926 = vcmp.eq.s32.totalorder %v421, %v923
          %vm927 = vcmp.eq.s32.totalorder %v422, %v923
          %vm928 = vcmp.eq.s32.totalorder %v423, %v923
          %vm929 = vcmp.eq.s32.totalorder %v424, %v923
          %vm930 = vcmp.eq.s32.totalorder %v425, %v923
          %vm931 = vcmp.eq.s32.totalorder %v426, %v923
          %vm932 = vcmp.eq.s32.totalorder %v427, %v923
          %vm933 = vcmp.eq.s32.totalorder %v428, %v923
          %vm934 = vcmp.eq.s32.totalorder %v429, %v923
          %vm935 = vcmp.eq.s32.totalorder %v430, %v923
          %vm936 = vcmp.eq.s32.totalorder %v431, %v923
          %vm937 = vcmp.eq.s32.totalorder %v432, %v923
          %vm938 = vcmp.eq.s32.totalorder %v433, %v923
          %vm939 = vcmp.eq.s32.totalorder %v434, %v923
          %v940 = vsel %vm924, 1, 0
          %v941 = vsel %vm925, 1, 0
          %v942 = vsel %vm926, 1, 0
          %v943 = vsel %vm927, 1, 0
          %v944 = vsel %vm928, 1, 0
          %v945 = vsel %vm929, 1, 0
          %v946 = vsel %vm930, 1, 0
          %v947 = vsel %vm931, 1, 0
          %v948 = vsel %vm932, 1, 0
          %v949 = vsel %vm933, 1, 0
          %v950 = vsel %vm934, 1, 0
          %v951 = vsel %vm935, 1, 0
          %v952 = vsel %vm936, 1, 0
          %v953 = vsel %vm937, 1, 0
          %v954 = vsel %vm938, 1, 0
          %v955 = vsel %vm939, 1, 0
          %v956 = vcvt.s32.f32 %v940
          %v957 = vcvt.s32.f32 %v941
          %v958 = vcvt.s32.f32 %v942
          %v959 = vcvt.s32.f32 %v943
          %v960 = vcvt.s32.f32 %v944
          %v961 = vcvt.s32.f32 %v945
          %v962 = vcvt.s32.f32 %v946
          %v963 = vcvt.s32.f32 %v947
          %v964 = vcvt.s32.f32 %v948
          %v965 = vcvt.s32.f32 %v949
          %v966 = vcvt.s32.f32 %v950
          %v967 = vcvt.s32.f32 %v951
          %v968 = vcvt.s32.f32 %v952
          %v969 = vcvt.s32.f32 %v953
          %v970 = vcvt.s32.f32 %v954
          %v971 = vcvt.s32.f32 %v955
          %v972 = vpack.c.bf16 %v956, %v956
          %v973 = vpack.c.bf16 %v957, %v957
          %v974 = vpack.c.bf16 %v958, %v958
          %v975 = vpack.c.bf16 %v959, %v959
          %v976 = vpack.c.bf16 %v960, %v960
          %v977 = vpack.c.bf16 %v961, %v961
          %v978 = vpack.c.bf16 %v962, %v962
          %v979 = vpack.c.bf16 %v963, %v963
          %v980 = vpack.c.bf16 %v964, %v964
          %v981 = vpack.c.bf16 %v965, %v965
          %v982 = vpack.c.bf16 %v966, %v966
          %v983 = vpack.c.bf16 %v967, %v967
          %v984 = vpack.c.bf16 %v968, %v968
          %v985 = vpack.c.bf16 %v969, %v969
          %v986 = vpack.c.bf16 %v970, %v970
          %v987 = vpack.c.bf16 %v971, %v971
          %v988 = vshrl.u32 %v739, 16
          %v989 = vpack.i.b16 %v988, %v988
          %v991 = vperm.slane %v989, 1
          %v992 = vunpack.c.l.bf16 %v972
          %v993 = vunpack.c.l.bf16 %v973
          %v994 = vunpack.c.l.bf16 %v974
          %v995 = vunpack.c.l.bf16 %v975
          %v996 = vunpack.c.l.bf16 %v976
          %v997 = vunpack.c.l.bf16 %v977
          %v998 = vunpack.c.l.bf16 %v978
          %v999 = vunpack.c.l.bf16 %v979
          %v1000 = vunpack.c.l.bf16 %v980
          %v1001 = vunpack.c.l.bf16 %v981
          %v1002 = vunpack.c.l.bf16 %v982
          %v1003 = vunpack.c.l.bf16 %v983
          %v1004 = vunpack.c.l.bf16 %v984
          %v1005 = vunpack.c.l.bf16 %v985
          %v1006 = vunpack.c.l.bf16 %v986
          %v1007 = vunpack.c.l.bf16 %v987
          %v1008 = vunpack.c.l.bf16 %v991
          %v1009 = vmul.f32 %v992, %v1008
          %v1010 = vmul.f32 %v993, %v1008
          %v1011 = vmul.f32 %v994, %v1008
          %v1012 = vmul.f32 %v995, %v1008
          %v1013 = vmul.f32 %v996, %v1008
          %v1014 = vmul.f32 %v997, %v1008
          %v1015 = vmul.f32 %v998, %v1008
          %v1016 = vmul.f32 %v999, %v1008
          %v1017 = vmul.f32 %v1000, %v1008
          %v1018 = vmul.f32 %v1001, %v1008
          %v1019 = vmul.f32 %v1002, %v1008
          %v1020 = vmul.f32 %v1003, %v1008
          %v1021 = vmul.f32 %v1004, %v1008
          %v1022 = vmul.f32 %v1005, %v1008
          %v1023 = vmul.f32 %v1006, %v1008
          %v1024 = vmul.f32 %v1007, %v1008
          %v1025 = vpack.c.bf16 %v1009, %v1009
          %v1026 = vpack.c.bf16 %v1010, %v1010
          %v1027 = vpack.c.bf16 %v1011, %v1011
          %v1028 = vpack.c.bf16 %v1012, %v1012
          %v1029 = vpack.c.bf16 %v1013, %v1013
          %v1030 = vpack.c.bf16 %v1014, %v1014
          %v1031 = vpack.c.bf16 %v1015, %v1015
          %v1032 = vpack.c.bf16 %v1016, %v1016
          %v1033 = vpack.c.bf16 %v1017, %v1017
          %v1034 = vpack.c.bf16 %v1018, %v1018
          %v1035 = vpack.c.bf16 %v1019, %v1019
          %v1036 = vpack.c.bf16 %v1020, %v1020
          %v1037 = vpack.c.bf16 %v1021, %v1021
          %v1038 = vpack.c.bf16 %v1022, %v1022
          %v1039 = vpack.c.bf16 %v1023, %v1023
          %v1040 = vpack.c.bf16 %v1024, %v1024
          %v1041 = vunpack.c.l.bf16 %v906
          %v1042 = vunpack.c.l.bf16 %v907
          %v1043 = vunpack.c.l.bf16 %v908
          %v1044 = vunpack.c.l.bf16 %v909
          %v1045 = vunpack.c.l.bf16 %v910
          %v1046 = vunpack.c.l.bf16 %v911
          %v1047 = vunpack.c.l.bf16 %v912
          %v1048 = vunpack.c.l.bf16 %v913
          %v1049 = vunpack.c.l.bf16 %v914
          %v1050 = vunpack.c.l.bf16 %v915
          %v1051 = vunpack.c.l.bf16 %v916
          %v1052 = vunpack.c.l.bf16 %v917
          %v1053 = vunpack.c.l.bf16 %v918
          %v1054 = vunpack.c.l.bf16 %v919
          %v1055 = vunpack.c.l.bf16 %v920
          %v1056 = vunpack.c.l.bf16 %v921
          %v1057 = vunpack.c.l.bf16 %v1025
          %v1058 = vunpack.c.l.bf16 %v1026
          %v1059 = vunpack.c.l.bf16 %v1027
          %v1060 = vunpack.c.l.bf16 %v1028
          %v1061 = vunpack.c.l.bf16 %v1029
          %v1062 = vunpack.c.l.bf16 %v1030
          %v1063 = vunpack.c.l.bf16 %v1031
          %v1064 = vunpack.c.l.bf16 %v1032
          %v1065 = vunpack.c.l.bf16 %v1033
          %v1066 = vunpack.c.l.bf16 %v1034
          %v1067 = vunpack.c.l.bf16 %v1035
          %v1068 = vunpack.c.l.bf16 %v1036
          %v1069 = vunpack.c.l.bf16 %v1037
          %v1070 = vunpack.c.l.bf16 %v1038
          %v1071 = vunpack.c.l.bf16 %v1039
          %v1072 = vunpack.c.l.bf16 %v1040
          %v1073 = vadd.f32 %v1041, %v1057
          %v1074 = vadd.f32 %v1042, %v1058
          %v1075 = vadd.f32 %v1043, %v1059
          %v1076 = vadd.f32 %v1044, %v1060
          %v1077 = vadd.f32 %v1045, %v1061
          %v1078 = vadd.f32 %v1046, %v1062
          %v1079 = vadd.f32 %v1047, %v1063
          %v1080 = vadd.f32 %v1048, %v1064
          %v1081 = vadd.f32 %v1049, %v1065
          %v1082 = vadd.f32 %v1050, %v1066
          %v1083 = vadd.f32 %v1051, %v1067
          %v1084 = vadd.f32 %v1052, %v1068
          %v1085 = vadd.f32 %v1053, %v1069
          %v1086 = vadd.f32 %v1054, %v1070
          %v1087 = vadd.f32 %v1055, %v1071
          %v1088 = vadd.f32 %v1056, %v1072
          %v1089 = vpack.c.bf16 %v1073, %v1073
          %v1090 = vpack.c.bf16 %v1074, %v1074
          %v1091 = vpack.c.bf16 %v1075, %v1075
          %v1092 = vpack.c.bf16 %v1076, %v1076
          %v1093 = vpack.c.bf16 %v1077, %v1077
          %v1094 = vpack.c.bf16 %v1078, %v1078
          %v1095 = vpack.c.bf16 %v1079, %v1079
          %v1096 = vpack.c.bf16 %v1080, %v1080
          %v1097 = vpack.c.bf16 %v1081, %v1081
          %v1098 = vpack.c.bf16 %v1082, %v1082
          %v1099 = vpack.c.bf16 %v1083, %v1083
          %v1100 = vpack.c.bf16 %v1084, %v1084
          %v1101 = vpack.c.bf16 %v1085, %v1085
          %v1102 = vpack.c.bf16 %v1086, %v1086
          %v1103 = vpack.c.bf16 %v1087, %v1087
          %v1104 = vpack.c.bf16 %v1088, %v1088
          %1105 = vst [vmem:[#allocation3] sm:$0xf] %v1089
          %1106 = vst [vmem:[#allocation3 + $0x4] sm:$0xf] %v1090
          %1107 = vst [vmem:[#allocation3 + $0x8] sm:$0xf] %v1091
          %1108 = vst [vmem:[#allocation3 + $0xc] sm:$0xf] %v1092
          %1109 = vst [vmem:[#allocation3 + $0x10] sm:$0xf] %v1093
          %1110 = vst [vmem:[#allocation3 + $0x14] sm:$0xf] %v1094
          %1111 = vst [vmem:[#allocation3 + $0x18] sm:$0xf] %v1095
          %1112 = vst [vmem:[#allocation3 + $0x1c] sm:$0xf] %v1096
          %1113 = vst [vmem:[#allocation3 + $0x20] sm:$0xf] %v1097
          %1114 = vst [vmem:[#allocation3 + $0x24] sm:$0xf] %v1098
          %1115 = vst [vmem:[#allocation3 + $0x28] sm:$0xf] %v1099
          %1116 = vst [vmem:[#allocation3 + $0x2c] sm:$0xf] %v1100
          %1117 = vst [vmem:[#allocation3 + $0x30] sm:$0xf] %v1101
          %1118 = vst [vmem:[#allocation3 + $0x34] sm:$0xf] %v1102
          %1119 = vst [vmem:[#allocation3 + $0x38] sm:$0xf] %v1103
          %1120 = vst [vmem:[#allocation3 + $0x3c] sm:$0xf] %v1104
          %v1121 = vld [vmem:[%s328 + $0x4] sm:$0x1]
          %v1122 = vld [vmem:[%s335] sm:$0x4]
          %v1123 = vperm.slane %v1121, 0
          %vm1124 = vcmp.eq.s32.totalorder %v419, %v1123
          %vm1125 = vcmp.eq.s32.totalorder %v420, %v1123
          %vm1126 = vcmp.eq.s32.totalorder %v421, %v1123
          %vm1127 = vcmp.eq.s32.totalorder %v422, %v1123
          %vm1128 = vcmp.eq.s32.totalorder %v423, %v1123
          %vm1129 = vcmp.eq.s32.totalorder %v424, %v1123
          %vm1130 = vcmp.eq.s32.totalorder %v425, %v1123
          %vm1131 = vcmp.eq.s32.totalorder %v426, %v1123
          %vm1132 = vcmp.eq.s32.totalorder %v427, %v1123
          %vm1133 = vcmp.eq.s32.totalorder %v428, %v1123
          %vm1134 = vcmp.eq.s32.totalorder %v429, %v1123
          %vm1135 = vcmp.eq.s32.totalorder %v430, %v1123
          %vm1136 = vcmp.eq.s32.totalorder %v431, %v1123
          %vm1137 = vcmp.eq.s32.totalorder %v432, %v1123
          %vm1138 = vcmp.eq.s32.totalorder %v433, %v1123
          %vm1139 = vcmp.eq.s32.totalorder %v434, %v1123
          %v1140 = vsel %vm1124, 1, 0
          %v1141 = vsel %vm1125, 1, 0
          %v1142 = vsel %vm1126, 1, 0
          %v1143 = vsel %vm1127, 1, 0
          %v1144 = vsel %vm1128, 1, 0
          %v1145 = vsel %vm1129, 1, 0
          %v1146 = vsel %vm1130, 1, 0
          %v1147 = vsel %vm1131, 1, 0
          %v1148 = vsel %vm1132, 1, 0
          %v1149 = vsel %vm1133, 1, 0
          %v1150 = vsel %vm1134, 1, 0
          %v1151 = vsel %vm1135, 1, 0
          %v1152 = vsel %vm1136, 1, 0
          %v1153 = vsel %vm1137, 1, 0
          %v1154 = vsel %vm1138, 1, 0
          %v1155 = vsel %vm1139, 1, 0
          %v1156 = vcvt.s32.f32 %v1140
          %v1157 = vcvt.s32.f32 %v1141
          %v1158 = vcvt.s32.f32 %v1142
          %v1159 = vcvt.s32.f32 %v1143
          %v1160 = vcvt.s32.f32 %v1144
          %v1161 = vcvt.s32.f32 %v1145
          %v1162 = vcvt.s32.f32 %v1146
          %v1163 = vcvt.s32.f32 %v1147
          %v1164 = vcvt.s32.f32 %v1148
          %v1165 = vcvt.s32.f32 %v1149
          %v1166 = vcvt.s32.f32 %v1150
          %v1167 = vcvt.s32.f32 %v1151
          %v1168 = vcvt.s32.f32 %v1152
          %v1169 = vcvt.s32.f32 %v1153
          %v1170 = vcvt.s32.f32 %v1154
          %v1171 = vcvt.s32.f32 %v1155
          %v1172 = vpack.c.bf16 %v1156, %v1156
          %v1173 = vpack.c.bf16 %v1157, %v1157
          %v1174 = vpack.c.bf16 %v1158, %v1158
          %v1175 = vpack.c.bf16 %v1159, %v1159
          %v1176 = vpack.c.bf16 %v1160, %v1160
          %v1177 = vpack.c.bf16 %v1161, %v1161
          %v1178 = vpack.c.bf16 %v1162, %v1162
          %v1179 = vpack.c.bf16 %v1163, %v1163
          %v1180 = vpack.c.bf16 %v1164, %v1164
          %v1181 = vpack.c.bf16 %v1165, %v1165
          %v1182 = vpack.c.bf16 %v1166, %v1166
          %v1183 = vpack.c.bf16 %v1167, %v1167
          %v1184 = vpack.c.bf16 %v1168, %v1168
          %v1185 = vpack.c.bf16 %v1169, %v1169
          %v1186 = vpack.c.bf16 %v1170, %v1170
          %v1187 = vpack.c.bf16 %v1171, %v1171
          %v1189 = vpack.i.b16 %v1122, %v1122
          %v1191 = vperm.slane %v1189, 2
          %v1192 = vunpack.c.l.bf16 %v1172
          %v1193 = vunpack.c.l.bf16 %v1173
          %v1194 = vunpack.c.l.bf16 %v1174
          %v1195 = vunpack.c.l.bf16 %v1175
          %v1196 = vunpack.c.l.bf16 %v1176
          %v1197 = vunpack.c.l.bf16 %v1177
          %v1198 = vunpack.c.l.bf16 %v1178
          %v1199 = vunpack.c.l.bf16 %v1179
          %v1200 = vunpack.c.l.bf16 %v1180
          %v1201 = vunpack.c.l.bf16 %v1181
          %v1202 = vunpack.c.l.bf16 %v1182
          %v1203 = vunpack.c.l.bf16 %v1183
          %v1204 = vunpack.c.l.bf16 %v1184
          %v1205 = vunpack.c.l.bf16 %v1185
          %v1206 = vunpack.c.l.bf16 %v1186
          %v1207 = vunpack.c.l.bf16 %v1187
          %v1208 = vunpack.c.l.bf16 %v1191
          %v1209 = vmul.f32 %v1192, %v1208
          %v1210 = vmul.f32 %v1193, %v1208
          %v1211 = vmul.f32 %v1194, %v1208
          %v1212 = vmul.f32 %v1195, %v1208
          %v1213 = vmul.f32 %v1196, %v1208
          %v1214 = vmul.f32 %v1197, %v1208
          %v1215 = vmul.f32 %v1198, %v1208
          %v1216 = vmul.f32 %v1199, %v1208
          %v1217 = vmul.f32 %v1200, %v1208
          %v1218 = vmul.f32 %v1201, %v1208
          %v1219 = vmul.f32 %v1202, %v1208
          %v1220 = vmul.f32 %v1203, %v1208
          %v1221 = vmul.f32 %v1204, %v1208
          %v1222 = vmul.f32 %v1205, %v1208
          %v1223 = vmul.f32 %v1206, %v1208
          %v1224 = vmul.f32 %v1207, %v1208
          %v1225 = vpack.c.bf16 %v1209, %v1209
          %v1226 = vpack.c.bf16 %v1210, %v1210
          %v1227 = vpack.c.bf16 %v1211, %v1211
          %v1228 = vpack.c.bf16 %v1212, %v1212
          %v1229 = vpack.c.bf16 %v1213, %v1213
          %v1230 = vpack.c.bf16 %v1214, %v1214
          %v1231 = vpack.c.bf16 %v1215, %v1215
          %v1232 = vpack.c.bf16 %v1216, %v1216
          %v1233 = vpack.c.bf16 %v1217, %v1217
          %v1234 = vpack.c.bf16 %v1218, %v1218
          %v1235 = vpack.c.bf16 %v1219, %v1219
          %v1236 = vpack.c.bf16 %v1220, %v1220
          %v1237 = vpack.c.bf16 %v1221, %v1221
          %v1238 = vpack.c.bf16 %v1222, %v1222
          %v1239 = vpack.c.bf16 %v1223, %v1223
          %v1240 = vpack.c.bf16 %v1224, %v1224
          %v1241 = vld [vmem:[%s328 + $0x5] sm:$0x1]
          %v1242 = vperm.slane %v1241, 0
          %vm1243 = vcmp.eq.s32.totalorder %v419, %v1242
          %vm1244 = vcmp.eq.s32.totalorder %v420, %v1242
          %vm1245 = vcmp.eq.s32.totalorder %v421, %v1242
          %vm1246 = vcmp.eq.s32.totalorder %v422, %v1242
          %vm1247 = vcmp.eq.s32.totalorder %v423, %v1242
          %vm1248 = vcmp.eq.s32.totalorder %v424, %v1242
          %vm1249 = vcmp.eq.s32.totalorder %v425, %v1242
          %vm1250 = vcmp.eq.s32.totalorder %v426, %v1242
          %vm1251 = vcmp.eq.s32.totalorder %v427, %v1242
          %vm1252 = vcmp.eq.s32.totalorder %v428, %v1242
          %vm1253 = vcmp.eq.s32.totalorder %v429, %v1242
          %vm1254 = vcmp.eq.s32.totalorder %v430, %v1242
          %vm1255 = vcmp.eq.s32.totalorder %v431, %v1242
          %vm1256 = vcmp.eq.s32.totalorder %v432, %v1242
          %vm1257 = vcmp.eq.s32.totalorder %v433, %v1242
          %vm1258 = vcmp.eq.s32.totalorder %v434, %v1242
          %v1259 = vsel %vm1243, 1, 0
          %v1260 = vsel %vm1244, 1, 0
          %v1261 = vsel %vm1245, 1, 0
          %v1262 = vsel %vm1246, 1, 0
          %v1263 = vsel %vm1247, 1, 0
          %v1264 = vsel %vm1248, 1, 0
          %v1265 = vsel %vm1249, 1, 0
          %v1266 = vsel %vm1250, 1, 0
          %v1267 = vsel %vm1251, 1, 0
          %v1268 = vsel %vm1252, 1, 0
          %v1269 = vsel %vm1253, 1, 0
          %v1270 = vsel %vm1254, 1, 0
          %v1271 = vsel %vm1255, 1, 0
          %v1272 = vsel %vm1256, 1, 0
          %v1273 = vsel %vm1257, 1, 0
          %v1274 = vsel %vm1258, 1, 0
          %v1275 = vcvt.s32.f32 %v1259
          %v1276 = vcvt.s32.f32 %v1260
          %v1277 = vcvt.s32.f32 %v1261
          %v1278 = vcvt.s32.f32 %v1262
          %v1279 = vcvt.s32.f32 %v1263
          %v1280 = vcvt.s32.f32 %v1264
          %v1281 = vcvt.s32.f32 %v1265
          %v1282 = vcvt.s32.f32 %v1266
          %v1283 = vcvt.s32.f32 %v1267
          %v1284 = vcvt.s32.f32 %v1268
          %v1285 = vcvt.s32.f32 %v1269
          %v1286 = vcvt.s32.f32 %v1270
          %v1287 = vcvt.s32.f32 %v1271
          %v1288 = vcvt.s32.f32 %v1272
          %v1289 = vcvt.s32.f32 %v1273
          %v1290 = vcvt.s32.f32 %v1274
          %v1291 = vpack.c.bf16 %v1275, %v1275
          %v1292 = vpack.c.bf16 %v1276, %v1276
          %v1293 = vpack.c.bf16 %v1277, %v1277
          %v1294 = vpack.c.bf16 %v1278, %v1278
          %v1295 = vpack.c.bf16 %v1279, %v1279
          %v1296 = vpack.c.bf16 %v1280, %v1280
          %v1297 = vpack.c.bf16 %v1281, %v1281
          %v1298 = vpack.c.bf16 %v1282, %v1282
          %v1299 = vpack.c.bf16 %v1283, %v1283
          %v1300 = vpack.c.bf16 %v1284, %v1284
          %v1301 = vpack.c.bf16 %v1285, %v1285
          %v1302 = vpack.c.bf16 %v1286, %v1286
          %v1303 = vpack.c.bf16 %v1287, %v1287
          %v1304 = vpack.c.bf16 %v1288, %v1288
          %v1305 = vpack.c.bf16 %v1289, %v1289
          %v1306 = vpack.c.bf16 %v1290, %v1290
          %v1307 = vshrl.u32 %v1122, 16
          %v1308 = vpack.i.b16 %v1307, %v1307
          %v1310 = vperm.slane %v1308, 2
          %v1311 = vunpack.c.l.bf16 %v1291
          %v1312 = vunpack.c.l.bf16 %v1292
          %v1313 = vunpack.c.l.bf16 %v1293
          %v1314 = vunpack.c.l.bf16 %v1294
          %v1315 = vunpack.c.l.bf16 %v1295
          %v1316 = vunpack.c.l.bf16 %v1296
          %v1317 = vunpack.c.l.bf16 %v1297
          %v1318 = vunpack.c.l.bf16 %v1298
          %v1319 = vunpack.c.l.bf16 %v1299
          %v1320 = vunpack.c.l.bf16 %v1300
          %v1321 = vunpack.c.l.bf16 %v1301
          %v1322 = vunpack.c.l.bf16 %v1302
          %v1323 = vunpack.c.l.bf16 %v1303
          %v1324 = vunpack.c.l.bf16 %v1304
          %v1325 = vunpack.c.l.bf16 %v1305
          %v1326 = vunpack.c.l.bf16 %v1306
          %v1327 = vunpack.c.l.bf16 %v1310
          %v1328 = vmul.f32 %v1311, %v1327
          %v1329 = vmul.f32 %v1312, %v1327
          %v1330 = vmul.f32 %v1313, %v1327
          %v1331 = vmul.f32 %v1314, %v1327
          %v1332 = vmul.f32 %v1315, %v1327
          %v1333 = vmul.f32 %v1316, %v1327
          %v1334 = vmul.f32 %v1317, %v1327
          %v1335 = vmul.f32 %v1318, %v1327
          %v1336 = vmul.f32 %v1319, %v1327
          %v1337 = vmul.f32 %v1320, %v1327
          %v1338 = vmul.f32 %v1321, %v1327
          %v1339 = vmul.f32 %v1322, %v1327
          %v1340 = vmul.f32 %v1323, %v1327
          %v1341 = vmul.f32 %v1324, %v1327
          %v1342 = vmul.f32 %v1325, %v1327
          %v1343 = vmul.f32 %v1326, %v1327
          %v1344 = vpack.c.bf16 %v1328, %v1328
          %v1345 = vpack.c.bf16 %v1329, %v1329
          %v1346 = vpack.c.bf16 %v1330, %v1330
          %v1347 = vpack.c.bf16 %v1331, %v1331
          %v1348 = vpack.c.bf16 %v1332, %v1332
          %v1349 = vpack.c.bf16 %v1333, %v1333
          %v1350 = vpack.c.bf16 %v1334, %v1334
          %v1351 = vpack.c.bf16 %v1335, %v1335
          %v1352 = vpack.c.bf16 %v1336, %v1336
          %v1353 = vpack.c.bf16 %v1337, %v1337
          %v1354 = vpack.c.bf16 %v1338, %v1338
          %v1355 = vpack.c.bf16 %v1339, %v1339
          %v1356 = vpack.c.bf16 %v1340, %v1340
          %v1357 = vpack.c.bf16 %v1341, %v1341
          %v1358 = vpack.c.bf16 %v1342, %v1342
          %v1359 = vpack.c.bf16 %v1343, %v1343
          %v1360 = vunpack.c.l.bf16 %v1225
          %v1361 = vunpack.c.l.bf16 %v1226
          %v1362 = vunpack.c.l.bf16 %v1227
          %v1363 = vunpack.c.l.bf16 %v1228
          %v1364 = vunpack.c.l.bf16 %v1229
          %v1365 = vunpack.c.l.bf16 %v1230
          %v1366 = vunpack.c.l.bf16 %v1231
          %v1367 = vunpack.c.l.bf16 %v1232
          %v1368 = vunpack.c.l.bf16 %v1233
          %v1369 = vunpack.c.l.bf16 %v1234
          %v1370 = vunpack.c.l.bf16 %v1235
          %v1371 = vunpack.c.l.bf16 %v1236
          %v1372 = vunpack.c.l.bf16 %v1237
          %v1373 = vunpack.c.l.bf16 %v1238
          %v1374 = vunpack.c.l.bf16 %v1239
          %v1375 = vunpack.c.l.bf16 %v1240
          %v1376 = vunpack.c.l.bf16 %v1344
          %v1377 = vunpack.c.l.bf16 %v1345
          %v1378 = vunpack.c.l.bf16 %v1346
          %v1379 = vunpack.c.l.bf16 %v1347
          %v1380 = vunpack.c.l.bf16 %v1348
          %v1381 = vunpack.c.l.bf16 %v1349
          %v1382 = vunpack.c.l.bf16 %v1350
          %v1383 = vunpack.c.l.bf16 %v1351
          %v1384 = vunpack.c.l.bf16 %v1352
          %v1385 = vunpack.c.l.bf16 %v1353
          %v1386 = vunpack.c.l.bf16 %v1354
          %v1387 = vunpack.c.l.bf16 %v1355
          %v1388 = vunpack.c.l.bf16 %v1356
          %v1389 = vunpack.c.l.bf16 %v1357
          %v1390 = vunpack.c.l.bf16 %v1358
          %v1391 = vunpack.c.l.bf16 %v1359
          %v1392 = vadd.f32 %v1360, %v1376
          %v1393 = vadd.f32 %v1361, %v1377
          %v1394 = vadd.f32 %v1362, %v1378
          %v1395 = vadd.f32 %v1363, %v1379
          %v1396 = vadd.f32 %v1364, %v1380
          %v1397 = vadd.f32 %v1365, %v1381
          %v1398 = vadd.f32 %v1366, %v1382
          %v1399 = vadd.f32 %v1367, %v1383
          %v1400 = vadd.f32 %v1368, %v1384
          %v1401 = vadd.f32 %v1369, %v1385
          %v1402 = vadd.f32 %v1370, %v1386
          %v1403 = vadd.f32 %v1371, %v1387
          %v1404 = vadd.f32 %v1372, %v1388
          %v1405 = vadd.f32 %v1373, %v1389
          %v1406 = vadd.f32 %v1374, %v1390
          %v1407 = vadd.f32 %v1375, %v1391
          %v1408 = vpack.c.bf16 %v1392, %v1392
          %v1409 = vpack.c.bf16 %v1393, %v1393
          %v1410 = vpack.c.bf16 %v1394, %v1394
          %v1411 = vpack.c.bf16 %v1395, %v1395
          %v1412 = vpack.c.bf16 %v1396, %v1396
          %v1413 = vpack.c.bf16 %v1397, %v1397
          %v1414 = vpack.c.bf16 %v1398, %v1398
          %v1415 = vpack.c.bf16 %v1399, %v1399
          %v1416 = vpack.c.bf16 %v1400, %v1400
          %v1417 = vpack.c.bf16 %v1401, %v1401
          %v1418 = vpack.c.bf16 %v1402, %v1402
          %v1419 = vpack.c.bf16 %v1403, %v1403
          %v1420 = vpack.c.bf16 %v1404, %v1404
          %v1421 = vpack.c.bf16 %v1405, %v1405
          %v1422 = vpack.c.bf16 %v1406, %v1406
          %v1423 = vpack.c.bf16 %v1407, %v1407
          %v1424 = vld [vmem:[%s328 + $0x6] sm:$0x1]
          %v1425 = vld [vmem:[%s335] sm:$0x8]
          %v1426 = vperm.slane %v1424, 0
          %vm1427 = vcmp.eq.s32.totalorder %v419, %v1426
          %vm1428 = vcmp.eq.s32.totalorder %v420, %v1426
          %vm1429 = vcmp.eq.s32.totalorder %v421, %v1426
          %vm1430 = vcmp.eq.s32.totalorder %v422, %v1426
          %vm1431 = vcmp.eq.s32.totalorder %v423, %v1426
          %vm1432 = vcmp.eq.s32.totalorder %v424, %v1426
          %vm1433 = vcmp.eq.s32.totalorder %v425, %v1426
          %vm1434 = vcmp.eq.s32.totalorder %v426, %v1426
          %vm1435 = vcmp.eq.s32.totalorder %v427, %v1426
          %vm1436 = vcmp.eq.s32.totalorder %v428, %v1426
          %vm1437 = vcmp.eq.s32.totalorder %v429, %v1426
          %vm1438 = vcmp.eq.s32.totalorder %v430, %v1426
          %vm1439 = vcmp.eq.s32.totalorder %v431, %v1426
          %vm1440 = vcmp.eq.s32.totalorder %v432, %v1426
          %vm1441 = vcmp.eq.s32.totalorder %v433, %v1426
          %vm1442 = vcmp.eq.s32.totalorder %v434, %v1426
          %v1443 = vsel %vm1427, 1, 0
          %v1444 = vsel %vm1428, 1, 0
          %v1445 = vsel %vm1429, 1, 0
          %v1446 = vsel %vm1430, 1, 0
          %v1447 = vsel %vm1431, 1, 0
          %v1448 = vsel %vm1432, 1, 0
          %v1449 = vsel %vm1433, 1, 0
          %v1450 = vsel %vm1434, 1, 0
          %v1451 = vsel %vm1435, 1, 0
          %v1452 = vsel %vm1436, 1, 0
          %v1453 = vsel %vm1437, 1, 0
          %v1454 = vsel %vm1438, 1, 0
          %v1455 = vsel %vm1439, 1, 0
          %v1456 = vsel %vm1440, 1, 0
          %v1457 = vsel %vm1441, 1, 0
          %v1458 = vsel %vm1442, 1, 0
          %v1459 = vcvt.s32.f32 %v1443
          %v1460 = vcvt.s32.f32 %v1444
          %v1461 = vcvt.s32.f32 %v1445
          %v1462 = vcvt.s32.f32 %v1446
          %v1463 = vcvt.s32.f32 %v1447
          %v1464 = vcvt.s32.f32 %v1448
          %v1465 = vcvt.s32.f32 %v1449
          %v1466 = vcvt.s32.f32 %v1450
          %v1467 = vcvt.s32.f32 %v1451
          %v1468 = vcvt.s32.f32 %v1452
          %v1469 = vcvt.s32.f32 %v1453
          %v1470 = vcvt.s32.f32 %v1454
          %v1471 = vcvt.s32.f32 %v1455
          %v1472 = vcvt.s32.f32 %v1456
          %v1473 = vcvt.s32.f32 %v1457
          %v1474 = vcvt.s32.f32 %v1458
          %v1475 = vpack.c.bf16 %v1459, %v1459
          %v1476 = vpack.c.bf16 %v1460, %v1460
          %v1477 = vpack.c.bf16 %v1461, %v1461
          %v1478 = vpack.c.bf16 %v1462, %v1462
          %v1479 = vpack.c.bf16 %v1463, %v1463
          %v1480 = vpack.c.bf16 %v1464, %v1464
          %v1481 = vpack.c.bf16 %v1465, %v1465
          %v1482 = vpack.c.bf16 %v1466, %v1466
          %v1483 = vpack.c.bf16 %v1467, %v1467
          %v1484 = vpack.c.bf16 %v1468, %v1468
          %v1485 = vpack.c.bf16 %v1469, %v1469
          %v1486 = vpack.c.bf16 %v1470, %v1470
          %v1487 = vpack.c.bf16 %v1471, %v1471
          %v1488 = vpack.c.bf16 %v1472, %v1472
          %v1489 = vpack.c.bf16 %v1473, %v1473
          %v1490 = vpack.c.bf16 %v1474, %v1474
          %v1492 = vpack.i.b16 %v1425, %v1425
          %v1494 = vperm.slane %v1492, 3
          %v1495 = vunpack.c.l.bf16 %v1475
          %v1496 = vunpack.c.l.bf16 %v1476
          %v1497 = vunpack.c.l.bf16 %v1477
          %v1498 = vunpack.c.l.bf16 %v1478
          %v1499 = vunpack.c.l.bf16 %v1479
          %v1500 = vunpack.c.l.bf16 %v1480
          %v1501 = vunpack.c.l.bf16 %v1481
          %v1502 = vunpack.c.l.bf16 %v1482
          %v1503 = vunpack.c.l.bf16 %v1483
          %v1504 = vunpack.c.l.bf16 %v1484
          %v1505 = vunpack.c.l.bf16 %v1485
          %v1506 = vunpack.c.l.bf16 %v1486
          %v1507 = vunpack.c.l.bf16 %v1487
          %v1508 = vunpack.c.l.bf16 %v1488
          %v1509 = vunpack.c.l.bf16 %v1489
          %v1510 = vunpack.c.l.bf16 %v1490
          %v1511 = vunpack.c.l.bf16 %v1494
          %v1512 = vmul.f32 %v1495, %v1511
          %v1513 = vmul.f32 %v1496, %v1511
          %v1514 = vmul.f32 %v1497, %v1511
          %v1515 = vmul.f32 %v1498, %v1511
          %v1516 = vmul.f32 %v1499, %v1511
          %v1517 = vmul.f32 %v1500, %v1511
          %v1518 = vmul.f32 %v1501, %v1511
          %v1519 = vmul.f32 %v1502, %v1511
          %v1520 = vmul.f32 %v1503, %v1511
          %v1521 = vmul.f32 %v1504, %v1511
          %v1522 = vmul.f32 %v1505, %v1511
          %v1523 = vmul.f32 %v1506, %v1511
          %v1524 = vmul.f32 %v1507, %v1511
          %v1525 = vmul.f32 %v1508, %v1511
          %v1526 = vmul.f32 %v1509, %v1511
          %v1527 = vmul.f32 %v1510, %v1511
          %v1528 = vpack.c.bf16 %v1512, %v1512
          %v1529 = vpack.c.bf16 %v1513, %v1513
          %v1530 = vpack.c.bf16 %v1514, %v1514
          %v1531 = vpack.c.bf16 %v1515, %v1515
          %v1532 = vpack.c.bf16 %v1516, %v1516
          %v1533 = vpack.c.bf16 %v1517, %v1517
          %v1534 = vpack.c.bf16 %v1518, %v1518
          %v1535 = vpack.c.bf16 %v1519, %v1519
          %v1536 = vpack.c.bf16 %v1520, %v1520
          %v1537 = vpack.c.bf16 %v1521, %v1521
          %v1538 = vpack.c.bf16 %v1522, %v1522
          %v1539 = vpack.c.bf16 %v1523, %v1523
          %v1540 = vpack.c.bf16 %v1524, %v1524
          %v1541 = vpack.c.bf16 %v1525, %v1525
          %v1542 = vpack.c.bf16 %v1526, %v1526
          %v1543 = vpack.c.bf16 %v1527, %v1527
          %v1544 = vunpack.c.l.bf16 %v1408
          %v1545 = vunpack.c.l.bf16 %v1409
          %v1546 = vunpack.c.l.bf16 %v1410
          %v1547 = vunpack.c.l.bf16 %v1411
          %v1548 = vunpack.c.l.bf16 %v1412
          %v1549 = vunpack.c.l.bf16 %v1413
          %v1550 = vunpack.c.l.bf16 %v1414
          %v1551 = vunpack.c.l.bf16 %v1415
          %v1552 = vunpack.c.l.bf16 %v1416
          %v1553 = vunpack.c.l.bf16 %v1417
          %v1554 = vunpack.c.l.bf16 %v1418
          %v1555 = vunpack.c.l.bf16 %v1419
          %v1556 = vunpack.c.l.bf16 %v1420
          %v1557 = vunpack.c.l.bf16 %v1421
          %v1558 = vunpack.c.l.bf16 %v1422
          %v1559 = vunpack.c.l.bf16 %v1423
          %v1560 = vunpack.c.l.bf16 %v1528
          %v1561 = vunpack.c.l.bf16 %v1529
          %v1562 = vunpack.c.l.bf16 %v1530
          %v1563 = vunpack.c.l.bf16 %v1531
          %v1564 = vunpack.c.l.bf16 %v1532
          %v1565 = vunpack.c.l.bf16 %v1533
          %v1566 = vunpack.c.l.bf16 %v1534
          %v1567 = vunpack.c.l.bf16 %v1535
          %v1568 = vunpack.c.l.bf16 %v1536
          %v1569 = vunpack.c.l.bf16 %v1537
          %v1570 = vunpack.c.l.bf16 %v1538
          %v1571 = vunpack.c.l.bf16 %v1539
          %v1572 = vunpack.c.l.bf16 %v1540
          %v1573 = vunpack.c.l.bf16 %v1541
          %v1574 = vunpack.c.l.bf16 %v1542
          %v1575 = vunpack.c.l.bf16 %v1543
          %v1576 = vadd.f32 %v1544, %v1560
          %v1577 = vadd.f32 %v1545, %v1561
          %v1578 = vadd.f32 %v1546, %v1562
          %v1579 = vadd.f32 %v1547, %v1563
          %v1580 = vadd.f32 %v1548, %v1564
          %v1581 = vadd.f32 %v1549, %v1565
          %v1582 = vadd.f32 %v1550, %v1566
          %v1583 = vadd.f32 %v1551, %v1567
          %v1584 = vadd.f32 %v1552, %v1568
          %v1585 = vadd.f32 %v1553, %v1569
          %v1586 = vadd.f32 %v1554, %v1570
          %v1587 = vadd.f32 %v1555, %v1571
          %v1588 = vadd.f32 %v1556, %v1572
          %v1589 = vadd.f32 %v1557, %v1573
          %v1590 = vadd.f32 %v1558, %v1574
          %v1591 = vadd.f32 %v1559, %v1575
          %v1592 = vpack.c.bf16 %v1576, %v1576
          %v1593 = vpack.c.bf16 %v1577, %v1577
          %v1594 = vpack.c.bf16 %v1578, %v1578
          %v1595 = vpack.c.bf16 %v1579, %v1579
          %v1596 = vpack.c.bf16 %v1580, %v1580
          %v1597 = vpack.c.bf16 %v1581, %v1581
          %v1598 = vpack.c.bf16 %v1582, %v1582
          %v1599 = vpack.c.bf16 %v1583, %v1583
          %v1600 = vpack.c.bf16 %v1584, %v1584
          %v1601 = vpack.c.bf16 %v1585, %v1585
          %v1602 = vpack.c.bf16 %v1586, %v1586
          %v1603 = vpack.c.bf16 %v1587, %v1587
          %v1604 = vpack.c.bf16 %v1588, %v1588
          %v1605 = vpack.c.bf16 %v1589, %v1589
          %v1606 = vpack.c.bf16 %v1590, %v1590
          %v1607 = vpack.c.bf16 %v1591, %v1591
          %v1608 = vld [vmem:[%s328 + $0x7] sm:$0x1]
          %v1609 = vperm.slane %v1608, 0
          %vm1610 = vcmp.eq.s32.totalorder %v419, %v1609
          %vm1611 = vcmp.eq.s32.totalorder %v420, %v1609
          %vm1612 = vcmp.eq.s32.totalorder %v421, %v1609
          %vm1613 = vcmp.eq.s32.totalorder %v422, %v1609
          %vm1614 = vcmp.eq.s32.totalorder %v423, %v1609
          %vm1615 = vcmp.eq.s32.totalorder %v424, %v1609
          %vm1616 = vcmp.eq.s32.totalorder %v425, %v1609
          %vm1617 = vcmp.eq.s32.totalorder %v426, %v1609
          %vm1618 = vcmp.eq.s32.totalorder %v427, %v1609
          %vm1619 = vcmp.eq.s32.totalorder %v428, %v1609
          %vm1620 = vcmp.eq.s32.totalorder %v429, %v1609
          %vm1621 = vcmp.eq.s32.totalorder %v430, %v1609
          %vm1622 = vcmp.eq.s32.totalorder %v431, %v1609
          %vm1623 = vcmp.eq.s32.totalorder %v432, %v1609
          %vm1624 = vcmp.eq.s32.totalorder %v433, %v1609
          %vm1625 = vcmp.eq.s32.totalorder %v434, %v1609
          %v1626 = vsel %vm1610, 1, 0
          %v1627 = vsel %vm1611, 1, 0
          %v1628 = vsel %vm1612, 1, 0
          %v1629 = vsel %vm1613, 1, 0
          %v1630 = vsel %vm1614, 1, 0
          %v1631 = vsel %vm1615, 1, 0
          %v1632 = vsel %vm1616, 1, 0
          %v1633 = vsel %vm1617, 1, 0
          %v1634 = vsel %vm1618, 1, 0
          %v1635 = vsel %vm1619, 1, 0
          %v1636 = vsel %vm1620, 1, 0
          %v1637 = vsel %vm1621, 1, 0
          %v1638 = vsel %vm1622, 1, 0
          %v1639 = vsel %vm1623, 1, 0
          %v1640 = vsel %vm1624, 1, 0
          %v1641 = vsel %vm1625, 1, 0
          %v1642 = vcvt.s32.f32 %v1626
          %v1643 = vcvt.s32.f32 %v1627
          %v1644 = vcvt.s32.f32 %v1628
          %v1645 = vcvt.s32.f32 %v1629
          %v1646 = vcvt.s32.f32 %v1630
          %v1647 = vcvt.s32.f32 %v1631
          %v1648 = vcvt.s32.f32 %v1632
          %v1649 = vcvt.s32.f32 %v1633
          %v1650 = vcvt.s32.f32 %v1634
          %v1651 = vcvt.s32.f32 %v1635
          %v1652 = vcvt.s32.f32 %v1636
          %v1653 = vcvt.s32.f32 %v1637
          %v1654 = vcvt.s32.f32 %v1638
          %v1655 = vcvt.s32.f32 %v1639
          %v1656 = vcvt.s32.f32 %v1640
          %v1657 = vcvt.s32.f32 %v1641
          %v1658 = vpack.c.bf16 %v1642, %v1642
          %v1659 = vpack.c.bf16 %v1643, %v1643
          %v1660 = vpack.c.bf16 %v1644, %v1644
          %v1661 = vpack.c.bf16 %v1645, %v1645
          %v1662 = vpack.c.bf16 %v1646, %v1646
          %v1663 = vpack.c.bf16 %v1647, %v1647
          %v1664 = vpack.c.bf16 %v1648, %v1648
          %v1665 = vpack.c.bf16 %v1649, %v1649
          %v1666 = vpack.c.bf16 %v1650, %v1650
          %v1667 = vpack.c.bf16 %v1651, %v1651
          %v1668 = vpack.c.bf16 %v1652, %v1652
          %v1669 = vpack.c.bf16 %v1653, %v1653
          %v1670 = vpack.c.bf16 %v1654, %v1654
          %v1671 = vpack.c.bf16 %v1655, %v1655
          %v1672 = vpack.c.bf16 %v1656, %v1656
          %v1673 = vpack.c.bf16 %v1657, %v1657
          %v1674 = vshrl.u32 %v1425, 16
          %v1675 = vpack.i.b16 %v1674, %v1674
          %v1677 = vperm.slane %v1675, 3
          %v1678 = vunpack.c.l.bf16 %v1658
          %v1679 = vunpack.c.l.bf16 %v1659
          %v1680 = vunpack.c.l.bf16 %v1660
          %v1681 = vunpack.c.l.bf16 %v1661
          %v1682 = vunpack.c.l.bf16 %v1662
          %v1683 = vunpack.c.l.bf16 %v1663
          %v1684 = vunpack.c.l.bf16 %v1664
          %v1685 = vunpack.c.l.bf16 %v1665
          %v1686 = vunpack.c.l.bf16 %v1666
          %v1687 = vunpack.c.l.bf16 %v1667
          %v1688 = vunpack.c.l.bf16 %v1668
          %v1689 = vunpack.c.l.bf16 %v1669
          %v1690 = vunpack.c.l.bf16 %v1670
          %v1691 = vunpack.c.l.bf16 %v1671
          %v1692 = vunpack.c.l.bf16 %v1672
          %v1693 = vunpack.c.l.bf16 %v1673
          %v1694 = vunpack.c.l.bf16 %v1677
          %v1695 = vmul.f32 %v1678, %v1694
          %v1696 = vmul.f32 %v1679, %v1694
          %v1697 = vmul.f32 %v1680, %v1694
          %v1698 = vmul.f32 %v1681, %v1694
          %v1699 = vmul.f32 %v1682, %v1694
          %v1700 = vmul.f32 %v1683, %v1694
          %v1701 = vmul.f32 %v1684, %v1694
          %v1702 = vmul.f32 %v1685, %v1694
          %v1703 = vmul.f32 %v1686, %v1694
          %v1704 = vmul.f32 %v1687, %v1694
          %v1705 = vmul.f32 %v1688, %v1694
          %v1706 = vmul.f32 %v1689, %v1694
          %v1707 = vmul.f32 %v1690, %v1694
          %v1708 = vmul.f32 %v1691, %v1694
          %v1709 = vmul.f32 %v1692, %v1694
          %v1710 = vmul.f32 %v1693, %v1694
          %v1711 = vpack.c.bf16 %v1695, %v1695
          %v1712 = vpack.c.bf16 %v1696, %v1696
          %v1713 = vpack.c.bf16 %v1697, %v1697
          %v1714 = vpack.c.bf16 %v1698, %v1698
          %v1715 = vpack.c.bf16 %v1699, %v1699
          %v1716 = vpack.c.bf16 %v1700, %v1700
          %v1717 = vpack.c.bf16 %v1701, %v1701
          %v1718 = vpack.c.bf16 %v1702, %v1702
          %v1719 = vpack.c.bf16 %v1703, %v1703
          %v1720 = vpack.c.bf16 %v1704, %v1704
          %v1721 = vpack.c.bf16 %v1705, %v1705
          %v1722 = vpack.c.bf16 %v1706, %v1706
          %v1723 = vpack.c.bf16 %v1707, %v1707
          %v1724 = vpack.c.bf16 %v1708, %v1708
          %v1725 = vpack.c.bf16 %v1709, %v1709
          %v1726 = vpack.c.bf16 %v1710, %v1710
          %v1727 = vunpack.c.l.bf16 %v1592
          %v1728 = vunpack.c.l.bf16 %v1593
          %v1729 = vunpack.c.l.bf16 %v1594
          %v1730 = vunpack.c.l.bf16 %v1595
          %v1731 = vunpack.c.l.bf16 %v1596
          %v1732 = vunpack.c.l.bf16 %v1597
          %v1733 = vunpack.c.l.bf16 %v1598
          %v1734 = vunpack.c.l.bf16 %v1599
          %v1735 = vunpack.c.l.bf16 %v1600
          %v1736 = vunpack.c.l.bf16 %v1601
          %v1737 = vunpack.c.l.bf16 %v1602
          %v1738 = vunpack.c.l.bf16 %v1603
          %v1739 = vunpack.c.l.bf16 %v1604
          %v1740 = vunpack.c.l.bf16 %v1605
          %v1741 = vunpack.c.l.bf16 %v1606
          %v1742 = vunpack.c.l.bf16 %v1607
          %v1743 = vunpack.c.l.bf16 %v1711
          %v1744 = vunpack.c.l.bf16 %v1712
          %v1745 = vunpack.c.l.bf16 %v1713
          %v1746 = vunpack.c.l.bf16 %v1714
          %v1747 = vunpack.c.l.bf16 %v1715
          %v1748 = vunpack.c.l.bf16 %v1716
          %v1749 = vunpack.c.l.bf16 %v1717
          %v1750 = vunpack.c.l.bf16 %v1718
          %v1751 = vunpack.c.l.bf16 %v1719
          %v1752 = vunpack.c.l.bf16 %v1720
          %v1753 = vunpack.c.l.bf16 %v1721
          %v1754 = vunpack.c.l.bf16 %v1722
          %v1755 = vunpack.c.l.bf16 %v1723
          %v1756 = vunpack.c.l.bf16 %v1724
          %v1757 = vunpack.c.l.bf16 %v1725
          %v1758 = vunpack.c.l.bf16 %v1726
          %v1759 = vadd.f32 %v1727, %v1743
          %v1760 = vadd.f32 %v1728, %v1744
          %v1761 = vadd.f32 %v1729, %v1745
          %v1762 = vadd.f32 %v1730, %v1746
          %v1763 = vadd.f32 %v1731, %v1747
          %v1764 = vadd.f32 %v1732, %v1748
          %v1765 = vadd.f32 %v1733, %v1749
          %v1766 = vadd.f32 %v1734, %v1750
          %v1767 = vadd.f32 %v1735, %v1751
          %v1768 = vadd.f32 %v1736, %v1752
          %v1769 = vadd.f32 %v1737, %v1753
          %v1770 = vadd.f32 %v1738, %v1754
          %v1771 = vadd.f32 %v1739, %v1755
          %v1772 = vadd.f32 %v1740, %v1756
          %v1773 = vadd.f32 %v1741, %v1757
          %v1774 = vadd.f32 %v1742, %v1758
          %v1775 = vpack.c.bf16 %v1759, %v1759
          %v1776 = vpack.c.bf16 %v1760, %v1760
          %v1777 = vpack.c.bf16 %v1761, %v1761
          %v1778 = vpack.c.bf16 %v1762, %v1762
          %v1779 = vpack.c.bf16 %v1763, %v1763
          %v1780 = vpack.c.bf16 %v1764, %v1764
          %v1781 = vpack.c.bf16 %v1765, %v1765
          %v1782 = vpack.c.bf16 %v1766, %v1766
          %v1783 = vpack.c.bf16 %v1767, %v1767
          %v1784 = vpack.c.bf16 %v1768, %v1768
          %v1785 = vpack.c.bf16 %v1769, %v1769
          %v1786 = vpack.c.bf16 %v1770, %v1770
          %v1787 = vpack.c.bf16 %v1771, %v1771
          %v1788 = vpack.c.bf16 %v1772, %v1772
          %v1789 = vpack.c.bf16 %v1773, %v1773
          %v1790 = vpack.c.bf16 %v1774, %v1774
          %1791 = vst [vmem:[#allocation3 + $0x40] sm:$0xf] %v1775
          %1792 = vst [vmem:[#allocation3 + $0x44] sm:$0xf] %v1776
          %1793 = vst [vmem:[#allocation3 + $0x48] sm:$0xf] %v1777
          %1794 = vst [vmem:[#allocation3 + $0x4c] sm:$0xf] %v1778
          %1795 = vst [vmem:[#allocation3 + $0x50] sm:$0xf] %v1779
          %1796 = vst [vmem:[#allocation3 + $0x54] sm:$0xf] %v1780
          %1797 = vst [vmem:[#allocation3 + $0x58] sm:$0xf] %v1781
          %1798 = vst [vmem:[#allocation3 + $0x5c] sm:$0xf] %v1782
          %1799 = vst [vmem:[#allocation3 + $0x60] sm:$0xf] %v1783
          %1800 = vst [vmem:[#allocation3 + $0x64] sm:$0xf] %v1784
          %1801 = vst [vmem:[#allocation3 + $0x68] sm:$0xf] %v1785
          %1802 = vst [vmem:[#allocation3 + $0x6c] sm:$0xf] %v1786
          %1803 = vst [vmem:[#allocation3 + $0x70] sm:$0xf] %v1787
          %1804 = vst [vmem:[#allocation3 + $0x74] sm:$0xf] %v1788
          %1805 = vst [vmem:[#allocation3 + $0x78] sm:$0xf] %v1789
          %1806 = vst [vmem:[#allocation3 + $0x7c] sm:$0xf] %v1790
          %v1807 = vld [vmem:[%s328 + $0x8] sm:$0x1]
          %v1808 = vld [vmem:[%s335 + $0x4] sm:$0x1]
          %v1809 = vperm.slane %v1807, 0
          %vm1810 = vcmp.eq.s32.totalorder %v419, %v1809
          %vm1811 = vcmp.eq.s32.totalorder %v420, %v1809
          %vm1812 = vcmp.eq.s32.totalorder %v421, %v1809
          %vm1813 = vcmp.eq.s32.totalorder %v422, %v1809
          %vm1814 = vcmp.eq.s32.totalorder %v423, %v1809
          %vm1815 = vcmp.eq.s32.totalorder %v424, %v1809
          %vm1816 = vcmp.eq.s32.totalorder %v425, %v1809
          %vm1817 = vcmp.eq.s32.totalorder %v426, %v1809
          %vm1818 = vcmp.eq.s32.totalorder %v427, %v1809
          %vm1819 = vcmp.eq.s32.totalorder %v428, %v1809
          %vm1820 = vcmp.eq.s32.totalorder %v429, %v1809
          %vm1821 = vcmp.eq.s32.totalorder %v430, %v1809
          %vm1822 = vcmp.eq.s32.totalorder %v431, %v1809
          %vm1823 = vcmp.eq.s32.totalorder %v432, %v1809
          %vm1824 = vcmp.eq.s32.totalorder %v433, %v1809
          %vm1825 = vcmp.eq.s32.totalorder %v434, %v1809
          %v1826 = vsel %vm1810, 1, 0
          %v1827 = vsel %vm1811, 1, 0
          %v1828 = vsel %vm1812, 1, 0
          %v1829 = vsel %vm1813, 1, 0
          %v1830 = vsel %vm1814, 1, 0
          %v1831 = vsel %vm1815, 1, 0
          %v1832 = vsel %vm1816, 1, 0
          %v1833 = vsel %vm1817, 1, 0
          %v1834 = vsel %vm1818, 1, 0
          %v1835 = vsel %vm1819, 1, 0
          %v1836 = vsel %vm1820, 1, 0
          %v1837 = vsel %vm1821, 1, 0
          %v1838 = vsel %vm1822, 1, 0
          %v1839 = vsel %vm1823, 1, 0
          %v1840 = vsel %vm1824, 1, 0
          %v1841 = vsel %vm1825, 1, 0
          %v1842 = vcvt.s32.f32 %v1826
          %v1843 = vcvt.s32.f32 %v1827
          %v1844 = vcvt.s32.f32 %v1828
          %v1845 = vcvt.s32.f32 %v1829
          %v1846 = vcvt.s32.f32 %v1830
          %v1847 = vcvt.s32.f32 %v1831
          %v1848 = vcvt.s32.f32 %v1832
          %v1849 = vcvt.s32.f32 %v1833
          %v1850 = vcvt.s32.f32 %v1834
          %v1851 = vcvt.s32.f32 %v1835
          %v1852 = vcvt.s32.f32 %v1836
          %v1853 = vcvt.s32.f32 %v1837
          %v1854 = vcvt.s32.f32 %v1838
          %v1855 = vcvt.s32.f32 %v1839
          %v1856 = vcvt.s32.f32 %v1840
          %v1857 = vcvt.s32.f32 %v1841
          %v1858 = vpack.c.bf16 %v1842, %v1842
          %v1859 = vpack.c.bf16 %v1843, %v1843
          %v1860 = vpack.c.bf16 %v1844, %v1844
          %v1861 = vpack.c.bf16 %v1845, %v1845
          %v1862 = vpack.c.bf16 %v1846, %v1846
          %v1863 = vpack.c.bf16 %v1847, %v1847
          %v1864 = vpack.c.bf16 %v1848, %v1848
          %v1865 = vpack.c.bf16 %v1849, %v1849
          %v1866 = vpack.c.bf16 %v1850, %v1850
          %v1867 = vpack.c.bf16 %v1851, %v1851
          %v1868 = vpack.c.bf16 %v1852, %v1852
          %v1869 = vpack.c.bf16 %v1853, %v1853
          %v1870 = vpack.c.bf16 %v1854, %v1854
          %v1871 = vpack.c.bf16 %v1855, %v1855
          %v1872 = vpack.c.bf16 %v1856, %v1856
          %v1873 = vpack.c.bf16 %v1857, %v1857
          %v1875 = vpack.i.b16 %v1808, %v1808
          %v1877 = vperm.slane %v1875, 0
          %v1878 = vunpack.c.l.bf16 %v1858
          %v1879 = vunpack.c.l.bf16 %v1859
          %v1880 = vunpack.c.l.bf16 %v1860
          %v1881 = vunpack.c.l.bf16 %v1861
          %v1882 = vunpack.c.l.bf16 %v1862
          %v1883 = vunpack.c.l.bf16 %v1863
          %v1884 = vunpack.c.l.bf16 %v1864
          %v1885 = vunpack.c.l.bf16 %v1865
          %v1886 = vunpack.c.l.bf16 %v1866
          %v1887 = vunpack.c.l.bf16 %v1867
          %v1888 = vunpack.c.l.bf16 %v1868
          %v1889 = vunpack.c.l.bf16 %v1869
          %v1890 = vunpack.c.l.bf16 %v1870
          %v1891 = vunpack.c.l.bf16 %v1871
          %v1892 = vunpack.c.l.bf16 %v1872
          %v1893 = vunpack.c.l.bf16 %v1873
          %v1894 = vunpack.c.l.bf16 %v1877
          %v1895 = vmul.f32 %v1878, %v1894
          %v1896 = vmul.f32 %v1879, %v1894
          %v1897 = vmul.f32 %v1880, %v1894
          %v1898 = vmul.f32 %v1881, %v1894
          %v1899 = vmul.f32 %v1882, %v1894
          %v1900 = vmul.f32 %v1883, %v1894
          %v1901 = vmul.f32 %v1884, %v1894
          %v1902 = vmul.f32 %v1885, %v1894
          %v1903 = vmul.f32 %v1886, %v1894
          %v1904 = vmul.f32 %v1887, %v1894
          %v1905 = vmul.f32 %v1888, %v1894
          %v1906 = vmul.f32 %v1889, %v1894
          %v1907 = vmul.f32 %v1890, %v1894
          %v1908 = vmul.f32 %v1891, %v1894
          %v1909 = vmul.f32 %v1892, %v1894
          %v1910 = vmul.f32 %v1893, %v1894
          %v1911 = vpack.c.bf16 %v1895, %v1895
          %v1912 = vpack.c.bf16 %v1896, %v1896
          %v1913 = vpack.c.bf16 %v1897, %v1897
          %v1914 = vpack.c.bf16 %v1898, %v1898
          %v1915 = vpack.c.bf16 %v1899, %v1899
          %v1916 = vpack.c.bf16 %v1900, %v1900
          %v1917 = vpack.c.bf16 %v1901, %v1901
          %v1918 = vpack.c.bf16 %v1902, %v1902
          %v1919 = vpack.c.bf16 %v1903, %v1903
          %v1920 = vpack.c.bf16 %v1904, %v1904
          %v1921 = vpack.c.bf16 %v1905, %v1905
          %v1922 = vpack.c.bf16 %v1906, %v1906
          %v1923 = vpack.c.bf16 %v1907, %v1907
          %v1924 = vpack.c.bf16 %v1908, %v1908
          %v1925 = vpack.c.bf16 %v1909, %v1909
          %v1926 = vpack.c.bf16 %v1910, %v1910
          %v1927 = vld [vmem:[%s328 + $0x9] sm:$0x1]
          %v1928 = vperm.slane %v1927, 0
          %vm1929 = vcmp.eq.s32.totalorder %v419, %v1928
          %vm1930 = vcmp.eq.s32.totalorder %v420, %v1928
          %vm1931 = vcmp.eq.s32.totalorder %v421, %v1928
          %vm1932 = vcmp.eq.s32.totalorder %v422, %v1928
          %vm1933 = vcmp.eq.s32.totalorder %v423, %v1928
          %vm1934 = vcmp.eq.s32.totalorder %v424, %v1928
          %vm1935 = vcmp.eq.s32.totalorder %v425, %v1928
          %vm1936 = vcmp.eq.s32.totalorder %v426, %v1928
          %vm1937 = vcmp.eq.s32.totalorder %v427, %v1928
          %vm1938 = vcmp.eq.s32.totalorder %v428, %v1928
          %vm1939 = vcmp.eq.s32.totalorder %v429, %v1928
          %vm1940 = vcmp.eq.s32.totalorder %v430, %v1928
          %vm1941 = vcmp.eq.s32.totalorder %v431, %v1928
          %vm1942 = vcmp.eq.s32.totalorder %v432, %v1928
          %vm1943 = vcmp.eq.s32.totalorder %v433, %v1928
          %vm1944 = vcmp.eq.s32.totalorder %v434, %v1928
          %v1945 = vsel %vm1929, 1, 0
          %v1946 = vsel %vm1930, 1, 0
          %v1947 = vsel %vm1931, 1, 0
          %v1948 = vsel %vm1932, 1, 0
          %v1949 = vsel %vm1933, 1, 0
          %v1950 = vsel %vm1934, 1, 0
          %v1951 = vsel %vm1935, 1, 0
          %v1952 = vsel %vm1936, 1, 0
          %v1953 = vsel %vm1937, 1, 0
          %v1954 = vsel %vm1938, 1, 0
          %v1955 = vsel %vm1939, 1, 0
          %v1956 = vsel %vm1940, 1, 0
          %v1957 = vsel %vm1941, 1, 0
          %v1958 = vsel %vm1942, 1, 0
          %v1959 = vsel %vm1943, 1, 0
          %v1960 = vsel %vm1944, 1, 0
          %v1961 = vcvt.s32.f32 %v1945
          %v1962 = vcvt.s32.f32 %v1946
          %v1963 = vcvt.s32.f32 %v1947
          %v1964 = vcvt.s32.f32 %v1948
          %v1965 = vcvt.s32.f32 %v1949
          %v1966 = vcvt.s32.f32 %v1950
          %v1967 = vcvt.s32.f32 %v1951
          %v1968 = vcvt.s32.f32 %v1952
          %v1969 = vcvt.s32.f32 %v1953
          %v1970 = vcvt.s32.f32 %v1954
          %v1971 = vcvt.s32.f32 %v1955
          %v1972 = vcvt.s32.f32 %v1956
          %v1973 = vcvt.s32.f32 %v1957
          %v1974 = vcvt.s32.f32 %v1958
          %v1975 = vcvt.s32.f32 %v1959
          %v1976 = vcvt.s32.f32 %v1960
          %v1977 = vpack.c.bf16 %v1961, %v1961
          %v1978 = vpack.c.bf16 %v1962, %v1962
          %v1979 = vpack.c.bf16 %v1963, %v1963
          %v1980 = vpack.c.bf16 %v1964, %v1964
          %v1981 = vpack.c.bf16 %v1965, %v1965
          %v1982 = vpack.c.bf16 %v1966, %v1966
          %v1983 = vpack.c.bf16 %v1967, %v1967
          %v1984 = vpack.c.bf16 %v1968, %v1968
          %v1985 = vpack.c.bf16 %v1969, %v1969
          %v1986 = vpack.c.bf16 %v1970, %v1970
          %v1987 = vpack.c.bf16 %v1971, %v1971
          %v1988 = vpack.c.bf16 %v1972, %v1972
          %v1989 = vpack.c.bf16 %v1973, %v1973
          %v1990 = vpack.c.bf16 %v1974, %v1974
          %v1991 = vpack.c.bf16 %v1975, %v1975
          %v1992 = vpack.c.bf16 %v1976, %v1976
          %v1993 = vshrl.u32 %v1808, 16
          %v1994 = vpack.i.b16 %v1993, %v1993
          %v1996 = vperm.slane %v1994, 0
          %v1997 = vunpack.c.l.bf16 %v1977
          %v1998 = vunpack.c.l.bf16 %v1978
          %v1999 = vunpack.c.l.bf16 %v1979
          %v2000 = vunpack.c.l.bf16 %v1980
          %v2001 = vunpack.c.l.bf16 %v1981
          %v2002 = vunpack.c.l.bf16 %v1982
          %v2003 = vunpack.c.l.bf16 %v1983
          %v2004 = vunpack.c.l.bf16 %v1984
          %v2005 = vunpack.c.l.bf16 %v1985
          %v2006 = vunpack.c.l.bf16 %v1986
          %v2007 = vunpack.c.l.bf16 %v1987
          %v2008 = vunpack.c.l.bf16 %v1988
          %v2009 = vunpack.c.l.bf16 %v1989
          %v2010 = vunpack.c.l.bf16 %v1990
          %v2011 = vunpack.c.l.bf16 %v1991
          %v2012 = vunpack.c.l.bf16 %v1992
          %v2013 = vunpack.c.l.bf16 %v1996
          %v2014 = vmul.f32 %v1997, %v2013
          %v2015 = vmul.f32 %v1998, %v2013
          %v2016 = vmul.f32 %v1999, %v2013
          %v2017 = vmul.f32 %v2000, %v2013
          %v2018 = vmul.f32 %v2001, %v2013
          %v2019 = vmul.f32 %v2002, %v2013
          %v2020 = vmul.f32 %v2003, %v2013
          %v2021 = vmul.f32 %v2004, %v2013
          %v2022 = vmul.f32 %v2005, %v2013
          %v2023 = vmul.f32 %v2006, %v2013
          %v2024 = vmul.f32 %v2007, %v2013
          %v2025 = vmul.f32 %v2008, %v2013
          %v2026 = vmul.f32 %v2009, %v2013
          %v2027 = vmul.f32 %v2010, %v2013
          %v2028 = vmul.f32 %v2011, %v2013
          %v2029 = vmul.f32 %v2012, %v2013
          %v2030 = vpack.c.bf16 %v2014, %v2014
          %v2031 = vpack.c.bf16 %v2015, %v2015
          %v2032 = vpack.c.bf16 %v2016, %v2016
          %v2033 = vpack.c.bf16 %v2017, %v2017
          %v2034 = vpack.c.bf16 %v2018, %v2018
          %v2035 = vpack.c.bf16 %v2019, %v2019
          %v2036 = vpack.c.bf16 %v2020, %v2020
          %v2037 = vpack.c.bf16 %v2021, %v2021
          %v2038 = vpack.c.bf16 %v2022, %v2022
          %v2039 = vpack.c.bf16 %v2023, %v2023
          %v2040 = vpack.c.bf16 %v2024, %v2024
          %v2041 = vpack.c.bf16 %v2025, %v2025
          %v2042 = vpack.c.bf16 %v2026, %v2026
          %v2043 = vpack.c.bf16 %v2027, %v2027
          %v2044 = vpack.c.bf16 %v2028, %v2028
          %v2045 = vpack.c.bf16 %v2029, %v2029
          %v2046 = vunpack.c.l.bf16 %v1911
          %v2047 = vunpack.c.l.bf16 %v1912
          %v2048 = vunpack.c.l.bf16 %v1913
          %v2049 = vunpack.c.l.bf16 %v1914
          %v2050 = vunpack.c.l.bf16 %v1915
          %v2051 = vunpack.c.l.bf16 %v1916
          %v2052 = vunpack.c.l.bf16 %v1917
          %v2053 = vunpack.c.l.bf16 %v1918
          %v2054 = vunpack.c.l.bf16 %v1919
          %v2055 = vunpack.c.l.bf16 %v1920
          %v2056 = vunpack.c.l.bf16 %v1921
          %v2057 = vunpack.c.l.bf16 %v1922
          %v2058 = vunpack.c.l.bf16 %v1923
          %v2059 = vunpack.c.l.bf16 %v1924
          %v2060 = vunpack.c.l.bf16 %v1925
          %v2061 = vunpack.c.l.bf16 %v1926
          %v2062 = vunpack.c.l.bf16 %v2030
          %v2063 = vunpack.c.l.bf16 %v2031
          %v2064 = vunpack.c.l.bf16 %v2032
          %v2065 = vunpack.c.l.bf16 %v2033
          %v2066 = vunpack.c.l.bf16 %v2034
          %v2067 = vunpack.c.l.bf16 %v2035
          %v2068 = vunpack.c.l.bf16 %v2036
          %v2069 = vunpack.c.l.bf16 %v2037
          %v2070 = vunpack.c.l.bf16 %v2038
          %v2071 = vunpack.c.l.bf16 %v2039
          %v2072 = vunpack.c.l.bf16 %v2040
          %v2073 = vunpack.c.l.bf16 %v2041
          %v2074 = vunpack.c.l.bf16 %v2042
          %v2075 = vunpack.c.l.bf16 %v2043
          %v2076 = vunpack.c.l.bf16 %v2044
          %v2077 = vunpack.c.l.bf16 %v2045
          %v2078 = vadd.f32 %v2046, %v2062
          %v2079 = vadd.f32 %v2047, %v2063
          %v2080 = vadd.f32 %v2048, %v2064
          %v2081 = vadd.f32 %v2049, %v2065
          %v2082 = vadd.f32 %v2050, %v2066
          %v2083 = vadd.f32 %v2051, %v2067
          %v2084 = vadd.f32 %v2052, %v2068
          %v2085 = vadd.f32 %v2053, %v2069
          %v2086 = vadd.f32 %v2054, %v2070
          %v2087 = vadd.f32 %v2055, %v2071
          %v2088 = vadd.f32 %v2056, %v2072
          %v2089 = vadd.f32 %v2057, %v2073
          %v2090 = vadd.f32 %v2058, %v2074
          %v2091 = vadd.f32 %v2059, %v2075
          %v2092 = vadd.f32 %v2060, %v2076
          %v2093 = vadd.f32 %v2061, %v2077
          %v2094 = vpack.c.bf16 %v2078, %v2078
          %v2095 = vpack.c.bf16 %v2079, %v2079
          %v2096 = vpack.c.bf16 %v2080, %v2080
          %v2097 = vpack.c.bf16 %v2081, %v2081
          %v2098 = vpack.c.bf16 %v2082, %v2082
          %v2099 = vpack.c.bf16 %v2083, %v2083
          %v2100 = vpack.c.bf16 %v2084, %v2084
          %v2101 = vpack.c.bf16 %v2085, %v2085
          %v2102 = vpack.c.bf16 %v2086, %v2086
          %v2103 = vpack.c.bf16 %v2087, %v2087
          %v2104 = vpack.c.bf16 %v2088, %v2088
          %v2105 = vpack.c.bf16 %v2089, %v2089
          %v2106 = vpack.c.bf16 %v2090, %v2090
          %v2107 = vpack.c.bf16 %v2091, %v2091
          %v2108 = vpack.c.bf16 %v2092, %v2092
          %v2109 = vpack.c.bf16 %v2093, %v2093
          %v2110 = vld [vmem:[%s328 + $0xa] sm:$0x1]
          %v2111 = vld [vmem:[%s335 + $0x4] sm:$0x2]
          %v2112 = vperm.slane %v2110, 0
          %vm2113 = vcmp.eq.s32.totalorder %v419, %v2112
          %vm2114 = vcmp.eq.s32.totalorder %v420, %v2112
          %vm2115 = vcmp.eq.s32.totalorder %v421, %v2112
          %vm2116 = vcmp.eq.s32.totalorder %v422, %v2112
          %vm2117 = vcmp.eq.s32.totalorder %v423, %v2112
          %vm2118 = vcmp.eq.s32.totalorder %v424, %v2112
          %vm2119 = vcmp.eq.s32.totalorder %v425, %v2112
          %vm2120 = vcmp.eq.s32.totalorder %v426, %v2112
          %vm2121 = vcmp.eq.s32.totalorder %v427, %v2112
          %vm2122 = vcmp.eq.s32.totalorder %v428, %v2112
          %vm2123 = vcmp.eq.s32.totalorder %v429, %v2112
          %vm2124 = vcmp.eq.s32.totalorder %v430, %v2112
          %vm2125 = vcmp.eq.s32.totalorder %v431, %v2112
          %vm2126 = vcmp.eq.s32.totalorder %v432, %v2112
          %vm2127 = vcmp.eq.s32.totalorder %v433, %v2112
          %vm2128 = vcmp.eq.s32.totalorder %v434, %v2112
          %v2129 = vsel %vm2113, 1, 0
          %v2130 = vsel %vm2114, 1, 0
          %v2131 = vsel %vm2115, 1, 0
          %v2132 = vsel %vm2116, 1, 0
          %v2133 = vsel %vm2117, 1, 0
          %v2134 = vsel %vm2118, 1, 0
          %v2135 = vsel %vm2119, 1, 0
          %v2136 = vsel %vm2120, 1, 0
          %v2137 = vsel %vm2121, 1, 0
          %v2138 = vsel %vm2122, 1, 0
          %v2139 = vsel %vm2123, 1, 0
          %v2140 = vsel %vm2124, 1, 0
          %v2141 = vsel %vm2125, 1, 0
          %v2142 = vsel %vm2126, 1, 0
          %v2143 = vsel %vm2127, 1, 0
          %v2144 = vsel %vm2128, 1, 0
          %v2145 = vcvt.s32.f32 %v2129
          %v2146 = vcvt.s32.f32 %v2130
          %v2147 = vcvt.s32.f32 %v2131
          %v2148 = vcvt.s32.f32 %v2132
          %v2149 = vcvt.s32.f32 %v2133
          %v2150 = vcvt.s32.f32 %v2134
          %v2151 = vcvt.s32.f32 %v2135
          %v2152 = vcvt.s32.f32 %v2136
          %v2153 = vcvt.s32.f32 %v2137
          %v2154 = vcvt.s32.f32 %v2138
          %v2155 = vcvt.s32.f32 %v2139
          %v2156 = vcvt.s32.f32 %v2140
          %v2157 = vcvt.s32.f32 %v2141
          %v2158 = vcvt.s32.f32 %v2142
          %v2159 = vcvt.s32.f32 %v2143
          %v2160 = vcvt.s32.f32 %v2144
          %v2161 = vpack.c.bf16 %v2145, %v2145
          %v2162 = vpack.c.bf16 %v2146, %v2146
          %v2163 = vpack.c.bf16 %v2147, %v2147
          %v2164 = vpack.c.bf16 %v2148, %v2148
          %v2165 = vpack.c.bf16 %v2149, %v2149
          %v2166 = vpack.c.bf16 %v2150, %v2150
          %v2167 = vpack.c.bf16 %v2151, %v2151
          %v2168 = vpack.c.bf16 %v2152, %v2152
          %v2169 = vpack.c.bf16 %v2153, %v2153
          %v2170 = vpack.c.bf16 %v2154, %v2154
          %v2171 = vpack.c.bf16 %v2155, %v2155
          %v2172 = vpack.c.bf16 %v2156, %v2156
          %v2173 = vpack.c.bf16 %v2157, %v2157
          %v2174 = vpack.c.bf16 %v2158, %v2158
          %v2175 = vpack.c.bf16 %v2159, %v2159
          %v2176 = vpack.c.bf16 %v2160, %v2160
          %v2178 = vpack.i.b16 %v2111, %v2111
          %v2180 = vperm.slane %v2178, 1
          %v2181 = vunpack.c.l.bf16 %v2161
          %v2182 = vunpack.c.l.bf16 %v2162
          %v2183 = vunpack.c.l.bf16 %v2163
          %v2184 = vunpack.c.l.bf16 %v2164
          %v2185 = vunpack.c.l.bf16 %v2165
          %v2186 = vunpack.c.l.bf16 %v2166
          %v2187 = vunpack.c.l.bf16 %v2167
          %v2188 = vunpack.c.l.bf16 %v2168
          %v2189 = vunpack.c.l.bf16 %v2169
          %v2190 = vunpack.c.l.bf16 %v2170
          %v2191 = vunpack.c.l.bf16 %v2171
          %v2192 = vunpack.c.l.bf16 %v2172
          %v2193 = vunpack.c.l.bf16 %v2173
          %v2194 = vunpack.c.l.bf16 %v2174
          %v2195 = vunpack.c.l.bf16 %v2175
          %v2196 = vunpack.c.l.bf16 %v2176
          %v2197 = vunpack.c.l.bf16 %v2180
          %v2198 = vmul.f32 %v2181, %v2197
          %v2199 = vmul.f32 %v2182, %v2197
          %v2200 = vmul.f32 %v2183, %v2197
          %v2201 = vmul.f32 %v2184, %v2197
          %v2202 = vmul.f32 %v2185, %v2197
          %v2203 = vmul.f32 %v2186, %v2197
          %v2204 = vmul.f32 %v2187, %v2197
          %v2205 = vmul.f32 %v2188, %v2197
          %v2206 = vmul.f32 %v2189, %v2197
          %v2207 = vmul.f32 %v2190, %v2197
          %v2208 = vmul.f32 %v2191, %v2197
          %v2209 = vmul.f32 %v2192, %v2197
          %v2210 = vmul.f32 %v2193, %v2197
          %v2211 = vmul.f32 %v2194, %v2197
          %v2212 = vmul.f32 %v2195, %v2197
          %v2213 = vmul.f32 %v2196, %v2197
          %v2214 = vpack.c.bf16 %v2198, %v2198
          %v2215 = vpack.c.bf16 %v2199, %v2199
          %v2216 = vpack.c.bf16 %v2200, %v2200
          %v2217 = vpack.c.bf16 %v2201, %v2201
          %v2218 = vpack.c.bf16 %v2202, %v2202
          %v2219 = vpack.c.bf16 %v2203, %v2203
          %v2220 = vpack.c.bf16 %v2204, %v2204
          %v2221 = vpack.c.bf16 %v2205, %v2205
          %v2222 = vpack.c.bf16 %v2206, %v2206
          %v2223 = vpack.c.bf16 %v2207, %v2207
          %v2224 = vpack.c.bf16 %v2208, %v2208
          %v2225 = vpack.c.bf16 %v2209, %v2209
          %v2226 = vpack.c.bf16 %v2210, %v2210
          %v2227 = vpack.c.bf16 %v2211, %v2211
          %v2228 = vpack.c.bf16 %v2212, %v2212
          %v2229 = vpack.c.bf16 %v2213, %v2213
          %v2230 = vunpack.c.l.bf16 %v2094
          %v2231 = vunpack.c.l.bf16 %v2095
          %v2232 = vunpack.c.l.bf16 %v2096
          %v2233 = vunpack.c.l.bf16 %v2097
          %v2234 = vunpack.c.l.bf16 %v2098
          %v2235 = vunpack.c.l.bf16 %v2099
          %v2236 = vunpack.c.l.bf16 %v2100
          %v2237 = vunpack.c.l.bf16 %v2101
          %v2238 = vunpack.c.l.bf16 %v2102
          %v2239 = vunpack.c.l.bf16 %v2103
          %v2240 = vunpack.c.l.bf16 %v2104
          %v2241 = vunpack.c.l.bf16 %v2105
          %v2242 = vunpack.c.l.bf16 %v2106
          %v2243 = vunpack.c.l.bf16 %v2107
          %v2244 = vunpack.c.l.bf16 %v2108
          %v2245 = vunpack.c.l.bf16 %v2109
          %v2246 = vunpack.c.l.bf16 %v2214
          %v2247 = vunpack.c.l.bf16 %v2215
          %v2248 = vunpack.c.l.bf16 %v2216
          %v2249 = vunpack.c.l.bf16 %v2217
          %v2250 = vunpack.c.l.bf16 %v2218
          %v2251 = vunpack.c.l.bf16 %v2219
          %v2252 = vunpack.c.l.bf16 %v2220
          %v2253 = vunpack.c.l.bf16 %v2221
          %v2254 = vunpack.c.l.bf16 %v2222
          %v2255 = vunpack.c.l.bf16 %v2223
          %v2256 = vunpack.c.l.bf16 %v2224
          %v2257 = vunpack.c.l.bf16 %v2225
          %v2258 = vunpack.c.l.bf16 %v2226
          %v2259 = vunpack.c.l.bf16 %v2227
          %v2260 = vunpack.c.l.bf16 %v2228
          %v2261 = vunpack.c.l.bf16 %v2229
          %v2262 = vadd.f32 %v2230, %v2246
          %v2263 = vadd.f32 %v2231, %v2247
          %v2264 = vadd.f32 %v2232, %v2248
          %v2265 = vadd.f32 %v2233, %v2249
          %v2266 = vadd.f32 %v2234, %v2250
          %v2267 = vadd.f32 %v2235, %v2251
          %v2268 = vadd.f32 %v2236, %v2252
          %v2269 = vadd.f32 %v2237, %v2253
          %v2270 = vadd.f32 %v2238, %v2254
          %v2271 = vadd.f32 %v2239, %v2255
          %v2272 = vadd.f32 %v2240, %v2256
          %v2273 = vadd.f32 %v2241, %v2257
          %v2274 = vadd.f32 %v2242, %v2258
          %v2275 = vadd.f32 %v2243, %v2259
          %v2276 = vadd.f32 %v2244, %v2260
          %v2277 = vadd.f32 %v2245, %v2261
          %v2278 = vpack.c.bf16 %v2262, %v2262
          %v2279 = vpack.c.bf16 %v2263, %v2263
          %v2280 = vpack.c.bf16 %v2264, %v2264
          %v2281 = vpack.c.bf16 %v2265, %v2265
          %v2282 = vpack.c.bf16 %v2266, %v2266
          %v2283 = vpack.c.bf16 %v2267, %v2267
          %v2284 = vpack.c.bf16 %v2268, %v2268
          %v2285 = vpack.c.bf16 %v2269, %v2269
          %v2286 = vpack.c.bf16 %v2270, %v2270
          %v2287 = vpack.c.bf16 %v2271, %v2271
          %v2288 = vpack.c.bf16 %v2272, %v2272
          %v2289 = vpack.c.bf16 %v2273, %v2273
          %v2290 = vpack.c.bf16 %v2274, %v2274
          %v2291 = vpack.c.bf16 %v2275, %v2275
          %v2292 = vpack.c.bf16 %v2276, %v2276
          %v2293 = vpack.c.bf16 %v2277, %v2277
          %v2294 = vld [vmem:[%s328 + $0xb] sm:$0x1]
          %v2295 = vperm.slane %v2294, 0
          %vm2296 = vcmp.eq.s32.totalorder %v419, %v2295
          %vm2297 = vcmp.eq.s32.totalorder %v420, %v2295
          %vm2298 = vcmp.eq.s32.totalorder %v421, %v2295
          %vm2299 = vcmp.eq.s32.totalorder %v422, %v2295
          %vm2300 = vcmp.eq.s32.totalorder %v423, %v2295
          %vm2301 = vcmp.eq.s32.totalorder %v424, %v2295
          %vm2302 = vcmp.eq.s32.totalorder %v425, %v2295
          %vm2303 = vcmp.eq.s32.totalorder %v426, %v2295
          %vm2304 = vcmp.eq.s32.totalorder %v427, %v2295
          %vm2305 = vcmp.eq.s32.totalorder %v428, %v2295
          %vm2306 = vcmp.eq.s32.totalorder %v429, %v2295
          %vm2307 = vcmp.eq.s32.totalorder %v430, %v2295
          %vm2308 = vcmp.eq.s32.totalorder %v431, %v2295
          %vm2309 = vcmp.eq.s32.totalorder %v432, %v2295
          %vm2310 = vcmp.eq.s32.totalorder %v433, %v2295
          %vm2311 = vcmp.eq.s32.totalorder %v434, %v2295
          %v2312 = vsel %vm2296, 1, 0
          %v2313 = vsel %vm2297, 1, 0
          %v2314 = vsel %vm2298, 1, 0
          %v2315 = vsel %vm2299, 1, 0
          %v2316 = vsel %vm2300, 1, 0
          %v2317 = vsel %vm2301, 1, 0
          %v2318 = vsel %vm2302, 1, 0
          %v2319 = vsel %vm2303, 1, 0
          %v2320 = vsel %vm2304, 1, 0
          %v2321 = vsel %vm2305, 1, 0
          %v2322 = vsel %vm2306, 1, 0
          %v2323 = vsel %vm2307, 1, 0
          %v2324 = vsel %vm2308, 1, 0
          %v2325 = vsel %vm2309, 1, 0
          %v2326 = vsel %vm2310, 1, 0
          %v2327 = vsel %vm2311, 1, 0
          %v2328 = vcvt.s32.f32 %v2312
          %v2329 = vcvt.s32.f32 %v2313
          %v2330 = vcvt.s32.f32 %v2314
          %v2331 = vcvt.s32.f32 %v2315
          %v2332 = vcvt.s32.f32 %v2316
          %v2333 = vcvt.s32.f32 %v2317
          %v2334 = vcvt.s32.f32 %v2318
          %v2335 = vcvt.s32.f32 %v2319
          %v2336 = vcvt.s32.f32 %v2320
          %v2337 = vcvt.s32.f32 %v2321
          %v2338 = vcvt.s32.f32 %v2322
          %v2339 = vcvt.s32.f32 %v2323
          %v2340 = vcvt.s32.f32 %v2324
          %v2341 = vcvt.s32.f32 %v2325
          %v2342 = vcvt.s32.f32 %v2326
          %v2343 = vcvt.s32.f32 %v2327
          %v2344 = vpack.c.bf16 %v2328, %v2328
          %v2345 = vpack.c.bf16 %v2329, %v2329
          %v2346 = vpack.c.bf16 %v2330, %v2330
          %v2347 = vpack.c.bf16 %v2331, %v2331
          %v2348 = vpack.c.bf16 %v2332, %v2332
          %v2349 = vpack.c.bf16 %v2333, %v2333
          %v2350 = vpack.c.bf16 %v2334, %v2334
          %v2351 = vpack.c.bf16 %v2335, %v2335
          %v2352 = vpack.c.bf16 %v2336, %v2336
          %v2353 = vpack.c.bf16 %v2337, %v2337
          %v2354 = vpack.c.bf16 %v2338, %v2338
          %v2355 = vpack.c.bf16 %v2339, %v2339
          %v2356 = vpack.c.bf16 %v2340, %v2340
          %v2357 = vpack.c.bf16 %v2341, %v2341
          %v2358 = vpack.c.bf16 %v2342, %v2342
          %v2359 = vpack.c.bf16 %v2343, %v2343
          %v2360 = vshrl.u32 %v2111, 16
          %v2361 = vpack.i.b16 %v2360, %v2360
          %v2363 = vperm.slane %v2361, 1
          %v2364 = vunpack.c.l.bf16 %v2344
          %v2365 = vunpack.c.l.bf16 %v2345
          %v2366 = vunpack.c.l.bf16 %v2346
          %v2367 = vunpack.c.l.bf16 %v2347
          %v2368 = vunpack.c.l.bf16 %v2348
          %v2369 = vunpack.c.l.bf16 %v2349
          %v2370 = vunpack.c.l.bf16 %v2350
          %v2371 = vunpack.c.l.bf16 %v2351
          %v2372 = vunpack.c.l.bf16 %v2352
          %v2373 = vunpack.c.l.bf16 %v2353
          %v2374 = vunpack.c.l.bf16 %v2354
          %v2375 = vunpack.c.l.bf16 %v2355
          %v2376 = vunpack.c.l.bf16 %v2356
          %v2377 = vunpack.c.l.bf16 %v2357
          %v2378 = vunpack.c.l.bf16 %v2358
          %v2379 = vunpack.c.l.bf16 %v2359
          %v2380 = vunpack.c.l.bf16 %v2363
          %v2381 = vmul.f32 %v2364, %v2380
          %v2382 = vmul.f32 %v2365, %v2380
          %v2383 = vmul.f32 %v2366, %v2380
          %v2384 = vmul.f32 %v2367, %v2380
          %v2385 = vmul.f32 %v2368, %v2380
          %v2386 = vmul.f32 %v2369, %v2380
          %v2387 = vmul.f32 %v2370, %v2380
          %v2388 = vmul.f32 %v2371, %v2380
          %v2389 = vmul.f32 %v2372, %v2380
          %v2390 = vmul.f32 %v2373, %v2380
          %v2391 = vmul.f32 %v2374, %v2380
          %v2392 = vmul.f32 %v2375, %v2380
          %v2393 = vmul.f32 %v2376, %v2380
          %v2394 = vmul.f32 %v2377, %v2380
          %v2395 = vmul.f32 %v2378, %v2380
          %v2396 = vmul.f32 %v2379, %v2380
          %v2397 = vpack.c.bf16 %v2381, %v2381
          %v2398 = vpack.c.bf16 %v2382, %v2382
          %v2399 = vpack.c.bf16 %v2383, %v2383
          %v2400 = vpack.c.bf16 %v2384, %v2384
          %v2401 = vpack.c.bf16 %v2385, %v2385
          %v2402 = vpack.c.bf16 %v2386, %v2386
          %v2403 = vpack.c.bf16 %v2387, %v2387
          %v2404 = vpack.c.bf16 %v2388, %v2388
          %v2405 = vpack.c.bf16 %v2389, %v2389
          %v2406 = vpack.c.bf16 %v2390, %v2390
          %v2407 = vpack.c.bf16 %v2391, %v2391
          %v2408 = vpack.c.bf16 %v2392, %v2392
          %v2409 = vpack.c.bf16 %v2393, %v2393
          %v2410 = vpack.c.bf16 %v2394, %v2394
          %v2411 = vpack.c.bf16 %v2395, %v2395
          %v2412 = vpack.c.bf16 %v2396, %v2396
          %v2413 = vunpack.c.l.bf16 %v2278
          %v2414 = vunpack.c.l.bf16 %v2279
          %v2415 = vunpack.c.l.bf16 %v2280
          %v2416 = vunpack.c.l.bf16 %v2281
          %v2417 = vunpack.c.l.bf16 %v2282
          %v2418 = vunpack.c.l.bf16 %v2283
          %v2419 = vunpack.c.l.bf16 %v2284
          %v2420 = vunpack.c.l.bf16 %v2285
          %v2421 = vunpack.c.l.bf16 %v2286
          %v2422 = vunpack.c.l.bf16 %v2287
          %v2423 = vunpack.c.l.bf16 %v2288
          %v2424 = vunpack.c.l.bf16 %v2289
          %v2425 = vunpack.c.l.bf16 %v2290
          %v2426 = vunpack.c.l.bf16 %v2291
          %v2427 = vunpack.c.l.bf16 %v2292
          %v2428 = vunpack.c.l.bf16 %v2293
          %v2429 = vunpack.c.l.bf16 %v2397
          %v2430 = vunpack.c.l.bf16 %v2398
          %v2431 = vunpack.c.l.bf16 %v2399
          %v2432 = vunpack.c.l.bf16 %v2400
          %v2433 = vunpack.c.l.bf16 %v2401
          %v2434 = vunpack.c.l.bf16 %v2402
          %v2435 = vunpack.c.l.bf16 %v2403
          %v2436 = vunpack.c.l.bf16 %v2404
          %v2437 = vunpack.c.l.bf16 %v2405
          %v2438 = vunpack.c.l.bf16 %v2406
          %v2439 = vunpack.c.l.bf16 %v2407
          %v2440 = vunpack.c.l.bf16 %v2408
          %v2441 = vunpack.c.l.bf16 %v2409
          %v2442 = vunpack.c.l.bf16 %v2410
          %v2443 = vunpack.c.l.bf16 %v2411
          %v2444 = vunpack.c.l.bf16 %v2412
          %v2445 = vadd.f32 %v2413, %v2429
          %v2446 = vadd.f32 %v2414, %v2430
          %v2447 = vadd.f32 %v2415, %v2431
          %v2448 = vadd.f32 %v2416, %v2432
          %v2449 = vadd.f32 %v2417, %v2433
          %v2450 = vadd.f32 %v2418, %v2434
          %v2451 = vadd.f32 %v2419, %v2435
          %v2452 = vadd.f32 %v2420, %v2436
          %v2453 = vadd.f32 %v2421, %v2437
          %v2454 = vadd.f32 %v2422, %v2438
          %v2455 = vadd.f32 %v2423, %v2439
          %v2456 = vadd.f32 %v2424, %v2440
          %v2457 = vadd.f32 %v2425, %v2441
          %v2458 = vadd.f32 %v2426, %v2442
          %v2459 = vadd.f32 %v2427, %v2443
          %v2460 = vadd.f32 %v2428, %v2444
          %v2461 = vpack.c.bf16 %v2445, %v2445
          %v2462 = vpack.c.bf16 %v2446, %v2446
          %v2463 = vpack.c.bf16 %v2447, %v2447
          %v2464 = vpack.c.bf16 %v2448, %v2448
          %v2465 = vpack.c.bf16 %v2449, %v2449
          %v2466 = vpack.c.bf16 %v2450, %v2450
          %v2467 = vpack.c.bf16 %v2451, %v2451
          %v2468 = vpack.c.bf16 %v2452, %v2452
          %v2469 = vpack.c.bf16 %v2453, %v2453
          %v2470 = vpack.c.bf16 %v2454, %v2454
          %v2471 = vpack.c.bf16 %v2455, %v2455
          %v2472 = vpack.c.bf16 %v2456, %v2456
          %v2473 = vpack.c.bf16 %v2457, %v2457
          %v2474 = vpack.c.bf16 %v2458, %v2458
          %v2475 = vpack.c.bf16 %v2459, %v2459
          %v2476 = vpack.c.bf16 %v2460, %v2460
          %2477 = vst [vmem:[#allocation3 + $0x80] sm:$0xf] %v2461
          %2478 = vst [vmem:[#allocation3 + $0x84] sm:$0xf] %v2462
          %2479 = vst [vmem:[#allocation3 + $0x88] sm:$0xf] %v2463
          %2480 = vst [vmem:[#allocation3 + $0x8c] sm:$0xf] %v2464
          %2481 = vst [vmem:[#allocation3 + $0x90] sm:$0xf] %v2465
          %2482 = vst [vmem:[#allocation3 + $0x94] sm:$0xf] %v2466
          %2483 = vst [vmem:[#allocation3 + $0x98] sm:$0xf] %v2467
          %2484 = vst [vmem:[#allocation3 + $0x9c] sm:$0xf] %v2468
          %2485 = vst [vmem:[#allocation3 + $0xa0] sm:$0xf] %v2469
          %2486 = vst [vmem:[#allocation3 + $0xa4] sm:$0xf] %v2470
          %2487 = vst [vmem:[#allocation3 + $0xa8] sm:$0xf] %v2471
          %2488 = vst [vmem:[#allocation3 + $0xac] sm:$0xf] %v2472
          %2489 = vst [vmem:[#allocation3 + $0xb0] sm:$0xf] %v2473
          %2490 = vst [vmem:[#allocation3 + $0xb4] sm:$0xf] %v2474
          %2491 = vst [vmem:[#allocation3 + $0xb8] sm:$0xf] %v2475
          %2492 = vst [vmem:[#allocation3 + $0xbc] sm:$0xf] %v2476
          %v2493 = vld [vmem:[%s328 + $0xc] sm:$0x1]
          %v2494 = vld [vmem:[%s335 + $0x4] sm:$0x4]
          %v2495 = vperm.slane %v2493, 0
          %vm2496 = vcmp.eq.s32.totalorder %v419, %v2495
          %vm2497 = vcmp.eq.s32.totalorder %v420, %v2495
          %vm2498 = vcmp.eq.s32.totalorder %v421, %v2495
          %vm2499 = vcmp.eq.s32.totalorder %v422, %v2495
          %vm2500 = vcmp.eq.s32.totalorder %v423, %v2495
          %vm2501 = vcmp.eq.s32.totalorder %v424, %v2495
          %vm2502 = vcmp.eq.s32.totalorder %v425, %v2495
          %vm2503 = vcmp.eq.s32.totalorder %v426, %v2495
          %vm2504 = vcmp.eq.s32.totalorder %v427, %v2495
          %vm2505 = vcmp.eq.s32.totalorder %v428, %v2495
          %vm2506 = vcmp.eq.s32.totalorder %v429, %v2495
          %vm2507 = vcmp.eq.s32.totalorder %v430, %v2495
          %vm2508 = vcmp.eq.s32.totalorder %v431, %v2495
          %vm2509 = vcmp.eq.s32.totalorder %v432, %v2495
          %vm2510 = vcmp.eq.s32.totalorder %v433, %v2495
          %vm2511 = vcmp.eq.s32.totalorder %v434, %v2495
          %v2512 = vsel %vm2496, 1, 0
          %v2513 = vsel %vm2497, 1, 0
          %v2514 = vsel %vm2498, 1, 0
          %v2515 = vsel %vm2499, 1, 0
          %v2516 = vsel %vm2500, 1, 0
          %v2517 = vsel %vm2501, 1, 0
          %v2518 = vsel %vm2502, 1, 0
          %v2519 = vsel %vm2503, 1, 0
          %v2520 = vsel %vm2504, 1, 0
          %v2521 = vsel %vm2505, 1, 0
          %v2522 = vsel %vm2506, 1, 0
          %v2523 = vsel %vm2507, 1, 0
          %v2524 = vsel %vm2508, 1, 0
          %v2525 = vsel %vm2509, 1, 0
          %v2526 = vsel %vm2510, 1, 0
          %v2527 = vsel %vm2511, 1, 0
          %v2528 = vcvt.s32.f32 %v2512
          %v2529 = vcvt.s32.f32 %v2513
          %v2530 = vcvt.s32.f32 %v2514
          %v2531 = vcvt.s32.f32 %v2515
          %v2532 = vcvt.s32.f32 %v2516
          %v2533 = vcvt.s32.f32 %v2517
          %v2534 = vcvt.s32.f32 %v2518
          %v2535 = vcvt.s32.f32 %v2519
          %v2536 = vcvt.s32.f32 %v2520
          %v2537 = vcvt.s32.f32 %v2521
          %v2538 = vcvt.s32.f32 %v2522
          %v2539 = vcvt.s32.f32 %v2523
          %v2540 = vcvt.s32.f32 %v2524
          %v2541 = vcvt.s32.f32 %v2525
          %v2542 = vcvt.s32.f32 %v2526
          %v2543 = vcvt.s32.f32 %v2527
          %v2544 = vpack.c.bf16 %v2528, %v2528
          %v2545 = vpack.c.bf16 %v2529, %v2529
          %v2546 = vpack.c.bf16 %v2530, %v2530
          %v2547 = vpack.c.bf16 %v2531, %v2531
          %v2548 = vpack.c.bf16 %v2532, %v2532
          %v2549 = vpack.c.bf16 %v2533, %v2533
          %v2550 = vpack.c.bf16 %v2534, %v2534
          %v2551 = vpack.c.bf16 %v2535, %v2535
          %v2552 = vpack.c.bf16 %v2536, %v2536
          %v2553 = vpack.c.bf16 %v2537, %v2537
          %v2554 = vpack.c.bf16 %v2538, %v2538
          %v2555 = vpack.c.bf16 %v2539, %v2539
          %v2556 = vpack.c.bf16 %v2540, %v2540
          %v2557 = vpack.c.bf16 %v2541, %v2541
          %v2558 = vpack.c.bf16 %v2542, %v2542
          %v2559 = vpack.c.bf16 %v2543, %v2543
          %v2561 = vpack.i.b16 %v2494, %v2494
          %v2563 = vperm.slane %v2561, 2
          %v2564 = vunpack.c.l.bf16 %v2544
          %v2565 = vunpack.c.l.bf16 %v2545
          %v2566 = vunpack.c.l.bf16 %v2546
          %v2567 = vunpack.c.l.bf16 %v2547
          %v2568 = vunpack.c.l.bf16 %v2548
          %v2569 = vunpack.c.l.bf16 %v2549
          %v2570 = vunpack.c.l.bf16 %v2550
          %v2571 = vunpack.c.l.bf16 %v2551
          %v2572 = vunpack.c.l.bf16 %v2552
          %v2573 = vunpack.c.l.bf16 %v2553
          %v2574 = vunpack.c.l.bf16 %v2554
          %v2575 = vunpack.c.l.bf16 %v2555
          %v2576 = vunpack.c.l.bf16 %v2556
          %v2577 = vunpack.c.l.bf16 %v2557
          %v2578 = vunpack.c.l.bf16 %v2558
          %v2579 = vunpack.c.l.bf16 %v2559
          %v2580 = vunpack.c.l.bf16 %v2563
          %v2581 = vmul.f32 %v2564, %v2580
          %v2582 = vmul.f32 %v2565, %v2580
          %v2583 = vmul.f32 %v2566, %v2580
          %v2584 = vmul.f32 %v2567, %v2580
          %v2585 = vmul.f32 %v2568, %v2580
          %v2586 = vmul.f32 %v2569, %v2580
          %v2587 = vmul.f32 %v2570, %v2580
          %v2588 = vmul.f32 %v2571, %v2580
          %v2589 = vmul.f32 %v2572, %v2580
          %v2590 = vmul.f32 %v2573, %v2580
          %v2591 = vmul.f32 %v2574, %v2580
          %v2592 = vmul.f32 %v2575, %v2580
          %v2593 = vmul.f32 %v2576, %v2580
          %v2594 = vmul.f32 %v2577, %v2580
          %v2595 = vmul.f32 %v2578, %v2580
          %v2596 = vmul.f32 %v2579, %v2580
          %v2597 = vpack.c.bf16 %v2581, %v2581
          %v2598 = vpack.c.bf16 %v2582, %v2582
          %v2599 = vpack.c.bf16 %v2583, %v2583
          %v2600 = vpack.c.bf16 %v2584, %v2584
          %v2601 = vpack.c.bf16 %v2585, %v2585
          %v2602 = vpack.c.bf16 %v2586, %v2586
          %v2603 = vpack.c.bf16 %v2587, %v2587
          %v2604 = vpack.c.bf16 %v2588, %v2588
          %v2605 = vpack.c.bf16 %v2589, %v2589
          %v2606 = vpack.c.bf16 %v2590, %v2590
          %v2607 = vpack.c.bf16 %v2591, %v2591
          %v2608 = vpack.c.bf16 %v2592, %v2592
          %v2609 = vpack.c.bf16 %v2593, %v2593
          %v2610 = vpack.c.bf16 %v2594, %v2594
          %v2611 = vpack.c.bf16 %v2595, %v2595
          %v2612 = vpack.c.bf16 %v2596, %v2596
          %v2613 = vld [vmem:[%s328 + $0xd] sm:$0x1]
          %v2614 = vperm.slane %v2613, 0
          %vm2615 = vcmp.eq.s32.totalorder %v419, %v2614
          %vm2616 = vcmp.eq.s32.totalorder %v420, %v2614
          %vm2617 = vcmp.eq.s32.totalorder %v421, %v2614
          %vm2618 = vcmp.eq.s32.totalorder %v422, %v2614
          %vm2619 = vcmp.eq.s32.totalorder %v423, %v2614
          %vm2620 = vcmp.eq.s32.totalorder %v424, %v2614
          %vm2621 = vcmp.eq.s32.totalorder %v425, %v2614
          %vm2622 = vcmp.eq.s32.totalorder %v426, %v2614
          %vm2623 = vcmp.eq.s32.totalorder %v427, %v2614
          %vm2624 = vcmp.eq.s32.totalorder %v428, %v2614
          %vm2625 = vcmp.eq.s32.totalorder %v429, %v2614
          %vm2626 = vcmp.eq.s32.totalorder %v430, %v2614
          %vm2627 = vcmp.eq.s32.totalorder %v431, %v2614
          %vm2628 = vcmp.eq.s32.totalorder %v432, %v2614
          %vm2629 = vcmp.eq.s32.totalorder %v433, %v2614
          %vm2630 = vcmp.eq.s32.totalorder %v434, %v2614
          %v2631 = vsel %vm2615, 1, 0
          %v2632 = vsel %vm2616, 1, 0
          %v2633 = vsel %vm2617, 1, 0
          %v2634 = vsel %vm2618, 1, 0
          %v2635 = vsel %vm2619, 1, 0
          %v2636 = vsel %vm2620, 1, 0
          %v2637 = vsel %vm2621, 1, 0
          %v2638 = vsel %vm2622, 1, 0
          %v2639 = vsel %vm2623, 1, 0
          %v2640 = vsel %vm2624, 1, 0
          %v2641 = vsel %vm2625, 1, 0
          %v2642 = vsel %vm2626, 1, 0
          %v2643 = vsel %vm2627, 1, 0
          %v2644 = vsel %vm2628, 1, 0
          %v2645 = vsel %vm2629, 1, 0
          %v2646 = vsel %vm2630, 1, 0
          %v2647 = vcvt.s32.f32 %v2631
          %v2648 = vcvt.s32.f32 %v2632
          %v2649 = vcvt.s32.f32 %v2633
          %v2650 = vcvt.s32.f32 %v2634
          %v2651 = vcvt.s32.f32 %v2635
          %v2652 = vcvt.s32.f32 %v2636
          %v2653 = vcvt.s32.f32 %v2637
          %v2654 = vcvt.s32.f32 %v2638
          %v2655 = vcvt.s32.f32 %v2639
          %v2656 = vcvt.s32.f32 %v2640
          %v2657 = vcvt.s32.f32 %v2641
          %v2658 = vcvt.s32.f32 %v2642
          %v2659 = vcvt.s32.f32 %v2643
          %v2660 = vcvt.s32.f32 %v2644
          %v2661 = vcvt.s32.f32 %v2645
          %v2662 = vcvt.s32.f32 %v2646
          %v2663 = vpack.c.bf16 %v2647, %v2647
          %v2664 = vpack.c.bf16 %v2648, %v2648
          %v2665 = vpack.c.bf16 %v2649, %v2649
          %v2666 = vpack.c.bf16 %v2650, %v2650
          %v2667 = vpack.c.bf16 %v2651, %v2651
          %v2668 = vpack.c.bf16 %v2652, %v2652
          %v2669 = vpack.c.bf16 %v2653, %v2653
          %v2670 = vpack.c.bf16 %v2654, %v2654
          %v2671 = vpack.c.bf16 %v2655, %v2655
          %v2672 = vpack.c.bf16 %v2656, %v2656
          %v2673 = vpack.c.bf16 %v2657, %v2657
          %v2674 = vpack.c.bf16 %v2658, %v2658
          %v2675 = vpack.c.bf16 %v2659, %v2659
          %v2676 = vpack.c.bf16 %v2660, %v2660
          %v2677 = vpack.c.bf16 %v2661, %v2661
          %v2678 = vpack.c.bf16 %v2662, %v2662
          %v2679 = vshrl.u32 %v2494, 16
          %v2680 = vpack.i.b16 %v2679, %v2679
          %v2682 = vperm.slane %v2680, 2
          %v2683 = vunpack.c.l.bf16 %v2663
          %v2684 = vunpack.c.l.bf16 %v2664
          %v2685 = vunpack.c.l.bf16 %v2665
          %v2686 = vunpack.c.l.bf16 %v2666
          %v2687 = vunpack.c.l.bf16 %v2667
          %v2688 = vunpack.c.l.bf16 %v2668
          %v2689 = vunpack.c.l.bf16 %v2669
          %v2690 = vunpack.c.l.bf16 %v2670
          %v2691 = vunpack.c.l.bf16 %v2671
          %v2692 = vunpack.c.l.bf16 %v2672
          %v2693 = vunpack.c.l.bf16 %v2673
          %v2694 = vunpack.c.l.bf16 %v2674
          %v2695 = vunpack.c.l.bf16 %v2675
          %v2696 = vunpack.c.l.bf16 %v2676
          %v2697 = vunpack.c.l.bf16 %v2677
          %v2698 = vunpack.c.l.bf16 %v2678
          %v2699 = vunpack.c.l.bf16 %v2682
          %v2700 = vmul.f32 %v2683, %v2699
          %v2701 = vmul.f32 %v2684, %v2699
          %v2702 = vmul.f32 %v2685, %v2699
          %v2703 = vmul.f32 %v2686, %v2699
          %v2704 = vmul.f32 %v2687, %v2699
          %v2705 = vmul.f32 %v2688, %v2699
          %v2706 = vmul.f32 %v2689, %v2699
          %v2707 = vmul.f32 %v2690, %v2699
          %v2708 = vmul.f32 %v2691, %v2699
          %v2709 = vmul.f32 %v2692, %v2699
          %v2710 = vmul.f32 %v2693, %v2699
          %v2711 = vmul.f32 %v2694, %v2699
          %v2712 = vmul.f32 %v2695, %v2699
          %v2713 = vmul.f32 %v2696, %v2699
          %v2714 = vmul.f32 %v2697, %v2699
          %v2715 = vmul.f32 %v2698, %v2699
          %v2716 = vpack.c.bf16 %v2700, %v2700
          %v2717 = vpack.c.bf16 %v2701, %v2701
          %v2718 = vpack.c.bf16 %v2702, %v2702
          %v2719 = vpack.c.bf16 %v2703, %v2703
          %v2720 = vpack.c.bf16 %v2704, %v2704
          %v2721 = vpack.c.bf16 %v2705, %v2705
          %v2722 = vpack.c.bf16 %v2706, %v2706
          %v2723 = vpack.c.bf16 %v2707, %v2707
          %v2724 = vpack.c.bf16 %v2708, %v2708
          %v2725 = vpack.c.bf16 %v2709, %v2709
          %v2726 = vpack.c.bf16 %v2710, %v2710
          %v2727 = vpack.c.bf16 %v2711, %v2711
          %v2728 = vpack.c.bf16 %v2712, %v2712
          %v2729 = vpack.c.bf16 %v2713, %v2713
          %v2730 = vpack.c.bf16 %v2714, %v2714
          %v2731 = vpack.c.bf16 %v2715, %v2715
          %v2732 = vunpack.c.l.bf16 %v2597
          %v2733 = vunpack.c.l.bf16 %v2598
          %v2734 = vunpack.c.l.bf16 %v2599
          %v2735 = vunpack.c.l.bf16 %v2600
          %v2736 = vunpack.c.l.bf16 %v2601
          %v2737 = vunpack.c.l.bf16 %v2602
          %v2738 = vunpack.c.l.bf16 %v2603
          %v2739 = vunpack.c.l.bf16 %v2604
          %v2740 = vunpack.c.l.bf16 %v2605
          %v2741 = vunpack.c.l.bf16 %v2606
          %v2742 = vunpack.c.l.bf16 %v2607
          %v2743 = vunpack.c.l.bf16 %v2608
          %v2744 = vunpack.c.l.bf16 %v2609
          %v2745 = vunpack.c.l.bf16 %v2610
          %v2746 = vunpack.c.l.bf16 %v2611
          %v2747 = vunpack.c.l.bf16 %v2612
          %v2748 = vunpack.c.l.bf16 %v2716
          %v2749 = vunpack.c.l.bf16 %v2717
          %v2750 = vunpack.c.l.bf16 %v2718
          %v2751 = vunpack.c.l.bf16 %v2719
          %v2752 = vunpack.c.l.bf16 %v2720
          %v2753 = vunpack.c.l.bf16 %v2721
          %v2754 = vunpack.c.l.bf16 %v2722
          %v2755 = vunpack.c.l.bf16 %v2723
          %v2756 = vunpack.c.l.bf16 %v2724
          %v2757 = vunpack.c.l.bf16 %v2725
          %v2758 = vunpack.c.l.bf16 %v2726
          %v2759 = vunpack.c.l.bf16 %v2727
          %v2760 = vunpack.c.l.bf16 %v2728
          %v2761 = vunpack.c.l.bf16 %v2729
          %v2762 = vunpack.c.l.bf16 %v2730
          %v2763 = vunpack.c.l.bf16 %v2731
          %v2764 = vadd.f32 %v2732, %v2748
          %v2765 = vadd.f32 %v2733, %v2749
          %v2766 = vadd.f32 %v2734, %v2750
          %v2767 = vadd.f32 %v2735, %v2751
          %v2768 = vadd.f32 %v2736, %v2752
          %v2769 = vadd.f32 %v2737, %v2753
          %v2770 = vadd.f32 %v2738, %v2754
          %v2771 = vadd.f32 %v2739, %v2755
          %v2772 = vadd.f32 %v2740, %v2756
          %v2773 = vadd.f32 %v2741, %v2757
          %v2774 = vadd.f32 %v2742, %v2758
          %v2775 = vadd.f32 %v2743, %v2759
          %v2776 = vadd.f32 %v2744, %v2760
          %v2777 = vadd.f32 %v2745, %v2761
          %v2778 = vadd.f32 %v2746, %v2762
          %v2779 = vadd.f32 %v2747, %v2763
          %v2780 = vpack.c.bf16 %v2764, %v2764
          %v2781 = vpack.c.bf16 %v2765, %v2765
          %v2782 = vpack.c.bf16 %v2766, %v2766
          %v2783 = vpack.c.bf16 %v2767, %v2767
          %v2784 = vpack.c.bf16 %v2768, %v2768
          %v2785 = vpack.c.bf16 %v2769, %v2769
          %v2786 = vpack.c.bf16 %v2770, %v2770
          %v2787 = vpack.c.bf16 %v2771, %v2771
          %v2788 = vpack.c.bf16 %v2772, %v2772
          %v2789 = vpack.c.bf16 %v2773, %v2773
          %v2790 = vpack.c.bf16 %v2774, %v2774
          %v2791 = vpack.c.bf16 %v2775, %v2775
          %v2792 = vpack.c.bf16 %v2776, %v2776
          %v2793 = vpack.c.bf16 %v2777, %v2777
          %v2794 = vpack.c.bf16 %v2778, %v2778
          %v2795 = vpack.c.bf16 %v2779, %v2779
          %v2796 = vld [vmem:[%s328 + $0xe] sm:$0x1]
          %v2797 = vld [vmem:[%s335 + $0x4] sm:$0x8]
          %v2798 = vperm.slane %v2796, 0
          %vm2799 = vcmp.eq.s32.totalorder %v419, %v2798
          %vm2800 = vcmp.eq.s32.totalorder %v420, %v2798
          %vm2801 = vcmp.eq.s32.totalorder %v421, %v2798
          %vm2802 = vcmp.eq.s32.totalorder %v422, %v2798
          %vm2803 = vcmp.eq.s32.totalorder %v423, %v2798
          %vm2804 = vcmp.eq.s32.totalorder %v424, %v2798
          %vm2805 = vcmp.eq.s32.totalorder %v425, %v2798
          %vm2806 = vcmp.eq.s32.totalorder %v426, %v2798
          %vm2807 = vcmp.eq.s32.totalorder %v427, %v2798
          %vm2808 = vcmp.eq.s32.totalorder %v428, %v2798
          %vm2809 = vcmp.eq.s32.totalorder %v429, %v2798
          %vm2810 = vcmp.eq.s32.totalorder %v430, %v2798
          %vm2811 = vcmp.eq.s32.totalorder %v431, %v2798
          %vm2812 = vcmp.eq.s32.totalorder %v432, %v2798
          %vm2813 = vcmp.eq.s32.totalorder %v433, %v2798
          %vm2814 = vcmp.eq.s32.totalorder %v434, %v2798
          %v2815 = vsel %vm2799, 1, 0
          %v2816 = vsel %vm2800, 1, 0
          %v2817 = vsel %vm2801, 1, 0
          %v2818 = vsel %vm2802, 1, 0
          %v2819 = vsel %vm2803, 1, 0
          %v2820 = vsel %vm2804, 1, 0
          %v2821 = vsel %vm2805, 1, 0
          %v2822 = vsel %vm2806, 1, 0
          %v2823 = vsel %vm2807, 1, 0
          %v2824 = vsel %vm2808, 1, 0
          %v2825 = vsel %vm2809, 1, 0
          %v2826 = vsel %vm2810, 1, 0
          %v2827 = vsel %vm2811, 1, 0
          %v2828 = vsel %vm2812, 1, 0
          %v2829 = vsel %vm2813, 1, 0
          %v2830 = vsel %vm2814, 1, 0
          %v2831 = vcvt.s32.f32 %v2815
          %v2832 = vcvt.s32.f32 %v2816
          %v2833 = vcvt.s32.f32 %v2817
          %v2834 = vcvt.s32.f32 %v2818
          %v2835 = vcvt.s32.f32 %v2819
          %v2836 = vcvt.s32.f32 %v2820
          %v2837 = vcvt.s32.f32 %v2821
          %v2838 = vcvt.s32.f32 %v2822
          %v2839 = vcvt.s32.f32 %v2823
          %v2840 = vcvt.s32.f32 %v2824
          %v2841 = vcvt.s32.f32 %v2825
          %v2842 = vcvt.s32.f32 %v2826
          %v2843 = vcvt.s32.f32 %v2827
          %v2844 = vcvt.s32.f32 %v2828
          %v2845 = vcvt.s32.f32 %v2829
          %v2846 = vcvt.s32.f32 %v2830
          %v2847 = vpack.c.bf16 %v2831, %v2831
          %v2848 = vpack.c.bf16 %v2832, %v2832
          %v2849 = vpack.c.bf16 %v2833, %v2833
          %v2850 = vpack.c.bf16 %v2834, %v2834
          %v2851 = vpack.c.bf16 %v2835, %v2835
          %v2852 = vpack.c.bf16 %v2836, %v2836
          %v2853 = vpack.c.bf16 %v2837, %v2837
          %v2854 = vpack.c.bf16 %v2838, %v2838
          %v2855 = vpack.c.bf16 %v2839, %v2839
          %v2856 = vpack.c.bf16 %v2840, %v2840
          %v2857 = vpack.c.bf16 %v2841, %v2841
          %v2858 = vpack.c.bf16 %v2842, %v2842
          %v2859 = vpack.c.bf16 %v2843, %v2843
          %v2860 = vpack.c.bf16 %v2844, %v2844
          %v2861 = vpack.c.bf16 %v2845, %v2845
          %v2862 = vpack.c.bf16 %v2846, %v2846
          %v2864 = vpack.i.b16 %v2797, %v2797
          %v2866 = vperm.slane %v2864, 3
          %v2867 = vunpack.c.l.bf16 %v2847
          %v2868 = vunpack.c.l.bf16 %v2848
          %v2869 = vunpack.c.l.bf16 %v2849
          %v2870 = vunpack.c.l.bf16 %v2850
          %v2871 = vunpack.c.l.bf16 %v2851
          %v2872 = vunpack.c.l.bf16 %v2852
          %v2873 = vunpack.c.l.bf16 %v2853
          %v2874 = vunpack.c.l.bf16 %v2854
          %v2875 = vunpack.c.l.bf16 %v2855
          %v2876 = vunpack.c.l.bf16 %v2856
          %v2877 = vunpack.c.l.bf16 %v2857
          %v2878 = vunpack.c.l.bf16 %v2858
          %v2879 = vunpack.c.l.bf16 %v2859
          %v2880 = vunpack.c.l.bf16 %v2860
          %v2881 = vunpack.c.l.bf16 %v2861
          %v2882 = vunpack.c.l.bf16 %v2862
          %v2883 = vunpack.c.l.bf16 %v2866
          %v2884 = vmul.f32 %v2867, %v2883
          %v2885 = vmul.f32 %v2868, %v2883
          %v2886 = vmul.f32 %v2869, %v2883
          %v2887 = vmul.f32 %v2870, %v2883
          %v2888 = vmul.f32 %v2871, %v2883
          %v2889 = vmul.f32 %v2872, %v2883
          %v2890 = vmul.f32 %v2873, %v2883
          %v2891 = vmul.f32 %v2874, %v2883
          %v2892 = vmul.f32 %v2875, %v2883
          %v2893 = vmul.f32 %v2876, %v2883
          %v2894 = vmul.f32 %v2877, %v2883
          %v2895 = vmul.f32 %v2878, %v2883
          %v2896 = vmul.f32 %v2879, %v2883
          %v2897 = vmul.f32 %v2880, %v2883
          %v2898 = vmul.f32 %v2881, %v2883
          %v2899 = vmul.f32 %v2882, %v2883
          %v2900 = vpack.c.bf16 %v2884, %v2884
          %v2901 = vpack.c.bf16 %v2885, %v2885
          %v2902 = vpack.c.bf16 %v2886, %v2886
          %v2903 = vpack.c.bf16 %v2887, %v2887
          %v2904 = vpack.c.bf16 %v2888, %v2888
          %v2905 = vpack.c.bf16 %v2889, %v2889
          %v2906 = vpack.c.bf16 %v2890, %v2890
          %v2907 = vpack.c.bf16 %v2891, %v2891
          %v2908 = vpack.c.bf16 %v2892, %v2892
          %v2909 = vpack.c.bf16 %v2893, %v2893
          %v2910 = vpack.c.bf16 %v2894, %v2894
          %v2911 = vpack.c.bf16 %v2895, %v2895
          %v2912 = vpack.c.bf16 %v2896, %v2896
          %v2913 = vpack.c.bf16 %v2897, %v2897
          %v2914 = vpack.c.bf16 %v2898, %v2898
          %v2915 = vpack.c.bf16 %v2899, %v2899
          %v2916 = vunpack.c.l.bf16 %v2780
          %v2917 = vunpack.c.l.bf16 %v2781
          %v2918 = vunpack.c.l.bf16 %v2782
          %v2919 = vunpack.c.l.bf16 %v2783
          %v2920 = vunpack.c.l.bf16 %v2784
          %v2921 = vunpack.c.l.bf16 %v2785
          %v2922 = vunpack.c.l.bf16 %v2786
          %v2923 = vunpack.c.l.bf16 %v2787
          %v2924 = vunpack.c.l.bf16 %v2788
          %v2925 = vunpack.c.l.bf16 %v2789
          %v2926 = vunpack.c.l.bf16 %v2790
          %v2927 = vunpack.c.l.bf16 %v2791
          %v2928 = vunpack.c.l.bf16 %v2792
          %v2929 = vunpack.c.l.bf16 %v2793
          %v2930 = vunpack.c.l.bf16 %v2794
          %v2931 = vunpack.c.l.bf16 %v2795
          %v2932 = vunpack.c.l.bf16 %v2900
          %v2933 = vunpack.c.l.bf16 %v2901
          %v2934 = vunpack.c.l.bf16 %v2902
          %v2935 = vunpack.c.l.bf16 %v2903
          %v2936 = vunpack.c.l.bf16 %v2904
          %v2937 = vunpack.c.l.bf16 %v2905
          %v2938 = vunpack.c.l.bf16 %v2906
          %v2939 = vunpack.c.l.bf16 %v2907
          %v2940 = vunpack.c.l.bf16 %v2908
          %v2941 = vunpack.c.l.bf16 %v2909
          %v2942 = vunpack.c.l.bf16 %v2910
          %v2943 = vunpack.c.l.bf16 %v2911
          %v2944 = vunpack.c.l.bf16 %v2912
          %v2945 = vunpack.c.l.bf16 %v2913
          %v2946 = vunpack.c.l.bf16 %v2914
          %v2947 = vunpack.c.l.bf16 %v2915
          %v2948 = vadd.f32 %v2916, %v2932
          %v2949 = vadd.f32 %v2917, %v2933
          %v2950 = vadd.f32 %v2918, %v2934
          %v2951 = vadd.f32 %v2919, %v2935
          %v2952 = vadd.f32 %v2920, %v2936
          %v2953 = vadd.f32 %v2921, %v2937
          %v2954 = vadd.f32 %v2922, %v2938
          %v2955 = vadd.f32 %v2923, %v2939
          %v2956 = vadd.f32 %v2924, %v2940
          %v2957 = vadd.f32 %v2925, %v2941
          %v2958 = vadd.f32 %v2926, %v2942
          %v2959 = vadd.f32 %v2927, %v2943
          %v2960 = vadd.f32 %v2928, %v2944
          %v2961 = vadd.f32 %v2929, %v2945
          %v2962 = vadd.f32 %v2930, %v2946
          %v2963 = vadd.f32 %v2931, %v2947
          %v2964 = vpack.c.bf16 %v2948, %v2948
          %v2965 = vpack.c.bf16 %v2949, %v2949
          %v2966 = vpack.c.bf16 %v2950, %v2950
          %v2967 = vpack.c.bf16 %v2951, %v2951
          %v2968 = vpack.c.bf16 %v2952, %v2952
          %v2969 = vpack.c.bf16 %v2953, %v2953
          %v2970 = vpack.c.bf16 %v2954, %v2954
          %v2971 = vpack.c.bf16 %v2955, %v2955
          %v2972 = vpack.c.bf16 %v2956, %v2956
          %v2973 = vpack.c.bf16 %v2957, %v2957
          %v2974 = vpack.c.bf16 %v2958, %v2958
          %v2975 = vpack.c.bf16 %v2959, %v2959
          %v2976 = vpack.c.bf16 %v2960, %v2960
          %v2977 = vpack.c.bf16 %v2961, %v2961
          %v2978 = vpack.c.bf16 %v2962, %v2962
          %v2979 = vpack.c.bf16 %v2963, %v2963
          %v2980 = vld [vmem:[%s328 + $0xf] sm:$0x1]
          %v2981 = vperm.slane %v2980, 0
          %vm2982 = vcmp.eq.s32.totalorder %v419, %v2981
          %vm2983 = vcmp.eq.s32.totalorder %v420, %v2981
          %vm2984 = vcmp.eq.s32.totalorder %v421, %v2981
          %vm2985 = vcmp.eq.s32.totalorder %v422, %v2981
          %vm2986 = vcmp.eq.s32.totalorder %v423, %v2981
          %vm2987 = vcmp.eq.s32.totalorder %v424, %v2981
          %vm2988 = vcmp.eq.s32.totalorder %v425, %v2981
          %vm2989 = vcmp.eq.s32.totalorder %v426, %v2981
          %vm2990 = vcmp.eq.s32.totalorder %v427, %v2981
          %vm2991 = vcmp.eq.s32.totalorder %v428, %v2981
          %vm2992 = vcmp.eq.s32.totalorder %v429, %v2981
          %vm2993 = vcmp.eq.s32.totalorder %v430, %v2981
          %vm2994 = vcmp.eq.s32.totalorder %v431, %v2981
          %vm2995 = vcmp.eq.s32.totalorder %v432, %v2981
          %vm2996 = vcmp.eq.s32.totalorder %v433, %v2981
          %vm2997 = vcmp.eq.s32.totalorder %v434, %v2981
          %v2998 = vsel %vm2982, 1, 0
          %v2999 = vsel %vm2983, 1, 0
          %v3000 = vsel %vm2984, 1, 0
          %v3001 = vsel %vm2985, 1, 0
          %v3002 = vsel %vm2986, 1, 0
          %v3003 = vsel %vm2987, 1, 0
          %v3004 = vsel %vm2988, 1, 0
          %v3005 = vsel %vm2989, 1, 0
          %v3006 = vsel %vm2990, 1, 0
          %v3007 = vsel %vm2991, 1, 0
          %v3008 = vsel %vm2992, 1, 0
          %v3009 = vsel %vm2993, 1, 0
          %v3010 = vsel %vm2994, 1, 0
          %v3011 = vsel %vm2995, 1, 0
          %v3012 = vsel %vm2996, 1, 0
          %v3013 = vsel %vm2997, 1, 0
          %v3014 = vcvt.s32.f32 %v2998
          %v3015 = vcvt.s32.f32 %v2999
          %v3016 = vcvt.s32.f32 %v3000
          %v3017 = vcvt.s32.f32 %v3001
          %v3018 = vcvt.s32.f32 %v3002
          %v3019 = vcvt.s32.f32 %v3003
          %v3020 = vcvt.s32.f32 %v3004
          %v3021 = vcvt.s32.f32 %v3005
          %v3022 = vcvt.s32.f32 %v3006
          %v3023 = vcvt.s32.f32 %v3007
          %v3024 = vcvt.s32.f32 %v3008
          %v3025 = vcvt.s32.f32 %v3009
          %v3026 = vcvt.s32.f32 %v3010
          %v3027 = vcvt.s32.f32 %v3011
          %v3028 = vcvt.s32.f32 %v3012
          %v3029 = vcvt.s32.f32 %v3013
          %v3030 = vpack.c.bf16 %v3014, %v3014
          %v3031 = vpack.c.bf16 %v3015, %v3015
          %v3032 = vpack.c.bf16 %v3016, %v3016
          %v3033 = vpack.c.bf16 %v3017, %v3017
          %v3034 = vpack.c.bf16 %v3018, %v3018
          %v3035 = vpack.c.bf16 %v3019, %v3019
          %v3036 = vpack.c.bf16 %v3020, %v3020
          %v3037 = vpack.c.bf16 %v3021, %v3021
          %v3038 = vpack.c.bf16 %v3022, %v3022
          %v3039 = vpack.c.bf16 %v3023, %v3023
          %v3040 = vpack.c.bf16 %v3024, %v3024
          %v3041 = vpack.c.bf16 %v3025, %v3025
          %v3042 = vpack.c.bf16 %v3026, %v3026
          %v3043 = vpack.c.bf16 %v3027, %v3027
          %v3044 = vpack.c.bf16 %v3028, %v3028
          %v3045 = vpack.c.bf16 %v3029, %v3029
          %v3046 = vshrl.u32 %v2797, 16
          %v3047 = vpack.i.b16 %v3046, %v3046
          %v3049 = vperm.slane %v3047, 3
          %v3050 = vunpack.c.l.bf16 %v3030
          %v3051 = vunpack.c.l.bf16 %v3031
          %v3052 = vunpack.c.l.bf16 %v3032
          %v3053 = vunpack.c.l.bf16 %v3033
          %v3054 = vunpack.c.l.bf16 %v3034
          %v3055 = vunpack.c.l.bf16 %v3035
          %v3056 = vunpack.c.l.bf16 %v3036
          %v3057 = vunpack.c.l.bf16 %v3037
          %v3058 = vunpack.c.l.bf16 %v3038
          %v3059 = vunpack.c.l.bf16 %v3039
          %v3060 = vunpack.c.l.bf16 %v3040
          %v3061 = vunpack.c.l.bf16 %v3041
          %v3062 = vunpack.c.l.bf16 %v3042
          %v3063 = vunpack.c.l.bf16 %v3043
          %v3064 = vunpack.c.l.bf16 %v3044
          %v3065 = vunpack.c.l.bf16 %v3045
          %v3066 = vunpack.c.l.bf16 %v3049
          %v3067 = vmul.f32 %v3050, %v3066
          %v3068 = vmul.f32 %v3051, %v3066
          %v3069 = vmul.f32 %v3052, %v3066
          %v3070 = vmul.f32 %v3053, %v3066
          %v3071 = vmul.f32 %v3054, %v3066
          %v3072 = vmul.f32 %v3055, %v3066
          %v3073 = vmul.f32 %v3056, %v3066
          %v3074 = vmul.f32 %v3057, %v3066
          %v3075 = vmul.f32 %v3058, %v3066
          %v3076 = vmul.f32 %v3059, %v3066
          %v3077 = vmul.f32 %v3060, %v3066
          %v3078 = vmul.f32 %v3061, %v3066
          %v3079 = vmul.f32 %v3062, %v3066
          %v3080 = vmul.f32 %v3063, %v3066
          %v3081 = vmul.f32 %v3064, %v3066
          %v3082 = vmul.f32 %v3065, %v3066
          %v3083 = vpack.c.bf16 %v3067, %v3067
          %v3084 = vpack.c.bf16 %v3068, %v3068
          %v3085 = vpack.c.bf16 %v3069, %v3069
          %v3086 = vpack.c.bf16 %v3070, %v3070
          %v3087 = vpack.c.bf16 %v3071, %v3071
          %v3088 = vpack.c.bf16 %v3072, %v3072
          %v3089 = vpack.c.bf16 %v3073, %v3073
          %v3090 = vpack.c.bf16 %v3074, %v3074
          %v3091 = vpack.c.bf16 %v3075, %v3075
          %v3092 = vpack.c.bf16 %v3076, %v3076
          %v3093 = vpack.c.bf16 %v3077, %v3077
          %v3094 = vpack.c.bf16 %v3078, %v3078
          %v3095 = vpack.c.bf16 %v3079, %v3079
          %v3096 = vpack.c.bf16 %v3080, %v3080
          %v3097 = vpack.c.bf16 %v3081, %v3081
          %v3098 = vpack.c.bf16 %v3082, %v3082
          %v3099 = vunpack.c.l.bf16 %v2964
          %v3100 = vunpack.c.l.bf16 %v2965
          %v3101 = vunpack.c.l.bf16 %v2966
          %v3102 = vunpack.c.l.bf16 %v2967
          %v3103 = vunpack.c.l.bf16 %v2968
          %v3104 = vunpack.c.l.bf16 %v2969
          %v3105 = vunpack.c.l.bf16 %v2970
          %v3106 = vunpack.c.l.bf16 %v2971
          %v3107 = vunpack.c.l.bf16 %v2972
          %v3108 = vunpack.c.l.bf16 %v2973
          %v3109 = vunpack.c.l.bf16 %v2974
          %v3110 = vunpack.c.l.bf16 %v2975
          %v3111 = vunpack.c.l.bf16 %v2976
          %v3112 = vunpack.c.l.bf16 %v2977
          %v3113 = vunpack.c.l.bf16 %v2978
          %v3114 = vunpack.c.l.bf16 %v2979
          %v3115 = vunpack.c.l.bf16 %v3083
          %v3116 = vunpack.c.l.bf16 %v3084
          %v3117 = vunpack.c.l.bf16 %v3085
          %v3118 = vunpack.c.l.bf16 %v3086
          %v3119 = vunpack.c.l.bf16 %v3087
          %v3120 = vunpack.c.l.bf16 %v3088
          %v3121 = vunpack.c.l.bf16 %v3089
          %v3122 = vunpack.c.l.bf16 %v3090
          %v3123 = vunpack.c.l.bf16 %v3091
          %v3124 = vunpack.c.l.bf16 %v3092
          %v3125 = vunpack.c.l.bf16 %v3093
          %v3126 = vunpack.c.l.bf16 %v3094
          %v3127 = vunpack.c.l.bf16 %v3095
          %v3128 = vunpack.c.l.bf16 %v3096
          %v3129 = vunpack.c.l.bf16 %v3097
          %v3130 = vunpack.c.l.bf16 %v3098
          %v3131 = vadd.f32 %v3099, %v3115
          %v3132 = vadd.f32 %v3100, %v3116
          %v3133 = vadd.f32 %v3101, %v3117
          %v3134 = vadd.f32 %v3102, %v3118
          %v3135 = vadd.f32 %v3103, %v3119
          %v3136 = vadd.f32 %v3104, %v3120
          %v3137 = vadd.f32 %v3105, %v3121
          %v3138 = vadd.f32 %v3106, %v3122
          %v3139 = vadd.f32 %v3107, %v3123
          %v3140 = vadd.f32 %v3108, %v3124
          %v3141 = vadd.f32 %v3109, %v3125
          %v3142 = vadd.f32 %v3110, %v3126
          %v3143 = vadd.f32 %v3111, %v3127
          %v3144 = vadd.f32 %v3112, %v3128
          %v3145 = vadd.f32 %v3113, %v3129
          %v3146 = vadd.f32 %v3114, %v3130
          %v3147 = vpack.c.bf16 %v3131, %v3131
          %v3148 = vpack.c.bf16 %v3132, %v3132
          %v3149 = vpack.c.bf16 %v3133, %v3133
          %v3150 = vpack.c.bf16 %v3134, %v3134
          %v3151 = vpack.c.bf16 %v3135, %v3135
          %v3152 = vpack.c.bf16 %v3136, %v3136
          %v3153 = vpack.c.bf16 %v3137, %v3137
          %v3154 = vpack.c.bf16 %v3138, %v3138
          %v3155 = vpack.c.bf16 %v3139, %v3139
          %v3156 = vpack.c.bf16 %v3140, %v3140
          %v3157 = vpack.c.bf16 %v3141, %v3141
          %v3158 = vpack.c.bf16 %v3142, %v3142
          %v3159 = vpack.c.bf16 %v3143, %v3143
          %v3160 = vpack.c.bf16 %v3144, %v3144
          %v3161 = vpack.c.bf16 %v3145, %v3145
          %v3162 = vpack.c.bf16 %v3146, %v3146
          %3163 = vst [vmem:[#allocation3 + $0xc0] sm:$0xf] %v3147
          %3164 = vst [vmem:[#allocation3 + $0xc4] sm:$0xf] %v3148
          %3165 = vst [vmem:[#allocation3 + $0xc8] sm:$0xf] %v3149
          %3166 = vst [vmem:[#allocation3 + $0xcc] sm:$0xf] %v3150
          %3167 = vst [vmem:[#allocation3 + $0xd0] sm:$0xf] %v3151
          %3168 = vst [vmem:[#allocation3 + $0xd4] sm:$0xf] %v3152
          %3169 = vst [vmem:[#allocation3 + $0xd8] sm:$0xf] %v3153
          %3170 = vst [vmem:[#allocation3 + $0xdc] sm:$0xf] %v3154
          %3171 = vst [vmem:[#allocation3 + $0xe0] sm:$0xf] %v3155
          %3172 = vst [vmem:[#allocation3 + $0xe4] sm:$0xf] %v3156
          %3173 = vst [vmem:[#allocation3 + $0xe8] sm:$0xf] %v3157
          %3174 = vst [vmem:[#allocation3 + $0xec] sm:$0xf] %v3158
          %3175 = vst [vmem:[#allocation3 + $0xf0] sm:$0xf] %v3159
          %3176 = vst [vmem:[#allocation3 + $0xf4] sm:$0xf] %v3160
          %3177 = vst [vmem:[#allocation3 + $0xf8] sm:$0xf] %v3161
          %3178 = vst [vmem:[#allocation3 + $0xfc] sm:$0xf] %v3162
          %v3179 = vld [vmem:[%s328 + $0x10] sm:$0x1]
          %v3180 = vld [vmem:[%s335 + $0x8] sm:$0x1]
          %v3181 = vperm.slane %v3179, 0
          %vm3182 = vcmp.eq.s32.totalorder %v419, %v3181
          %vm3183 = vcmp.eq.s32.totalorder %v420, %v3181
          %vm3184 = vcmp.eq.s32.totalorder %v421, %v3181
          %vm3185 = vcmp.eq.s32.totalorder %v422, %v3181
          %vm3186 = vcmp.eq.s32.totalorder %v423, %v3181
          %vm3187 = vcmp.eq.s32.totalorder %v424, %v3181
          %vm3188 = vcmp.eq.s32.totalorder %v425, %v3181
          %vm3189 = vcmp.eq.s32.totalorder %v426, %v3181
          %vm3190 = vcmp.eq.s32.totalorder %v427, %v3181
          %vm3191 = vcmp.eq.s32.totalorder %v428, %v3181
          %vm3192 = vcmp.eq.s32.totalorder %v429, %v3181
          %vm3193 = vcmp.eq.s32.totalorder %v430, %v3181
          %vm3194 = vcmp.eq.s32.totalorder %v431, %v3181
          %vm3195 = vcmp.eq.s32.totalorder %v432, %v3181
          %vm3196 = vcmp.eq.s32.totalorder %v433, %v3181
          %vm3197 = vcmp.eq.s32.totalorder %v434, %v3181
          %v3198 = vsel %vm3182, 1, 0
          %v3199 = vsel %vm3183, 1, 0
          %v3200 = vsel %vm3184, 1, 0
          %v3201 = vsel %vm3185, 1, 0
          %v3202 = vsel %vm3186, 1, 0
          %v3203 = vsel %vm3187, 1, 0
          %v3204 = vsel %vm3188, 1, 0
          %v3205 = vsel %vm3189, 1, 0
          %v3206 = vsel %vm3190, 1, 0
          %v3207 = vsel %vm3191, 1, 0
          %v3208 = vsel %vm3192, 1, 0
          %v3209 = vsel %vm3193, 1, 0
          %v3210 = vsel %vm3194, 1, 0
          %v3211 = vsel %vm3195, 1, 0
          %v3212 = vsel %vm3196, 1, 0
          %v3213 = vsel %vm3197, 1, 0
          %v3214 = vcvt.s32.f32 %v3198
          %v3215 = vcvt.s32.f32 %v3199
          %v3216 = vcvt.s32.f32 %v3200
          %v3217 = vcvt.s32.f32 %v3201
          %v3218 = vcvt.s32.f32 %v3202
          %v3219 = vcvt.s32.f32 %v3203
          %v3220 = vcvt.s32.f32 %v3204
          %v3221 = vcvt.s32.f32 %v3205
          %v3222 = vcvt.s32.f32 %v3206
          %v3223 = vcvt.s32.f32 %v3207
          %v3224 = vcvt.s32.f32 %v3208
          %v3225 = vcvt.s32.f32 %v3209
          %v3226 = vcvt.s32.f32 %v3210
          %v3227 = vcvt.s32.f32 %v3211
          %v3228 = vcvt.s32.f32 %v3212
          %v3229 = vcvt.s32.f32 %v3213
          %v3230 = vpack.c.bf16 %v3214, %v3214
          %v3231 = vpack.c.bf16 %v3215, %v3215
          %v3232 = vpack.c.bf16 %v3216, %v3216
          %v3233 = vpack.c.bf16 %v3217, %v3217
          %v3234 = vpack.c.bf16 %v3218, %v3218
          %v3235 = vpack.c.bf16 %v3219, %v3219
          %v3236 = vpack.c.bf16 %v3220, %v3220
          %v3237 = vpack.c.bf16 %v3221, %v3221
          %v3238 = vpack.c.bf16 %v3222, %v3222
          %v3239 = vpack.c.bf16 %v3223, %v3223
          %v3240 = vpack.c.bf16 %v3224, %v3224
          %v3241 = vpack.c.bf16 %v3225, %v3225
          %v3242 = vpack.c.bf16 %v3226, %v3226
          %v3243 = vpack.c.bf16 %v3227, %v3227
          %v3244 = vpack.c.bf16 %v3228, %v3228
          %v3245 = vpack.c.bf16 %v3229, %v3229
          %v3247 = vpack.i.b16 %v3180, %v3180
          %v3249 = vperm.slane %v3247, 0
          %v3250 = vunpack.c.l.bf16 %v3230
          %v3251 = vunpack.c.l.bf16 %v3231
          %v3252 = vunpack.c.l.bf16 %v3232
          %v3253 = vunpack.c.l.bf16 %v3233
          %v3254 = vunpack.c.l.bf16 %v3234
          %v3255 = vunpack.c.l.bf16 %v3235
          %v3256 = vunpack.c.l.bf16 %v3236
          %v3257 = vunpack.c.l.bf16 %v3237
          %v3258 = vunpack.c.l.bf16 %v3238
          %v3259 = vunpack.c.l.bf16 %v3239
          %v3260 = vunpack.c.l.bf16 %v3240
          %v3261 = vunpack.c.l.bf16 %v3241
          %v3262 = vunpack.c.l.bf16 %v3242
          %v3263 = vunpack.c.l.bf16 %v3243
          %v3264 = vunpack.c.l.bf16 %v3244
          %v3265 = vunpack.c.l.bf16 %v3245
          %v3266 = vunpack.c.l.bf16 %v3249
          %v3267 = vmul.f32 %v3250, %v3266
          %v3268 = vmul.f32 %v3251, %v3266
          %v3269 = vmul.f32 %v3252, %v3266
          %v3270 = vmul.f32 %v3253, %v3266
          %v3271 = vmul.f32 %v3254, %v3266
          %v3272 = vmul.f32 %v3255, %v3266
          %v3273 = vmul.f32 %v3256, %v3266
          %v3274 = vmul.f32 %v3257, %v3266
          %v3275 = vmul.f32 %v3258, %v3266
          %v3276 = vmul.f32 %v3259, %v3266
          %v3277 = vmul.f32 %v3260, %v3266
          %v3278 = vmul.f32 %v3261, %v3266
          %v3279 = vmul.f32 %v3262, %v3266
          %v3280 = vmul.f32 %v3263, %v3266
          %v3281 = vmul.f32 %v3264, %v3266
          %v3282 = vmul.f32 %v3265, %v3266
          %v3283 = vpack.c.bf16 %v3267, %v3267
          %v3284 = vpack.c.bf16 %v3268, %v3268
          %v3285 = vpack.c.bf16 %v3269, %v3269
          %v3286 = vpack.c.bf16 %v3270, %v3270
          %v3287 = vpack.c.bf16 %v3271, %v3271
          %v3288 = vpack.c.bf16 %v3272, %v3272
          %v3289 = vpack.c.bf16 %v3273, %v3273
          %v3290 = vpack.c.bf16 %v3274, %v3274
          %v3291 = vpack.c.bf16 %v3275, %v3275
          %v3292 = vpack.c.bf16 %v3276, %v3276
          %v3293 = vpack.c.bf16 %v3277, %v3277
          %v3294 = vpack.c.bf16 %v3278, %v3278
          %v3295 = vpack.c.bf16 %v3279, %v3279
          %v3296 = vpack.c.bf16 %v3280, %v3280
          %v3297 = vpack.c.bf16 %v3281, %v3281
          %v3298 = vpack.c.bf16 %v3282, %v3282
          %v3299 = vld [vmem:[%s328 + $0x11] sm:$0x1]
          %v3300 = vperm.slane %v3299, 0
          %vm3301 = vcmp.eq.s32.totalorder %v419, %v3300
          %vm3302 = vcmp.eq.s32.totalorder %v420, %v3300
          %vm3303 = vcmp.eq.s32.totalorder %v421, %v3300
          %vm3304 = vcmp.eq.s32.totalorder %v422, %v3300
          %vm3305 = vcmp.eq.s32.totalorder %v423, %v3300
          %vm3306 = vcmp.eq.s32.totalorder %v424, %v3300
          %vm3307 = vcmp.eq.s32.totalorder %v425, %v3300
          %vm3308 = vcmp.eq.s32.totalorder %v426, %v3300
          %vm3309 = vcmp.eq.s32.totalorder %v427, %v3300
          %vm3310 = vcmp.eq.s32.totalorder %v428, %v3300
          %vm3311 = vcmp.eq.s32.totalorder %v429, %v3300
          %vm3312 = vcmp.eq.s32.totalorder %v430, %v3300
          %vm3313 = vcmp.eq.s32.totalorder %v431, %v3300
          %vm3314 = vcmp.eq.s32.totalorder %v432, %v3300
          %vm3315 = vcmp.eq.s32.totalorder %v433, %v3300
          %vm3316 = vcmp.eq.s32.totalorder %v434, %v3300
          %v3317 = vsel %vm3301, 1, 0
          %v3318 = vsel %vm3302, 1, 0
          %v3319 = vsel %vm3303, 1, 0
          %v3320 = vsel %vm3304, 1, 0
          %v3321 = vsel %vm3305, 1, 0
          %v3322 = vsel %vm3306, 1, 0
          %v3323 = vsel %vm3307, 1, 0
          %v3324 = vsel %vm3308, 1, 0
          %v3325 = vsel %vm3309, 1, 0
          %v3326 = vsel %vm3310, 1, 0
          %v3327 = vsel %vm3311, 1, 0
          %v3328 = vsel %vm3312, 1, 0
          %v3329 = vsel %vm3313, 1, 0
          %v3330 = vsel %vm3314, 1, 0
          %v3331 = vsel %vm3315, 1, 0
          %v3332 = vsel %vm3316, 1, 0
          %v3333 = vcvt.s32.f32 %v3317
          %v3334 = vcvt.s32.f32 %v3318
          %v3335 = vcvt.s32.f32 %v3319
          %v3336 = vcvt.s32.f32 %v3320
          %v3337 = vcvt.s32.f32 %v3321
          %v3338 = vcvt.s32.f32 %v3322
          %v3339 = vcvt.s32.f32 %v3323
          %v3340 = vcvt.s32.f32 %v3324
          %v3341 = vcvt.s32.f32 %v3325
          %v3342 = vcvt.s32.f32 %v3326
          %v3343 = vcvt.s32.f32 %v3327
          %v3344 = vcvt.s32.f32 %v3328
          %v3345 = vcvt.s32.f32 %v3329
          %v3346 = vcvt.s32.f32 %v3330
          %v3347 = vcvt.s32.f32 %v3331
          %v3348 = vcvt.s32.f32 %v3332
          %v3349 = vpack.c.bf16 %v3333, %v3333
          %v3350 = vpack.c.bf16 %v3334, %v3334
          %v3351 = vpack.c.bf16 %v3335, %v3335
          %v3352 = vpack.c.bf16 %v3336, %v3336
          %v3353 = vpack.c.bf16 %v3337, %v3337
          %v3354 = vpack.c.bf16 %v3338, %v3338
          %v3355 = vpack.c.bf16 %v3339, %v3339
          %v3356 = vpack.c.bf16 %v3340, %v3340
          %v3357 = vpack.c.bf16 %v3341, %v3341
          %v3358 = vpack.c.bf16 %v3342, %v3342
          %v3359 = vpack.c.bf16 %v3343, %v3343
          %v3360 = vpack.c.bf16 %v3344, %v3344
          %v3361 = vpack.c.bf16 %v3345, %v3345
          %v3362 = vpack.c.bf16 %v3346, %v3346
          %v3363 = vpack.c.bf16 %v3347, %v3347
          %v3364 = vpack.c.bf16 %v3348, %v3348
          %v3365 = vshrl.u32 %v3180, 16
          %v3366 = vpack.i.b16 %v3365, %v3365
          %v3368 = vperm.slane %v3366, 0
          %v3369 = vunpack.c.l.bf16 %v3349
          %v3370 = vunpack.c.l.bf16 %v3350
          %v3371 = vunpack.c.l.bf16 %v3351
          %v3372 = vunpack.c.l.bf16 %v3352
          %v3373 = vunpack.c.l.bf16 %v3353
          %v3374 = vunpack.c.l.bf16 %v3354
          %v3375 = vunpack.c.l.bf16 %v3355
          %v3376 = vunpack.c.l.bf16 %v3356
          %v3377 = vunpack.c.l.bf16 %v3357
          %v3378 = vunpack.c.l.bf16 %v3358
          %v3379 = vunpack.c.l.bf16 %v3359
          %v3380 = vunpack.c.l.bf16 %v3360
          %v3381 = vunpack.c.l.bf16 %v3361
          %v3382 = vunpack.c.l.bf16 %v3362
          %v3383 = vunpack.c.l.bf16 %v3363
          %v3384 = vunpack.c.l.bf16 %v3364
          %v3385 = vunpack.c.l.bf16 %v3368
          %v3386 = vmul.f32 %v3369, %v3385
          %v3387 = vmul.f32 %v3370, %v3385
          %v3388 = vmul.f32 %v3371, %v3385
          %v3389 = vmul.f32 %v3372, %v3385
          %v3390 = vmul.f32 %v3373, %v3385
          %v3391 = vmul.f32 %v3374, %v3385
          %v3392 = vmul.f32 %v3375, %v3385
          %v3393 = vmul.f32 %v3376, %v3385
          %v3394 = vmul.f32 %v3377, %v3385
          %v3395 = vmul.f32 %v3378, %v3385
          %v3396 = vmul.f32 %v3379, %v3385
          %v3397 = vmul.f32 %v3380, %v3385
          %v3398 = vmul.f32 %v3381, %v3385
          %v3399 = vmul.f32 %v3382, %v3385
          %v3400 = vmul.f32 %v3383, %v3385
          %v3401 = vmul.f32 %v3384, %v3385
          %v3402 = vpack.c.bf16 %v3386, %v3386
          %v3403 = vpack.c.bf16 %v3387, %v3387
          %v3404 = vpack.c.bf16 %v3388, %v3388
          %v3405 = vpack.c.bf16 %v3389, %v3389
          %v3406 = vpack.c.bf16 %v3390, %v3390
          %v3407 = vpack.c.bf16 %v3391, %v3391
          %v3408 = vpack.c.bf16 %v3392, %v3392
          %v3409 = vpack.c.bf16 %v3393, %v3393
          %v3410 = vpack.c.bf16 %v3394, %v3394
          %v3411 = vpack.c.bf16 %v3395, %v3395
          %v3412 = vpack.c.bf16 %v3396, %v3396
          %v3413 = vpack.c.bf16 %v3397, %v3397
          %v3414 = vpack.c.bf16 %v3398, %v3398
          %v3415 = vpack.c.bf16 %v3399, %v3399
          %v3416 = vpack.c.bf16 %v3400, %v3400
          %v3417 = vpack.c.bf16 %v3401, %v3401
          %v3418 = vunpack.c.l.bf16 %v3283
          %v3419 = vunpack.c.l.bf16 %v3284
          %v3420 = vunpack.c.l.bf16 %v3285
          %v3421 = vunpack.c.l.bf16 %v3286
          %v3422 = vunpack.c.l.bf16 %v3287
          %v3423 = vunpack.c.l.bf16 %v3288
          %v3424 = vunpack.c.l.bf16 %v3289
          %v3425 = vunpack.c.l.bf16 %v3290
          %v3426 = vunpack.c.l.bf16 %v3291
          %v3427 = vunpack.c.l.bf16 %v3292
          %v3428 = vunpack.c.l.bf16 %v3293
          %v3429 = vunpack.c.l.bf16 %v3294
          %v3430 = vunpack.c.l.bf16 %v3295
          %v3431 = vunpack.c.l.bf16 %v3296
          %v3432 = vunpack.c.l.bf16 %v3297
          %v3433 = vunpack.c.l.bf16 %v3298
          %v3434 = vunpack.c.l.bf16 %v3402
          %v3435 = vunpack.c.l.bf16 %v3403
          %v3436 = vunpack.c.l.bf16 %v3404
          %v3437 = vunpack.c.l.bf16 %v3405
          %v3438 = vunpack.c.l.bf16 %v3406
          %v3439 = vunpack.c.l.bf16 %v3407
          %v3440 = vunpack.c.l.bf16 %v3408
          %v3441 = vunpack.c.l.bf16 %v3409
          %v3442 = vunpack.c.l.bf16 %v3410
          %v3443 = vunpack.c.l.bf16 %v3411
          %v3444 = vunpack.c.l.bf16 %v3412
          %v3445 = vunpack.c.l.bf16 %v3413
          %v3446 = vunpack.c.l.bf16 %v3414
          %v3447 = vunpack.c.l.bf16 %v3415
          %v3448 = vunpack.c.l.bf16 %v3416
          %v3449 = vunpack.c.l.bf16 %v3417
          %v3450 = vadd.f32 %v3418, %v3434
          %v3451 = vadd.f32 %v3419, %v3435
          %v3452 = vadd.f32 %v3420, %v3436
          %v3453 = vadd.f32 %v3421, %v3437
          %v3454 = vadd.f32 %v3422, %v3438
          %v3455 = vadd.f32 %v3423, %v3439
          %v3456 = vadd.f32 %v3424, %v3440
          %v3457 = vadd.f32 %v3425, %v3441
          %v3458 = vadd.f32 %v3426, %v3442
          %v3459 = vadd.f32 %v3427, %v3443
          %v3460 = vadd.f32 %v3428, %v3444
          %v3461 = vadd.f32 %v3429, %v3445
          %v3462 = vadd.f32 %v3430, %v3446
          %v3463 = vadd.f32 %v3431, %v3447
          %v3464 = vadd.f32 %v3432, %v3448
          %v3465 = vadd.f32 %v3433, %v3449
          %v3466 = vpack.c.bf16 %v3450, %v3450
          %v3467 = vpack.c.bf16 %v3451, %v3451
          %v3468 = vpack.c.bf16 %v3452, %v3452
          %v3469 = vpack.c.bf16 %v3453, %v3453
          %v3470 = vpack.c.bf16 %v3454, %v3454
          %v3471 = vpack.c.bf16 %v3455, %v3455
          %v3472 = vpack.c.bf16 %v3456, %v3456
          %v3473 = vpack.c.bf16 %v3457, %v3457
          %v3474 = vpack.c.bf16 %v3458, %v3458
          %v3475 = vpack.c.bf16 %v3459, %v3459
          %v3476 = vpack.c.bf16 %v3460, %v3460
          %v3477 = vpack.c.bf16 %v3461, %v3461
          %v3478 = vpack.c.bf16 %v3462, %v3462
          %v3479 = vpack.c.bf16 %v3463, %v3463
          %v3480 = vpack.c.bf16 %v3464, %v3464
          %v3481 = vpack.c.bf16 %v3465, %v3465
          %v3482 = vld [vmem:[%s328 + $0x12] sm:$0x1]
          %v3483 = vld [vmem:[%s335 + $0x8] sm:$0x2]
          %v3484 = vperm.slane %v3482, 0
          %vm3485 = vcmp.eq.s32.totalorder %v419, %v3484
          %vm3486 = vcmp.eq.s32.totalorder %v420, %v3484
          %vm3487 = vcmp.eq.s32.totalorder %v421, %v3484
          %vm3488 = vcmp.eq.s32.totalorder %v422, %v3484
          %vm3489 = vcmp.eq.s32.totalorder %v423, %v3484
          %vm3490 = vcmp.eq.s32.totalorder %v424, %v3484
          %vm3491 = vcmp.eq.s32.totalorder %v425, %v3484
          %vm3492 = vcmp.eq.s32.totalorder %v426, %v3484
          %vm3493 = vcmp.eq.s32.totalorder %v427, %v3484
          %vm3494 = vcmp.eq.s32.totalorder %v428, %v3484
          %vm3495 = vcmp.eq.s32.totalorder %v429, %v3484
          %vm3496 = vcmp.eq.s32.totalorder %v430, %v3484
          %vm3497 = vcmp.eq.s32.totalorder %v431, %v3484
          %vm3498 = vcmp.eq.s32.totalorder %v432, %v3484
          %vm3499 = vcmp.eq.s32.totalorder %v433, %v3484
          %vm3500 = vcmp.eq.s32.totalorder %v434, %v3484
          %v3501 = vsel %vm3485, 1, 0
          %v3502 = vsel %vm3486, 1, 0
          %v3503 = vsel %vm3487, 1, 0
          %v3504 = vsel %vm3488, 1, 0
          %v3505 = vsel %vm3489, 1, 0
          %v3506 = vsel %vm3490, 1, 0
          %v3507 = vsel %vm3491, 1, 0
          %v3508 = vsel %vm3492, 1, 0
          %v3509 = vsel %vm3493, 1, 0
          %v3510 = vsel %vm3494, 1, 0
          %v3511 = vsel %vm3495, 1, 0
          %v3512 = vsel %vm3496, 1, 0
          %v3513 = vsel %vm3497, 1, 0
          %v3514 = vsel %vm3498, 1, 0
          %v3515 = vsel %vm3499, 1, 0
          %v3516 = vsel %vm3500, 1, 0
          %v3517 = vcvt.s32.f32 %v3501
          %v3518 = vcvt.s32.f32 %v3502
          %v3519 = vcvt.s32.f32 %v3503
          %v3520 = vcvt.s32.f32 %v3504
          %v3521 = vcvt.s32.f32 %v3505
          %v3522 = vcvt.s32.f32 %v3506
          %v3523 = vcvt.s32.f32 %v3507
          %v3524 = vcvt.s32.f32 %v3508
          %v3525 = vcvt.s32.f32 %v3509
          %v3526 = vcvt.s32.f32 %v3510
          %v3527 = vcvt.s32.f32 %v3511
          %v3528 = vcvt.s32.f32 %v3512
          %v3529 = vcvt.s32.f32 %v3513
          %v3530 = vcvt.s32.f32 %v3514
          %v3531 = vcvt.s32.f32 %v3515
          %v3532 = vcvt.s32.f32 %v3516
          %v3533 = vpack.c.bf16 %v3517, %v3517
          %v3534 = vpack.c.bf16 %v3518, %v3518
          %v3535 = vpack.c.bf16 %v3519, %v3519
          %v3536 = vpack.c.bf16 %v3520, %v3520
          %v3537 = vpack.c.bf16 %v3521, %v3521
          %v3538 = vpack.c.bf16 %v3522, %v3522
          %v3539 = vpack.c.bf16 %v3523, %v3523
          %v3540 = vpack.c.bf16 %v3524, %v3524
          %v3541 = vpack.c.bf16 %v3525, %v3525
          %v3542 = vpack.c.bf16 %v3526, %v3526
          %v3543 = vpack.c.bf16 %v3527, %v3527
          %v3544 = vpack.c.bf16 %v3528, %v3528
          %v3545 = vpack.c.bf16 %v3529, %v3529
          %v3546 = vpack.c.bf16 %v3530, %v3530
          %v3547 = vpack.c.bf16 %v3531, %v3531
          %v3548 = vpack.c.bf16 %v3532, %v3532
          %v3550 = vpack.i.b16 %v3483, %v3483
          %v3552 = vperm.slane %v3550, 1
          %v3553 = vunpack.c.l.bf16 %v3533
          %v3554 = vunpack.c.l.bf16 %v3534
          %v3555 = vunpack.c.l.bf16 %v3535
          %v3556 = vunpack.c.l.bf16 %v3536
          %v3557 = vunpack.c.l.bf16 %v3537
          %v3558 = vunpack.c.l.bf16 %v3538
          %v3559 = vunpack.c.l.bf16 %v3539
          %v3560 = vunpack.c.l.bf16 %v3540
          %v3561 = vunpack.c.l.bf16 %v3541
          %v3562 = vunpack.c.l.bf16 %v3542
          %v3563 = vunpack.c.l.bf16 %v3543
          %v3564 = vunpack.c.l.bf16 %v3544
          %v3565 = vunpack.c.l.bf16 %v3545
          %v3566 = vunpack.c.l.bf16 %v3546
          %v3567 = vunpack.c.l.bf16 %v3547
          %v3568 = vunpack.c.l.bf16 %v3548
          %v3569 = vunpack.c.l.bf16 %v3552
          %v3570 = vmul.f32 %v3553, %v3569
          %v3571 = vmul.f32 %v3554, %v3569
          %v3572 = vmul.f32 %v3555, %v3569
          %v3573 = vmul.f32 %v3556, %v3569
          %v3574 = vmul.f32 %v3557, %v3569
          %v3575 = vmul.f32 %v3558, %v3569
          %v3576 = vmul.f32 %v3559, %v3569
          %v3577 = vmul.f32 %v3560, %v3569
          %v3578 = vmul.f32 %v3561, %v3569
          %v3579 = vmul.f32 %v3562, %v3569
          %v3580 = vmul.f32 %v3563, %v3569
          %v3581 = vmul.f32 %v3564, %v3569
          %v3582 = vmul.f32 %v3565, %v3569
          %v3583 = vmul.f32 %v3566, %v3569
          %v3584 = vmul.f32 %v3567, %v3569
          %v3585 = vmul.f32 %v3568, %v3569
          %v3586 = vpack.c.bf16 %v3570, %v3570
          %v3587 = vpack.c.bf16 %v3571, %v3571
          %v3588 = vpack.c.bf16 %v3572, %v3572
          %v3589 = vpack.c.bf16 %v3573, %v3573
          %v3590 = vpack.c.bf16 %v3574, %v3574
          %v3591 = vpack.c.bf16 %v3575, %v3575
          %v3592 = vpack.c.bf16 %v3576, %v3576
          %v3593 = vpack.c.bf16 %v3577, %v3577
          %v3594 = vpack.c.bf16 %v3578, %v3578
          %v3595 = vpack.c.bf16 %v3579, %v3579
          %v3596 = vpack.c.bf16 %v3580, %v3580
          %v3597 = vpack.c.bf16 %v3581, %v3581
          %v3598 = vpack.c.bf16 %v3582, %v3582
          %v3599 = vpack.c.bf16 %v3583, %v3583
          %v3600 = vpack.c.bf16 %v3584, %v3584
          %v3601 = vpack.c.bf16 %v3585, %v3585
          %v3602 = vunpack.c.l.bf16 %v3466
          %v3603 = vunpack.c.l.bf16 %v3467
          %v3604 = vunpack.c.l.bf16 %v3468
          %v3605 = vunpack.c.l.bf16 %v3469
          %v3606 = vunpack.c.l.bf16 %v3470
          %v3607 = vunpack.c.l.bf16 %v3471
          %v3608 = vunpack.c.l.bf16 %v3472
          %v3609 = vunpack.c.l.bf16 %v3473
          %v3610 = vunpack.c.l.bf16 %v3474
          %v3611 = vunpack.c.l.bf16 %v3475
          %v3612 = vunpack.c.l.bf16 %v3476
          %v3613 = vunpack.c.l.bf16 %v3477
          %v3614 = vunpack.c.l.bf16 %v3478
          %v3615 = vunpack.c.l.bf16 %v3479
          %v3616 = vunpack.c.l.bf16 %v3480
          %v3617 = vunpack.c.l.bf16 %v3481
          %v3618 = vunpack.c.l.bf16 %v3586
          %v3619 = vunpack.c.l.bf16 %v3587
          %v3620 = vunpack.c.l.bf16 %v3588
          %v3621 = vunpack.c.l.bf16 %v3589
          %v3622 = vunpack.c.l.bf16 %v3590
          %v3623 = vunpack.c.l.bf16 %v3591
          %v3624 = vunpack.c.l.bf16 %v3592
          %v3625 = vunpack.c.l.bf16 %v3593
          %v3626 = vunpack.c.l.bf16 %v3594
          %v3627 = vunpack.c.l.bf16 %v3595
          %v3628 = vunpack.c.l.bf16 %v3596
          %v3629 = vunpack.c.l.bf16 %v3597
          %v3630 = vunpack.c.l.bf16 %v3598
          %v3631 = vunpack.c.l.bf16 %v3599
          %v3632 = vunpack.c.l.bf16 %v3600
          %v3633 = vunpack.c.l.bf16 %v3601
          %v3634 = vadd.f32 %v3602, %v3618
          %v3635 = vadd.f32 %v3603, %v3619
          %v3636 = vadd.f32 %v3604, %v3620
          %v3637 = vadd.f32 %v3605, %v3621
          %v3638 = vadd.f32 %v3606, %v3622
          %v3639 = vadd.f32 %v3607, %v3623
          %v3640 = vadd.f32 %v3608, %v3624
          %v3641 = vadd.f32 %v3609, %v3625
          %v3642 = vadd.f32 %v3610, %v3626
          %v3643 = vadd.f32 %v3611, %v3627
          %v3644 = vadd.f32 %v3612, %v3628
          %v3645 = vadd.f32 %v3613, %v3629
          %v3646 = vadd.f32 %v3614, %v3630
          %v3647 = vadd.f32 %v3615, %v3631
          %v3648 = vadd.f32 %v3616, %v3632
          %v3649 = vadd.f32 %v3617, %v3633
          %v3650 = vpack.c.bf16 %v3634, %v3634
          %v3651 = vpack.c.bf16 %v3635, %v3635
          %v3652 = vpack.c.bf16 %v3636, %v3636
          %v3653 = vpack.c.bf16 %v3637, %v3637
          %v3654 = vpack.c.bf16 %v3638, %v3638
          %v3655 = vpack.c.bf16 %v3639, %v3639
          %v3656 = vpack.c.bf16 %v3640, %v3640
          %v3657 = vpack.c.bf16 %v3641, %v3641
          %v3658 = vpack.c.bf16 %v3642, %v3642
          %v3659 = vpack.c.bf16 %v3643, %v3643
          %v3660 = vpack.c.bf16 %v3644, %v3644
          %v3661 = vpack.c.bf16 %v3645, %v3645
          %v3662 = vpack.c.bf16 %v3646, %v3646
          %v3663 = vpack.c.bf16 %v3647, %v3647
          %v3664 = vpack.c.bf16 %v3648, %v3648
          %v3665 = vpack.c.bf16 %v3649, %v3649
          %v3666 = vld [vmem:[%s328 + $0x13] sm:$0x1]
          %v3667 = vperm.slane %v3666, 0
          %vm3668 = vcmp.eq.s32.totalorder %v419, %v3667
          %vm3669 = vcmp.eq.s32.totalorder %v420, %v3667
          %vm3670 = vcmp.eq.s32.totalorder %v421, %v3667
          %vm3671 = vcmp.eq.s32.totalorder %v422, %v3667
          %vm3672 = vcmp.eq.s32.totalorder %v423, %v3667
          %vm3673 = vcmp.eq.s32.totalorder %v424, %v3667
          %vm3674 = vcmp.eq.s32.totalorder %v425, %v3667
          %vm3675 = vcmp.eq.s32.totalorder %v426, %v3667
          %vm3676 = vcmp.eq.s32.totalorder %v427, %v3667
          %vm3677 = vcmp.eq.s32.totalorder %v428, %v3667
          %vm3678 = vcmp.eq.s32.totalorder %v429, %v3667
          %vm3679 = vcmp.eq.s32.totalorder %v430, %v3667
          %vm3680 = vcmp.eq.s32.totalorder %v431, %v3667
          %vm3681 = vcmp.eq.s32.totalorder %v432, %v3667
          %vm3682 = vcmp.eq.s32.totalorder %v433, %v3667
          %vm3683 = vcmp.eq.s32.totalorder %v434, %v3667
          %v3684 = vsel %vm3668, 1, 0
          %v3685 = vsel %vm3669, 1, 0
          %v3686 = vsel %vm3670, 1, 0
          %v3687 = vsel %vm3671, 1, 0
          %v3688 = vsel %vm3672, 1, 0
          %v3689 = vsel %vm3673, 1, 0
          %v3690 = vsel %vm3674, 1, 0
          %v3691 = vsel %vm3675, 1, 0
          %v3692 = vsel %vm3676, 1, 0
          %v3693 = vsel %vm3677, 1, 0
          %v3694 = vsel %vm3678, 1, 0
          %v3695 = vsel %vm3679, 1, 0
          %v3696 = vsel %vm3680, 1, 0
          %v3697 = vsel %vm3681, 1, 0
          %v3698 = vsel %vm3682, 1, 0
          %v3699 = vsel %vm3683, 1, 0
          %v3700 = vcvt.s32.f32 %v3684
          %v3701 = vcvt.s32.f32 %v3685
          %v3702 = vcvt.s32.f32 %v3686
          %v3703 = vcvt.s32.f32 %v3687
          %v3704 = vcvt.s32.f32 %v3688
          %v3705 = vcvt.s32.f32 %v3689
          %v3706 = vcvt.s32.f32 %v3690
          %v3707 = vcvt.s32.f32 %v3691
          %v3708 = vcvt.s32.f32 %v3692
          %v3709 = vcvt.s32.f32 %v3693
          %v3710 = vcvt.s32.f32 %v3694
          %v3711 = vcvt.s32.f32 %v3695
          %v3712 = vcvt.s32.f32 %v3696
          %v3713 = vcvt.s32.f32 %v3697
          %v3714 = vcvt.s32.f32 %v3698
          %v3715 = vcvt.s32.f32 %v3699
          %v3716 = vpack.c.bf16 %v3700, %v3700
          %v3717 = vpack.c.bf16 %v3701, %v3701
          %v3718 = vpack.c.bf16 %v3702, %v3702
          %v3719 = vpack.c.bf16 %v3703, %v3703
          %v3720 = vpack.c.bf16 %v3704, %v3704
          %v3721 = vpack.c.bf16 %v3705, %v3705
          %v3722 = vpack.c.bf16 %v3706, %v3706
          %v3723 = vpack.c.bf16 %v3707, %v3707
          %v3724 = vpack.c.bf16 %v3708, %v3708
          %v3725 = vpack.c.bf16 %v3709, %v3709
          %v3726 = vpack.c.bf16 %v3710, %v3710
          %v3727 = vpack.c.bf16 %v3711, %v3711
          %v3728 = vpack.c.bf16 %v3712, %v3712
          %v3729 = vpack.c.bf16 %v3713, %v3713
          %v3730 = vpack.c.bf16 %v3714, %v3714
          %v3731 = vpack.c.bf16 %v3715, %v3715
          %v3732 = vshrl.u32 %v3483, 16
          %v3733 = vpack.i.b16 %v3732, %v3732
          %v3735 = vperm.slane %v3733, 1
          %v3736 = vunpack.c.l.bf16 %v3716
          %v3737 = vunpack.c.l.bf16 %v3717
          %v3738 = vunpack.c.l.bf16 %v3718
          %v3739 = vunpack.c.l.bf16 %v3719
          %v3740 = vunpack.c.l.bf16 %v3720
          %v3741 = vunpack.c.l.bf16 %v3721
          %v3742 = vunpack.c.l.bf16 %v3722
          %v3743 = vunpack.c.l.bf16 %v3723
          %v3744 = vunpack.c.l.bf16 %v3724
          %v3745 = vunpack.c.l.bf16 %v3725
          %v3746 = vunpack.c.l.bf16 %v3726
          %v3747 = vunpack.c.l.bf16 %v3727
          %v3748 = vunpack.c.l.bf16 %v3728
          %v3749 = vunpack.c.l.bf16 %v3729
          %v3750 = vunpack.c.l.bf16 %v3730
          %v3751 = vunpack.c.l.bf16 %v3731
          %v3752 = vunpack.c.l.bf16 %v3735
          %v3753 = vmul.f32 %v3736, %v3752
          %v3754 = vmul.f32 %v3737, %v3752
          %v3755 = vmul.f32 %v3738, %v3752
          %v3756 = vmul.f32 %v3739, %v3752
          %v3757 = vmul.f32 %v3740, %v3752
          %v3758 = vmul.f32 %v3741, %v3752
          %v3759 = vmul.f32 %v3742, %v3752
          %v3760 = vmul.f32 %v3743, %v3752
          %v3761 = vmul.f32 %v3744, %v3752
          %v3762 = vmul.f32 %v3745, %v3752
          %v3763 = vmul.f32 %v3746, %v3752
          %v3764 = vmul.f32 %v3747, %v3752
          %v3765 = vmul.f32 %v3748, %v3752
          %v3766 = vmul.f32 %v3749, %v3752
          %v3767 = vmul.f32 %v3750, %v3752
          %v3768 = vmul.f32 %v3751, %v3752
          %v3769 = vpack.c.bf16 %v3753, %v3753
          %v3770 = vpack.c.bf16 %v3754, %v3754
          %v3771 = vpack.c.bf16 %v3755, %v3755
          %v3772 = vpack.c.bf16 %v3756, %v3756
          %v3773 = vpack.c.bf16 %v3757, %v3757
          %v3774 = vpack.c.bf16 %v3758, %v3758
          %v3775 = vpack.c.bf16 %v3759, %v3759
          %v3776 = vpack.c.bf16 %v3760, %v3760
          %v3777 = vpack.c.bf16 %v3761, %v3761
          %v3778 = vpack.c.bf16 %v3762, %v3762
          %v3779 = vpack.c.bf16 %v3763, %v3763
          %v3780 = vpack.c.bf16 %v3764, %v3764
          %v3781 = vpack.c.bf16 %v3765, %v3765
          %v3782 = vpack.c.bf16 %v3766, %v3766
          %v3783 = vpack.c.bf16 %v3767, %v3767
          %v3784 = vpack.c.bf16 %v3768, %v3768
          %v3785 = vunpack.c.l.bf16 %v3650
          %v3786 = vunpack.c.l.bf16 %v3651
          %v3787 = vunpack.c.l.bf16 %v3652
          %v3788 = vunpack.c.l.bf16 %v3653
          %v3789 = vunpack.c.l.bf16 %v3654
          %v3790 = vunpack.c.l.bf16 %v3655
          %v3791 = vunpack.c.l.bf16 %v3656
          %v3792 = vunpack.c.l.bf16 %v3657
          %v3793 = vunpack.c.l.bf16 %v3658
          %v3794 = vunpack.c.l.bf16 %v3659
          %v3795 = vunpack.c.l.bf16 %v3660
          %v3796 = vunpack.c.l.bf16 %v3661
          %v3797 = vunpack.c.l.bf16 %v3662
          %v3798 = vunpack.c.l.bf16 %v3663
          %v3799 = vunpack.c.l.bf16 %v3664
          %v3800 = vunpack.c.l.bf16 %v3665
          %v3801 = vunpack.c.l.bf16 %v3769
          %v3802 = vunpack.c.l.bf16 %v3770
          %v3803 = vunpack.c.l.bf16 %v3771
          %v3804 = vunpack.c.l.bf16 %v3772
          %v3805 = vunpack.c.l.bf16 %v3773
          %v3806 = vunpack.c.l.bf16 %v3774
          %v3807 = vunpack.c.l.bf16 %v3775
          %v3808 = vunpack.c.l.bf16 %v3776
          %v3809 = vunpack.c.l.bf16 %v3777
          %v3810 = vunpack.c.l.bf16 %v3778
          %v3811 = vunpack.c.l.bf16 %v3779
          %v3812 = vunpack.c.l.bf16 %v3780
          %v3813 = vunpack.c.l.bf16 %v3781
          %v3814 = vunpack.c.l.bf16 %v3782
          %v3815 = vunpack.c.l.bf16 %v3783
          %v3816 = vunpack.c.l.bf16 %v3784
          %v3817 = vadd.f32 %v3785, %v3801
          %v3818 = vadd.f32 %v3786, %v3802
          %v3819 = vadd.f32 %v3787, %v3803
          %v3820 = vadd.f32 %v3788, %v3804
          %v3821 = vadd.f32 %v3789, %v3805
          %v3822 = vadd.f32 %v3790, %v3806
          %v3823 = vadd.f32 %v3791, %v3807
          %v3824 = vadd.f32 %v3792, %v3808
          %v3825 = vadd.f32 %v3793, %v3809
          %v3826 = vadd.f32 %v3794, %v3810
          %v3827 = vadd.f32 %v3795, %v3811
          %v3828 = vadd.f32 %v3796, %v3812
          %v3829 = vadd.f32 %v3797, %v3813
          %v3830 = vadd.f32 %v3798, %v3814
          %v3831 = vadd.f32 %v3799, %v3815
          %v3832 = vadd.f32 %v3800, %v3816
          %v3833 = vpack.c.bf16 %v3817, %v3817
          %v3834 = vpack.c.bf16 %v3818, %v3818
          %v3835 = vpack.c.bf16 %v3819, %v3819
          %v3836 = vpack.c.bf16 %v3820, %v3820
          %v3837 = vpack.c.bf16 %v3821, %v3821
          %v3838 = vpack.c.bf16 %v3822, %v3822
          %v3839 = vpack.c.bf16 %v3823, %v3823
          %v3840 = vpack.c.bf16 %v3824, %v3824
          %v3841 = vpack.c.bf16 %v3825, %v3825
          %v3842 = vpack.c.bf16 %v3826, %v3826
          %v3843 = vpack.c.bf16 %v3827, %v3827
          %v3844 = vpack.c.bf16 %v3828, %v3828
          %v3845 = vpack.c.bf16 %v3829, %v3829
          %v3846 = vpack.c.bf16 %v3830, %v3830
          %v3847 = vpack.c.bf16 %v3831, %v3831
          %v3848 = vpack.c.bf16 %v3832, %v3832
          %3849 = vst [vmem:[#allocation3 + $0x100] sm:$0xf] %v3833
          %3850 = vst [vmem:[#allocation3 + $0x104] sm:$0xf] %v3834
          %3851 = vst [vmem:[#allocation3 + $0x108] sm:$0xf] %v3835
          %3852 = vst [vmem:[#allocation3 + $0x10c] sm:$0xf] %v3836
          %3853 = vst [vmem:[#allocation3 + $0x110] sm:$0xf] %v3837
          %3854 = vst [vmem:[#allocation3 + $0x114] sm:$0xf] %v3838
          %3855 = vst [vmem:[#allocation3 + $0x118] sm:$0xf] %v3839
          %3856 = vst [vmem:[#allocation3 + $0x11c] sm:$0xf] %v3840
          %3857 = vst [vmem:[#allocation3 + $0x120] sm:$0xf] %v3841
          %3858 = vst [vmem:[#allocation3 + $0x124] sm:$0xf] %v3842
          %3859 = vst [vmem:[#allocation3 + $0x128] sm:$0xf] %v3843
          %3860 = vst [vmem:[#allocation3 + $0x12c] sm:$0xf] %v3844
          %3861 = vst [vmem:[#allocation3 + $0x130] sm:$0xf] %v3845
          %3862 = vst [vmem:[#allocation3 + $0x134] sm:$0xf] %v3846
          %3863 = vst [vmem:[#allocation3 + $0x138] sm:$0xf] %v3847
          %3864 = vst [vmem:[#allocation3 + $0x13c] sm:$0xf] %v3848
          %v3865 = vld [vmem:[%s328 + $0x14] sm:$0x1]
          %v3866 = vld [vmem:[%s335 + $0x8] sm:$0x4]
          %v3867 = vperm.slane %v3865, 0
          %vm3868 = vcmp.eq.s32.totalorder %v419, %v3867
          %vm3869 = vcmp.eq.s32.totalorder %v420, %v3867
          %vm3870 = vcmp.eq.s32.totalorder %v421, %v3867
          %vm3871 = vcmp.eq.s32.totalorder %v422, %v3867
          %vm3872 = vcmp.eq.s32.totalorder %v423, %v3867
          %vm3873 = vcmp.eq.s32.totalorder %v424, %v3867
          %vm3874 = vcmp.eq.s32.totalorder %v425, %v3867
          %vm3875 = vcmp.eq.s32.totalorder %v426, %v3867
          %vm3876 = vcmp.eq.s32.totalorder %v427, %v3867
          %vm3877 = vcmp.eq.s32.totalorder %v428, %v3867
          %vm3878 = vcmp.eq.s32.totalorder %v429, %v3867
          %vm3879 = vcmp.eq.s32.totalorder %v430, %v3867
          %vm3880 = vcmp.eq.s32.totalorder %v431, %v3867
          %vm3881 = vcmp.eq.s32.totalorder %v432, %v3867
          %vm3882 = vcmp.eq.s32.totalorder %v433, %v3867
          %vm3883 = vcmp.eq.s32.totalorder %v434, %v3867
          %v3884 = vsel %vm3868, 1, 0
          %v3885 = vsel %vm3869, 1, 0
          %v3886 = vsel %vm3870, 1, 0
          %v3887 = vsel %vm3871, 1, 0
          %v3888 = vsel %vm3872, 1, 0
          %v3889 = vsel %vm3873, 1, 0
          %v3890 = vsel %vm3874, 1, 0
          %v3891 = vsel %vm3875, 1, 0
          %v3892 = vsel %vm3876, 1, 0
          %v3893 = vsel %vm3877, 1, 0
          %v3894 = vsel %vm3878, 1, 0
          %v3895 = vsel %vm3879, 1, 0
          %v3896 = vsel %vm3880, 1, 0
          %v3897 = vsel %vm3881, 1, 0
          %v3898 = vsel %vm3882, 1, 0
          %v3899 = vsel %vm3883, 1, 0
          %v3900 = vcvt.s32.f32 %v3884
          %v3901 = vcvt.s32.f32 %v3885
          %v3902 = vcvt.s32.f32 %v3886
          %v3903 = vcvt.s32.f32 %v3887
          %v3904 = vcvt.s32.f32 %v3888
          %v3905 = vcvt.s32.f32 %v3889
          %v3906 = vcvt.s32.f32 %v3890
          %v3907 = vcvt.s32.f32 %v3891
          %v3908 = vcvt.s32.f32 %v3892
          %v3909 = vcvt.s32.f32 %v3893
          %v3910 = vcvt.s32.f32 %v3894
          %v3911 = vcvt.s32.f32 %v3895
          %v3912 = vcvt.s32.f32 %v3896
          %v3913 = vcvt.s32.f32 %v3897
          %v3914 = vcvt.s32.f32 %v3898
          %v3915 = vcvt.s32.f32 %v3899
          %v3916 = vpack.c.bf16 %v3900, %v3900
          %v3917 = vpack.c.bf16 %v3901, %v3901
          %v3918 = vpack.c.bf16 %v3902, %v3902
          %v3919 = vpack.c.bf16 %v3903, %v3903
          %v3920 = vpack.c.bf16 %v3904, %v3904
          %v3921 = vpack.c.bf16 %v3905, %v3905
          %v3922 = vpack.c.bf16 %v3906, %v3906
          %v3923 = vpack.c.bf16 %v3907, %v3907
          %v3924 = vpack.c.bf16 %v3908, %v3908
          %v3925 = vpack.c.bf16 %v3909, %v3909
          %v3926 = vpack.c.bf16 %v3910, %v3910
          %v3927 = vpack.c.bf16 %v3911, %v3911
          %v3928 = vpack.c.bf16 %v3912, %v3912
          %v3929 = vpack.c.bf16 %v3913, %v3913
          %v3930 = vpack.c.bf16 %v3914, %v3914
          %v3931 = vpack.c.bf16 %v3915, %v3915
          %v3933 = vpack.i.b16 %v3866, %v3866
          %v3935 = vperm.slane %v3933, 2
          %v3936 = vunpack.c.l.bf16 %v3916
          %v3937 = vunpack.c.l.bf16 %v3917
          %v3938 = vunpack.c.l.bf16 %v3918
          %v3939 = vunpack.c.l.bf16 %v3919
          %v3940 = vunpack.c.l.bf16 %v3920
          %v3941 = vunpack.c.l.bf16 %v3921
          %v3942 = vunpack.c.l.bf16 %v3922
          %v3943 = vunpack.c.l.bf16 %v3923
          %v3944 = vunpack.c.l.bf16 %v3924
          %v3945 = vunpack.c.l.bf16 %v3925
          %v3946 = vunpack.c.l.bf16 %v3926
          %v3947 = vunpack.c.l.bf16 %v3927
          %v3948 = vunpack.c.l.bf16 %v3928
          %v3949 = vunpack.c.l.bf16 %v3929
          %v3950 = vunpack.c.l.bf16 %v3930
          %v3951 = vunpack.c.l.bf16 %v3931
          %v3952 = vunpack.c.l.bf16 %v3935
          %v3953 = vmul.f32 %v3936, %v3952
          %v3954 = vmul.f32 %v3937, %v3952
          %v3955 = vmul.f32 %v3938, %v3952
          %v3956 = vmul.f32 %v3939, %v3952
          %v3957 = vmul.f32 %v3940, %v3952
          %v3958 = vmul.f32 %v3941, %v3952
          %v3959 = vmul.f32 %v3942, %v3952
          %v3960 = vmul.f32 %v3943, %v3952
          %v3961 = vmul.f32 %v3944, %v3952
          %v3962 = vmul.f32 %v3945, %v3952
          %v3963 = vmul.f32 %v3946, %v3952
          %v3964 = vmul.f32 %v3947, %v3952
          %v3965 = vmul.f32 %v3948, %v3952
          %v3966 = vmul.f32 %v3949, %v3952
          %v3967 = vmul.f32 %v3950, %v3952
          %v3968 = vmul.f32 %v3951, %v3952
          %v3969 = vpack.c.bf16 %v3953, %v3953
          %v3970 = vpack.c.bf16 %v3954, %v3954
          %v3971 = vpack.c.bf16 %v3955, %v3955
          %v3972 = vpack.c.bf16 %v3956, %v3956
          %v3973 = vpack.c.bf16 %v3957, %v3957
          %v3974 = vpack.c.bf16 %v3958, %v3958
          %v3975 = vpack.c.bf16 %v3959, %v3959
          %v3976 = vpack.c.bf16 %v3960, %v3960
          %v3977 = vpack.c.bf16 %v3961, %v3961
          %v3978 = vpack.c.bf16 %v3962, %v3962
          %v3979 = vpack.c.bf16 %v3963, %v3963
          %v3980 = vpack.c.bf16 %v3964, %v3964
          %v3981 = vpack.c.bf16 %v3965, %v3965
          %v3982 = vpack.c.bf16 %v3966, %v3966
          %v3983 = vpack.c.bf16 %v3967, %v3967
          %v3984 = vpack.c.bf16 %v3968, %v3968
          %v3985 = vld [vmem:[%s328 + $0x15] sm:$0x1]
          %v3986 = vperm.slane %v3985, 0
          %vm3987 = vcmp.eq.s32.totalorder %v419, %v3986
          %vm3988 = vcmp.eq.s32.totalorder %v420, %v3986
          %vm3989 = vcmp.eq.s32.totalorder %v421, %v3986
          %vm3990 = vcmp.eq.s32.totalorder %v422, %v3986
          %vm3991 = vcmp.eq.s32.totalorder %v423, %v3986
          %vm3992 = vcmp.eq.s32.totalorder %v424, %v3986
          %vm3993 = vcmp.eq.s32.totalorder %v425, %v3986
          %vm3994 = vcmp.eq.s32.totalorder %v426, %v3986
          %vm3995 = vcmp.eq.s32.totalorder %v427, %v3986
          %vm3996 = vcmp.eq.s32.totalorder %v428, %v3986
          %vm3997 = vcmp.eq.s32.totalorder %v429, %v3986
          %vm3998 = vcmp.eq.s32.totalorder %v430, %v3986
          %vm3999 = vcmp.eq.s32.totalorder %v431, %v3986
          %vm4000 = vcmp.eq.s32.totalorder %v432, %v3986
          %vm4001 = vcmp.eq.s32.totalorder %v433, %v3986
          %vm4002 = vcmp.eq.s32.totalorder %v434, %v3986
          %v4003 = vsel %vm3987, 1, 0
          %v4004 = vsel %vm3988, 1, 0
          %v4005 = vsel %vm3989, 1, 0
          %v4006 = vsel %vm3990, 1, 0
          %v4007 = vsel %vm3991, 1, 0
          %v4008 = vsel %vm3992, 1, 0
          %v4009 = vsel %vm3993, 1, 0
          %v4010 = vsel %vm3994, 1, 0
          %v4011 = vsel %vm3995, 1, 0
          %v4012 = vsel %vm3996, 1, 0
          %v4013 = vsel %vm3997, 1, 0
          %v4014 = vsel %vm3998, 1, 0
          %v4015 = vsel %vm3999, 1, 0
          %v4016 = vsel %vm4000, 1, 0
          %v4017 = vsel %vm4001, 1, 0
          %v4018 = vsel %vm4002, 1, 0
          %v4019 = vcvt.s32.f32 %v4003
          %v4020 = vcvt.s32.f32 %v4004
          %v4021 = vcvt.s32.f32 %v4005
          %v4022 = vcvt.s32.f32 %v4006
          %v4023 = vcvt.s32.f32 %v4007
          %v4024 = vcvt.s32.f32 %v4008
          %v4025 = vcvt.s32.f32 %v4009
          %v4026 = vcvt.s32.f32 %v4010
          %v4027 = vcvt.s32.f32 %v4011
          %v4028 = vcvt.s32.f32 %v4012
          %v4029 = vcvt.s32.f32 %v4013
          %v4030 = vcvt.s32.f32 %v4014
          %v4031 = vcvt.s32.f32 %v4015
          %v4032 = vcvt.s32.f32 %v4016
          %v4033 = vcvt.s32.f32 %v4017
          %v4034 = vcvt.s32.f32 %v4018
          %v4035 = vpack.c.bf16 %v4019, %v4019
          %v4036 = vpack.c.bf16 %v4020, %v4020
          %v4037 = vpack.c.bf16 %v4021, %v4021
          %v4038 = vpack.c.bf16 %v4022, %v4022
          %v4039 = vpack.c.bf16 %v4023, %v4023
          %v4040 = vpack.c.bf16 %v4024, %v4024
          %v4041 = vpack.c.bf16 %v4025, %v4025
          %v4042 = vpack.c.bf16 %v4026, %v4026
          %v4043 = vpack.c.bf16 %v4027, %v4027
          %v4044 = vpack.c.bf16 %v4028, %v4028
          %v4045 = vpack.c.bf16 %v4029, %v4029
          %v4046 = vpack.c.bf16 %v4030, %v4030
          %v4047 = vpack.c.bf16 %v4031, %v4031
          %v4048 = vpack.c.bf16 %v4032, %v4032
          %v4049 = vpack.c.bf16 %v4033, %v4033
          %v4050 = vpack.c.bf16 %v4034, %v4034
          %v4051 = vshrl.u32 %v3866, 16
          %v4052 = vpack.i.b16 %v4051, %v4051
          %v4054 = vperm.slane %v4052, 2
          %v4055 = vunpack.c.l.bf16 %v4035
          %v4056 = vunpack.c.l.bf16 %v4036
          %v4057 = vunpack.c.l.bf16 %v4037
          %v4058 = vunpack.c.l.bf16 %v4038
          %v4059 = vunpack.c.l.bf16 %v4039
          %v4060 = vunpack.c.l.bf16 %v4040
          %v4061 = vunpack.c.l.bf16 %v4041
          %v4062 = vunpack.c.l.bf16 %v4042
          %v4063 = vunpack.c.l.bf16 %v4043
          %v4064 = vunpack.c.l.bf16 %v4044
          %v4065 = vunpack.c.l.bf16 %v4045
          %v4066 = vunpack.c.l.bf16 %v4046
          %v4067 = vunpack.c.l.bf16 %v4047
          %v4068 = vunpack.c.l.bf16 %v4048
          %v4069 = vunpack.c.l.bf16 %v4049
          %v4070 = vunpack.c.l.bf16 %v4050
          %v4071 = vunpack.c.l.bf16 %v4054
          %v4072 = vmul.f32 %v4055, %v4071
          %v4073 = vmul.f32 %v4056, %v4071
          %v4074 = vmul.f32 %v4057, %v4071
          %v4075 = vmul.f32 %v4058, %v4071
          %v4076 = vmul.f32 %v4059, %v4071
          %v4077 = vmul.f32 %v4060, %v4071
          %v4078 = vmul.f32 %v4061, %v4071
          %v4079 = vmul.f32 %v4062, %v4071
          %v4080 = vmul.f32 %v4063, %v4071
          %v4081 = vmul.f32 %v4064, %v4071
          %v4082 = vmul.f32 %v4065, %v4071
          %v4083 = vmul.f32 %v4066, %v4071
          %v4084 = vmul.f32 %v4067, %v4071
          %v4085 = vmul.f32 %v4068, %v4071
          %v4086 = vmul.f32 %v4069, %v4071
          %v4087 = vmul.f32 %v4070, %v4071
          %v4088 = vpack.c.bf16 %v4072, %v4072
          %v4089 = vpack.c.bf16 %v4073, %v4073
          %v4090 = vpack.c.bf16 %v4074, %v4074
          %v4091 = vpack.c.bf16 %v4075, %v4075
          %v4092 = vpack.c.bf16 %v4076, %v4076
          %v4093 = vpack.c.bf16 %v4077, %v4077
          %v4094 = vpack.c.bf16 %v4078, %v4078
          %v4095 = vpack.c.bf16 %v4079, %v4079
          %v4096 = vpack.c.bf16 %v4080, %v4080
          %v4097 = vpack.c.bf16 %v4081, %v4081
          %v4098 = vpack.c.bf16 %v4082, %v4082
          %v4099 = vpack.c.bf16 %v4083, %v4083
          %v4100 = vpack.c.bf16 %v4084, %v4084
          %v4101 = vpack.c.bf16 %v4085, %v4085
          %v4102 = vpack.c.bf16 %v4086, %v4086
          %v4103 = vpack.c.bf16 %v4087, %v4087
          %v4104 = vunpack.c.l.bf16 %v3969
          %v4105 = vunpack.c.l.bf16 %v3970
          %v4106 = vunpack.c.l.bf16 %v3971
          %v4107 = vunpack.c.l.bf16 %v3972
          %v4108 = vunpack.c.l.bf16 %v3973
          %v4109 = vunpack.c.l.bf16 %v3974
          %v4110 = vunpack.c.l.bf16 %v3975
          %v4111 = vunpack.c.l.bf16 %v3976
          %v4112 = vunpack.c.l.bf16 %v3977
          %v4113 = vunpack.c.l.bf16 %v3978
          %v4114 = vunpack.c.l.bf16 %v3979
          %v4115 = vunpack.c.l.bf16 %v3980
          %v4116 = vunpack.c.l.bf16 %v3981
          %v4117 = vunpack.c.l.bf16 %v3982
          %v4118 = vunpack.c.l.bf16 %v3983
          %v4119 = vunpack.c.l.bf16 %v3984
          %v4120 = vunpack.c.l.bf16 %v4088
          %v4121 = vunpack.c.l.bf16 %v4089
          %v4122 = vunpack.c.l.bf16 %v4090
          %v4123 = vunpack.c.l.bf16 %v4091
          %v4124 = vunpack.c.l.bf16 %v4092
          %v4125 = vunpack.c.l.bf16 %v4093
          %v4126 = vunpack.c.l.bf16 %v4094
          %v4127 = vunpack.c.l.bf16 %v4095
          %v4128 = vunpack.c.l.bf16 %v4096
          %v4129 = vunpack.c.l.bf16 %v4097
          %v4130 = vunpack.c.l.bf16 %v4098
          %v4131 = vunpack.c.l.bf16 %v4099
          %v4132 = vunpack.c.l.bf16 %v4100
          %v4133 = vunpack.c.l.bf16 %v4101
          %v4134 = vunpack.c.l.bf16 %v4102
          %v4135 = vunpack.c.l.bf16 %v4103
          %v4136 = vadd.f32 %v4104, %v4120
          %v4137 = vadd.f32 %v4105, %v4121
          %v4138 = vadd.f32 %v4106, %v4122
          %v4139 = vadd.f32 %v4107, %v4123
          %v4140 = vadd.f32 %v4108, %v4124
          %v4141 = vadd.f32 %v4109, %v4125
          %v4142 = vadd.f32 %v4110, %v4126
          %v4143 = vadd.f32 %v4111, %v4127
          %v4144 = vadd.f32 %v4112, %v4128
          %v4145 = vadd.f32 %v4113, %v4129
          %v4146 = vadd.f32 %v4114, %v4130
          %v4147 = vadd.f32 %v4115, %v4131
          %v4148 = vadd.f32 %v4116, %v4132
          %v4149 = vadd.f32 %v4117, %v4133
          %v4150 = vadd.f32 %v4118, %v4134
          %v4151 = vadd.f32 %v4119, %v4135
          %v4152 = vpack.c.bf16 %v4136, %v4136
          %v4153 = vpack.c.bf16 %v4137, %v4137
          %v4154 = vpack.c.bf16 %v4138, %v4138
          %v4155 = vpack.c.bf16 %v4139, %v4139
          %v4156 = vpack.c.bf16 %v4140, %v4140
          %v4157 = vpack.c.bf16 %v4141, %v4141
          %v4158 = vpack.c.bf16 %v4142, %v4142
          %v4159 = vpack.c.bf16 %v4143, %v4143
          %v4160 = vpack.c.bf16 %v4144, %v4144
          %v4161 = vpack.c.bf16 %v4145, %v4145
          %v4162 = vpack.c.bf16 %v4146, %v4146
          %v4163 = vpack.c.bf16 %v4147, %v4147
          %v4164 = vpack.c.bf16 %v4148, %v4148
          %v4165 = vpack.c.bf16 %v4149, %v4149
          %v4166 = vpack.c.bf16 %v4150, %v4150
          %v4167 = vpack.c.bf16 %v4151, %v4151
          %v4168 = vld [vmem:[%s328 + $0x16] sm:$0x1]
          %v4169 = vld [vmem:[%s335 + $0x8] sm:$0x8]
          %v4170 = vperm.slane %v4168, 0
          %vm4171 = vcmp.eq.s32.totalorder %v419, %v4170
          %vm4172 = vcmp.eq.s32.totalorder %v420, %v4170
          %vm4173 = vcmp.eq.s32.totalorder %v421, %v4170
          %vm4174 = vcmp.eq.s32.totalorder %v422, %v4170
          %vm4175 = vcmp.eq.s32.totalorder %v423, %v4170
          %vm4176 = vcmp.eq.s32.totalorder %v424, %v4170
          %vm4177 = vcmp.eq.s32.totalorder %v425, %v4170
          %vm4178 = vcmp.eq.s32.totalorder %v426, %v4170
          %vm4179 = vcmp.eq.s32.totalorder %v427, %v4170
          %vm4180 = vcmp.eq.s32.totalorder %v428, %v4170
          %vm4181 = vcmp.eq.s32.totalorder %v429, %v4170
          %vm4182 = vcmp.eq.s32.totalorder %v430, %v4170
          %vm4183 = vcmp.eq.s32.totalorder %v431, %v4170
          %vm4184 = vcmp.eq.s32.totalorder %v432, %v4170
          %vm4185 = vcmp.eq.s32.totalorder %v433, %v4170
          %vm4186 = vcmp.eq.s32.totalorder %v434, %v4170
          %v4187 = vsel %vm4171, 1, 0
          %v4188 = vsel %vm4172, 1, 0
          %v4189 = vsel %vm4173, 1, 0
          %v4190 = vsel %vm4174, 1, 0
          %v4191 = vsel %vm4175, 1, 0
          %v4192 = vsel %vm4176, 1, 0
          %v4193 = vsel %vm4177, 1, 0
          %v4194 = vsel %vm4178, 1, 0
          %v4195 = vsel %vm4179, 1, 0
          %v4196 = vsel %vm4180, 1, 0
          %v4197 = vsel %vm4181, 1, 0
          %v4198 = vsel %vm4182, 1, 0
          %v4199 = vsel %vm4183, 1, 0
          %v4200 = vsel %vm4184, 1, 0
          %v4201 = vsel %vm4185, 1, 0
          %v4202 = vsel %vm4186, 1, 0
          %v4203 = vcvt.s32.f32 %v4187
          %v4204 = vcvt.s32.f32 %v4188
          %v4205 = vcvt.s32.f32 %v4189
          %v4206 = vcvt.s32.f32 %v4190
          %v4207 = vcvt.s32.f32 %v4191
          %v4208 = vcvt.s32.f32 %v4192
          %v4209 = vcvt.s32.f32 %v4193
          %v4210 = vcvt.s32.f32 %v4194
          %v4211 = vcvt.s32.f32 %v4195
          %v4212 = vcvt.s32.f32 %v4196
          %v4213 = vcvt.s32.f32 %v4197
          %v4214 = vcvt.s32.f32 %v4198
          %v4215 = vcvt.s32.f32 %v4199
          %v4216 = vcvt.s32.f32 %v4200
          %v4217 = vcvt.s32.f32 %v4201
          %v4218 = vcvt.s32.f32 %v4202
          %v4219 = vpack.c.bf16 %v4203, %v4203
          %v4220 = vpack.c.bf16 %v4204, %v4204
          %v4221 = vpack.c.bf16 %v4205, %v4205
          %v4222 = vpack.c.bf16 %v4206, %v4206
          %v4223 = vpack.c.bf16 %v4207, %v4207
          %v4224 = vpack.c.bf16 %v4208, %v4208
          %v4225 = vpack.c.bf16 %v4209, %v4209
          %v4226 = vpack.c.bf16 %v4210, %v4210
          %v4227 = vpack.c.bf16 %v4211, %v4211
          %v4228 = vpack.c.bf16 %v4212, %v4212
          %v4229 = vpack.c.bf16 %v4213, %v4213
          %v4230 = vpack.c.bf16 %v4214, %v4214
          %v4231 = vpack.c.bf16 %v4215, %v4215
          %v4232 = vpack.c.bf16 %v4216, %v4216
          %v4233 = vpack.c.bf16 %v4217, %v4217
          %v4234 = vpack.c.bf16 %v4218, %v4218
          %v4236 = vpack.i.b16 %v4169, %v4169
          %v4238 = vperm.slane %v4236, 3
          %v4239 = vunpack.c.l.bf16 %v4219
          %v4240 = vunpack.c.l.bf16 %v4220
          %v4241 = vunpack.c.l.bf16 %v4221
          %v4242 = vunpack.c.l.bf16 %v4222
          %v4243 = vunpack.c.l.bf16 %v4223
          %v4244 = vunpack.c.l.bf16 %v4224
          %v4245 = vunpack.c.l.bf16 %v4225
          %v4246 = vunpack.c.l.bf16 %v4226
          %v4247 = vunpack.c.l.bf16 %v4227
          %v4248 = vunpack.c.l.bf16 %v4228
          %v4249 = vunpack.c.l.bf16 %v4229
          %v4250 = vunpack.c.l.bf16 %v4230
          %v4251 = vunpack.c.l.bf16 %v4231
          %v4252 = vunpack.c.l.bf16 %v4232
          %v4253 = vunpack.c.l.bf16 %v4233
          %v4254 = vunpack.c.l.bf16 %v4234
          %v4255 = vunpack.c.l.bf16 %v4238
          %v4256 = vmul.f32 %v4239, %v4255
          %v4257 = vmul.f32 %v4240, %v4255
          %v4258 = vmul.f32 %v4241, %v4255
          %v4259 = vmul.f32 %v4242, %v4255
          %v4260 = vmul.f32 %v4243, %v4255
          %v4261 = vmul.f32 %v4244, %v4255
          %v4262 = vmul.f32 %v4245, %v4255
          %v4263 = vmul.f32 %v4246, %v4255
          %v4264 = vmul.f32 %v4247, %v4255
          %v4265 = vmul.f32 %v4248, %v4255
          %v4266 = vmul.f32 %v4249, %v4255
          %v4267 = vmul.f32 %v4250, %v4255
          %v4268 = vmul.f32 %v4251, %v4255
          %v4269 = vmul.f32 %v4252, %v4255
          %v4270 = vmul.f32 %v4253, %v4255
          %v4271 = vmul.f32 %v4254, %v4255
          %v4272 = vpack.c.bf16 %v4256, %v4256
          %v4273 = vpack.c.bf16 %v4257, %v4257
          %v4274 = vpack.c.bf16 %v4258, %v4258
          %v4275 = vpack.c.bf16 %v4259, %v4259
          %v4276 = vpack.c.bf16 %v4260, %v4260
          %v4277 = vpack.c.bf16 %v4261, %v4261
          %v4278 = vpack.c.bf16 %v4262, %v4262
          %v4279 = vpack.c.bf16 %v4263, %v4263
          %v4280 = vpack.c.bf16 %v4264, %v4264
          %v4281 = vpack.c.bf16 %v4265, %v4265
          %v4282 = vpack.c.bf16 %v4266, %v4266
          %v4283 = vpack.c.bf16 %v4267, %v4267
          %v4284 = vpack.c.bf16 %v4268, %v4268
          %v4285 = vpack.c.bf16 %v4269, %v4269
          %v4286 = vpack.c.bf16 %v4270, %v4270
          %v4287 = vpack.c.bf16 %v4271, %v4271
          %v4288 = vunpack.c.l.bf16 %v4152
          %v4289 = vunpack.c.l.bf16 %v4153
          %v4290 = vunpack.c.l.bf16 %v4154
          %v4291 = vunpack.c.l.bf16 %v4155
          %v4292 = vunpack.c.l.bf16 %v4156
          %v4293 = vunpack.c.l.bf16 %v4157
          %v4294 = vunpack.c.l.bf16 %v4158
          %v4295 = vunpack.c.l.bf16 %v4159
          %v4296 = vunpack.c.l.bf16 %v4160
          %v4297 = vunpack.c.l.bf16 %v4161
          %v4298 = vunpack.c.l.bf16 %v4162
          %v4299 = vunpack.c.l.bf16 %v4163
          %v4300 = vunpack.c.l.bf16 %v4164
          %v4301 = vunpack.c.l.bf16 %v4165
          %v4302 = vunpack.c.l.bf16 %v4166
          %v4303 = vunpack.c.l.bf16 %v4167
          %v4304 = vunpack.c.l.bf16 %v4272
          %v4305 = vunpack.c.l.bf16 %v4273
          %v4306 = vunpack.c.l.bf16 %v4274
          %v4307 = vunpack.c.l.bf16 %v4275
          %v4308 = vunpack.c.l.bf16 %v4276
          %v4309 = vunpack.c.l.bf16 %v4277
          %v4310 = vunpack.c.l.bf16 %v4278
          %v4311 = vunpack.c.l.bf16 %v4279
          %v4312 = vunpack.c.l.bf16 %v4280
          %v4313 = vunpack.c.l.bf16 %v4281
          %v4314 = vunpack.c.l.bf16 %v4282
          %v4315 = vunpack.c.l.bf16 %v4283
          %v4316 = vunpack.c.l.bf16 %v4284
          %v4317 = vunpack.c.l.bf16 %v4285
          %v4318 = vunpack.c.l.bf16 %v4286
          %v4319 = vunpack.c.l.bf16 %v4287
          %v4320 = vadd.f32 %v4288, %v4304
          %v4321 = vadd.f32 %v4289, %v4305
          %v4322 = vadd.f32 %v4290, %v4306
          %v4323 = vadd.f32 %v4291, %v4307
          %v4324 = vadd.f32 %v4292, %v4308
          %v4325 = vadd.f32 %v4293, %v4309
          %v4326 = vadd.f32 %v4294, %v4310
          %v4327 = vadd.f32 %v4295, %v4311
          %v4328 = vadd.f32 %v4296, %v4312
          %v4329 = vadd.f32 %v4297, %v4313
          %v4330 = vadd.f32 %v4298, %v4314
          %v4331 = vadd.f32 %v4299, %v4315
          %v4332 = vadd.f32 %v4300, %v4316
          %v4333 = vadd.f32 %v4301, %v4317
          %v4334 = vadd.f32 %v4302, %v4318
          %v4335 = vadd.f32 %v4303, %v4319
          %v4336 = vpack.c.bf16 %v4320, %v4320
          %v4337 = vpack.c.bf16 %v4321, %v4321
          %v4338 = vpack.c.bf16 %v4322, %v4322
          %v4339 = vpack.c.bf16 %v4323, %v4323
          %v4340 = vpack.c.bf16 %v4324, %v4324
          %v4341 = vpack.c.bf16 %v4325, %v4325
          %v4342 = vpack.c.bf16 %v4326, %v4326
          %v4343 = vpack.c.bf16 %v4327, %v4327
          %v4344 = vpack.c.bf16 %v4328, %v4328
          %v4345 = vpack.c.bf16 %v4329, %v4329
          %v4346 = vpack.c.bf16 %v4330, %v4330
          %v4347 = vpack.c.bf16 %v4331, %v4331
          %v4348 = vpack.c.bf16 %v4332, %v4332
          %v4349 = vpack.c.bf16 %v4333, %v4333
          %v4350 = vpack.c.bf16 %v4334, %v4334
          %v4351 = vpack.c.bf16 %v4335, %v4335
          %v4352 = vld [vmem:[%s328 + $0x17] sm:$0x1]
          %v4353 = vperm.slane %v4352, 0
          %vm4354 = vcmp.eq.s32.totalorder %v419, %v4353
          %vm4355 = vcmp.eq.s32.totalorder %v420, %v4353
          %vm4356 = vcmp.eq.s32.totalorder %v421, %v4353
          %vm4357 = vcmp.eq.s32.totalorder %v422, %v4353
          %vm4358 = vcmp.eq.s32.totalorder %v423, %v4353
          %vm4359 = vcmp.eq.s32.totalorder %v424, %v4353
          %vm4360 = vcmp.eq.s32.totalorder %v425, %v4353
          %vm4361 = vcmp.eq.s32.totalorder %v426, %v4353
          %vm4362 = vcmp.eq.s32.totalorder %v427, %v4353
          %vm4363 = vcmp.eq.s32.totalorder %v428, %v4353
          %vm4364 = vcmp.eq.s32.totalorder %v429, %v4353
          %vm4365 = vcmp.eq.s32.totalorder %v430, %v4353
          %vm4366 = vcmp.eq.s32.totalorder %v431, %v4353
          %vm4367 = vcmp.eq.s32.totalorder %v432, %v4353
          %vm4368 = vcmp.eq.s32.totalorder %v433, %v4353
          %vm4369 = vcmp.eq.s32.totalorder %v434, %v4353
          %v4370 = vsel %vm4354, 1, 0
          %v4371 = vsel %vm4355, 1, 0
          %v4372 = vsel %vm4356, 1, 0
          %v4373 = vsel %vm4357, 1, 0
          %v4374 = vsel %vm4358, 1, 0
          %v4375 = vsel %vm4359, 1, 0
          %v4376 = vsel %vm4360, 1, 0
          %v4377 = vsel %vm4361, 1, 0
          %v4378 = vsel %vm4362, 1, 0
          %v4379 = vsel %vm4363, 1, 0
          %v4380 = vsel %vm4364, 1, 0
          %v4381 = vsel %vm4365, 1, 0
          %v4382 = vsel %vm4366, 1, 0
          %v4383 = vsel %vm4367, 1, 0
          %v4384 = vsel %vm4368, 1, 0
          %v4385 = vsel %vm4369, 1, 0
          %v4386 = vcvt.s32.f32 %v4370
          %v4387 = vcvt.s32.f32 %v4371
          %v4388 = vcvt.s32.f32 %v4372
          %v4389 = vcvt.s32.f32 %v4373
          %v4390 = vcvt.s32.f32 %v4374
          %v4391 = vcvt.s32.f32 %v4375
          %v4392 = vcvt.s32.f32 %v4376
          %v4393 = vcvt.s32.f32 %v4377
          %v4394 = vcvt.s32.f32 %v4378
          %v4395 = vcvt.s32.f32 %v4379
          %v4396 = vcvt.s32.f32 %v4380
          %v4397 = vcvt.s32.f32 %v4381
          %v4398 = vcvt.s32.f32 %v4382
          %v4399 = vcvt.s32.f32 %v4383
          %v4400 = vcvt.s32.f32 %v4384
          %v4401 = vcvt.s32.f32 %v4385
          %v4402 = vpack.c.bf16 %v4386, %v4386
          %v4403 = vpack.c.bf16 %v4387, %v4387
          %v4404 = vpack.c.bf16 %v4388, %v4388
          %v4405 = vpack.c.bf16 %v4389, %v4389
          %v4406 = vpack.c.bf16 %v4390, %v4390
          %v4407 = vpack.c.bf16 %v4391, %v4391
          %v4408 = vpack.c.bf16 %v4392, %v4392
          %v4409 = vpack.c.bf16 %v4393, %v4393
          %v4410 = vpack.c.bf16 %v4394, %v4394
          %v4411 = vpack.c.bf16 %v4395, %v4395
          %v4412 = vpack.c.bf16 %v4396, %v4396
          %v4413 = vpack.c.bf16 %v4397, %v4397
          %v4414 = vpack.c.bf16 %v4398, %v4398
          %v4415 = vpack.c.bf16 %v4399, %v4399
          %v4416 = vpack.c.bf16 %v4400, %v4400
          %v4417 = vpack.c.bf16 %v4401, %v4401
          %v4418 = vshrl.u32 %v4169, 16
          %v4419 = vpack.i.b16 %v4418, %v4418
          %v4421 = vperm.slane %v4419, 3
          %v4422 = vunpack.c.l.bf16 %v4402
          %v4423 = vunpack.c.l.bf16 %v4403
          %v4424 = vunpack.c.l.bf16 %v4404
          %v4425 = vunpack.c.l.bf16 %v4405
          %v4426 = vunpack.c.l.bf16 %v4406
          %v4427 = vunpack.c.l.bf16 %v4407
          %v4428 = vunpack.c.l.bf16 %v4408
          %v4429 = vunpack.c.l.bf16 %v4409
          %v4430 = vunpack.c.l.bf16 %v4410
          %v4431 = vunpack.c.l.bf16 %v4411
          %v4432 = vunpack.c.l.bf16 %v4412
          %v4433 = vunpack.c.l.bf16 %v4413
          %v4434 = vunpack.c.l.bf16 %v4414
          %v4435 = vunpack.c.l.bf16 %v4415
          %v4436 = vunpack.c.l.bf16 %v4416
          %v4437 = vunpack.c.l.bf16 %v4417
          %v4438 = vunpack.c.l.bf16 %v4421
          %v4439 = vmul.f32 %v4422, %v4438
          %v4440 = vmul.f32 %v4423, %v4438
          %v4441 = vmul.f32 %v4424, %v4438
          %v4442 = vmul.f32 %v4425, %v4438
          %v4443 = vmul.f32 %v4426, %v4438
          %v4444 = vmul.f32 %v4427, %v4438
          %v4445 = vmul.f32 %v4428, %v4438
          %v4446 = vmul.f32 %v4429, %v4438
          %v4447 = vmul.f32 %v4430, %v4438
          %v4448 = vmul.f32 %v4431, %v4438
          %v4449 = vmul.f32 %v4432, %v4438
          %v4450 = vmul.f32 %v4433, %v4438
          %v4451 = vmul.f32 %v4434, %v4438
          %v4452 = vmul.f32 %v4435, %v4438
          %v4453 = vmul.f32 %v4436, %v4438
          %v4454 = vmul.f32 %v4437, %v4438
          %v4455 = vpack.c.bf16 %v4439, %v4439
          %v4456 = vpack.c.bf16 %v4440, %v4440
          %v4457 = vpack.c.bf16 %v4441, %v4441
          %v4458 = vpack.c.bf16 %v4442, %v4442
          %v4459 = vpack.c.bf16 %v4443, %v4443
          %v4460 = vpack.c.bf16 %v4444, %v4444
          %v4461 = vpack.c.bf16 %v4445, %v4445
          %v4462 = vpack.c.bf16 %v4446, %v4446
          %v4463 = vpack.c.bf16 %v4447, %v4447
          %v4464 = vpack.c.bf16 %v4448, %v4448
          %v4465 = vpack.c.bf16 %v4449, %v4449
          %v4466 = vpack.c.bf16 %v4450, %v4450
          %v4467 = vpack.c.bf16 %v4451, %v4451
          %v4468 = vpack.c.bf16 %v4452, %v4452
          %v4469 = vpack.c.bf16 %v4453, %v4453
          %v4470 = vpack.c.bf16 %v4454, %v4454
          %v4471 = vunpack.c.l.bf16 %v4336
          %v4472 = vunpack.c.l.bf16 %v4337
          %v4473 = vunpack.c.l.bf16 %v4338
          %v4474 = vunpack.c.l.bf16 %v4339
          %v4475 = vunpack.c.l.bf16 %v4340
          %v4476 = vunpack.c.l.bf16 %v4341
          %v4477 = vunpack.c.l.bf16 %v4342
          %v4478 = vunpack.c.l.bf16 %v4343
          %v4479 = vunpack.c.l.bf16 %v4344
          %v4480 = vunpack.c.l.bf16 %v4345
          %v4481 = vunpack.c.l.bf16 %v4346
          %v4482 = vunpack.c.l.bf16 %v4347
          %v4483 = vunpack.c.l.bf16 %v4348
          %v4484 = vunpack.c.l.bf16 %v4349
          %v4485 = vunpack.c.l.bf16 %v4350
          %v4486 = vunpack.c.l.bf16 %v4351
          %v4487 = vunpack.c.l.bf16 %v4455
          %v4488 = vunpack.c.l.bf16 %v4456
          %v4489 = vunpack.c.l.bf16 %v4457
          %v4490 = vunpack.c.l.bf16 %v4458
          %v4491 = vunpack.c.l.bf16 %v4459
          %v4492 = vunpack.c.l.bf16 %v4460
          %v4493 = vunpack.c.l.bf16 %v4461
          %v4494 = vunpack.c.l.bf16 %v4462
          %v4495 = vunpack.c.l.bf16 %v4463
          %v4496 = vunpack.c.l.bf16 %v4464
          %v4497 = vunpack.c.l.bf16 %v4465
          %v4498 = vunpack.c.l.bf16 %v4466
          %v4499 = vunpack.c.l.bf16 %v4467
          %v4500 = vunpack.c.l.bf16 %v4468
          %v4501 = vunpack.c.l.bf16 %v4469
          %v4502 = vunpack.c.l.bf16 %v4470
          %v4503 = vadd.f32 %v4471, %v4487
          %v4504 = vadd.f32 %v4472, %v4488
          %v4505 = vadd.f32 %v4473, %v4489
          %v4506 = vadd.f32 %v4474, %v4490
          %v4507 = vadd.f32 %v4475, %v4491
          %v4508 = vadd.f32 %v4476, %v4492
          %v4509 = vadd.f32 %v4477, %v4493
          %v4510 = vadd.f32 %v4478, %v4494
          %v4511 = vadd.f32 %v4479, %v4495
          %v4512 = vadd.f32 %v4480, %v4496
          %v4513 = vadd.f32 %v4481, %v4497
          %v4514 = vadd.f32 %v4482, %v4498
          %v4515 = vadd.f32 %v4483, %v4499
          %v4516 = vadd.f32 %v4484, %v4500
          %v4517 = vadd.f32 %v4485, %v4501
          %v4518 = vadd.f32 %v4486, %v4502
          %v4519 = vpack.c.bf16 %v4503, %v4503
          %v4520 = vpack.c.bf16 %v4504, %v4504
          %v4521 = vpack.c.bf16 %v4505, %v4505
          %v4522 = vpack.c.bf16 %v4506, %v4506
          %v4523 = vpack.c.bf16 %v4507, %v4507
          %v4524 = vpack.c.bf16 %v4508, %v4508
          %v4525 = vpack.c.bf16 %v4509, %v4509
          %v4526 = vpack.c.bf16 %v4510, %v4510
          %v4527 = vpack.c.bf16 %v4511, %v4511
          %v4528 = vpack.c.bf16 %v4512, %v4512
          %v4529 = vpack.c.bf16 %v4513, %v4513
          %v4530 = vpack.c.bf16 %v4514, %v4514
          %v4531 = vpack.c.bf16 %v4515, %v4515
          %v4532 = vpack.c.bf16 %v4516, %v4516
          %v4533 = vpack.c.bf16 %v4517, %v4517
          %v4534 = vpack.c.bf16 %v4518, %v4518
          %4535 = vst [vmem:[#allocation3 + $0x140] sm:$0xf] %v4519
          %4536 = vst [vmem:[#allocation3 + $0x144] sm:$0xf] %v4520
          %4537 = vst [vmem:[#allocation3 + $0x148] sm:$0xf] %v4521
          %4538 = vst [vmem:[#allocation3 + $0x14c] sm:$0xf] %v4522
          %4539 = vst [vmem:[#allocation3 + $0x150] sm:$0xf] %v4523
          %4540 = vst [vmem:[#allocation3 + $0x154] sm:$0xf] %v4524
          %4541 = vst [vmem:[#allocation3 + $0x158] sm:$0xf] %v4525
          %4542 = vst [vmem:[#allocation3 + $0x15c] sm:$0xf] %v4526
          %4543 = vst [vmem:[#allocation3 + $0x160] sm:$0xf] %v4527
          %4544 = vst [vmem:[#allocation3 + $0x164] sm:$0xf] %v4528
          %4545 = vst [vmem:[#allocation3 + $0x168] sm:$0xf] %v4529
          %4546 = vst [vmem:[#allocation3 + $0x16c] sm:$0xf] %v4530
          %4547 = vst [vmem:[#allocation3 + $0x170] sm:$0xf] %v4531
          %4548 = vst [vmem:[#allocation3 + $0x174] sm:$0xf] %v4532
          %4549 = vst [vmem:[#allocation3 + $0x178] sm:$0xf] %v4533
          %4550 = vst [vmem:[#allocation3 + $0x17c] sm:$0xf] %v4534
          %v4551 = vld [vmem:[%s328 + $0x18] sm:$0x1]
          %v4552 = vld [vmem:[%s335 + $0xc] sm:$0x1]
          %v4553 = vperm.slane %v4551, 0
          %vm4554 = vcmp.eq.s32.totalorder %v419, %v4553
          %vm4555 = vcmp.eq.s32.totalorder %v420, %v4553
          %vm4556 = vcmp.eq.s32.totalorder %v421, %v4553
          %vm4557 = vcmp.eq.s32.totalorder %v422, %v4553
          %vm4558 = vcmp.eq.s32.totalorder %v423, %v4553
          %vm4559 = vcmp.eq.s32.totalorder %v424, %v4553
          %vm4560 = vcmp.eq.s32.totalorder %v425, %v4553
          %vm4561 = vcmp.eq.s32.totalorder %v426, %v4553
          %vm4562 = vcmp.eq.s32.totalorder %v427, %v4553
          %vm4563 = vcmp.eq.s32.totalorder %v428, %v4553
          %vm4564 = vcmp.eq.s32.totalorder %v429, %v4553
          %vm4565 = vcmp.eq.s32.totalorder %v430, %v4553
          %vm4566 = vcmp.eq.s32.totalorder %v431, %v4553
          %vm4567 = vcmp.eq.s32.totalorder %v432, %v4553
          %vm4568 = vcmp.eq.s32.totalorder %v433, %v4553
          %vm4569 = vcmp.eq.s32.totalorder %v434, %v4553
          %v4570 = vsel %vm4554, 1, 0
          %v4571 = vsel %vm4555, 1, 0
          %v4572 = vsel %vm4556, 1, 0
          %v4573 = vsel %vm4557, 1, 0
          %v4574 = vsel %vm4558, 1, 0
          %v4575 = vsel %vm4559, 1, 0
          %v4576 = vsel %vm4560, 1, 0
          %v4577 = vsel %vm4561, 1, 0
          %v4578 = vsel %vm4562, 1, 0
          %v4579 = vsel %vm4563, 1, 0
          %v4580 = vsel %vm4564, 1, 0
          %v4581 = vsel %vm4565, 1, 0
          %v4582 = vsel %vm4566, 1, 0
          %v4583 = vsel %vm4567, 1, 0
          %v4584 = vsel %vm4568, 1, 0
          %v4585 = vsel %vm4569, 1, 0
          %v4586 = vcvt.s32.f32 %v4570
          %v4587 = vcvt.s32.f32 %v4571
          %v4588 = vcvt.s32.f32 %v4572
          %v4589 = vcvt.s32.f32 %v4573
          %v4590 = vcvt.s32.f32 %v4574
          %v4591 = vcvt.s32.f32 %v4575
          %v4592 = vcvt.s32.f32 %v4576
          %v4593 = vcvt.s32.f32 %v4577
          %v4594 = vcvt.s32.f32 %v4578
          %v4595 = vcvt.s32.f32 %v4579
          %v4596 = vcvt.s32.f32 %v4580
          %v4597 = vcvt.s32.f32 %v4581
          %v4598 = vcvt.s32.f32 %v4582
          %v4599 = vcvt.s32.f32 %v4583
          %v4600 = vcvt.s32.f32 %v4584
          %v4601 = vcvt.s32.f32 %v4585
          %v4602 = vpack.c.bf16 %v4586, %v4586
          %v4603 = vpack.c.bf16 %v4587, %v4587
          %v4604 = vpack.c.bf16 %v4588, %v4588
          %v4605 = vpack.c.bf16 %v4589, %v4589
          %v4606 = vpack.c.bf16 %v4590, %v4590
          %v4607 = vpack.c.bf16 %v4591, %v4591
          %v4608 = vpack.c.bf16 %v4592, %v4592
          %v4609 = vpack.c.bf16 %v4593, %v4593
          %v4610 = vpack.c.bf16 %v4594, %v4594
          %v4611 = vpack.c.bf16 %v4595, %v4595
          %v4612 = vpack.c.bf16 %v4596, %v4596
          %v4613 = vpack.c.bf16 %v4597, %v4597
          %v4614 = vpack.c.bf16 %v4598, %v4598
          %v4615 = vpack.c.bf16 %v4599, %v4599
          %v4616 = vpack.c.bf16 %v4600, %v4600
          %v4617 = vpack.c.bf16 %v4601, %v4601
          %v4619 = vpack.i.b16 %v4552, %v4552
          %v4621 = vperm.slane %v4619, 0
          %v4622 = vunpack.c.l.bf16 %v4602
          %v4623 = vunpack.c.l.bf16 %v4603
          %v4624 = vunpack.c.l.bf16 %v4604
          %v4625 = vunpack.c.l.bf16 %v4605
          %v4626 = vunpack.c.l.bf16 %v4606
          %v4627 = vunpack.c.l.bf16 %v4607
          %v4628 = vunpack.c.l.bf16 %v4608
          %v4629 = vunpack.c.l.bf16 %v4609
          %v4630 = vunpack.c.l.bf16 %v4610
          %v4631 = vunpack.c.l.bf16 %v4611
          %v4632 = vunpack.c.l.bf16 %v4612
          %v4633 = vunpack.c.l.bf16 %v4613
          %v4634 = vunpack.c.l.bf16 %v4614
          %v4635 = vunpack.c.l.bf16 %v4615
          %v4636 = vunpack.c.l.bf16 %v4616
          %v4637 = vunpack.c.l.bf16 %v4617
          %v4638 = vunpack.c.l.bf16 %v4621
          %v4639 = vmul.f32 %v4622, %v4638
          %v4640 = vmul.f32 %v4623, %v4638
          %v4641 = vmul.f32 %v4624, %v4638
          %v4642 = vmul.f32 %v4625, %v4638
          %v4643 = vmul.f32 %v4626, %v4638
          %v4644 = vmul.f32 %v4627, %v4638
          %v4645 = vmul.f32 %v4628, %v4638
          %v4646 = vmul.f32 %v4629, %v4638
          %v4647 = vmul.f32 %v4630, %v4638
          %v4648 = vmul.f32 %v4631, %v4638
          %v4649 = vmul.f32 %v4632, %v4638
          %v4650 = vmul.f32 %v4633, %v4638
          %v4651 = vmul.f32 %v4634, %v4638
          %v4652 = vmul.f32 %v4635, %v4638
          %v4653 = vmul.f32 %v4636, %v4638
          %v4654 = vmul.f32 %v4637, %v4638
          %v4655 = vpack.c.bf16 %v4639, %v4639
          %v4656 = vpack.c.bf16 %v4640, %v4640
          %v4657 = vpack.c.bf16 %v4641, %v4641
          %v4658 = vpack.c.bf16 %v4642, %v4642
          %v4659 = vpack.c.bf16 %v4643, %v4643
          %v4660 = vpack.c.bf16 %v4644, %v4644
          %v4661 = vpack.c.bf16 %v4645, %v4645
          %v4662 = vpack.c.bf16 %v4646, %v4646
          %v4663 = vpack.c.bf16 %v4647, %v4647
          %v4664 = vpack.c.bf16 %v4648, %v4648
          %v4665 = vpack.c.bf16 %v4649, %v4649
          %v4666 = vpack.c.bf16 %v4650, %v4650
          %v4667 = vpack.c.bf16 %v4651, %v4651
          %v4668 = vpack.c.bf16 %v4652, %v4652
          %v4669 = vpack.c.bf16 %v4653, %v4653
          %v4670 = vpack.c.bf16 %v4654, %v4654
          %v4671 = vld [vmem:[%s328 + $0x19] sm:$0x1]
          %v4672 = vperm.slane %v4671, 0
          %vm4673 = vcmp.eq.s32.totalorder %v419, %v4672
          %vm4674 = vcmp.eq.s32.totalorder %v420, %v4672
          %vm4675 = vcmp.eq.s32.totalorder %v421, %v4672
          %vm4676 = vcmp.eq.s32.totalorder %v422, %v4672
          %vm4677 = vcmp.eq.s32.totalorder %v423, %v4672
          %vm4678 = vcmp.eq.s32.totalorder %v424, %v4672
          %vm4679 = vcmp.eq.s32.totalorder %v425, %v4672
          %vm4680 = vcmp.eq.s32.totalorder %v426, %v4672
          %vm4681 = vcmp.eq.s32.totalorder %v427, %v4672
          %vm4682 = vcmp.eq.s32.totalorder %v428, %v4672
          %vm4683 = vcmp.eq.s32.totalorder %v429, %v4672
          %vm4684 = vcmp.eq.s32.totalorder %v430, %v4672
          %vm4685 = vcmp.eq.s32.totalorder %v431, %v4672
          %vm4686 = vcmp.eq.s32.totalorder %v432, %v4672
          %vm4687 = vcmp.eq.s32.totalorder %v433, %v4672
          %vm4688 = vcmp.eq.s32.totalorder %v434, %v4672
          %v4689 = vsel %vm4673, 1, 0
          %v4690 = vsel %vm4674, 1, 0
          %v4691 = vsel %vm4675, 1, 0
          %v4692 = vsel %vm4676, 1, 0
          %v4693 = vsel %vm4677, 1, 0
          %v4694 = vsel %vm4678, 1, 0
          %v4695 = vsel %vm4679, 1, 0
          %v4696 = vsel %vm4680, 1, 0
          %v4697 = vsel %vm4681, 1, 0
          %v4698 = vsel %vm4682, 1, 0
          %v4699 = vsel %vm4683, 1, 0
          %v4700 = vsel %vm4684, 1, 0
          %v4701 = vsel %vm4685, 1, 0
          %v4702 = vsel %vm4686, 1, 0
          %v4703 = vsel %vm4687, 1, 0
          %v4704 = vsel %vm4688, 1, 0
          %v4705 = vcvt.s32.f32 %v4689
          %v4706 = vcvt.s32.f32 %v4690
          %v4707 = vcvt.s32.f32 %v4691
          %v4708 = vcvt.s32.f32 %v4692
          %v4709 = vcvt.s32.f32 %v4693
          %v4710 = vcvt.s32.f32 %v4694
          %v4711 = vcvt.s32.f32 %v4695
          %v4712 = vcvt.s32.f32 %v4696
          %v4713 = vcvt.s32.f32 %v4697
          %v4714 = vcvt.s32.f32 %v4698
          %v4715 = vcvt.s32.f32 %v4699
          %v4716 = vcvt.s32.f32 %v4700
          %v4717 = vcvt.s32.f32 %v4701
          %v4718 = vcvt.s32.f32 %v4702
          %v4719 = vcvt.s32.f32 %v4703
          %v4720 = vcvt.s32.f32 %v4704
          %v4721 = vpack.c.bf16 %v4705, %v4705
          %v4722 = vpack.c.bf16 %v4706, %v4706
          %v4723 = vpack.c.bf16 %v4707, %v4707
          %v4724 = vpack.c.bf16 %v4708, %v4708
          %v4725 = vpack.c.bf16 %v4709, %v4709
          %v4726 = vpack.c.bf16 %v4710, %v4710
          %v4727 = vpack.c.bf16 %v4711, %v4711
          %v4728 = vpack.c.bf16 %v4712, %v4712
          %v4729 = vpack.c.bf16 %v4713, %v4713
          %v4730 = vpack.c.bf16 %v4714, %v4714
          %v4731 = vpack.c.bf16 %v4715, %v4715
          %v4732 = vpack.c.bf16 %v4716, %v4716
          %v4733 = vpack.c.bf16 %v4717, %v4717
          %v4734 = vpack.c.bf16 %v4718, %v4718
          %v4735 = vpack.c.bf16 %v4719, %v4719
          %v4736 = vpack.c.bf16 %v4720, %v4720
          %v4737 = vshrl.u32 %v4552, 16
          %v4738 = vpack.i.b16 %v4737, %v4737
          %v4740 = vperm.slane %v4738, 0
          %v4741 = vunpack.c.l.bf16 %v4721
          %v4742 = vunpack.c.l.bf16 %v4722
          %v4743 = vunpack.c.l.bf16 %v4723
          %v4744 = vunpack.c.l.bf16 %v4724
          %v4745 = vunpack.c.l.bf16 %v4725
          %v4746 = vunpack.c.l.bf16 %v4726
          %v4747 = vunpack.c.l.bf16 %v4727
          %v4748 = vunpack.c.l.bf16 %v4728
          %v4749 = vunpack.c.l.bf16 %v4729
          %v4750 = vunpack.c.l.bf16 %v4730
          %v4751 = vunpack.c.l.bf16 %v4731
          %v4752 = vunpack.c.l.bf16 %v4732
          %v4753 = vunpack.c.l.bf16 %v4733
          %v4754 = vunpack.c.l.bf16 %v4734
          %v4755 = vunpack.c.l.bf16 %v4735
          %v4756 = vunpack.c.l.bf16 %v4736
          %v4757 = vunpack.c.l.bf16 %v4740
          %v4758 = vmul.f32 %v4741, %v4757
          %v4759 = vmul.f32 %v4742, %v4757
          %v4760 = vmul.f32 %v4743, %v4757
          %v4761 = vmul.f32 %v4744, %v4757
          %v4762 = vmul.f32 %v4745, %v4757
          %v4763 = vmul.f32 %v4746, %v4757
          %v4764 = vmul.f32 %v4747, %v4757
          %v4765 = vmul.f32 %v4748, %v4757
          %v4766 = vmul.f32 %v4749, %v4757
          %v4767 = vmul.f32 %v4750, %v4757
          %v4768 = vmul.f32 %v4751, %v4757
          %v4769 = vmul.f32 %v4752, %v4757
          %v4770 = vmul.f32 %v4753, %v4757
          %v4771 = vmul.f32 %v4754, %v4757
          %v4772 = vmul.f32 %v4755, %v4757
          %v4773 = vmul.f32 %v4756, %v4757
          %v4774 = vpack.c.bf16 %v4758, %v4758
          %v4775 = vpack.c.bf16 %v4759, %v4759
          %v4776 = vpack.c.bf16 %v4760, %v4760
          %v4777 = vpack.c.bf16 %v4761, %v4761
          %v4778 = vpack.c.bf16 %v4762, %v4762
          %v4779 = vpack.c.bf16 %v4763, %v4763
          %v4780 = vpack.c.bf16 %v4764, %v4764
          %v4781 = vpack.c.bf16 %v4765, %v4765
          %v4782 = vpack.c.bf16 %v4766, %v4766
          %v4783 = vpack.c.bf16 %v4767, %v4767
          %v4784 = vpack.c.bf16 %v4768, %v4768
          %v4785 = vpack.c.bf16 %v4769, %v4769
          %v4786 = vpack.c.bf16 %v4770, %v4770
          %v4787 = vpack.c.bf16 %v4771, %v4771
          %v4788 = vpack.c.bf16 %v4772, %v4772
          %v4789 = vpack.c.bf16 %v4773, %v4773
          %v4790 = vunpack.c.l.bf16 %v4655
          %v4791 = vunpack.c.l.bf16 %v4656
          %v4792 = vunpack.c.l.bf16 %v4657
          %v4793 = vunpack.c.l.bf16 %v4658
          %v4794 = vunpack.c.l.bf16 %v4659
          %v4795 = vunpack.c.l.bf16 %v4660
          %v4796 = vunpack.c.l.bf16 %v4661
          %v4797 = vunpack.c.l.bf16 %v4662
          %v4798 = vunpack.c.l.bf16 %v4663
          %v4799 = vunpack.c.l.bf16 %v4664
          %v4800 = vunpack.c.l.bf16 %v4665
          %v4801 = vunpack.c.l.bf16 %v4666
          %v4802 = vunpack.c.l.bf16 %v4667
          %v4803 = vunpack.c.l.bf16 %v4668
          %v4804 = vunpack.c.l.bf16 %v4669
          %v4805 = vunpack.c.l.bf16 %v4670
          %v4806 = vunpack.c.l.bf16 %v4774
          %v4807 = vunpack.c.l.bf16 %v4775
          %v4808 = vunpack.c.l.bf16 %v4776
          %v4809 = vunpack.c.l.bf16 %v4777
          %v4810 = vunpack.c.l.bf16 %v4778
          %v4811 = vunpack.c.l.bf16 %v4779
          %v4812 = vunpack.c.l.bf16 %v4780
          %v4813 = vunpack.c.l.bf16 %v4781
          %v4814 = vunpack.c.l.bf16 %v4782
          %v4815 = vunpack.c.l.bf16 %v4783
          %v4816 = vunpack.c.l.bf16 %v4784
          %v4817 = vunpack.c.l.bf16 %v4785
          %v4818 = vunpack.c.l.bf16 %v4786
          %v4819 = vunpack.c.l.bf16 %v4787
          %v4820 = vunpack.c.l.bf16 %v4788
          %v4821 = vunpack.c.l.bf16 %v4789
          %v4822 = vadd.f32 %v4790, %v4806
          %v4823 = vadd.f32 %v4791, %v4807
          %v4824 = vadd.f32 %v4792, %v4808
          %v4825 = vadd.f32 %v4793, %v4809
          %v4826 = vadd.f32 %v4794, %v4810
          %v4827 = vadd.f32 %v4795, %v4811
          %v4828 = vadd.f32 %v4796, %v4812
          %v4829 = vadd.f32 %v4797, %v4813
          %v4830 = vadd.f32 %v4798, %v4814
          %v4831 = vadd.f32 %v4799, %v4815
          %v4832 = vadd.f32 %v4800, %v4816
          %v4833 = vadd.f32 %v4801, %v4817
          %v4834 = vadd.f32 %v4802, %v4818
          %v4835 = vadd.f32 %v4803, %v4819
          %v4836 = vadd.f32 %v4804, %v4820
          %v4837 = vadd.f32 %v4805, %v4821
          %v4838 = vpack.c.bf16 %v4822, %v4822
          %v4839 = vpack.c.bf16 %v4823, %v4823
          %v4840 = vpack.c.bf16 %v4824, %v4824
          %v4841 = vpack.c.bf16 %v4825, %v4825
          %v4842 = vpack.c.bf16 %v4826, %v4826
          %v4843 = vpack.c.bf16 %v4827, %v4827
          %v4844 = vpack.c.bf16 %v4828, %v4828
          %v4845 = vpack.c.bf16 %v4829, %v4829
          %v4846 = vpack.c.bf16 %v4830, %v4830
          %v4847 = vpack.c.bf16 %v4831, %v4831
          %v4848 = vpack.c.bf16 %v4832, %v4832
          %v4849 = vpack.c.bf16 %v4833, %v4833
          %v4850 = vpack.c.bf16 %v4834, %v4834
          %v4851 = vpack.c.bf16 %v4835, %v4835
          %v4852 = vpack.c.bf16 %v4836, %v4836
          %v4853 = vpack.c.bf16 %v4837, %v4837
          %v4854 = vld [vmem:[%s328 + $0x1a] sm:$0x1]
          %v4855 = vld [vmem:[%s335 + $0xc] sm:$0x2]
          %v4856 = vperm.slane %v4854, 0
          %vm4857 = vcmp.eq.s32.totalorder %v419, %v4856
          %vm4858 = vcmp.eq.s32.totalorder %v420, %v4856
          %vm4859 = vcmp.eq.s32.totalorder %v421, %v4856
          %vm4860 = vcmp.eq.s32.totalorder %v422, %v4856
          %vm4861 = vcmp.eq.s32.totalorder %v423, %v4856
          %vm4862 = vcmp.eq.s32.totalorder %v424, %v4856
          %vm4863 = vcmp.eq.s32.totalorder %v425, %v4856
          %vm4864 = vcmp.eq.s32.totalorder %v426, %v4856
          %vm4865 = vcmp.eq.s32.totalorder %v427, %v4856
          %vm4866 = vcmp.eq.s32.totalorder %v428, %v4856
          %vm4867 = vcmp.eq.s32.totalorder %v429, %v4856
          %vm4868 = vcmp.eq.s32.totalorder %v430, %v4856
          %vm4869 = vcmp.eq.s32.totalorder %v431, %v4856
          %vm4870 = vcmp.eq.s32.totalorder %v432, %v4856
          %vm4871 = vcmp.eq.s32.totalorder %v433, %v4856
          %vm4872 = vcmp.eq.s32.totalorder %v434, %v4856
          %v4873 = vsel %vm4857, 1, 0
          %v4874 = vsel %vm4858, 1, 0
          %v4875 = vsel %vm4859, 1, 0
          %v4876 = vsel %vm4860, 1, 0
          %v4877 = vsel %vm4861, 1, 0
          %v4878 = vsel %vm4862, 1, 0
          %v4879 = vsel %vm4863, 1, 0
          %v4880 = vsel %vm4864, 1, 0
          %v4881 = vsel %vm4865, 1, 0
          %v4882 = vsel %vm4866, 1, 0
          %v4883 = vsel %vm4867, 1, 0
          %v4884 = vsel %vm4868, 1, 0
          %v4885 = vsel %vm4869, 1, 0
          %v4886 = vsel %vm4870, 1, 0
          %v4887 = vsel %vm4871, 1, 0
          %v4888 = vsel %vm4872, 1, 0
          %v4889 = vcvt.s32.f32 %v4873
          %v4890 = vcvt.s32.f32 %v4874
          %v4891 = vcvt.s32.f32 %v4875
          %v4892 = vcvt.s32.f32 %v4876
          %v4893 = vcvt.s32.f32 %v4877
          %v4894 = vcvt.s32.f32 %v4878
          %v4895 = vcvt.s32.f32 %v4879
          %v4896 = vcvt.s32.f32 %v4880
          %v4897 = vcvt.s32.f32 %v4881
          %v4898 = vcvt.s32.f32 %v4882
          %v4899 = vcvt.s32.f32 %v4883
          %v4900 = vcvt.s32.f32 %v4884
          %v4901 = vcvt.s32.f32 %v4885
          %v4902 = vcvt.s32.f32 %v4886
          %v4903 = vcvt.s32.f32 %v4887
          %v4904 = vcvt.s32.f32 %v4888
          %v4905 = vpack.c.bf16 %v4889, %v4889
          %v4906 = vpack.c.bf16 %v4890, %v4890
          %v4907 = vpack.c.bf16 %v4891, %v4891
          %v4908 = vpack.c.bf16 %v4892, %v4892
          %v4909 = vpack.c.bf16 %v4893, %v4893
          %v4910 = vpack.c.bf16 %v4894, %v4894
          %v4911 = vpack.c.bf16 %v4895, %v4895
          %v4912 = vpack.c.bf16 %v4896, %v4896
          %v4913 = vpack.c.bf16 %v4897, %v4897
          %v4914 = vpack.c.bf16 %v4898, %v4898
          %v4915 = vpack.c.bf16 %v4899, %v4899
          %v4916 = vpack.c.bf16 %v4900, %v4900
          %v4917 = vpack.c.bf16 %v4901, %v4901
          %v4918 = vpack.c.bf16 %v4902, %v4902
          %v4919 = vpack.c.bf16 %v4903, %v4903
          %v4920 = vpack.c.bf16 %v4904, %v4904
          %v4922 = vpack.i.b16 %v4855, %v4855
          %v4924 = vperm.slane %v4922, 1
          %v4925 = vunpack.c.l.bf16 %v4905
          %v4926 = vunpack.c.l.bf16 %v4906
          %v4927 = vunpack.c.l.bf16 %v4907
          %v4928 = vunpack.c.l.bf16 %v4908
          %v4929 = vunpack.c.l.bf16 %v4909
          %v4930 = vunpack.c.l.bf16 %v4910
          %v4931 = vunpack.c.l.bf16 %v4911
          %v4932 = vunpack.c.l.bf16 %v4912
          %v4933 = vunpack.c.l.bf16 %v4913
          %v4934 = vunpack.c.l.bf16 %v4914
          %v4935 = vunpack.c.l.bf16 %v4915
          %v4936 = vunpack.c.l.bf16 %v4916
          %v4937 = vunpack.c.l.bf16 %v4917
          %v4938 = vunpack.c.l.bf16 %v4918
          %v4939 = vunpack.c.l.bf16 %v4919
          %v4940 = vunpack.c.l.bf16 %v4920
          %v4941 = vunpack.c.l.bf16 %v4924
          %v4942 = vmul.f32 %v4925, %v4941
          %v4943 = vmul.f32 %v4926, %v4941
          %v4944 = vmul.f32 %v4927, %v4941
          %v4945 = vmul.f32 %v4928, %v4941
          %v4946 = vmul.f32 %v4929, %v4941
          %v4947 = vmul.f32 %v4930, %v4941
          %v4948 = vmul.f32 %v4931, %v4941
          %v4949 = vmul.f32 %v4932, %v4941
          %v4950 = vmul.f32 %v4933, %v4941
          %v4951 = vmul.f32 %v4934, %v4941
          %v4952 = vmul.f32 %v4935, %v4941
          %v4953 = vmul.f32 %v4936, %v4941
          %v4954 = vmul.f32 %v4937, %v4941
          %v4955 = vmul.f32 %v4938, %v4941
          %v4956 = vmul.f32 %v4939, %v4941
          %v4957 = vmul.f32 %v4940, %v4941
          %v4958 = vpack.c.bf16 %v4942, %v4942
          %v4959 = vpack.c.bf16 %v4943, %v4943
          %v4960 = vpack.c.bf16 %v4944, %v4944
          %v4961 = vpack.c.bf16 %v4945, %v4945
          %v4962 = vpack.c.bf16 %v4946, %v4946
          %v4963 = vpack.c.bf16 %v4947, %v4947
          %v4964 = vpack.c.bf16 %v4948, %v4948
          %v4965 = vpack.c.bf16 %v4949, %v4949
          %v4966 = vpack.c.bf16 %v4950, %v4950
          %v4967 = vpack.c.bf16 %v4951, %v4951
          %v4968 = vpack.c.bf16 %v4952, %v4952
          %v4969 = vpack.c.bf16 %v4953, %v4953
          %v4970 = vpack.c.bf16 %v4954, %v4954
          %v4971 = vpack.c.bf16 %v4955, %v4955
          %v4972 = vpack.c.bf16 %v4956, %v4956
          %v4973 = vpack.c.bf16 %v4957, %v4957
          %v4974 = vunpack.c.l.bf16 %v4838
          %v4975 = vunpack.c.l.bf16 %v4839
          %v4976 = vunpack.c.l.bf16 %v4840
          %v4977 = vunpack.c.l.bf16 %v4841
          %v4978 = vunpack.c.l.bf16 %v4842
          %v4979 = vunpack.c.l.bf16 %v4843
          %v4980 = vunpack.c.l.bf16 %v4844
          %v4981 = vunpack.c.l.bf16 %v4845
          %v4982 = vunpack.c.l.bf16 %v4846
          %v4983 = vunpack.c.l.bf16 %v4847
          %v4984 = vunpack.c.l.bf16 %v4848
          %v4985 = vunpack.c.l.bf16 %v4849
          %v4986 = vunpack.c.l.bf16 %v4850
          %v4987 = vunpack.c.l.bf16 %v4851
          %v4988 = vunpack.c.l.bf16 %v4852
          %v4989 = vunpack.c.l.bf16 %v4853
          %v4990 = vunpack.c.l.bf16 %v4958
          %v4991 = vunpack.c.l.bf16 %v4959
          %v4992 = vunpack.c.l.bf16 %v4960
          %v4993 = vunpack.c.l.bf16 %v4961
          %v4994 = vunpack.c.l.bf16 %v4962
          %v4995 = vunpack.c.l.bf16 %v4963
          %v4996 = vunpack.c.l.bf16 %v4964
          %v4997 = vunpack.c.l.bf16 %v4965
          %v4998 = vunpack.c.l.bf16 %v4966
          %v4999 = vunpack.c.l.bf16 %v4967
          %v5000 = vunpack.c.l.bf16 %v4968
          %v5001 = vunpack.c.l.bf16 %v4969
          %v5002 = vunpack.c.l.bf16 %v4970
          %v5003 = vunpack.c.l.bf16 %v4971
          %v5004 = vunpack.c.l.bf16 %v4972
          %v5005 = vunpack.c.l.bf16 %v4973
          %v5006 = vadd.f32 %v4974, %v4990
          %v5007 = vadd.f32 %v4975, %v4991
          %v5008 = vadd.f32 %v4976, %v4992
          %v5009 = vadd.f32 %v4977, %v4993
          %v5010 = vadd.f32 %v4978, %v4994
          %v5011 = vadd.f32 %v4979, %v4995
          %v5012 = vadd.f32 %v4980, %v4996
          %v5013 = vadd.f32 %v4981, %v4997
          %v5014 = vadd.f32 %v4982, %v4998
          %v5015 = vadd.f32 %v4983, %v4999
          %v5016 = vadd.f32 %v4984, %v5000
          %v5017 = vadd.f32 %v4985, %v5001
          %v5018 = vadd.f32 %v4986, %v5002
          %v5019 = vadd.f32 %v4987, %v5003
          %v5020 = vadd.f32 %v4988, %v5004
          %v5021 = vadd.f32 %v4989, %v5005
          %v5022 = vpack.c.bf16 %v5006, %v5006
          %v5023 = vpack.c.bf16 %v5007, %v5007
          %v5024 = vpack.c.bf16 %v5008, %v5008
          %v5025 = vpack.c.bf16 %v5009, %v5009
          %v5026 = vpack.c.bf16 %v5010, %v5010
          %v5027 = vpack.c.bf16 %v5011, %v5011
          %v5028 = vpack.c.bf16 %v5012, %v5012
          %v5029 = vpack.c.bf16 %v5013, %v5013
          %v5030 = vpack.c.bf16 %v5014, %v5014
          %v5031 = vpack.c.bf16 %v5015, %v5015
          %v5032 = vpack.c.bf16 %v5016, %v5016
          %v5033 = vpack.c.bf16 %v5017, %v5017
          %v5034 = vpack.c.bf16 %v5018, %v5018
          %v5035 = vpack.c.bf16 %v5019, %v5019
          %v5036 = vpack.c.bf16 %v5020, %v5020
          %v5037 = vpack.c.bf16 %v5021, %v5021
          %v5038 = vld [vmem:[%s328 + $0x1b] sm:$0x1]
          %v5039 = vperm.slane %v5038, 0
          %vm5040 = vcmp.eq.s32.totalorder %v419, %v5039
          %vm5041 = vcmp.eq.s32.totalorder %v420, %v5039
          %vm5042 = vcmp.eq.s32.totalorder %v421, %v5039
          %vm5043 = vcmp.eq.s32.totalorder %v422, %v5039
          %vm5044 = vcmp.eq.s32.totalorder %v423, %v5039
          %vm5045 = vcmp.eq.s32.totalorder %v424, %v5039
          %vm5046 = vcmp.eq.s32.totalorder %v425, %v5039
          %vm5047 = vcmp.eq.s32.totalorder %v426, %v5039
          %vm5048 = vcmp.eq.s32.totalorder %v427, %v5039
          %vm5049 = vcmp.eq.s32.totalorder %v428, %v5039
          %vm5050 = vcmp.eq.s32.totalorder %v429, %v5039
          %vm5051 = vcmp.eq.s32.totalorder %v430, %v5039
          %vm5052 = vcmp.eq.s32.totalorder %v431, %v5039
          %vm5053 = vcmp.eq.s32.totalorder %v432, %v5039
          %vm5054 = vcmp.eq.s32.totalorder %v433, %v5039
          %vm5055 = vcmp.eq.s32.totalorder %v434, %v5039
          %v5056 = vsel %vm5040, 1, 0
          %v5057 = vsel %vm5041, 1, 0
          %v5058 = vsel %vm5042, 1, 0
          %v5059 = vsel %vm5043, 1, 0
          %v5060 = vsel %vm5044, 1, 0
          %v5061 = vsel %vm5045, 1, 0
          %v5062 = vsel %vm5046, 1, 0
          %v5063 = vsel %vm5047, 1, 0
          %v5064 = vsel %vm5048, 1, 0
          %v5065 = vsel %vm5049, 1, 0
          %v5066 = vsel %vm5050, 1, 0
          %v5067 = vsel %vm5051, 1, 0
          %v5068 = vsel %vm5052, 1, 0
          %v5069 = vsel %vm5053, 1, 0
          %v5070 = vsel %vm5054, 1, 0
          %v5071 = vsel %vm5055, 1, 0
          %v5072 = vcvt.s32.f32 %v5056
          %v5073 = vcvt.s32.f32 %v5057
          %v5074 = vcvt.s32.f32 %v5058
          %v5075 = vcvt.s32.f32 %v5059
          %v5076 = vcvt.s32.f32 %v5060
          %v5077 = vcvt.s32.f32 %v5061
          %v5078 = vcvt.s32.f32 %v5062
          %v5079 = vcvt.s32.f32 %v5063
          %v5080 = vcvt.s32.f32 %v5064
          %v5081 = vcvt.s32.f32 %v5065
          %v5082 = vcvt.s32.f32 %v5066
          %v5083 = vcvt.s32.f32 %v5067
          %v5084 = vcvt.s32.f32 %v5068
          %v5085 = vcvt.s32.f32 %v5069
          %v5086 = vcvt.s32.f32 %v5070
          %v5087 = vcvt.s32.f32 %v5071
          %v5088 = vpack.c.bf16 %v5072, %v5072
          %v5089 = vpack.c.bf16 %v5073, %v5073
          %v5090 = vpack.c.bf16 %v5074, %v5074
          %v5091 = vpack.c.bf16 %v5075, %v5075
          %v5092 = vpack.c.bf16 %v5076, %v5076
          %v5093 = vpack.c.bf16 %v5077, %v5077
          %v5094 = vpack.c.bf16 %v5078, %v5078
          %v5095 = vpack.c.bf16 %v5079, %v5079
          %v5096 = vpack.c.bf16 %v5080, %v5080
          %v5097 = vpack.c.bf16 %v5081, %v5081
          %v5098 = vpack.c.bf16 %v5082, %v5082
          %v5099 = vpack.c.bf16 %v5083, %v5083
          %v5100 = vpack.c.bf16 %v5084, %v5084
          %v5101 = vpack.c.bf16 %v5085, %v5085
          %v5102 = vpack.c.bf16 %v5086, %v5086
          %v5103 = vpack.c.bf16 %v5087, %v5087
          %v5104 = vshrl.u32 %v4855, 16
          %v5105 = vpack.i.b16 %v5104, %v5104
          %v5107 = vperm.slane %v5105, 1
          %v5108 = vunpack.c.l.bf16 %v5088
          %v5109 = vunpack.c.l.bf16 %v5089
          %v5110 = vunpack.c.l.bf16 %v5090
          %v5111 = vunpack.c.l.bf16 %v5091
          %v5112 = vunpack.c.l.bf16 %v5092
          %v5113 = vunpack.c.l.bf16 %v5093
          %v5114 = vunpack.c.l.bf16 %v5094
          %v5115 = vunpack.c.l.bf16 %v5095
          %v5116 = vunpack.c.l.bf16 %v5096
          %v5117 = vunpack.c.l.bf16 %v5097
          %v5118 = vunpack.c.l.bf16 %v5098
          %v5119 = vunpack.c.l.bf16 %v5099
          %v5120 = vunpack.c.l.bf16 %v5100
          %v5121 = vunpack.c.l.bf16 %v5101
          %v5122 = vunpack.c.l.bf16 %v5102
          %v5123 = vunpack.c.l.bf16 %v5103
          %v5124 = vunpack.c.l.bf16 %v5107
          %v5125 = vmul.f32 %v5108, %v5124
          %v5126 = vmul.f32 %v5109, %v5124
          %v5127 = vmul.f32 %v5110, %v5124
          %v5128 = vmul.f32 %v5111, %v5124
          %v5129 = vmul.f32 %v5112, %v5124
          %v5130 = vmul.f32 %v5113, %v5124
          %v5131 = vmul.f32 %v5114, %v5124
          %v5132 = vmul.f32 %v5115, %v5124
          %v5133 = vmul.f32 %v5116, %v5124
          %v5134 = vmul.f32 %v5117, %v5124
          %v5135 = vmul.f32 %v5118, %v5124
          %v5136 = vmul.f32 %v5119, %v5124
          %v5137 = vmul.f32 %v5120, %v5124
          %v5138 = vmul.f32 %v5121, %v5124
          %v5139 = vmul.f32 %v5122, %v5124
          %v5140 = vmul.f32 %v5123, %v5124
          %v5141 = vpack.c.bf16 %v5125, %v5125
          %v5142 = vpack.c.bf16 %v5126, %v5126
          %v5143 = vpack.c.bf16 %v5127, %v5127
          %v5144 = vpack.c.bf16 %v5128, %v5128
          %v5145 = vpack.c.bf16 %v5129, %v5129
          %v5146 = vpack.c.bf16 %v5130, %v5130
          %v5147 = vpack.c.bf16 %v5131, %v5131
          %v5148 = vpack.c.bf16 %v5132, %v5132
          %v5149 = vpack.c.bf16 %v5133, %v5133
          %v5150 = vpack.c.bf16 %v5134, %v5134
          %v5151 = vpack.c.bf16 %v5135, %v5135
          %v5152 = vpack.c.bf16 %v5136, %v5136
          %v5153 = vpack.c.bf16 %v5137, %v5137
          %v5154 = vpack.c.bf16 %v5138, %v5138
          %v5155 = vpack.c.bf16 %v5139, %v5139
          %v5156 = vpack.c.bf16 %v5140, %v5140
          %v5157 = vunpack.c.l.bf16 %v5022
          %v5158 = vunpack.c.l.bf16 %v5023
          %v5159 = vunpack.c.l.bf16 %v5024
          %v5160 = vunpack.c.l.bf16 %v5025
          %v5161 = vunpack.c.l.bf16 %v5026
          %v5162 = vunpack.c.l.bf16 %v5027
          %v5163 = vunpack.c.l.bf16 %v5028
          %v5164 = vunpack.c.l.bf16 %v5029
          %v5165 = vunpack.c.l.bf16 %v5030
          %v5166 = vunpack.c.l.bf16 %v5031
          %v5167 = vunpack.c.l.bf16 %v5032
          %v5168 = vunpack.c.l.bf16 %v5033
          %v5169 = vunpack.c.l.bf16 %v5034
          %v5170 = vunpack.c.l.bf16 %v5035
          %v5171 = vunpack.c.l.bf16 %v5036
          %v5172 = vunpack.c.l.bf16 %v5037
          %v5173 = vunpack.c.l.bf16 %v5141
          %v5174 = vunpack.c.l.bf16 %v5142
          %v5175 = vunpack.c.l.bf16 %v5143
          %v5176 = vunpack.c.l.bf16 %v5144
          %v5177 = vunpack.c.l.bf16 %v5145
          %v5178 = vunpack.c.l.bf16 %v5146
          %v5179 = vunpack.c.l.bf16 %v5147
          %v5180 = vunpack.c.l.bf16 %v5148
          %v5181 = vunpack.c.l.bf16 %v5149
          %v5182 = vunpack.c.l.bf16 %v5150
          %v5183 = vunpack.c.l.bf16 %v5151
          %v5184 = vunpack.c.l.bf16 %v5152
          %v5185 = vunpack.c.l.bf16 %v5153
          %v5186 = vunpack.c.l.bf16 %v5154
          %v5187 = vunpack.c.l.bf16 %v5155
          %v5188 = vunpack.c.l.bf16 %v5156
          %v5189 = vadd.f32 %v5157, %v5173
          %v5190 = vadd.f32 %v5158, %v5174
          %v5191 = vadd.f32 %v5159, %v5175
          %v5192 = vadd.f32 %v5160, %v5176
          %v5193 = vadd.f32 %v5161, %v5177
          %v5194 = vadd.f32 %v5162, %v5178
          %v5195 = vadd.f32 %v5163, %v5179
          %v5196 = vadd.f32 %v5164, %v5180
          %v5197 = vadd.f32 %v5165, %v5181
          %v5198 = vadd.f32 %v5166, %v5182
          %v5199 = vadd.f32 %v5167, %v5183
          %v5200 = vadd.f32 %v5168, %v5184
          %v5201 = vadd.f32 %v5169, %v5185
          %v5202 = vadd.f32 %v5170, %v5186
          %v5203 = vadd.f32 %v5171, %v5187
          %v5204 = vadd.f32 %v5172, %v5188
          %v5205 = vpack.c.bf16 %v5189, %v5189
          %v5206 = vpack.c.bf16 %v5190, %v5190
          %v5207 = vpack.c.bf16 %v5191, %v5191
          %v5208 = vpack.c.bf16 %v5192, %v5192
          %v5209 = vpack.c.bf16 %v5193, %v5193
          %v5210 = vpack.c.bf16 %v5194, %v5194
          %v5211 = vpack.c.bf16 %v5195, %v5195
          %v5212 = vpack.c.bf16 %v5196, %v5196
          %v5213 = vpack.c.bf16 %v5197, %v5197
          %v5214 = vpack.c.bf16 %v5198, %v5198
          %v5215 = vpack.c.bf16 %v5199, %v5199
          %v5216 = vpack.c.bf16 %v5200, %v5200
          %v5217 = vpack.c.bf16 %v5201, %v5201
          %v5218 = vpack.c.bf16 %v5202, %v5202
          %v5219 = vpack.c.bf16 %v5203, %v5203
          %v5220 = vpack.c.bf16 %v5204, %v5204
          %5221 = vst [vmem:[#allocation3 + $0x180] sm:$0xf] %v5205
          %5222 = vst [vmem:[#allocation3 + $0x184] sm:$0xf] %v5206
          %5223 = vst [vmem:[#allocation3 + $0x188] sm:$0xf] %v5207
          %5224 = vst [vmem:[#allocation3 + $0x18c] sm:$0xf] %v5208
          %5225 = vst [vmem:[#allocation3 + $0x190] sm:$0xf] %v5209
          %5226 = vst [vmem:[#allocation3 + $0x194] sm:$0xf] %v5210
          %5227 = vst [vmem:[#allocation3 + $0x198] sm:$0xf] %v5211
          %5228 = vst [vmem:[#allocation3 + $0x19c] sm:$0xf] %v5212
          %5229 = vst [vmem:[#allocation3 + $0x1a0] sm:$0xf] %v5213
          %5230 = vst [vmem:[#allocation3 + $0x1a4] sm:$0xf] %v5214
          %5231 = vst [vmem:[#allocation3 + $0x1a8] sm:$0xf] %v5215
          %5232 = vst [vmem:[#allocation3 + $0x1ac] sm:$0xf] %v5216
          %5233 = vst [vmem:[#allocation3 + $0x1b0] sm:$0xf] %v5217
          %5234 = vst [vmem:[#allocation3 + $0x1b4] sm:$0xf] %v5218
          %5235 = vst [vmem:[#allocation3 + $0x1b8] sm:$0xf] %v5219
          %5236 = vst [vmem:[#allocation3 + $0x1bc] sm:$0xf] %v5220
          %v5237 = vld [vmem:[%s328 + $0x1c] sm:$0x1]
          %v5238 = vld [vmem:[%s335 + $0xc] sm:$0x4]
          %v5239 = vperm.slane %v5237, 0
          %vm5240 = vcmp.eq.s32.totalorder %v419, %v5239
          %vm5241 = vcmp.eq.s32.totalorder %v420, %v5239
          %vm5242 = vcmp.eq.s32.totalorder %v421, %v5239
          %vm5243 = vcmp.eq.s32.totalorder %v422, %v5239
          %vm5244 = vcmp.eq.s32.totalorder %v423, %v5239
          %vm5245 = vcmp.eq.s32.totalorder %v424, %v5239
          %vm5246 = vcmp.eq.s32.totalorder %v425, %v5239
          %vm5247 = vcmp.eq.s32.totalorder %v426, %v5239
          %vm5248 = vcmp.eq.s32.totalorder %v427, %v5239
          %vm5249 = vcmp.eq.s32.totalorder %v428, %v5239
          %vm5250 = vcmp.eq.s32.totalorder %v429, %v5239
          %vm5251 = vcmp.eq.s32.totalorder %v430, %v5239
          %vm5252 = vcmp.eq.s32.totalorder %v431, %v5239
          %vm5253 = vcmp.eq.s32.totalorder %v432, %v5239
          %vm5254 = vcmp.eq.s32.totalorder %v433, %v5239
          %vm5255 = vcmp.eq.s32.totalorder %v434, %v5239
          %v5256 = vsel %vm5240, 1, 0
          %v5257 = vsel %vm5241, 1, 0
          %v5258 = vsel %vm5242, 1, 0
          %v5259 = vsel %vm5243, 1, 0
          %v5260 = vsel %vm5244, 1, 0
          %v5261 = vsel %vm5245, 1, 0
          %v5262 = vsel %vm5246, 1, 0
          %v5263 = vsel %vm5247, 1, 0
          %v5264 = vsel %vm5248, 1, 0
          %v5265 = vsel %vm5249, 1, 0
          %v5266 = vsel %vm5250, 1, 0
          %v5267 = vsel %vm5251, 1, 0
          %v5268 = vsel %vm5252, 1, 0
          %v5269 = vsel %vm5253, 1, 0
          %v5270 = vsel %vm5254, 1, 0
          %v5271 = vsel %vm5255, 1, 0
          %v5272 = vcvt.s32.f32 %v5256
          %v5273 = vcvt.s32.f32 %v5257
          %v5274 = vcvt.s32.f32 %v5258
          %v5275 = vcvt.s32.f32 %v5259
          %v5276 = vcvt.s32.f32 %v5260
          %v5277 = vcvt.s32.f32 %v5261
          %v5278 = vcvt.s32.f32 %v5262
          %v5279 = vcvt.s32.f32 %v5263
          %v5280 = vcvt.s32.f32 %v5264
          %v5281 = vcvt.s32.f32 %v5265
          %v5282 = vcvt.s32.f32 %v5266
          %v5283 = vcvt.s32.f32 %v5267
          %v5284 = vcvt.s32.f32 %v5268
          %v5285 = vcvt.s32.f32 %v5269
          %v5286 = vcvt.s32.f32 %v5270
          %v5287 = vcvt.s32.f32 %v5271
          %v5288 = vpack.c.bf16 %v5272, %v5272
          %v5289 = vpack.c.bf16 %v5273, %v5273
          %v5290 = vpack.c.bf16 %v5274, %v5274
          %v5291 = vpack.c.bf16 %v5275, %v5275
          %v5292 = vpack.c.bf16 %v5276, %v5276
          %v5293 = vpack.c.bf16 %v5277, %v5277
          %v5294 = vpack.c.bf16 %v5278, %v5278
          %v5295 = vpack.c.bf16 %v5279, %v5279
          %v5296 = vpack.c.bf16 %v5280, %v5280
          %v5297 = vpack.c.bf16 %v5281, %v5281
          %v5298 = vpack.c.bf16 %v5282, %v5282
          %v5299 = vpack.c.bf16 %v5283, %v5283
          %v5300 = vpack.c.bf16 %v5284, %v5284
          %v5301 = vpack.c.bf16 %v5285, %v5285
          %v5302 = vpack.c.bf16 %v5286, %v5286
          %v5303 = vpack.c.bf16 %v5287, %v5287
          %v5305 = vpack.i.b16 %v5238, %v5238
          %v5307 = vperm.slane %v5305, 2
          %v5308 = vunpack.c.l.bf16 %v5288
          %v5309 = vunpack.c.l.bf16 %v5289
          %v5310 = vunpack.c.l.bf16 %v5290
          %v5311 = vunpack.c.l.bf16 %v5291
          %v5312 = vunpack.c.l.bf16 %v5292
          %v5313 = vunpack.c.l.bf16 %v5293
          %v5314 = vunpack.c.l.bf16 %v5294
          %v5315 = vunpack.c.l.bf16 %v5295
          %v5316 = vunpack.c.l.bf16 %v5296
          %v5317 = vunpack.c.l.bf16 %v5297
          %v5318 = vunpack.c.l.bf16 %v5298
          %v5319 = vunpack.c.l.bf16 %v5299
          %v5320 = vunpack.c.l.bf16 %v5300
          %v5321 = vunpack.c.l.bf16 %v5301
          %v5322 = vunpack.c.l.bf16 %v5302
          %v5323 = vunpack.c.l.bf16 %v5303
          %v5324 = vunpack.c.l.bf16 %v5307
          %v5325 = vmul.f32 %v5308, %v5324
          %v5326 = vmul.f32 %v5309, %v5324
          %v5327 = vmul.f32 %v5310, %v5324
          %v5328 = vmul.f32 %v5311, %v5324
          %v5329 = vmul.f32 %v5312, %v5324
          %v5330 = vmul.f32 %v5313, %v5324
          %v5331 = vmul.f32 %v5314, %v5324
          %v5332 = vmul.f32 %v5315, %v5324
          %v5333 = vmul.f32 %v5316, %v5324
          %v5334 = vmul.f32 %v5317, %v5324
          %v5335 = vmul.f32 %v5318, %v5324
          %v5336 = vmul.f32 %v5319, %v5324
          %v5337 = vmul.f32 %v5320, %v5324
          %v5338 = vmul.f32 %v5321, %v5324
          %v5339 = vmul.f32 %v5322, %v5324
          %v5340 = vmul.f32 %v5323, %v5324
          %v5341 = vpack.c.bf16 %v5325, %v5325
          %v5342 = vpack.c.bf16 %v5326, %v5326
          %v5343 = vpack.c.bf16 %v5327, %v5327
          %v5344 = vpack.c.bf16 %v5328, %v5328
          %v5345 = vpack.c.bf16 %v5329, %v5329
          %v5346 = vpack.c.bf16 %v5330, %v5330
          %v5347 = vpack.c.bf16 %v5331, %v5331
          %v5348 = vpack.c.bf16 %v5332, %v5332
          %v5349 = vpack.c.bf16 %v5333, %v5333
          %v5350 = vpack.c.bf16 %v5334, %v5334
          %v5351 = vpack.c.bf16 %v5335, %v5335
          %v5352 = vpack.c.bf16 %v5336, %v5336
          %v5353 = vpack.c.bf16 %v5337, %v5337
          %v5354 = vpack.c.bf16 %v5338, %v5338
          %v5355 = vpack.c.bf16 %v5339, %v5339
          %v5356 = vpack.c.bf16 %v5340, %v5340
          %v5357 = vld [vmem:[%s328 + $0x1d] sm:$0x1]
          %v5358 = vperm.slane %v5357, 0
          %vm5359 = vcmp.eq.s32.totalorder %v419, %v5358
          %vm5360 = vcmp.eq.s32.totalorder %v420, %v5358
          %vm5361 = vcmp.eq.s32.totalorder %v421, %v5358
          %vm5362 = vcmp.eq.s32.totalorder %v422, %v5358
          %vm5363 = vcmp.eq.s32.totalorder %v423, %v5358
          %vm5364 = vcmp.eq.s32.totalorder %v424, %v5358
          %vm5365 = vcmp.eq.s32.totalorder %v425, %v5358
          %vm5366 = vcmp.eq.s32.totalorder %v426, %v5358
          %vm5367 = vcmp.eq.s32.totalorder %v427, %v5358
          %vm5368 = vcmp.eq.s32.totalorder %v428, %v5358
          %vm5369 = vcmp.eq.s32.totalorder %v429, %v5358
          %vm5370 = vcmp.eq.s32.totalorder %v430, %v5358
          %vm5371 = vcmp.eq.s32.totalorder %v431, %v5358
          %vm5372 = vcmp.eq.s32.totalorder %v432, %v5358
          %vm5373 = vcmp.eq.s32.totalorder %v433, %v5358
          %vm5374 = vcmp.eq.s32.totalorder %v434, %v5358
          %v5375 = vsel %vm5359, 1, 0
          %v5376 = vsel %vm5360, 1, 0
          %v5377 = vsel %vm5361, 1, 0
          %v5378 = vsel %vm5362, 1, 0
          %v5379 = vsel %vm5363, 1, 0
          %v5380 = vsel %vm5364, 1, 0
          %v5381 = vsel %vm5365, 1, 0
          %v5382 = vsel %vm5366, 1, 0
          %v5383 = vsel %vm5367, 1, 0
          %v5384 = vsel %vm5368, 1, 0
          %v5385 = vsel %vm5369, 1, 0
          %v5386 = vsel %vm5370, 1, 0
          %v5387 = vsel %vm5371, 1, 0
          %v5388 = vsel %vm5372, 1, 0
          %v5389 = vsel %vm5373, 1, 0
          %v5390 = vsel %vm5374, 1, 0
          %v5391 = vcvt.s32.f32 %v5375
          %v5392 = vcvt.s32.f32 %v5376
          %v5393 = vcvt.s32.f32 %v5377
          %v5394 = vcvt.s32.f32 %v5378
          %v5395 = vcvt.s32.f32 %v5379
          %v5396 = vcvt.s32.f32 %v5380
          %v5397 = vcvt.s32.f32 %v5381
          %v5398 = vcvt.s32.f32 %v5382
          %v5399 = vcvt.s32.f32 %v5383
          %v5400 = vcvt.s32.f32 %v5384
          %v5401 = vcvt.s32.f32 %v5385
          %v5402 = vcvt.s32.f32 %v5386
          %v5403 = vcvt.s32.f32 %v5387
          %v5404 = vcvt.s32.f32 %v5388
          %v5405 = vcvt.s32.f32 %v5389
          %v5406 = vcvt.s32.f32 %v5390
          %v5407 = vpack.c.bf16 %v5391, %v5391
          %v5408 = vpack.c.bf16 %v5392, %v5392
          %v5409 = vpack.c.bf16 %v5393, %v5393
          %v5410 = vpack.c.bf16 %v5394, %v5394
          %v5411 = vpack.c.bf16 %v5395, %v5395
          %v5412 = vpack.c.bf16 %v5396, %v5396
          %v5413 = vpack.c.bf16 %v5397, %v5397
          %v5414 = vpack.c.bf16 %v5398, %v5398
          %v5415 = vpack.c.bf16 %v5399, %v5399
          %v5416 = vpack.c.bf16 %v5400, %v5400
          %v5417 = vpack.c.bf16 %v5401, %v5401
          %v5418 = vpack.c.bf16 %v5402, %v5402
          %v5419 = vpack.c.bf16 %v5403, %v5403
          %v5420 = vpack.c.bf16 %v5404, %v5404
          %v5421 = vpack.c.bf16 %v5405, %v5405
          %v5422 = vpack.c.bf16 %v5406, %v5406
          %v5423 = vshrl.u32 %v5238, 16
          %v5424 = vpack.i.b16 %v5423, %v5423
          %v5426 = vperm.slane %v5424, 2
          %v5427 = vunpack.c.l.bf16 %v5407
          %v5428 = vunpack.c.l.bf16 %v5408
          %v5429 = vunpack.c.l.bf16 %v5409
          %v5430 = vunpack.c.l.bf16 %v5410
          %v5431 = vunpack.c.l.bf16 %v5411
          %v5432 = vunpack.c.l.bf16 %v5412
          %v5433 = vunpack.c.l.bf16 %v5413
          %v5434 = vunpack.c.l.bf16 %v5414
          %v5435 = vunpack.c.l.bf16 %v5415
          %v5436 = vunpack.c.l.bf16 %v5416
          %v5437 = vunpack.c.l.bf16 %v5417
          %v5438 = vunpack.c.l.bf16 %v5418
          %v5439 = vunpack.c.l.bf16 %v5419
          %v5440 = vunpack.c.l.bf16 %v5420
          %v5441 = vunpack.c.l.bf16 %v5421
          %v5442 = vunpack.c.l.bf16 %v5422
          %v5443 = vunpack.c.l.bf16 %v5426
          %v5444 = vmul.f32 %v5427, %v5443
          %v5445 = vmul.f32 %v5428, %v5443
          %v5446 = vmul.f32 %v5429, %v5443
          %v5447 = vmul.f32 %v5430, %v5443
          %v5448 = vmul.f32 %v5431, %v5443
          %v5449 = vmul.f32 %v5432, %v5443
          %v5450 = vmul.f32 %v5433, %v5443
          %v5451 = vmul.f32 %v5434, %v5443
          %v5452 = vmul.f32 %v5435, %v5443
          %v5453 = vmul.f32 %v5436, %v5443
          %v5454 = vmul.f32 %v5437, %v5443
          %v5455 = vmul.f32 %v5438, %v5443
          %v5456 = vmul.f32 %v5439, %v5443
          %v5457 = vmul.f32 %v5440, %v5443
          %v5458 = vmul.f32 %v5441, %v5443
          %v5459 = vmul.f32 %v5442, %v5443
          %v5460 = vpack.c.bf16 %v5444, %v5444
          %v5461 = vpack.c.bf16 %v5445, %v5445
          %v5462 = vpack.c.bf16 %v5446, %v5446
          %v5463 = vpack.c.bf16 %v5447, %v5447
          %v5464 = vpack.c.bf16 %v5448, %v5448
          %v5465 = vpack.c.bf16 %v5449, %v5449
          %v5466 = vpack.c.bf16 %v5450, %v5450
          %v5467 = vpack.c.bf16 %v5451, %v5451
          %v5468 = vpack.c.bf16 %v5452, %v5452
          %v5469 = vpack.c.bf16 %v5453, %v5453
          %v5470 = vpack.c.bf16 %v5454, %v5454
          %v5471 = vpack.c.bf16 %v5455, %v5455
          %v5472 = vpack.c.bf16 %v5456, %v5456
          %v5473 = vpack.c.bf16 %v5457, %v5457
          %v5474 = vpack.c.bf16 %v5458, %v5458
          %v5475 = vpack.c.bf16 %v5459, %v5459
          %v5476 = vunpack.c.l.bf16 %v5341
          %v5477 = vunpack.c.l.bf16 %v5342
          %v5478 = vunpack.c.l.bf16 %v5343
          %v5479 = vunpack.c.l.bf16 %v5344
          %v5480 = vunpack.c.l.bf16 %v5345
          %v5481 = vunpack.c.l.bf16 %v5346
          %v5482 = vunpack.c.l.bf16 %v5347
          %v5483 = vunpack.c.l.bf16 %v5348
          %v5484 = vunpack.c.l.bf16 %v5349
          %v5485 = vunpack.c.l.bf16 %v5350
          %v5486 = vunpack.c.l.bf16 %v5351
          %v5487 = vunpack.c.l.bf16 %v5352
          %v5488 = vunpack.c.l.bf16 %v5353
          %v5489 = vunpack.c.l.bf16 %v5354
          %v5490 = vunpack.c.l.bf16 %v5355
          %v5491 = vunpack.c.l.bf16 %v5356
          %v5492 = vunpack.c.l.bf16 %v5460
          %v5493 = vunpack.c.l.bf16 %v5461
          %v5494 = vunpack.c.l.bf16 %v5462
          %v5495 = vunpack.c.l.bf16 %v5463
          %v5496 = vunpack.c.l.bf16 %v5464
          %v5497 = vunpack.c.l.bf16 %v5465
          %v5498 = vunpack.c.l.bf16 %v5466
          %v5499 = vunpack.c.l.bf16 %v5467
          %v5500 = vunpack.c.l.bf16 %v5468
          %v5501 = vunpack.c.l.bf16 %v5469
          %v5502 = vunpack.c.l.bf16 %v5470
          %v5503 = vunpack.c.l.bf16 %v5471
          %v5504 = vunpack.c.l.bf16 %v5472
          %v5505 = vunpack.c.l.bf16 %v5473
          %v5506 = vunpack.c.l.bf16 %v5474
          %v5507 = vunpack.c.l.bf16 %v5475
          %v5508 = vadd.f32 %v5476, %v5492
          %v5509 = vadd.f32 %v5477, %v5493
          %v5510 = vadd.f32 %v5478, %v5494
          %v5511 = vadd.f32 %v5479, %v5495
          %v5512 = vadd.f32 %v5480, %v5496
          %v5513 = vadd.f32 %v5481, %v5497
          %v5514 = vadd.f32 %v5482, %v5498
          %v5515 = vadd.f32 %v5483, %v5499
          %v5516 = vadd.f32 %v5484, %v5500
          %v5517 = vadd.f32 %v5485, %v5501
          %v5518 = vadd.f32 %v5486, %v5502
          %v5519 = vadd.f32 %v5487, %v5503
          %v5520 = vadd.f32 %v5488, %v5504
          %v5521 = vadd.f32 %v5489, %v5505
          %v5522 = vadd.f32 %v5490, %v5506
          %v5523 = vadd.f32 %v5491, %v5507
          %v5524 = vpack.c.bf16 %v5508, %v5508
          %v5525 = vpack.c.bf16 %v5509, %v5509
          %v5526 = vpack.c.bf16 %v5510, %v5510
          %v5527 = vpack.c.bf16 %v5511, %v5511
          %v5528 = vpack.c.bf16 %v5512, %v5512
          %v5529 = vpack.c.bf16 %v5513, %v5513
          %v5530 = vpack.c.bf16 %v5514, %v5514
          %v5531 = vpack.c.bf16 %v5515, %v5515
          %v5532 = vpack.c.bf16 %v5516, %v5516
          %v5533 = vpack.c.bf16 %v5517, %v5517
          %v5534 = vpack.c.bf16 %v5518, %v5518
          %v5535 = vpack.c.bf16 %v5519, %v5519
          %v5536 = vpack.c.bf16 %v5520, %v5520
          %v5537 = vpack.c.bf16 %v5521, %v5521
          %v5538 = vpack.c.bf16 %v5522, %v5522
          %v5539 = vpack.c.bf16 %v5523, %v5523
          %v5540 = vld [vmem:[%s328 + $0x1e] sm:$0x1]
          %v5541 = vld [vmem:[%s335 + $0xc] sm:$0x8]
          %v5542 = vperm.slane %v5540, 0
          %vm5543 = vcmp.eq.s32.totalorder %v419, %v5542
          %vm5544 = vcmp.eq.s32.totalorder %v420, %v5542
          %vm5545 = vcmp.eq.s32.totalorder %v421, %v5542
          %vm5546 = vcmp.eq.s32.totalorder %v422, %v5542
          %vm5547 = vcmp.eq.s32.totalorder %v423, %v5542
          %vm5548 = vcmp.eq.s32.totalorder %v424, %v5542
          %vm5549 = vcmp.eq.s32.totalorder %v425, %v5542
          %vm5550 = vcmp.eq.s32.totalorder %v426, %v5542
          %vm5551 = vcmp.eq.s32.totalorder %v427, %v5542
          %vm5552 = vcmp.eq.s32.totalorder %v428, %v5542
          %vm5553 = vcmp.eq.s32.totalorder %v429, %v5542
          %vm5554 = vcmp.eq.s32.totalorder %v430, %v5542
          %vm5555 = vcmp.eq.s32.totalorder %v431, %v5542
          %vm5556 = vcmp.eq.s32.totalorder %v432, %v5542
          %vm5557 = vcmp.eq.s32.totalorder %v433, %v5542
          %vm5558 = vcmp.eq.s32.totalorder %v434, %v5542
          %v5559 = vsel %vm5543, 1, 0
          %v5560 = vsel %vm5544, 1, 0
          %v5561 = vsel %vm5545, 1, 0
          %v5562 = vsel %vm5546, 1, 0
          %v5563 = vsel %vm5547, 1, 0
          %v5564 = vsel %vm5548, 1, 0
          %v5565 = vsel %vm5549, 1, 0
          %v5566 = vsel %vm5550, 1, 0
          %v5567 = vsel %vm5551, 1, 0
          %v5568 = vsel %vm5552, 1, 0
          %v5569 = vsel %vm5553, 1, 0
          %v5570 = vsel %vm5554, 1, 0
          %v5571 = vsel %vm5555, 1, 0
          %v5572 = vsel %vm5556, 1, 0
          %v5573 = vsel %vm5557, 1, 0
          %v5574 = vsel %vm5558, 1, 0
          %v5575 = vcvt.s32.f32 %v5559
          %v5576 = vcvt.s32.f32 %v5560
          %v5577 = vcvt.s32.f32 %v5561
          %v5578 = vcvt.s32.f32 %v5562
          %v5579 = vcvt.s32.f32 %v5563
          %v5580 = vcvt.s32.f32 %v5564
          %v5581 = vcvt.s32.f32 %v5565
          %v5582 = vcvt.s32.f32 %v5566
          %v5583 = vcvt.s32.f32 %v5567
          %v5584 = vcvt.s32.f32 %v5568
          %v5585 = vcvt.s32.f32 %v5569
          %v5586 = vcvt.s32.f32 %v5570
          %v5587 = vcvt.s32.f32 %v5571
          %v5588 = vcvt.s32.f32 %v5572
          %v5589 = vcvt.s32.f32 %v5573
          %v5590 = vcvt.s32.f32 %v5574
          %v5591 = vpack.c.bf16 %v5575, %v5575
          %v5592 = vpack.c.bf16 %v5576, %v5576
          %v5593 = vpack.c.bf16 %v5577, %v5577
          %v5594 = vpack.c.bf16 %v5578, %v5578
          %v5595 = vpack.c.bf16 %v5579, %v5579
          %v5596 = vpack.c.bf16 %v5580, %v5580
          %v5597 = vpack.c.bf16 %v5581, %v5581
          %v5598 = vpack.c.bf16 %v5582, %v5582
          %v5599 = vpack.c.bf16 %v5583, %v5583
          %v5600 = vpack.c.bf16 %v5584, %v5584
          %v5601 = vpack.c.bf16 %v5585, %v5585
          %v5602 = vpack.c.bf16 %v5586, %v5586
          %v5603 = vpack.c.bf16 %v5587, %v5587
          %v5604 = vpack.c.bf16 %v5588, %v5588
          %v5605 = vpack.c.bf16 %v5589, %v5589
          %v5606 = vpack.c.bf16 %v5590, %v5590
          %v5608 = vpack.i.b16 %v5541, %v5541
          %v5610 = vperm.slane %v5608, 3
          %v5611 = vunpack.c.l.bf16 %v5591
          %v5612 = vunpack.c.l.bf16 %v5592
          %v5613 = vunpack.c.l.bf16 %v5593
          %v5614 = vunpack.c.l.bf16 %v5594
          %v5615 = vunpack.c.l.bf16 %v5595
          %v5616 = vunpack.c.l.bf16 %v5596
          %v5617 = vunpack.c.l.bf16 %v5597
          %v5618 = vunpack.c.l.bf16 %v5598
          %v5619 = vunpack.c.l.bf16 %v5599
          %v5620 = vunpack.c.l.bf16 %v5600
          %v5621 = vunpack.c.l.bf16 %v5601
          %v5622 = vunpack.c.l.bf16 %v5602
          %v5623 = vunpack.c.l.bf16 %v5603
          %v5624 = vunpack.c.l.bf16 %v5604
          %v5625 = vunpack.c.l.bf16 %v5605
          %v5626 = vunpack.c.l.bf16 %v5606
          %v5627 = vunpack.c.l.bf16 %v5610
          %v5628 = vmul.f32 %v5611, %v5627
          %v5629 = vmul.f32 %v5612, %v5627
          %v5630 = vmul.f32 %v5613, %v5627
          %v5631 = vmul.f32 %v5614, %v5627
          %v5632 = vmul.f32 %v5615, %v5627
          %v5633 = vmul.f32 %v5616, %v5627
          %v5634 = vmul.f32 %v5617, %v5627
          %v5635 = vmul.f32 %v5618, %v5627
          %v5636 = vmul.f32 %v5619, %v5627
          %v5637 = vmul.f32 %v5620, %v5627
          %v5638 = vmul.f32 %v5621, %v5627
          %v5639 = vmul.f32 %v5622, %v5627
          %v5640 = vmul.f32 %v5623, %v5627
          %v5641 = vmul.f32 %v5624, %v5627
          %v5642 = vmul.f32 %v5625, %v5627
          %v5643 = vmul.f32 %v5626, %v5627
          %v5644 = vpack.c.bf16 %v5628, %v5628
          %v5645 = vpack.c.bf16 %v5629, %v5629
          %v5646 = vpack.c.bf16 %v5630, %v5630
          %v5647 = vpack.c.bf16 %v5631, %v5631
          %v5648 = vpack.c.bf16 %v5632, %v5632
          %v5649 = vpack.c.bf16 %v5633, %v5633
          %v5650 = vpack.c.bf16 %v5634, %v5634
          %v5651 = vpack.c.bf16 %v5635, %v5635
          %v5652 = vpack.c.bf16 %v5636, %v5636
          %v5653 = vpack.c.bf16 %v5637, %v5637
          %v5654 = vpack.c.bf16 %v5638, %v5638
          %v5655 = vpack.c.bf16 %v5639, %v5639
          %v5656 = vpack.c.bf16 %v5640, %v5640
          %v5657 = vpack.c.bf16 %v5641, %v5641
          %v5658 = vpack.c.bf16 %v5642, %v5642
          %v5659 = vpack.c.bf16 %v5643, %v5643
          %v5660 = vunpack.c.l.bf16 %v5524
          %v5661 = vunpack.c.l.bf16 %v5525
          %v5662 = vunpack.c.l.bf16 %v5526
          %v5663 = vunpack.c.l.bf16 %v5527
          %v5664 = vunpack.c.l.bf16 %v5528
          %v5665 = vunpack.c.l.bf16 %v5529
          %v5666 = vunpack.c.l.bf16 %v5530
          %v5667 = vunpack.c.l.bf16 %v5531
          %v5668 = vunpack.c.l.bf16 %v5532
          %v5669 = vunpack.c.l.bf16 %v5533
          %v5670 = vunpack.c.l.bf16 %v5534
          %v5671 = vunpack.c.l.bf16 %v5535
          %v5672 = vunpack.c.l.bf16 %v5536
          %v5673 = vunpack.c.l.bf16 %v5537
          %v5674 = vunpack.c.l.bf16 %v5538
          %v5675 = vunpack.c.l.bf16 %v5539
          %v5676 = vunpack.c.l.bf16 %v5644
          %v5677 = vunpack.c.l.bf16 %v5645
          %v5678 = vunpack.c.l.bf16 %v5646
          %v5679 = vunpack.c.l.bf16 %v5647
          %v5680 = vunpack.c.l.bf16 %v5648
          %v5681 = vunpack.c.l.bf16 %v5649
          %v5682 = vunpack.c.l.bf16 %v5650
          %v5683 = vunpack.c.l.bf16 %v5651
          %v5684 = vunpack.c.l.bf16 %v5652
          %v5685 = vunpack.c.l.bf16 %v5653
          %v5686 = vunpack.c.l.bf16 %v5654
          %v5687 = vunpack.c.l.bf16 %v5655
          %v5688 = vunpack.c.l.bf16 %v5656
          %v5689 = vunpack.c.l.bf16 %v5657
          %v5690 = vunpack.c.l.bf16 %v5658
          %v5691 = vunpack.c.l.bf16 %v5659
          %v5692 = vadd.f32 %v5660, %v5676
          %v5693 = vadd.f32 %v5661, %v5677
          %v5694 = vadd.f32 %v5662, %v5678
          %v5695 = vadd.f32 %v5663, %v5679
          %v5696 = vadd.f32 %v5664, %v5680
          %v5697 = vadd.f32 %v5665, %v5681
          %v5698 = vadd.f32 %v5666, %v5682
          %v5699 = vadd.f32 %v5667, %v5683
          %v5700 = vadd.f32 %v5668, %v5684
          %v5701 = vadd.f32 %v5669, %v5685
          %v5702 = vadd.f32 %v5670, %v5686
          %v5703 = vadd.f32 %v5671, %v5687
          %v5704 = vadd.f32 %v5672, %v5688
          %v5705 = vadd.f32 %v5673, %v5689
          %v5706 = vadd.f32 %v5674, %v5690
          %v5707 = vadd.f32 %v5675, %v5691
          %v5708 = vpack.c.bf16 %v5692, %v5692
          %v5709 = vpack.c.bf16 %v5693, %v5693
          %v5710 = vpack.c.bf16 %v5694, %v5694
          %v5711 = vpack.c.bf16 %v5695, %v5695
          %v5712 = vpack.c.bf16 %v5696, %v5696
          %v5713 = vpack.c.bf16 %v5697, %v5697
          %v5714 = vpack.c.bf16 %v5698, %v5698
          %v5715 = vpack.c.bf16 %v5699, %v5699
          %v5716 = vpack.c.bf16 %v5700, %v5700
          %v5717 = vpack.c.bf16 %v5701, %v5701
          %v5718 = vpack.c.bf16 %v5702, %v5702
          %v5719 = vpack.c.bf16 %v5703, %v5703
          %v5720 = vpack.c.bf16 %v5704, %v5704
          %v5721 = vpack.c.bf16 %v5705, %v5705
          %v5722 = vpack.c.bf16 %v5706, %v5706
          %v5723 = vpack.c.bf16 %v5707, %v5707
          %v5724 = vld [vmem:[%s328 + $0x1f] sm:$0x1]
          %v5725 = vperm.slane %v5724, 0
          %vm5726 = vcmp.eq.s32.totalorder %v419, %v5725
          %vm5727 = vcmp.eq.s32.totalorder %v420, %v5725
          %vm5728 = vcmp.eq.s32.totalorder %v421, %v5725
          %vm5729 = vcmp.eq.s32.totalorder %v422, %v5725
          %vm5730 = vcmp.eq.s32.totalorder %v423, %v5725
          %vm5731 = vcmp.eq.s32.totalorder %v424, %v5725
          %vm5732 = vcmp.eq.s32.totalorder %v425, %v5725
          %vm5733 = vcmp.eq.s32.totalorder %v426, %v5725
          %vm5734 = vcmp.eq.s32.totalorder %v427, %v5725
          %vm5735 = vcmp.eq.s32.totalorder %v428, %v5725
          %vm5736 = vcmp.eq.s32.totalorder %v429, %v5725
          %vm5737 = vcmp.eq.s32.totalorder %v430, %v5725
          %vm5738 = vcmp.eq.s32.totalorder %v431, %v5725
          %vm5739 = vcmp.eq.s32.totalorder %v432, %v5725
          %vm5740 = vcmp.eq.s32.totalorder %v433, %v5725
          %vm5741 = vcmp.eq.s32.totalorder %v434, %v5725
          %v5742 = vsel %vm5726, 1, 0
          %v5743 = vsel %vm5727, 1, 0
          %v5744 = vsel %vm5728, 1, 0
          %v5745 = vsel %vm5729, 1, 0
          %v5746 = vsel %vm5730, 1, 0
          %v5747 = vsel %vm5731, 1, 0
          %v5748 = vsel %vm5732, 1, 0
          %v5749 = vsel %vm5733, 1, 0
          %v5750 = vsel %vm5734, 1, 0
          %v5751 = vsel %vm5735, 1, 0
          %v5752 = vsel %vm5736, 1, 0
          %v5753 = vsel %vm5737, 1, 0
          %v5754 = vsel %vm5738, 1, 0
          %v5755 = vsel %vm5739, 1, 0
          %v5756 = vsel %vm5740, 1, 0
          %v5757 = vsel %vm5741, 1, 0
          %v5758 = vcvt.s32.f32 %v5742
          %v5759 = vcvt.s32.f32 %v5743
          %v5760 = vcvt.s32.f32 %v5744
          %v5761 = vcvt.s32.f32 %v5745
          %v5762 = vcvt.s32.f32 %v5746
          %v5763 = vcvt.s32.f32 %v5747
          %v5764 = vcvt.s32.f32 %v5748
          %v5765 = vcvt.s32.f32 %v5749
          %v5766 = vcvt.s32.f32 %v5750
          %v5767 = vcvt.s32.f32 %v5751
          %v5768 = vcvt.s32.f32 %v5752
          %v5769 = vcvt.s32.f32 %v5753
          %v5770 = vcvt.s32.f32 %v5754
          %v5771 = vcvt.s32.f32 %v5755
          %v5772 = vcvt.s32.f32 %v5756
          %v5773 = vcvt.s32.f32 %v5757
          %v5774 = vpack.c.bf16 %v5758, %v5758
          %v5775 = vpack.c.bf16 %v5759, %v5759
          %v5776 = vpack.c.bf16 %v5760, %v5760
          %v5777 = vpack.c.bf16 %v5761, %v5761
          %v5778 = vpack.c.bf16 %v5762, %v5762
          %v5779 = vpack.c.bf16 %v5763, %v5763
          %v5780 = vpack.c.bf16 %v5764, %v5764
          %v5781 = vpack.c.bf16 %v5765, %v5765
          %v5782 = vpack.c.bf16 %v5766, %v5766
          %v5783 = vpack.c.bf16 %v5767, %v5767
          %v5784 = vpack.c.bf16 %v5768, %v5768
          %v5785 = vpack.c.bf16 %v5769, %v5769
          %v5786 = vpack.c.bf16 %v5770, %v5770
          %v5787 = vpack.c.bf16 %v5771, %v5771
          %v5788 = vpack.c.bf16 %v5772, %v5772
          %v5789 = vpack.c.bf16 %v5773, %v5773
          %v5790 = vshrl.u32 %v5541, 16
          %v5791 = vpack.i.b16 %v5790, %v5790
          %v5793 = vperm.slane %v5791, 3
          %v5794 = vunpack.c.l.bf16 %v5774
          %v5795 = vunpack.c.l.bf16 %v5775
          %v5796 = vunpack.c.l.bf16 %v5776
          %v5797 = vunpack.c.l.bf16 %v5777
          %v5798 = vunpack.c.l.bf16 %v5778
          %v5799 = vunpack.c.l.bf16 %v5779
          %v5800 = vunpack.c.l.bf16 %v5780
          %v5801 = vunpack.c.l.bf16 %v5781
          %v5802 = vunpack.c.l.bf16 %v5782
          %v5803 = vunpack.c.l.bf16 %v5783
          %v5804 = vunpack.c.l.bf16 %v5784
          %v5805 = vunpack.c.l.bf16 %v5785
          %v5806 = vunpack.c.l.bf16 %v5786
          %v5807 = vunpack.c.l.bf16 %v5787
          %v5808 = vunpack.c.l.bf16 %v5788
          %v5809 = vunpack.c.l.bf16 %v5789
          %v5810 = vunpack.c.l.bf16 %v5793
          %v5811 = vmul.f32 %v5794, %v5810
          %v5812 = vmul.f32 %v5795, %v5810
          %v5813 = vmul.f32 %v5796, %v5810
          %v5814 = vmul.f32 %v5797, %v5810
          %v5815 = vmul.f32 %v5798, %v5810
          %v5816 = vmul.f32 %v5799, %v5810
          %v5817 = vmul.f32 %v5800, %v5810
          %v5818 = vmul.f32 %v5801, %v5810
          %v5819 = vmul.f32 %v5802, %v5810
          %v5820 = vmul.f32 %v5803, %v5810
          %v5821 = vmul.f32 %v5804, %v5810
          %v5822 = vmul.f32 %v5805, %v5810
          %v5823 = vmul.f32 %v5806, %v5810
          %v5824 = vmul.f32 %v5807, %v5810
          %v5825 = vmul.f32 %v5808, %v5810
          %v5826 = vmul.f32 %v5809, %v5810
          %v5827 = vpack.c.bf16 %v5811, %v5811
          %v5828 = vpack.c.bf16 %v5812, %v5812
          %v5829 = vpack.c.bf16 %v5813, %v5813
          %v5830 = vpack.c.bf16 %v5814, %v5814
          %v5831 = vpack.c.bf16 %v5815, %v5815
          %v5832 = vpack.c.bf16 %v5816, %v5816
          %v5833 = vpack.c.bf16 %v5817, %v5817
          %v5834 = vpack.c.bf16 %v5818, %v5818
          %v5835 = vpack.c.bf16 %v5819, %v5819
          %v5836 = vpack.c.bf16 %v5820, %v5820
          %v5837 = vpack.c.bf16 %v5821, %v5821
          %v5838 = vpack.c.bf16 %v5822, %v5822
          %v5839 = vpack.c.bf16 %v5823, %v5823
          %v5840 = vpack.c.bf16 %v5824, %v5824
          %v5841 = vpack.c.bf16 %v5825, %v5825
          %v5842 = vpack.c.bf16 %v5826, %v5826
          %v5843 = vunpack.c.l.bf16 %v5708
          %v5844 = vunpack.c.l.bf16 %v5709
          %v5845 = vunpack.c.l.bf16 %v5710
          %v5846 = vunpack.c.l.bf16 %v5711
          %v5847 = vunpack.c.l.bf16 %v5712
          %v5848 = vunpack.c.l.bf16 %v5713
          %v5849 = vunpack.c.l.bf16 %v5714
          %v5850 = vunpack.c.l.bf16 %v5715
          %v5851 = vunpack.c.l.bf16 %v5716
          %v5852 = vunpack.c.l.bf16 %v5717
          %v5853 = vunpack.c.l.bf16 %v5718
          %v5854 = vunpack.c.l.bf16 %v5719
          %v5855 = vunpack.c.l.bf16 %v5720
          %v5856 = vunpack.c.l.bf16 %v5721
          %v5857 = vunpack.c.l.bf16 %v5722
          %v5858 = vunpack.c.l.bf16 %v5723
          %v5859 = vunpack.c.l.bf16 %v5827
          %v5860 = vunpack.c.l.bf16 %v5828
          %v5861 = vunpack.c.l.bf16 %v5829
          %v5862 = vunpack.c.l.bf16 %v5830
          %v5863 = vunpack.c.l.bf16 %v5831
          %v5864 = vunpack.c.l.bf16 %v5832
          %v5865 = vunpack.c.l.bf16 %v5833
          %v5866 = vunpack.c.l.bf16 %v5834
          %v5867 = vunpack.c.l.bf16 %v5835
          %v5868 = vunpack.c.l.bf16 %v5836
          %v5869 = vunpack.c.l.bf16 %v5837
          %v5870 = vunpack.c.l.bf16 %v5838
          %v5871 = vunpack.c.l.bf16 %v5839
          %v5872 = vunpack.c.l.bf16 %v5840
          %v5873 = vunpack.c.l.bf16 %v5841
          %v5874 = vunpack.c.l.bf16 %v5842
          %v5875 = vadd.f32 %v5843, %v5859
          %v5876 = vadd.f32 %v5844, %v5860
          %v5877 = vadd.f32 %v5845, %v5861
          %v5878 = vadd.f32 %v5846, %v5862
          %v5879 = vadd.f32 %v5847, %v5863
          %v5880 = vadd.f32 %v5848, %v5864
          %v5881 = vadd.f32 %v5849, %v5865
          %v5882 = vadd.f32 %v5850, %v5866
          %v5883 = vadd.f32 %v5851, %v5867
          %v5884 = vadd.f32 %v5852, %v5868
          %v5885 = vadd.f32 %v5853, %v5869
          %v5886 = vadd.f32 %v5854, %v5870
          %v5887 = vadd.f32 %v5855, %v5871
          %v5888 = vadd.f32 %v5856, %v5872
          %v5889 = vadd.f32 %v5857, %v5873
          %v5890 = vadd.f32 %v5858, %v5874
          %v5891 = vpack.c.bf16 %v5875, %v5875
          %v5892 = vpack.c.bf16 %v5876, %v5876
          %v5893 = vpack.c.bf16 %v5877, %v5877
          %v5894 = vpack.c.bf16 %v5878, %v5878
          %v5895 = vpack.c.bf16 %v5879, %v5879
          %v5896 = vpack.c.bf16 %v5880, %v5880
          %v5897 = vpack.c.bf16 %v5881, %v5881
          %v5898 = vpack.c.bf16 %v5882, %v5882
          %v5899 = vpack.c.bf16 %v5883, %v5883
          %v5900 = vpack.c.bf16 %v5884, %v5884
          %v5901 = vpack.c.bf16 %v5885, %v5885
          %v5902 = vpack.c.bf16 %v5886, %v5886
          %v5903 = vpack.c.bf16 %v5887, %v5887
          %v5904 = vpack.c.bf16 %v5888, %v5888
          %v5905 = vpack.c.bf16 %v5889, %v5889
          %v5906 = vpack.c.bf16 %v5890, %v5890
          %5907 = vst [vmem:[#allocation3 + $0x1c0] sm:$0xf] %v5891
          %5908 = vst [vmem:[#allocation3 + $0x1c4] sm:$0xf] %v5892
          %5909 = vst [vmem:[#allocation3 + $0x1c8] sm:$0xf] %v5893
          %5910 = vst [vmem:[#allocation3 + $0x1cc] sm:$0xf] %v5894
          %5911 = vst [vmem:[#allocation3 + $0x1d0] sm:$0xf] %v5895
          %5912 = vst [vmem:[#allocation3 + $0x1d4] sm:$0xf] %v5896
          %5913 = vst [vmem:[#allocation3 + $0x1d8] sm:$0xf] %v5897
          %5914 = vst [vmem:[#allocation3 + $0x1dc] sm:$0xf] %v5898
          %5915 = vst [vmem:[#allocation3 + $0x1e0] sm:$0xf] %v5899
          %5916 = vst [vmem:[#allocation3 + $0x1e4] sm:$0xf] %v5900
          %5917 = vst [vmem:[#allocation3 + $0x1e8] sm:$0xf] %v5901
          %5918 = vst [vmem:[#allocation3 + $0x1ec] sm:$0xf] %v5902
          %5919 = vst [vmem:[#allocation3 + $0x1f0] sm:$0xf] %v5903
          %5920 = vst [vmem:[#allocation3 + $0x1f4] sm:$0xf] %v5904
          %5921 = vst [vmem:[#allocation3 + $0x1f8] sm:$0xf] %v5905
          %5922 = vst [vmem:[#allocation3 + $0x1fc] sm:$0xf] %v5906
          %v5923 = vld [vmem:[%s328 + $0x20] sm:$0x1]
          %v5924 = vld [vmem:[%s335 + $0x10] sm:$0x1]
          %v5925 = vperm.slane %v5923, 0
          %vm5926 = vcmp.eq.s32.totalorder %v419, %v5925
          %vm5927 = vcmp.eq.s32.totalorder %v420, %v5925
          %vm5928 = vcmp.eq.s32.totalorder %v421, %v5925
          %vm5929 = vcmp.eq.s32.totalorder %v422, %v5925
          %vm5930 = vcmp.eq.s32.totalorder %v423, %v5925
          %vm5931 = vcmp.eq.s32.totalorder %v424, %v5925
          %vm5932 = vcmp.eq.s32.totalorder %v425, %v5925
          %vm5933 = vcmp.eq.s32.totalorder %v426, %v5925
          %vm5934 = vcmp.eq.s32.totalorder %v427, %v5925
          %vm5935 = vcmp.eq.s32.totalorder %v428, %v5925
          %vm5936 = vcmp.eq.s32.totalorder %v429, %v5925
          %vm5937 = vcmp.eq.s32.totalorder %v430, %v5925
          %vm5938 = vcmp.eq.s32.totalorder %v431, %v5925
          %vm5939 = vcmp.eq.s32.totalorder %v432, %v5925
          %vm5940 = vcmp.eq.s32.totalorder %v433, %v5925
          %vm5941 = vcmp.eq.s32.totalorder %v434, %v5925
          %v5942 = vsel %vm5926, 1, 0
          %v5943 = vsel %vm5927, 1, 0
          %v5944 = vsel %vm5928, 1, 0
          %v5945 = vsel %vm5929, 1, 0
          %v5946 = vsel %vm5930, 1, 0
          %v5947 = vsel %vm5931, 1, 0
          %v5948 = vsel %vm5932, 1, 0
          %v5949 = vsel %vm5933, 1, 0
          %v5950 = vsel %vm5934, 1, 0
          %v5951 = vsel %vm5935, 1, 0
          %v5952 = vsel %vm5936, 1, 0
          %v5953 = vsel %vm5937, 1, 0
          %v5954 = vsel %vm5938, 1, 0
          %v5955 = vsel %vm5939, 1, 0
          %v5956 = vsel %vm5940, 1, 0
          %v5957 = vsel %vm5941, 1, 0
          %v5958 = vcvt.s32.f32 %v5942
          %v5959 = vcvt.s32.f32 %v5943
          %v5960 = vcvt.s32.f32 %v5944
          %v5961 = vcvt.s32.f32 %v5945
          %v5962 = vcvt.s32.f32 %v5946
          %v5963 = vcvt.s32.f32 %v5947
          %v5964 = vcvt.s32.f32 %v5948
          %v5965 = vcvt.s32.f32 %v5949
          %v5966 = vcvt.s32.f32 %v5950
          %v5967 = vcvt.s32.f32 %v5951
          %v5968 = vcvt.s32.f32 %v5952
          %v5969 = vcvt.s32.f32 %v5953
          %v5970 = vcvt.s32.f32 %v5954
          %v5971 = vcvt.s32.f32 %v5955
          %v5972 = vcvt.s32.f32 %v5956
          %v5973 = vcvt.s32.f32 %v5957
          %v5974 = vpack.c.bf16 %v5958, %v5958
          %v5975 = vpack.c.bf16 %v5959, %v5959
          %v5976 = vpack.c.bf16 %v5960, %v5960
          %v5977 = vpack.c.bf16 %v5961, %v5961
          %v5978 = vpack.c.bf16 %v5962, %v5962
          %v5979 = vpack.c.bf16 %v5963, %v5963
          %v5980 = vpack.c.bf16 %v5964, %v5964
          %v5981 = vpack.c.bf16 %v5965, %v5965
          %v5982 = vpack.c.bf16 %v5966, %v5966
          %v5983 = vpack.c.bf16 %v5967, %v5967
          %v5984 = vpack.c.bf16 %v5968, %v5968
          %v5985 = vpack.c.bf16 %v5969, %v5969
          %v5986 = vpack.c.bf16 %v5970, %v5970
          %v5987 = vpack.c.bf16 %v5971, %v5971
          %v5988 = vpack.c.bf16 %v5972, %v5972
          %v5989 = vpack.c.bf16 %v5973, %v5973
          %v5991 = vpack.i.b16 %v5924, %v5924
          %v5993 = vperm.slane %v5991, 0
          %v5994 = vunpack.c.l.bf16 %v5974
          %v5995 = vunpack.c.l.bf16 %v5975
          %v5996 = vunpack.c.l.bf16 %v5976
          %v5997 = vunpack.c.l.bf16 %v5977
          %v5998 = vunpack.c.l.bf16 %v5978
          %v5999 = vunpack.c.l.bf16 %v5979
          %v6000 = vunpack.c.l.bf16 %v5980
          %v6001 = vunpack.c.l.bf16 %v5981
          %v6002 = vunpack.c.l.bf16 %v5982
          %v6003 = vunpack.c.l.bf16 %v5983
          %v6004 = vunpack.c.l.bf16 %v5984
          %v6005 = vunpack.c.l.bf16 %v5985
          %v6006 = vunpack.c.l.bf16 %v5986
          %v6007 = vunpack.c.l.bf16 %v5987
          %v6008 = vunpack.c.l.bf16 %v5988
          %v6009 = vunpack.c.l.bf16 %v5989
          %v6010 = vunpack.c.l.bf16 %v5993
          %v6011 = vmul.f32 %v5994, %v6010
          %v6012 = vmul.f32 %v5995, %v6010
          %v6013 = vmul.f32 %v5996, %v6010
          %v6014 = vmul.f32 %v5997, %v6010
          %v6015 = vmul.f32 %v5998, %v6010
          %v6016 = vmul.f32 %v5999, %v6010
          %v6017 = vmul.f32 %v6000, %v6010
          %v6018 = vmul.f32 %v6001, %v6010
          %v6019 = vmul.f32 %v6002, %v6010
          %v6020 = vmul.f32 %v6003, %v6010
          %v6021 = vmul.f32 %v6004, %v6010
          %v6022 = vmul.f32 %v6005, %v6010
          %v6023 = vmul.f32 %v6006, %v6010
          %v6024 = vmul.f32 %v6007, %v6010
          %v6025 = vmul.f32 %v6008, %v6010
          %v6026 = vmul.f32 %v6009, %v6010
          %v6027 = vpack.c.bf16 %v6011, %v6011
          %v6028 = vpack.c.bf16 %v6012, %v6012
          %v6029 = vpack.c.bf16 %v6013, %v6013
          %v6030 = vpack.c.bf16 %v6014, %v6014
          %v6031 = vpack.c.bf16 %v6015, %v6015
          %v6032 = vpack.c.bf16 %v6016, %v6016
          %v6033 = vpack.c.bf16 %v6017, %v6017
          %v6034 = vpack.c.bf16 %v6018, %v6018
          %v6035 = vpack.c.bf16 %v6019, %v6019
          %v6036 = vpack.c.bf16 %v6020, %v6020
          %v6037 = vpack.c.bf16 %v6021, %v6021
          %v6038 = vpack.c.bf16 %v6022, %v6022
          %v6039 = vpack.c.bf16 %v6023, %v6023
          %v6040 = vpack.c.bf16 %v6024, %v6024
          %v6041 = vpack.c.bf16 %v6025, %v6025
          %v6042 = vpack.c.bf16 %v6026, %v6026
          %v6043 = vld [vmem:[%s328 + $0x21] sm:$0x1]
          %v6044 = vperm.slane %v6043, 0
          %vm6045 = vcmp.eq.s32.totalorder %v419, %v6044
          %vm6046 = vcmp.eq.s32.totalorder %v420, %v6044
          %vm6047 = vcmp.eq.s32.totalorder %v421, %v6044
          %vm6048 = vcmp.eq.s32.totalorder %v422, %v6044
          %vm6049 = vcmp.eq.s32.totalorder %v423, %v6044
          %vm6050 = vcmp.eq.s32.totalorder %v424, %v6044
          %vm6051 = vcmp.eq.s32.totalorder %v425, %v6044
          %vm6052 = vcmp.eq.s32.totalorder %v426, %v6044
          %vm6053 = vcmp.eq.s32.totalorder %v427, %v6044
          %vm6054 = vcmp.eq.s32.totalorder %v428, %v6044
          %vm6055 = vcmp.eq.s32.totalorder %v429, %v6044
          %vm6056 = vcmp.eq.s32.totalorder %v430, %v6044
          %vm6057 = vcmp.eq.s32.totalorder %v431, %v6044
          %vm6058 = vcmp.eq.s32.totalorder %v432, %v6044
          %vm6059 = vcmp.eq.s32.totalorder %v433, %v6044
          %vm6060 = vcmp.eq.s32.totalorder %v434, %v6044
          %v6061 = vsel %vm6045, 1, 0
          %v6062 = vsel %vm6046, 1, 0
          %v6063 = vsel %vm6047, 1, 0
          %v6064 = vsel %vm6048, 1, 0
          %v6065 = vsel %vm6049, 1, 0
          %v6066 = vsel %vm6050, 1, 0
          %v6067 = vsel %vm6051, 1, 0
          %v6068 = vsel %vm6052, 1, 0
          %v6069 = vsel %vm6053, 1, 0
          %v6070 = vsel %vm6054, 1, 0
          %v6071 = vsel %vm6055, 1, 0
          %v6072 = vsel %vm6056, 1, 0
          %v6073 = vsel %vm6057, 1, 0
          %v6074 = vsel %vm6058, 1, 0
          %v6075 = vsel %vm6059, 1, 0
          %v6076 = vsel %vm6060, 1, 0
          %v6077 = vcvt.s32.f32 %v6061
          %v6078 = vcvt.s32.f32 %v6062
          %v6079 = vcvt.s32.f32 %v6063
          %v6080 = vcvt.s32.f32 %v6064
          %v6081 = vcvt.s32.f32 %v6065
          %v6082 = vcvt.s32.f32 %v6066
          %v6083 = vcvt.s32.f32 %v6067
          %v6084 = vcvt.s32.f32 %v6068
          %v6085 = vcvt.s32.f32 %v6069
          %v6086 = vcvt.s32.f32 %v6070
          %v6087 = vcvt.s32.f32 %v6071
          %v6088 = vcvt.s32.f32 %v6072
          %v6089 = vcvt.s32.f32 %v6073
          %v6090 = vcvt.s32.f32 %v6074
          %v6091 = vcvt.s32.f32 %v6075
          %v6092 = vcvt.s32.f32 %v6076
          %v6093 = vpack.c.bf16 %v6077, %v6077
          %v6094 = vpack.c.bf16 %v6078, %v6078
          %v6095 = vpack.c.bf16 %v6079, %v6079
          %v6096 = vpack.c.bf16 %v6080, %v6080
          %v6097 = vpack.c.bf16 %v6081, %v6081
          %v6098 = vpack.c.bf16 %v6082, %v6082
          %v6099 = vpack.c.bf16 %v6083, %v6083
          %v6100 = vpack.c.bf16 %v6084, %v6084
          %v6101 = vpack.c.bf16 %v6085, %v6085
          %v6102 = vpack.c.bf16 %v6086, %v6086
          %v6103 = vpack.c.bf16 %v6087, %v6087
          %v6104 = vpack.c.bf16 %v6088, %v6088
          %v6105 = vpack.c.bf16 %v6089, %v6089
          %v6106 = vpack.c.bf16 %v6090, %v6090
          %v6107 = vpack.c.bf16 %v6091, %v6091
          %v6108 = vpack.c.bf16 %v6092, %v6092
          %v6109 = vshrl.u32 %v5924, 16
          %v6110 = vpack.i.b16 %v6109, %v6109
          %v6112 = vperm.slane %v6110, 0
          %v6113 = vunpack.c.l.bf16 %v6093
          %v6114 = vunpack.c.l.bf16 %v6094
          %v6115 = vunpack.c.l.bf16 %v6095
          %v6116 = vunpack.c.l.bf16 %v6096
          %v6117 = vunpack.c.l.bf16 %v6097
          %v6118 = vunpack.c.l.bf16 %v6098
          %v6119 = vunpack.c.l.bf16 %v6099
          %v6120 = vunpack.c.l.bf16 %v6100
          %v6121 = vunpack.c.l.bf16 %v6101
          %v6122 = vunpack.c.l.bf16 %v6102
          %v6123 = vunpack.c.l.bf16 %v6103
          %v6124 = vunpack.c.l.bf16 %v6104
          %v6125 = vunpack.c.l.bf16 %v6105
          %v6126 = vunpack.c.l.bf16 %v6106
          %v6127 = vunpack.c.l.bf16 %v6107
          %v6128 = vunpack.c.l.bf16 %v6108
          %v6129 = vunpack.c.l.bf16 %v6112
          %v6130 = vmul.f32 %v6113, %v6129
          %v6131 = vmul.f32 %v6114, %v6129
          %v6132 = vmul.f32 %v6115, %v6129
          %v6133 = vmul.f32 %v6116, %v6129
          %v6134 = vmul.f32 %v6117, %v6129
          %v6135 = vmul.f32 %v6118, %v6129
          %v6136 = vmul.f32 %v6119, %v6129
          %v6137 = vmul.f32 %v6120, %v6129
          %v6138 = vmul.f32 %v6121, %v6129
          %v6139 = vmul.f32 %v6122, %v6129
          %v6140 = vmul.f32 %v6123, %v6129
          %v6141 = vmul.f32 %v6124, %v6129
          %v6142 = vmul.f32 %v6125, %v6129
          %v6143 = vmul.f32 %v6126, %v6129
          %v6144 = vmul.f32 %v6127, %v6129
          %v6145 = vmul.f32 %v6128, %v6129
          %v6146 = vpack.c.bf16 %v6130, %v6130
          %v6147 = vpack.c.bf16 %v6131, %v6131
          %v6148 = vpack.c.bf16 %v6132, %v6132
          %v6149 = vpack.c.bf16 %v6133, %v6133
          %v6150 = vpack.c.bf16 %v6134, %v6134
          %v6151 = vpack.c.bf16 %v6135, %v6135
          %v6152 = vpack.c.bf16 %v6136, %v6136
          %v6153 = vpack.c.bf16 %v6137, %v6137
          %v6154 = vpack.c.bf16 %v6138, %v6138
          %v6155 = vpack.c.bf16 %v6139, %v6139
          %v6156 = vpack.c.bf16 %v6140, %v6140
          %v6157 = vpack.c.bf16 %v6141, %v6141
          %v6158 = vpack.c.bf16 %v6142, %v6142
          %v6159 = vpack.c.bf16 %v6143, %v6143
          %v6160 = vpack.c.bf16 %v6144, %v6144
          %v6161 = vpack.c.bf16 %v6145, %v6145
          %v6162 = vunpack.c.l.bf16 %v6027
          %v6163 = vunpack.c.l.bf16 %v6028
          %v6164 = vunpack.c.l.bf16 %v6029
          %v6165 = vunpack.c.l.bf16 %v6030
          %v6166 = vunpack.c.l.bf16 %v6031
          %v6167 = vunpack.c.l.bf16 %v6032
          %v6168 = vunpack.c.l.bf16 %v6033
          %v6169 = vunpack.c.l.bf16 %v6034
          %v6170 = vunpack.c.l.bf16 %v6035
          %v6171 = vunpack.c.l.bf16 %v6036
          %v6172 = vunpack.c.l.bf16 %v6037
          %v6173 = vunpack.c.l.bf16 %v6038
          %v6174 = vunpack.c.l.bf16 %v6039
          %v6175 = vunpack.c.l.bf16 %v6040
          %v6176 = vunpack.c.l.bf16 %v6041
          %v6177 = vunpack.c.l.bf16 %v6042
          %v6178 = vunpack.c.l.bf16 %v6146
          %v6179 = vunpack.c.l.bf16 %v6147
          %v6180 = vunpack.c.l.bf16 %v6148
          %v6181 = vunpack.c.l.bf16 %v6149
          %v6182 = vunpack.c.l.bf16 %v6150
          %v6183 = vunpack.c.l.bf16 %v6151
          %v6184 = vunpack.c.l.bf16 %v6152
          %v6185 = vunpack.c.l.bf16 %v6153
          %v6186 = vunpack.c.l.bf16 %v6154
          %v6187 = vunpack.c.l.bf16 %v6155
          %v6188 = vunpack.c.l.bf16 %v6156
          %v6189 = vunpack.c.l.bf16 %v6157
          %v6190 = vunpack.c.l.bf16 %v6158
          %v6191 = vunpack.c.l.bf16 %v6159
          %v6192 = vunpack.c.l.bf16 %v6160
          %v6193 = vunpack.c.l.bf16 %v6161
          %v6194 = vadd.f32 %v6162, %v6178
          %v6195 = vadd.f32 %v6163, %v6179
          %v6196 = vadd.f32 %v6164, %v6180
          %v6197 = vadd.f32 %v6165, %v6181
          %v6198 = vadd.f32 %v6166, %v6182
          %v6199 = vadd.f32 %v6167, %v6183
          %v6200 = vadd.f32 %v6168, %v6184
          %v6201 = vadd.f32 %v6169, %v6185
          %v6202 = vadd.f32 %v6170, %v6186
          %v6203 = vadd.f32 %v6171, %v6187
          %v6204 = vadd.f32 %v6172, %v6188
          %v6205 = vadd.f32 %v6173, %v6189
          %v6206 = vadd.f32 %v6174, %v6190
          %v6207 = vadd.f32 %v6175, %v6191
          %v6208 = vadd.f32 %v6176, %v6192
          %v6209 = vadd.f32 %v6177, %v6193
          %v6210 = vpack.c.bf16 %v6194, %v6194
          %v6211 = vpack.c.bf16 %v6195, %v6195
          %v6212 = vpack.c.bf16 %v6196, %v6196
          %v6213 = vpack.c.bf16 %v6197, %v6197
          %v6214 = vpack.c.bf16 %v6198, %v6198
          %v6215 = vpack.c.bf16 %v6199, %v6199
          %v6216 = vpack.c.bf16 %v6200, %v6200
          %v6217 = vpack.c.bf16 %v6201, %v6201
          %v6218 = vpack.c.bf16 %v6202, %v6202
          %v6219 = vpack.c.bf16 %v6203, %v6203
          %v6220 = vpack.c.bf16 %v6204, %v6204
          %v6221 = vpack.c.bf16 %v6205, %v6205
          %v6222 = vpack.c.bf16 %v6206, %v6206
          %v6223 = vpack.c.bf16 %v6207, %v6207
          %v6224 = vpack.c.bf16 %v6208, %v6208
          %v6225 = vpack.c.bf16 %v6209, %v6209
          %v6226 = vld [vmem:[%s328 + $0x22] sm:$0x1]
          %v6227 = vld [vmem:[%s335 + $0x10] sm:$0x2]
          %v6228 = vperm.slane %v6226, 0
          %vm6229 = vcmp.eq.s32.totalorder %v419, %v6228
          %vm6230 = vcmp.eq.s32.totalorder %v420, %v6228
          %vm6231 = vcmp.eq.s32.totalorder %v421, %v6228
          %vm6232 = vcmp.eq.s32.totalorder %v422, %v6228
          %vm6233 = vcmp.eq.s32.totalorder %v423, %v6228
          %vm6234 = vcmp.eq.s32.totalorder %v424, %v6228
          %vm6235 = vcmp.eq.s32.totalorder %v425, %v6228
          %vm6236 = vcmp.eq.s32.totalorder %v426, %v6228
          %vm6237 = vcmp.eq.s32.totalorder %v427, %v6228
          %vm6238 = vcmp.eq.s32.totalorder %v428, %v6228
          %vm6239 = vcmp.eq.s32.totalorder %v429, %v6228
          %vm6240 = vcmp.eq.s32.totalorder %v430, %v6228
          %vm6241 = vcmp.eq.s32.totalorder %v431, %v6228
          %vm6242 = vcmp.eq.s32.totalorder %v432, %v6228
          %vm6243 = vcmp.eq.s32.totalorder %v433, %v6228
          %vm6244 = vcmp.eq.s32.totalorder %v434, %v6228
          %v6245 = vsel %vm6229, 1, 0
          %v6246 = vsel %vm6230, 1, 0
          %v6247 = vsel %vm6231, 1, 0
          %v6248 = vsel %vm6232, 1, 0
          %v6249 = vsel %vm6233, 1, 0
          %v6250 = vsel %vm6234, 1, 0
          %v6251 = vsel %vm6235, 1, 0
          %v6252 = vsel %vm6236, 1, 0
          %v6253 = vsel %vm6237, 1, 0
          %v6254 = vsel %vm6238, 1, 0
          %v6255 = vsel %vm6239, 1, 0
          %v6256 = vsel %vm6240, 1, 0
          %v6257 = vsel %vm6241, 1, 0
          %v6258 = vsel %vm6242, 1, 0
          %v6259 = vsel %vm6243, 1, 0
          %v6260 = vsel %vm6244, 1, 0
          %v6261 = vcvt.s32.f32 %v6245
          %v6262 = vcvt.s32.f32 %v6246
          %v6263 = vcvt.s32.f32 %v6247
          %v6264 = vcvt.s32.f32 %v6248
          %v6265 = vcvt.s32.f32 %v6249
          %v6266 = vcvt.s32.f32 %v6250
          %v6267 = vcvt.s32.f32 %v6251
          %v6268 = vcvt.s32.f32 %v6252
          %v6269 = vcvt.s32.f32 %v6253
          %v6270 = vcvt.s32.f32 %v6254
          %v6271 = vcvt.s32.f32 %v6255
          %v6272 = vcvt.s32.f32 %v6256
          %v6273 = vcvt.s32.f32 %v6257
          %v6274 = vcvt.s32.f32 %v6258
          %v6275 = vcvt.s32.f32 %v6259
          %v6276 = vcvt.s32.f32 %v6260
          %v6277 = vpack.c.bf16 %v6261, %v6261
          %v6278 = vpack.c.bf16 %v6262, %v6262
          %v6279 = vpack.c.bf16 %v6263, %v6263
          %v6280 = vpack.c.bf16 %v6264, %v6264
          %v6281 = vpack.c.bf16 %v6265, %v6265
          %v6282 = vpack.c.bf16 %v6266, %v6266
          %v6283 = vpack.c.bf16 %v6267, %v6267
          %v6284 = vpack.c.bf16 %v6268, %v6268
          %v6285 = vpack.c.bf16 %v6269, %v6269
          %v6286 = vpack.c.bf16 %v6270, %v6270
          %v6287 = vpack.c.bf16 %v6271, %v6271
          %v6288 = vpack.c.bf16 %v6272, %v6272
          %v6289 = vpack.c.bf16 %v6273, %v6273
          %v6290 = vpack.c.bf16 %v6274, %v6274
          %v6291 = vpack.c.bf16 %v6275, %v6275
          %v6292 = vpack.c.bf16 %v6276, %v6276
          %v6294 = vpack.i.b16 %v6227, %v6227
          %v6296 = vperm.slane %v6294, 1
          %v6297 = vunpack.c.l.bf16 %v6277
          %v6298 = vunpack.c.l.bf16 %v6278
          %v6299 = vunpack.c.l.bf16 %v6279
          %v6300 = vunpack.c.l.bf16 %v6280
          %v6301 = vunpack.c.l.bf16 %v6281
          %v6302 = vunpack.c.l.bf16 %v6282
          %v6303 = vunpack.c.l.bf16 %v6283
          %v6304 = vunpack.c.l.bf16 %v6284
          %v6305 = vunpack.c.l.bf16 %v6285
          %v6306 = vunpack.c.l.bf16 %v6286
          %v6307 = vunpack.c.l.bf16 %v6287
          %v6308 = vunpack.c.l.bf16 %v6288
          %v6309 = vunpack.c.l.bf16 %v6289
          %v6310 = vunpack.c.l.bf16 %v6290
          %v6311 = vunpack.c.l.bf16 %v6291
          %v6312 = vunpack.c.l.bf16 %v6292
          %v6313 = vunpack.c.l.bf16 %v6296
          %v6314 = vmul.f32 %v6297, %v6313
          %v6315 = vmul.f32 %v6298, %v6313
          %v6316 = vmul.f32 %v6299, %v6313
          %v6317 = vmul.f32 %v6300, %v6313
          %v6318 = vmul.f32 %v6301, %v6313
          %v6319 = vmul.f32 %v6302, %v6313
          %v6320 = vmul.f32 %v6303, %v6313
          %v6321 = vmul.f32 %v6304, %v6313
          %v6322 = vmul.f32 %v6305, %v6313
          %v6323 = vmul.f32 %v6306, %v6313
          %v6324 = vmul.f32 %v6307, %v6313
          %v6325 = vmul.f32 %v6308, %v6313
          %v6326 = vmul.f32 %v6309, %v6313
          %v6327 = vmul.f32 %v6310, %v6313
          %v6328 = vmul.f32 %v6311, %v6313
          %v6329 = vmul.f32 %v6312, %v6313
          %v6330 = vpack.c.bf16 %v6314, %v6314
          %v6331 = vpack.c.bf16 %v6315, %v6315
          %v6332 = vpack.c.bf16 %v6316, %v6316
          %v6333 = vpack.c.bf16 %v6317, %v6317
          %v6334 = vpack.c.bf16 %v6318, %v6318
          %v6335 = vpack.c.bf16 %v6319, %v6319
          %v6336 = vpack.c.bf16 %v6320, %v6320
          %v6337 = vpack.c.bf16 %v6321, %v6321
          %v6338 = vpack.c.bf16 %v6322, %v6322
          %v6339 = vpack.c.bf16 %v6323, %v6323
          %v6340 = vpack.c.bf16 %v6324, %v6324
          %v6341 = vpack.c.bf16 %v6325, %v6325
          %v6342 = vpack.c.bf16 %v6326, %v6326
          %v6343 = vpack.c.bf16 %v6327, %v6327
          %v6344 = vpack.c.bf16 %v6328, %v6328
          %v6345 = vpack.c.bf16 %v6329, %v6329
          %v6346 = vunpack.c.l.bf16 %v6210
          %v6347 = vunpack.c.l.bf16 %v6211
          %v6348 = vunpack.c.l.bf16 %v6212
          %v6349 = vunpack.c.l.bf16 %v6213
          %v6350 = vunpack.c.l.bf16 %v6214
          %v6351 = vunpack.c.l.bf16 %v6215
          %v6352 = vunpack.c.l.bf16 %v6216
          %v6353 = vunpack.c.l.bf16 %v6217
          %v6354 = vunpack.c.l.bf16 %v6218
          %v6355 = vunpack.c.l.bf16 %v6219
          %v6356 = vunpack.c.l.bf16 %v6220
          %v6357 = vunpack.c.l.bf16 %v6221
          %v6358 = vunpack.c.l.bf16 %v6222
          %v6359 = vunpack.c.l.bf16 %v6223
          %v6360 = vunpack.c.l.bf16 %v6224
          %v6361 = vunpack.c.l.bf16 %v6225
          %v6362 = vunpack.c.l.bf16 %v6330
          %v6363 = vunpack.c.l.bf16 %v6331
          %v6364 = vunpack.c.l.bf16 %v6332
          %v6365 = vunpack.c.l.bf16 %v6333
          %v6366 = vunpack.c.l.bf16 %v6334
          %v6367 = vunpack.c.l.bf16 %v6335
          %v6368 = vunpack.c.l.bf16 %v6336
          %v6369 = vunpack.c.l.bf16 %v6337
          %v6370 = vunpack.c.l.bf16 %v6338
          %v6371 = vunpack.c.l.bf16 %v6339
          %v6372 = vunpack.c.l.bf16 %v6340
          %v6373 = vunpack.c.l.bf16 %v6341
          %v6374 = vunpack.c.l.bf16 %v6342
          %v6375 = vunpack.c.l.bf16 %v6343
          %v6376 = vunpack.c.l.bf16 %v6344
          %v6377 = vunpack.c.l.bf16 %v6345
          %v6378 = vadd.f32 %v6346, %v6362
          %v6379 = vadd.f32 %v6347, %v6363
          %v6380 = vadd.f32 %v6348, %v6364
          %v6381 = vadd.f32 %v6349, %v6365
          %v6382 = vadd.f32 %v6350, %v6366
          %v6383 = vadd.f32 %v6351, %v6367
          %v6384 = vadd.f32 %v6352, %v6368
          %v6385 = vadd.f32 %v6353, %v6369
          %v6386 = vadd.f32 %v6354, %v6370
          %v6387 = vadd.f32 %v6355, %v6371
          %v6388 = vadd.f32 %v6356, %v6372
          %v6389 = vadd.f32 %v6357, %v6373
          %v6390 = vadd.f32 %v6358, %v6374
          %v6391 = vadd.f32 %v6359, %v6375
          %v6392 = vadd.f32 %v6360, %v6376
          %v6393 = vadd.f32 %v6361, %v6377
          %v6394 = vpack.c.bf16 %v6378, %v6378
          %v6395 = vpack.c.bf16 %v6379, %v6379
          %v6396 = vpack.c.bf16 %v6380, %v6380
          %v6397 = vpack.c.bf16 %v6381, %v6381
          %v6398 = vpack.c.bf16 %v6382, %v6382
          %v6399 = vpack.c.bf16 %v6383, %v6383
          %v6400 = vpack.c.bf16 %v6384, %v6384
          %v6401 = vpack.c.bf16 %v6385, %v6385
          %v6402 = vpack.c.bf16 %v6386, %v6386
          %v6403 = vpack.c.bf16 %v6387, %v6387
          %v6404 = vpack.c.bf16 %v6388, %v6388
          %v6405 = vpack.c.bf16 %v6389, %v6389
          %v6406 = vpack.c.bf16 %v6390, %v6390
          %v6407 = vpack.c.bf16 %v6391, %v6391
          %v6408 = vpack.c.bf16 %v6392, %v6392
          %v6409 = vpack.c.bf16 %v6393, %v6393
          %v6410 = vld [vmem:[%s328 + $0x23] sm:$0x1]
          %v6411 = vperm.slane %v6410, 0
          %vm6412 = vcmp.eq.s32.totalorder %v419, %v6411
          %vm6413 = vcmp.eq.s32.totalorder %v420, %v6411
          %vm6414 = vcmp.eq.s32.totalorder %v421, %v6411
          %vm6415 = vcmp.eq.s32.totalorder %v422, %v6411
          %vm6416 = vcmp.eq.s32.totalorder %v423, %v6411
          %vm6417 = vcmp.eq.s32.totalorder %v424, %v6411
          %vm6418 = vcmp.eq.s32.totalorder %v425, %v6411
          %vm6419 = vcmp.eq.s32.totalorder %v426, %v6411
          %vm6420 = vcmp.eq.s32.totalorder %v427, %v6411
          %vm6421 = vcmp.eq.s32.totalorder %v428, %v6411
          %vm6422 = vcmp.eq.s32.totalorder %v429, %v6411
          %vm6423 = vcmp.eq.s32.totalorder %v430, %v6411
          %vm6424 = vcmp.eq.s32.totalorder %v431, %v6411
          %vm6425 = vcmp.eq.s32.totalorder %v432, %v6411
          %vm6426 = vcmp.eq.s32.totalorder %v433, %v6411
          %vm6427 = vcmp.eq.s32.totalorder %v434, %v6411
          %v6428 = vsel %vm6412, 1, 0
          %v6429 = vsel %vm6413, 1, 0
          %v6430 = vsel %vm6414, 1, 0
          %v6431 = vsel %vm6415, 1, 0
          %v6432 = vsel %vm6416, 1, 0
          %v6433 = vsel %vm6417, 1, 0
          %v6434 = vsel %vm6418, 1, 0
          %v6435 = vsel %vm6419, 1, 0
          %v6436 = vsel %vm6420, 1, 0
          %v6437 = vsel %vm6421, 1, 0
          %v6438 = vsel %vm6422, 1, 0
          %v6439 = vsel %vm6423, 1, 0
          %v6440 = vsel %vm6424, 1, 0
          %v6441 = vsel %vm6425, 1, 0
          %v6442 = vsel %vm6426, 1, 0
          %v6443 = vsel %vm6427, 1, 0
          %v6444 = vcvt.s32.f32 %v6428
          %v6445 = vcvt.s32.f32 %v6429
          %v6446 = vcvt.s32.f32 %v6430
          %v6447 = vcvt.s32.f32 %v6431
          %v6448 = vcvt.s32.f32 %v6432
          %v6449 = vcvt.s32.f32 %v6433
          %v6450 = vcvt.s32.f32 %v6434
          %v6451 = vcvt.s32.f32 %v6435
          %v6452 = vcvt.s32.f32 %v6436
          %v6453 = vcvt.s32.f32 %v6437
          %v6454 = vcvt.s32.f32 %v6438
          %v6455 = vcvt.s32.f32 %v6439
          %v6456 = vcvt.s32.f32 %v6440
          %v6457 = vcvt.s32.f32 %v6441
          %v6458 = vcvt.s32.f32 %v6442
          %v6459 = vcvt.s32.f32 %v6443
          %v6460 = vpack.c.bf16 %v6444, %v6444
          %v6461 = vpack.c.bf16 %v6445, %v6445
          %v6462 = vpack.c.bf16 %v6446, %v6446
          %v6463 = vpack.c.bf16 %v6447, %v6447
          %v6464 = vpack.c.bf16 %v6448, %v6448
          %v6465 = vpack.c.bf16 %v6449, %v6449
          %v6466 = vpack.c.bf16 %v6450, %v6450
          %v6467 = vpack.c.bf16 %v6451, %v6451
          %v6468 = vpack.c.bf16 %v6452, %v6452
          %v6469 = vpack.c.bf16 %v6453, %v6453
          %v6470 = vpack.c.bf16 %v6454, %v6454
          %v6471 = vpack.c.bf16 %v6455, %v6455
          %v6472 = vpack.c.bf16 %v6456, %v6456
          %v6473 = vpack.c.bf16 %v6457, %v6457
          %v6474 = vpack.c.bf16 %v6458, %v6458
          %v6475 = vpack.c.bf16 %v6459, %v6459
          %v6476 = vshrl.u32 %v6227, 16
          %v6477 = vpack.i.b16 %v6476, %v6476
          %v6479 = vperm.slane %v6477, 1
          %v6480 = vunpack.c.l.bf16 %v6460
          %v6481 = vunpack.c.l.bf16 %v6461
          %v6482 = vunpack.c.l.bf16 %v6462
          %v6483 = vunpack.c.l.bf16 %v6463
          %v6484 = vunpack.c.l.bf16 %v6464
          %v6485 = vunpack.c.l.bf16 %v6465
          %v6486 = vunpack.c.l.bf16 %v6466
          %v6487 = vunpack.c.l.bf16 %v6467
          %v6488 = vunpack.c.l.bf16 %v6468
          %v6489 = vunpack.c.l.bf16 %v6469
          %v6490 = vunpack.c.l.bf16 %v6470
          %v6491 = vunpack.c.l.bf16 %v6471
          %v6492 = vunpack.c.l.bf16 %v6472
          %v6493 = vunpack.c.l.bf16 %v6473
          %v6494 = vunpack.c.l.bf16 %v6474
          %v6495 = vunpack.c.l.bf16 %v6475
          %v6496 = vunpack.c.l.bf16 %v6479
          %v6497 = vmul.f32 %v6480, %v6496
          %v6498 = vmul.f32 %v6481, %v6496
          %v6499 = vmul.f32 %v6482, %v6496
          %v6500 = vmul.f32 %v6483, %v6496
          %v6501 = vmul.f32 %v6484, %v6496
          %v6502 = vmul.f32 %v6485, %v6496
          %v6503 = vmul.f32 %v6486, %v6496
          %v6504 = vmul.f32 %v6487, %v6496
          %v6505 = vmul.f32 %v6488, %v6496
          %v6506 = vmul.f32 %v6489, %v6496
          %v6507 = vmul.f32 %v6490, %v6496
          %v6508 = vmul.f32 %v6491, %v6496
          %v6509 = vmul.f32 %v6492, %v6496
          %v6510 = vmul.f32 %v6493, %v6496
          %v6511 = vmul.f32 %v6494, %v6496
          %v6512 = vmul.f32 %v6495, %v6496
          %v6513 = vpack.c.bf16 %v6497, %v6497
          %v6514 = vpack.c.bf16 %v6498, %v6498
          %v6515 = vpack.c.bf16 %v6499, %v6499
          %v6516 = vpack.c.bf16 %v6500, %v6500
          %v6517 = vpack.c.bf16 %v6501, %v6501
          %v6518 = vpack.c.bf16 %v6502, %v6502
          %v6519 = vpack.c.bf16 %v6503, %v6503
          %v6520 = vpack.c.bf16 %v6504, %v6504
          %v6521 = vpack.c.bf16 %v6505, %v6505
          %v6522 = vpack.c.bf16 %v6506, %v6506
          %v6523 = vpack.c.bf16 %v6507, %v6507
          %v6524 = vpack.c.bf16 %v6508, %v6508
          %v6525 = vpack.c.bf16 %v6509, %v6509
          %v6526 = vpack.c.bf16 %v6510, %v6510
          %v6527 = vpack.c.bf16 %v6511, %v6511
          %v6528 = vpack.c.bf16 %v6512, %v6512
          %v6529 = vunpack.c.l.bf16 %v6394
          %v6530 = vunpack.c.l.bf16 %v6395
          %v6531 = vunpack.c.l.bf16 %v6396
          %v6532 = vunpack.c.l.bf16 %v6397
          %v6533 = vunpack.c.l.bf16 %v6398
          %v6534 = vunpack.c.l.bf16 %v6399
          %v6535 = vunpack.c.l.bf16 %v6400
          %v6536 = vunpack.c.l.bf16 %v6401
          %v6537 = vunpack.c.l.bf16 %v6402
          %v6538 = vunpack.c.l.bf16 %v6403
          %v6539 = vunpack.c.l.bf16 %v6404
          %v6540 = vunpack.c.l.bf16 %v6405
          %v6541 = vunpack.c.l.bf16 %v6406
          %v6542 = vunpack.c.l.bf16 %v6407
          %v6543 = vunpack.c.l.bf16 %v6408
          %v6544 = vunpack.c.l.bf16 %v6409
          %v6545 = vunpack.c.l.bf16 %v6513
          %v6546 = vunpack.c.l.bf16 %v6514
          %v6547 = vunpack.c.l.bf16 %v6515
          %v6548 = vunpack.c.l.bf16 %v6516
          %v6549 = vunpack.c.l.bf16 %v6517
          %v6550 = vunpack.c.l.bf16 %v6518
          %v6551 = vunpack.c.l.bf16 %v6519
          %v6552 = vunpack.c.l.bf16 %v6520
          %v6553 = vunpack.c.l.bf16 %v6521
          %v6554 = vunpack.c.l.bf16 %v6522
          %v6555 = vunpack.c.l.bf16 %v6523
          %v6556 = vunpack.c.l.bf16 %v6524
          %v6557 = vunpack.c.l.bf16 %v6525
          %v6558 = vunpack.c.l.bf16 %v6526
          %v6559 = vunpack.c.l.bf16 %v6527
          %v6560 = vunpack.c.l.bf16 %v6528
          %v6561 = vadd.f32 %v6529, %v6545
          %v6562 = vadd.f32 %v6530, %v6546
          %v6563 = vadd.f32 %v6531, %v6547
          %v6564 = vadd.f32 %v6532, %v6548
          %v6565 = vadd.f32 %v6533, %v6549
          %v6566 = vadd.f32 %v6534, %v6550
          %v6567 = vadd.f32 %v6535, %v6551
          %v6568 = vadd.f32 %v6536, %v6552
          %v6569 = vadd.f32 %v6537, %v6553
          %v6570 = vadd.f32 %v6538, %v6554
          %v6571 = vadd.f32 %v6539, %v6555
          %v6572 = vadd.f32 %v6540, %v6556
          %v6573 = vadd.f32 %v6541, %v6557
          %v6574 = vadd.f32 %v6542, %v6558
          %v6575 = vadd.f32 %v6543, %v6559
          %v6576 = vadd.f32 %v6544, %v6560
          %v6577 = vpack.c.bf16 %v6561, %v6561
          %v6578 = vpack.c.bf16 %v6562, %v6562
          %v6579 = vpack.c.bf16 %v6563, %v6563
          %v6580 = vpack.c.bf16 %v6564, %v6564
          %v6581 = vpack.c.bf16 %v6565, %v6565
          %v6582 = vpack.c.bf16 %v6566, %v6566
          %v6583 = vpack.c.bf16 %v6567, %v6567
          %v6584 = vpack.c.bf16 %v6568, %v6568
          %v6585 = vpack.c.bf16 %v6569, %v6569
          %v6586 = vpack.c.bf16 %v6570, %v6570
          %v6587 = vpack.c.bf16 %v6571, %v6571
          %v6588 = vpack.c.bf16 %v6572, %v6572
          %v6589 = vpack.c.bf16 %v6573, %v6573
          %v6590 = vpack.c.bf16 %v6574, %v6574
          %v6591 = vpack.c.bf16 %v6575, %v6575
          %v6592 = vpack.c.bf16 %v6576, %v6576
          %6593 = vst [vmem:[#allocation3 + $0x200] sm:$0xf] %v6577
          %6594 = vst [vmem:[#allocation3 + $0x204] sm:$0xf] %v6578
          %6595 = vst [vmem:[#allocation3 + $0x208] sm:$0xf] %v6579
          %6596 = vst [vmem:[#allocation3 + $0x20c] sm:$0xf] %v6580
          %6597 = vst [vmem:[#allocation3 + $0x210] sm:$0xf] %v6581
          %6598 = vst [vmem:[#allocation3 + $0x214] sm:$0xf] %v6582
          %6599 = vst [vmem:[#allocation3 + $0x218] sm:$0xf] %v6583
          %6600 = vst [vmem:[#allocation3 + $0x21c] sm:$0xf] %v6584
          %6601 = vst [vmem:[#allocation3 + $0x220] sm:$0xf] %v6585
          %6602 = vst [vmem:[#allocation3 + $0x224] sm:$0xf] %v6586
          %6603 = vst [vmem:[#allocation3 + $0x228] sm:$0xf] %v6587
          %6604 = vst [vmem:[#allocation3 + $0x22c] sm:$0xf] %v6588
          %6605 = vst [vmem:[#allocation3 + $0x230] sm:$0xf] %v6589
          %6606 = vst [vmem:[#allocation3 + $0x234] sm:$0xf] %v6590
          %6607 = vst [vmem:[#allocation3 + $0x238] sm:$0xf] %v6591
          %6608 = vst [vmem:[#allocation3 + $0x23c] sm:$0xf] %v6592
          %v6609 = vld [vmem:[#allocation2] sm:$0xff]
          %v6610 = vld [vmem:[%s377] sm:$0xff]
          %v6611 = vld [vmem:[%s377 + $0x8] sm:$0xff]
          %v6612 = vld [vmem:[%s377 + $0x10] sm:$0xff]
          %v6613 = vld [vmem:[%s377 + $0x18] sm:$0xff]
          %v6614 = vld [vmem:[%s377 + $0x20] sm:$0xf]
          %v6615 = vld [vmem:[#allocation3] sm:$0xf]
          %v6616 = vld [vmem:[#allocation3 + $0x4] sm:$0xf]
          %v6617 = vld [vmem:[#allocation3 + $0x8] sm:$0xf]
          %v6618 = vld [vmem:[#allocation3 + $0xc] sm:$0xf]
          %v6619 = vld [vmem:[#allocation3 + $0x10] sm:$0xf]
          %v6620 = vld [vmem:[#allocation3 + $0x14] sm:$0xf]
          %v6621 = vld [vmem:[#allocation3 + $0x18] sm:$0xf]
          %v6622 = vld [vmem:[#allocation3 + $0x1c] sm:$0xf]
          %v6623 = vld [vmem:[#allocation3 + $0x20] sm:$0xf]
          %v6624 = vld [vmem:[#allocation3 + $0x24] sm:$0xf]
          %v6625 = vld [vmem:[#allocation3 + $0x28] sm:$0xf]
          %v6626 = vld [vmem:[#allocation3 + $0x2c] sm:$0xf]
          %v6627 = vld [vmem:[#allocation3 + $0x30] sm:$0xf]
          %v6628 = vld [vmem:[#allocation3 + $0x34] sm:$0xf]
          %v6629 = vld [vmem:[#allocation3 + $0x38] sm:$0xf]
          %v6630 = vld [vmem:[#allocation3 + $0x3c] sm:$0xf]
          %v6631 = vld [vmem:[#allocation3 + $0x40] sm:$0xf]
          %v6632 = vld [vmem:[#allocation3 + $0x44] sm:$0xf]
          %v6633 = vld [vmem:[#allocation3 + $0x48] sm:$0xf]
          %v6634 = vld [vmem:[#allocation3 + $0x4c] sm:$0xf]
          %v6635 = vld [vmem:[#allocation3 + $0x50] sm:$0xf]
          %v6636 = vld [vmem:[#allocation3 + $0x54] sm:$0xf]
          %v6637 = vld [vmem:[#allocation3 + $0x58] sm:$0xf]
          %v6638 = vld [vmem:[#allocation3 + $0x5c] sm:$0xf]
          %v6639 = vld [vmem:[#allocation3 + $0x60] sm:$0xf]
          %v6640 = vld [vmem:[#allocation3 + $0x64] sm:$0xf]
          %v6641 = vld [vmem:[#allocation3 + $0x68] sm:$0xf]
          %v6642 = vld [vmem:[#allocation3 + $0x6c] sm:$0xf]
          %v6643 = vld [vmem:[#allocation3 + $0x70] sm:$0xf]
          %v6644 = vld [vmem:[#allocation3 + $0x74] sm:$0xf]
          %v6645 = vld [vmem:[#allocation3 + $0x78] sm:$0xf]
          %v6646 = vld [vmem:[#allocation3 + $0x7c] sm:$0xf]
          %v6647 = vld [vmem:[#allocation3 + $0x80] sm:$0xf]
          %v6648 = vld [vmem:[#allocation3 + $0x84] sm:$0xf]
          %v6649 = vld [vmem:[#allocation3 + $0x88] sm:$0xf]
          %v6650 = vld [vmem:[#allocation3 + $0x8c] sm:$0xf]
          %v6651 = vld [vmem:[#allocation3 + $0x90] sm:$0xf]
          %v6652 = vld [vmem:[#allocation3 + $0x94] sm:$0xf]
          %v6653 = vld [vmem:[#allocation3 + $0x98] sm:$0xf]
          %v6654 = vld [vmem:[#allocation3 + $0x9c] sm:$0xf]
          %v6655 = vld [vmem:[#allocation3 + $0xa0] sm:$0xf]
          %v6656 = vld [vmem:[#allocation3 + $0xa4] sm:$0xf]
          %v6657 = vld [vmem:[#allocation3 + $0xa8] sm:$0xf]
          %v6658 = vld [vmem:[#allocation3 + $0xac] sm:$0xf]
          %v6659 = vld [vmem:[#allocation3 + $0xb0] sm:$0xf]
          %v6660 = vld [vmem:[#allocation3 + $0xb4] sm:$0xf]
          %v6661 = vld [vmem:[#allocation3 + $0xb8] sm:$0xf]
          %v6662 = vld [vmem:[#allocation3 + $0xbc] sm:$0xf]
          %v6663 = vld [vmem:[#allocation3 + $0xc0] sm:$0xf]
          %v6664 = vld [vmem:[#allocation3 + $0xc4] sm:$0xf]
          %v6665 = vld [vmem:[#allocation3 + $0xc8] sm:$0xf]
          %v6666 = vld [vmem:[#allocation3 + $0xcc] sm:$0xf]
          %v6667 = vld [vmem:[#allocation3 + $0xd0] sm:$0xf]
          %v6668 = vld [vmem:[#allocation3 + $0xd4] sm:$0xf]
          %v6669 = vld [vmem:[#allocation3 + $0xd8] sm:$0xf]
          %v6670 = vld [vmem:[#allocation3 + $0xdc] sm:$0xf]
          %v6671 = vld [vmem:[#allocation3 + $0xe0] sm:$0xf]
          %v6672 = vld [vmem:[#allocation3 + $0xe4] sm:$0xf]
          %v6673 = vld [vmem:[#allocation3 + $0xe8] sm:$0xf]
          %v6674 = vld [vmem:[#allocation3 + $0xec] sm:$0xf]
          %v6675 = vld [vmem:[#allocation3 + $0xf0] sm:$0xf]
          %v6676 = vld [vmem:[#allocation3 + $0xf4] sm:$0xf]
          %v6677 = vld [vmem:[#allocation3 + $0xf8] sm:$0xf]
          %v6678 = vld [vmem:[#allocation3 + $0xfc] sm:$0xf]
          %v6679 = vld [vmem:[#allocation3 + $0x100] sm:$0xf]
          %v6680 = vld [vmem:[#allocation3 + $0x104] sm:$0xf]
          %v6681 = vld [vmem:[#allocation3 + $0x108] sm:$0xf]
          %v6682 = vld [vmem:[#allocation3 + $0x10c] sm:$0xf]
          %v6683 = vld [vmem:[#allocation3 + $0x110] sm:$0xf]
          %v6684 = vld [vmem:[#allocation3 + $0x114] sm:$0xf]
          %v6685 = vld [vmem:[#allocation3 + $0x118] sm:$0xf]
          %v6686 = vld [vmem:[#allocation3 + $0x11c] sm:$0xf]
          %v6687 = vld [vmem:[#allocation3 + $0x120] sm:$0xf]
          %v6688 = vld [vmem:[#allocation3 + $0x124] sm:$0xf]
          %v6689 = vld [vmem:[#allocation3 + $0x128] sm:$0xf]
          %v6690 = vld [vmem:[#allocation3 + $0x12c] sm:$0xf]
          %v6691 = vld [vmem:[#allocation3 + $0x130] sm:$0xf]
          %v6692 = vld [vmem:[#allocation3 + $0x134] sm:$0xf]
          %v6693 = vld [vmem:[#allocation3 + $0x138] sm:$0xf]
          %v6694 = vld [vmem:[#allocation3 + $0x13c] sm:$0xf]
          %v6695 = vld [vmem:[#allocation3 + $0x140] sm:$0xf]
          %v6696 = vld [vmem:[#allocation3 + $0x144] sm:$0xf]
          %v6697 = vld [vmem:[#allocation3 + $0x148] sm:$0xf]
          %v6698 = vld [vmem:[#allocation3 + $0x14c] sm:$0xf]
          %v6699 = vld [vmem:[#allocation3 + $0x150] sm:$0xf]
          %v6700 = vld [vmem:[#allocation3 + $0x154] sm:$0xf]
          %v6701 = vld [vmem:[#allocation3 + $0x158] sm:$0xf]
          %v6702 = vld [vmem:[#allocation3 + $0x15c] sm:$0xf]
          %v6703 = vld [vmem:[#allocation3 + $0x160] sm:$0xf]
          %v6704 = vld [vmem:[#allocation3 + $0x164] sm:$0xf]
          %v6705 = vld [vmem:[#allocation3 + $0x168] sm:$0xf]
          %v6706 = vld [vmem:[#allocation3 + $0x16c] sm:$0xf]
          %v6707 = vld [vmem:[#allocation3 + $0x170] sm:$0xf]
          %v6708 = vld [vmem:[#allocation3 + $0x174] sm:$0xf]
          %v6709 = vld [vmem:[#allocation3 + $0x178] sm:$0xf]
          %v6710 = vld [vmem:[#allocation3 + $0x17c] sm:$0xf]
          %v6711 = vld [vmem:[#allocation3 + $0x180] sm:$0xf]
          %v6712 = vld [vmem:[#allocation3 + $0x184] sm:$0xf]
          %v6713 = vld [vmem:[#allocation3 + $0x188] sm:$0xf]
          %v6714 = vld [vmem:[#allocation3 + $0x18c] sm:$0xf]
          %v6715 = vld [vmem:[#allocation3 + $0x190] sm:$0xf]
          %v6716 = vld [vmem:[#allocation3 + $0x194] sm:$0xf]
          %v6717 = vld [vmem:[#allocation3 + $0x198] sm:$0xf]
          %v6718 = vld [vmem:[#allocation3 + $0x19c] sm:$0xf]
          %v6719 = vld [vmem:[#allocation3 + $0x1a0] sm:$0xf]
          %v6720 = vld [vmem:[#allocation3 + $0x1a4] sm:$0xf]
          %v6721 = vld [vmem:[#allocation3 + $0x1a8] sm:$0xf]
          %v6722 = vld [vmem:[#allocation3 + $0x1ac] sm:$0xf]
          %v6723 = vld [vmem:[#allocation3 + $0x1b0] sm:$0xf]
          %v6724 = vld [vmem:[#allocation3 + $0x1b4] sm:$0xf]
          %v6725 = vld [vmem:[#allocation3 + $0x1b8] sm:$0xf]
          %v6726 = vld [vmem:[#allocation3 + $0x1bc] sm:$0xf]
          %v6727 = vld [vmem:[#allocation3 + $0x1c0] sm:$0xf]
          %v6728 = vld [vmem:[#allocation3 + $0x1c4] sm:$0xf]
          %v6729 = vld [vmem:[#allocation3 + $0x1c8] sm:$0xf]
          %v6730 = vld [vmem:[#allocation3 + $0x1cc] sm:$0xf]
          %v6731 = vld [vmem:[#allocation3 + $0x1d0] sm:$0xf]
          %v6732 = vld [vmem:[#allocation3 + $0x1d4] sm:$0xf]
          %v6733 = vld [vmem:[#allocation3 + $0x1d8] sm:$0xf]
          %v6734 = vld [vmem:[#allocation3 + $0x1dc] sm:$0xf]
          %v6735 = vld [vmem:[#allocation3 + $0x1e0] sm:$0xf]
          %v6736 = vld [vmem:[#allocation3 + $0x1e4] sm:$0xf]
          %v6737 = vld [vmem:[#allocation3 + $0x1e8] sm:$0xf]
          %v6738 = vld [vmem:[#allocation3 + $0x1ec] sm:$0xf]
          %v6739 = vld [vmem:[#allocation3 + $0x1f0] sm:$0xf]
          %v6740 = vld [vmem:[#allocation3 + $0x1f4] sm:$0xf]
          %v6741 = vld [vmem:[#allocation3 + $0x1f8] sm:$0xf]
          %v6742 = vld [vmem:[#allocation3 + $0x1fc] sm:$0xf]
          %v6743 = vld [vmem:[#allocation3 + $0x200] sm:$0xf]
          %v6744 = vld [vmem:[#allocation3 + $0x204] sm:$0xf]
          %v6745 = vld [vmem:[#allocation3 + $0x208] sm:$0xf]
          %v6746 = vld [vmem:[#allocation3 + $0x20c] sm:$0xf]
          %v6747 = vld [vmem:[#allocation3 + $0x210] sm:$0xf]
          %v6748 = vld [vmem:[#allocation3 + $0x214] sm:$0xf]
          %v6749 = vld [vmem:[#allocation3 + $0x218] sm:$0xf]
          %v6750 = vld [vmem:[#allocation3 + $0x21c] sm:$0xf]
          %v6751 = vld [vmem:[#allocation3 + $0x220] sm:$0xf]
          %v6752 = vld [vmem:[#allocation3 + $0x224] sm:$0xf]
          %v6753 = vld [vmem:[#allocation3 + $0x228] sm:$0xf]
          %v6754 = vld [vmem:[#allocation3 + $0x22c] sm:$0xf]
          %v6755 = vld [vmem:[#allocation3 + $0x230] sm:$0xf]
          %v6756 = vld [vmem:[#allocation3 + $0x234] sm:$0xf]
          %v6757 = vld [vmem:[#allocation3 + $0x238] sm:$0xf]
          %v6758 = vld [vmem:[#allocation3 + $0x23c] sm:$0xf]
          %v6764 = vunpack.c.l.b16 %v6610
          %v6765 = vunpack.c.h.b16 %v6610
          %v6766 = vunpack.c.l.b16 %v6611
          %v6767 = vunpack.c.h.b16 %v6611
          %v6768 = vunpack.c.l.b16 %v6612
          %v6769 = vunpack.c.h.b16 %v6612
          %v6770 = vunpack.c.l.b16 %v6613
          %v6771 = vunpack.c.h.b16 %v6613
          %v6772 = vunpack.c.l.b16 %v6614
          %v6773 = vpack.c.b16 %v6764, %v6764
          %v6774 = vpack.c.b16 %v6765, %v6765
          %v6775 = vpack.c.b16 %v6766, %v6766
          %v6776 = vpack.c.b16 %v6767, %v6767
          %v6777 = vpack.c.b16 %v6768, %v6768
          %v6778 = vpack.c.b16 %v6769, %v6769
          %v6779 = vpack.c.b16 %v6770, %v6770
          %v6780 = vpack.c.b16 %v6771, %v6771
          %v6781 = vpack.c.b16 %v6772, %v6772
          %v6935 = vunpack.c.l.b16 %v6615
          %v6936 = vunpack.c.l.b16 %v6616
          %v6937 = vunpack.c.l.b16 %v6617
          %v6938 = vunpack.c.l.b16 %v6618
          %v6939 = vunpack.c.l.b16 %v6619
          %v6940 = vunpack.c.l.b16 %v6620
          %v6941 = vunpack.c.l.b16 %v6621
          %v6942 = vunpack.c.l.b16 %v6622
          %v6943 = vunpack.c.l.b16 %v6623
          %v6944 = vunpack.c.l.b16 %v6624
          %v6945 = vunpack.c.l.b16 %v6625
          %v6946 = vunpack.c.l.b16 %v6626
          %v6947 = vunpack.c.l.b16 %v6627
          %v6948 = vunpack.c.l.b16 %v6628
          %v6949 = vunpack.c.l.b16 %v6629
          %v6950 = vunpack.c.l.b16 %v6630
          %v6951 = vunpack.c.l.b16 %v6631
          %v6952 = vunpack.c.l.b16 %v6632
          %v6953 = vunpack.c.l.b16 %v6633
          %v6954 = vunpack.c.l.b16 %v6634
          %v6955 = vunpack.c.l.b16 %v6635
          %v6956 = vunpack.c.l.b16 %v6636
          %v6957 = vunpack.c.l.b16 %v6637
          %v6958 = vunpack.c.l.b16 %v6638
          %v6959 = vunpack.c.l.b16 %v6639
          %v6960 = vunpack.c.l.b16 %v6640
          %v6961 = vunpack.c.l.b16 %v6641
          %v6962 = vunpack.c.l.b16 %v6642
          %v6963 = vunpack.c.l.b16 %v6643
          %v6964 = vunpack.c.l.b16 %v6644
          %v6965 = vunpack.c.l.b16 %v6645
          %v6966 = vunpack.c.l.b16 %v6646
          %v6967 = vunpack.c.l.b16 %v6647
          %v6968 = vunpack.c.l.b16 %v6648
          %v6969 = vunpack.c.l.b16 %v6649
          %v6970 = vunpack.c.l.b16 %v6650
          %v6971 = vunpack.c.l.b16 %v6651
          %v6972 = vunpack.c.l.b16 %v6652
          %v6973 = vunpack.c.l.b16 %v6653
          %v6974 = vunpack.c.l.b16 %v6654
          %v6975 = vunpack.c.l.b16 %v6655
          %v6976 = vunpack.c.l.b16 %v6656
          %v6977 = vunpack.c.l.b16 %v6657
          %v6978 = vunpack.c.l.b16 %v6658
          %v6979 = vunpack.c.l.b16 %v6659
          %v6980 = vunpack.c.l.b16 %v6660
          %v6981 = vunpack.c.l.b16 %v6661
          %v6982 = vunpack.c.l.b16 %v6662
          %v6983 = vunpack.c.l.b16 %v6663
          %v6984 = vunpack.c.l.b16 %v6664
          %v6985 = vunpack.c.l.b16 %v6665
          %v6986 = vunpack.c.l.b16 %v6666
          %v6987 = vunpack.c.l.b16 %v6667
          %v6988 = vunpack.c.l.b16 %v6668
          %v6989 = vunpack.c.l.b16 %v6669
          %v6990 = vunpack.c.l.b16 %v6670
          %v6991 = vunpack.c.l.b16 %v6671
          %v6992 = vunpack.c.l.b16 %v6672
          %v6993 = vunpack.c.l.b16 %v6673
          %v6994 = vunpack.c.l.b16 %v6674
          %v6995 = vunpack.c.l.b16 %v6675
          %v6996 = vunpack.c.l.b16 %v6676
          %v6997 = vunpack.c.l.b16 %v6677
          %v6998 = vunpack.c.l.b16 %v6678
          %v6999 = vunpack.c.l.b16 %v6679
          %v7000 = vunpack.c.l.b16 %v6680
          %v7001 = vunpack.c.l.b16 %v6681
          %v7002 = vunpack.c.l.b16 %v6682
          %v7003 = vunpack.c.l.b16 %v6683
          %v7004 = vunpack.c.l.b16 %v6684
          %v7005 = vunpack.c.l.b16 %v6685
          %v7006 = vunpack.c.l.b16 %v6686
          %v7007 = vunpack.c.l.b16 %v6687
          %v7008 = vunpack.c.l.b16 %v6688
          %v7009 = vunpack.c.l.b16 %v6689
          %v7010 = vunpack.c.l.b16 %v6690
          %v7011 = vunpack.c.l.b16 %v6691
          %v7012 = vunpack.c.l.b16 %v6692
          %v7013 = vunpack.c.l.b16 %v6693
          %v7014 = vunpack.c.l.b16 %v6694
          %v7015 = vunpack.c.l.b16 %v6695
          %v7016 = vunpack.c.l.b16 %v6696
          %v7017 = vunpack.c.l.b16 %v6697
          %v7018 = vunpack.c.l.b16 %v6698
          %v7019 = vunpack.c.l.b16 %v6699
          %v7020 = vunpack.c.l.b16 %v6700
          %v7021 = vunpack.c.l.b16 %v6701
          %v7022 = vunpack.c.l.b16 %v6702
          %v7023 = vunpack.c.l.b16 %v6703
          %v7024 = vunpack.c.l.b16 %v6704
          %v7025 = vunpack.c.l.b16 %v6705
          %v7026 = vunpack.c.l.b16 %v6706
          %v7027 = vunpack.c.l.b16 %v6707
          %v7028 = vunpack.c.l.b16 %v6708
          %v7029 = vunpack.c.l.b16 %v6709
          %v7030 = vunpack.c.l.b16 %v6710
          %v7031 = vunpack.c.l.b16 %v6711
          %v7032 = vunpack.c.l.b16 %v6712
          %v7033 = vunpack.c.l.b16 %v6713
          %v7034 = vunpack.c.l.b16 %v6714
          %v7035 = vunpack.c.l.b16 %v6715
          %v7036 = vunpack.c.l.b16 %v6716
          %v7037 = vunpack.c.l.b16 %v6717
          %v7038 = vunpack.c.l.b16 %v6718
          %v7039 = vunpack.c.l.b16 %v6719
          %v7040 = vunpack.c.l.b16 %v6720
          %v7041 = vunpack.c.l.b16 %v6721
          %v7042 = vunpack.c.l.b16 %v6722
          %v7043 = vunpack.c.l.b16 %v6723
          %v7044 = vunpack.c.l.b16 %v6724
          %v7045 = vunpack.c.l.b16 %v6725
          %v7046 = vunpack.c.l.b16 %v6726
          %v7047 = vunpack.c.l.b16 %v6727
          %v7048 = vunpack.c.l.b16 %v6728
          %v7049 = vunpack.c.l.b16 %v6729
          %v7050 = vunpack.c.l.b16 %v6730
          %v7051 = vunpack.c.l.b16 %v6731
          %v7052 = vunpack.c.l.b16 %v6732
          %v7053 = vunpack.c.l.b16 %v6733
          %v7054 = vunpack.c.l.b16 %v6734
          %v7055 = vunpack.c.l.b16 %v6735
          %v7056 = vunpack.c.l.b16 %v6736
          %v7057 = vunpack.c.l.b16 %v6737
          %v7058 = vunpack.c.l.b16 %v6738
          %v7059 = vunpack.c.l.b16 %v6739
          %v7060 = vunpack.c.l.b16 %v6740
          %v7061 = vunpack.c.l.b16 %v6741
          %v7062 = vunpack.c.l.b16 %v6742
          %v7063 = vunpack.c.l.b16 %v6743
          %v7064 = vunpack.c.l.b16 %v6744
          %v7065 = vunpack.c.l.b16 %v6745
          %v7066 = vunpack.c.l.b16 %v6746
          %v7067 = vunpack.c.l.b16 %v6747
          %v7068 = vunpack.c.l.b16 %v6748
          %v7069 = vunpack.c.l.b16 %v6749
          %v7070 = vunpack.c.l.b16 %v6750
          %v7071 = vunpack.c.l.b16 %v6751
          %v7072 = vunpack.c.l.b16 %v6752
          %v7073 = vunpack.c.l.b16 %v6753
          %v7074 = vunpack.c.l.b16 %v6754
          %v7075 = vunpack.c.l.b16 %v6755
          %v7076 = vunpack.c.l.b16 %v6756
          %v7077 = vunpack.c.l.b16 %v6757
          %v7078 = vunpack.c.l.b16 %v6758
          %v7079 = vpack.c.b16 %v6936, %v6935
          %v7080 = vpack.c.b16 %v6938, %v6937
          %v7081 = vpack.c.b16 %v6940, %v6939
          %v7082 = vpack.c.b16 %v6942, %v6941
          %v7083 = vpack.c.b16 %v6944, %v6943
          %v7084 = vpack.c.b16 %v6946, %v6945
          %v7085 = vpack.c.b16 %v6948, %v6947
          %v7086 = vpack.c.b16 %v6950, %v6949
          %v7087 = vpack.c.b16 %v6952, %v6951
          %v7088 = vpack.c.b16 %v6954, %v6953
          %v7089 = vpack.c.b16 %v6956, %v6955
          %v7090 = vpack.c.b16 %v6958, %v6957
          %v7091 = vpack.c.b16 %v6960, %v6959
          %v7092 = vpack.c.b16 %v6962, %v6961
          %v7093 = vpack.c.b16 %v6964, %v6963
          %v7094 = vpack.c.b16 %v6966, %v6965
          %v7095 = vpack.c.b16 %v6968, %v6967
          %v7096 = vpack.c.b16 %v6970, %v6969
          %v7097 = vpack.c.b16 %v6972, %v6971
          %v7098 = vpack.c.b16 %v6974, %v6973
          %v7099 = vpack.c.b16 %v6976, %v6975
          %v7100 = vpack.c.b16 %v6978, %v6977
          %v7101 = vpack.c.b16 %v6980, %v6979
          %v7102 = vpack.c.b16 %v6982, %v6981
          %v7103 = vpack.c.b16 %v6984, %v6983
          %v7104 = vpack.c.b16 %v6986, %v6985
          %v7105 = vpack.c.b16 %v6988, %v6987
          %v7106 = vpack.c.b16 %v6990, %v6989
          %v7107 = vpack.c.b16 %v6992, %v6991
          %v7108 = vpack.c.b16 %v6994, %v6993
          %v7109 = vpack.c.b16 %v6996, %v6995
          %v7110 = vpack.c.b16 %v6998, %v6997
          %v7111 = vpack.c.b16 %v7000, %v6999
          %v7112 = vpack.c.b16 %v7002, %v7001
          %v7113 = vpack.c.b16 %v7004, %v7003
          %v7114 = vpack.c.b16 %v7006, %v7005
          %v7115 = vpack.c.b16 %v7008, %v7007
          %v7116 = vpack.c.b16 %v7010, %v7009
          %v7117 = vpack.c.b16 %v7012, %v7011
          %v7118 = vpack.c.b16 %v7014, %v7013
          %v7119 = vpack.c.b16 %v7016, %v7015
          %v7120 = vpack.c.b16 %v7018, %v7017
          %v7121 = vpack.c.b16 %v7020, %v7019
          %v7122 = vpack.c.b16 %v7022, %v7021
          %v7123 = vpack.c.b16 %v7024, %v7023
          %v7124 = vpack.c.b16 %v7026, %v7025
          %v7125 = vpack.c.b16 %v7028, %v7027
          %v7126 = vpack.c.b16 %v7030, %v7029
          %v7127 = vpack.c.b16 %v7032, %v7031
          %v7128 = vpack.c.b16 %v7034, %v7033
          %v7129 = vpack.c.b16 %v7036, %v7035
          %v7130 = vpack.c.b16 %v7038, %v7037
          %v7131 = vpack.c.b16 %v7040, %v7039
          %v7132 = vpack.c.b16 %v7042, %v7041
          %v7133 = vpack.c.b16 %v7044, %v7043
          %v7134 = vpack.c.b16 %v7046, %v7045
          %v7135 = vpack.c.b16 %v7048, %v7047
          %v7136 = vpack.c.b16 %v7050, %v7049
          %v7137 = vpack.c.b16 %v7052, %v7051
          %v7138 = vpack.c.b16 %v7054, %v7053
          %v7139 = vpack.c.b16 %v7056, %v7055
          %v7140 = vpack.c.b16 %v7058, %v7057
          %v7141 = vpack.c.b16 %v7060, %v7059
          %v7142 = vpack.c.b16 %v7062, %v7061
          %v7143 = vpack.c.b16 %v7064, %v7063
          %v7144 = vpack.c.b16 %v7066, %v7065
          %v7145 = vpack.c.b16 %v7068, %v7067
          %v7146 = vpack.c.b16 %v7070, %v7069
          %v7147 = vpack.c.b16 %v7072, %v7071
          %v7148 = vpack.c.b16 %v7074, %v7073
          %v7149 = vpack.c.b16 %v7076, %v7075
          %v7150 = vpack.c.b16 %v7078, %v7077
          %7223 = vmatpush.bf16.msra.mxu0 %v7086
          %7224 = vmatpush.bf16.msra.mxu0 %v7085
          %7225 = vmatpush.bf16.msra.mxu0 %v7084
          %7226 = vmatpush.bf16.msra.mxu0 %v7083
          %7227 = vmatpush.bf16.msra.mxu0 %v7082
          %7228 = vmatpush.bf16.msra.mxu0 %v7081
          %7229 = vmatpush.bf16.msra.mxu0 %v7080
          %7230 = vmatpush.bf16.msra.mxu0 %v7079
          %7231 = vmatmul.bf16.gmra.mxu0 %v6773
          %v7232 = vpop.f32.mrf.mxu0
          %v7233 = vadd.f32 0.0, %v7232
          %v7234 = vpop.f32.mrf.mxu0
          %7235 = vdwg.mxu0
          %7236 = vmatpush.bf16.msra.mxu0 %v7094
          %7237 = vmatpush.bf16.msra.mxu0 %v7093
          %7238 = vmatpush.bf16.msra.mxu0 %v7092
          %7239 = vmatpush.bf16.msra.mxu0 %v7091
          %7240 = vmatpush.bf16.msra.mxu0 %v7090
          %7241 = vmatpush.bf16.msra.mxu0 %v7089
          %7242 = vmatpush.bf16.msra.mxu0 %v7088
          %7243 = vmatpush.bf16.msra.mxu0 %v7087
          %7244 = vmatmul.bf16.gmra.mxu0 %v6774
          %v7245 = vpop.f32.mrf.mxu0
          %v7246 = vadd.f32 %v7233, %v7245
          %v7247 = vpop.f32.mrf.mxu0
          %7248 = vdwg.mxu0
          %7249 = vmatpush.bf16.msra.mxu0 %v7102
          %7250 = vmatpush.bf16.msra.mxu0 %v7101
          %7251 = vmatpush.bf16.msra.mxu0 %v7100
          %7252 = vmatpush.bf16.msra.mxu0 %v7099
          %7253 = vmatpush.bf16.msra.mxu0 %v7098
          %7254 = vmatpush.bf16.msra.mxu0 %v7097
          %7255 = vmatpush.bf16.msra.mxu0 %v7096
          %7256 = vmatpush.bf16.msra.mxu0 %v7095
          %7257 = vmatmul.bf16.gmra.mxu0 %v6775
          %v7258 = vpop.f32.mrf.mxu0
          %v7259 = vadd.f32 %v7246, %v7258
          %v7260 = vpop.f32.mrf.mxu0
          %7261 = vdwg.mxu0
          %7262 = vmatpush.bf16.msra.mxu0 %v7110
          %7263 = vmatpush.bf16.msra.mxu0 %v7109
          %7264 = vmatpush.bf16.msra.mxu0 %v7108
          %7265 = vmatpush.bf16.msra.mxu0 %v7107
          %7266 = vmatpush.bf16.msra.mxu0 %v7106
          %7267 = vmatpush.bf16.msra.mxu0 %v7105
          %7268 = vmatpush.bf16.msra.mxu0 %v7104
          %7269 = vmatpush.bf16.msra.mxu0 %v7103
          %7270 = vmatmul.bf16.gmra.mxu0 %v6776
          %v7271 = vpop.f32.mrf.mxu0
          %v7272 = vadd.f32 %v7259, %v7271
          %v7273 = vpop.f32.mrf.mxu0
          %7274 = vdwg.mxu0
          %7275 = vmatpush.bf16.msra.mxu0 %v7118
          %7276 = vmatpush.bf16.msra.mxu0 %v7117
          %7277 = vmatpush.bf16.msra.mxu0 %v7116
          %7278 = vmatpush.bf16.msra.mxu0 %v7115
          %7279 = vmatpush.bf16.msra.mxu0 %v7114
          %7280 = vmatpush.bf16.msra.mxu0 %v7113
          %7281 = vmatpush.bf16.msra.mxu0 %v7112
          %7282 = vmatpush.bf16.msra.mxu0 %v7111
          %7283 = vmatmul.bf16.gmra.mxu0 %v6777
          %v7284 = vpop.f32.mrf.mxu0
          %v7285 = vadd.f32 %v7272, %v7284
          %v7286 = vpop.f32.mrf.mxu0
          %7287 = vdwg.mxu0
          %7288 = vmatpush.bf16.msra.mxu0 %v7126
          %7289 = vmatpush.bf16.msra.mxu0 %v7125
          %7290 = vmatpush.bf16.msra.mxu0 %v7124
          %7291 = vmatpush.bf16.msra.mxu0 %v7123
          %7292 = vmatpush.bf16.msra.mxu0 %v7122
          %7293 = vmatpush.bf16.msra.mxu0 %v7121
          %7294 = vmatpush.bf16.msra.mxu0 %v7120
          %7295 = vmatpush.bf16.msra.mxu0 %v7119
          %7296 = vmatmul.bf16.gmra.mxu0 %v6778
          %v7297 = vpop.f32.mrf.mxu0
          %v7298 = vadd.f32 %v7285, %v7297
          %v7299 = vpop.f32.mrf.mxu0
          %7300 = vdwg.mxu0
          %7301 = vmatpush.bf16.msra.mxu0 %v7134
          %7302 = vmatpush.bf16.msra.mxu0 %v7133
          %7303 = vmatpush.bf16.msra.mxu0 %v7132
          %7304 = vmatpush.bf16.msra.mxu0 %v7131
          %7305 = vmatpush.bf16.msra.mxu0 %v7130
          %7306 = vmatpush.bf16.msra.mxu0 %v7129
          %7307 = vmatpush.bf16.msra.mxu0 %v7128
          %7308 = vmatpush.bf16.msra.mxu0 %v7127
          %7309 = vmatmul.bf16.gmra.mxu0 %v6779
          %v7310 = vpop.f32.mrf.mxu0
          %v7311 = vadd.f32 %v7298, %v7310
          %v7312 = vpop.f32.mrf.mxu0
          %7313 = vdwg.mxu0
          %7314 = vmatpush.bf16.msra.mxu0 %v7142
          %7315 = vmatpush.bf16.msra.mxu0 %v7141
          %7316 = vmatpush.bf16.msra.mxu0 %v7140
          %7317 = vmatpush.bf16.msra.mxu0 %v7139
          %7318 = vmatpush.bf16.msra.mxu0 %v7138
          %7319 = vmatpush.bf16.msra.mxu0 %v7137
          %7320 = vmatpush.bf16.msra.mxu0 %v7136
          %7321 = vmatpush.bf16.msra.mxu0 %v7135
          %7322 = vmatmul.bf16.gmra.mxu0 %v6780
          %v7323 = vpop.f32.mrf.mxu0
          %v7324 = vadd.f32 %v7311, %v7323
          %v7325 = vpop.f32.mrf.mxu0
          %7326 = vdwg.mxu0
          %7327 = vmatpush.bf16.msra.mxu0 %v7150
          %7328 = vmatpush.bf16.msra.mxu0 %v7149
          %7329 = vmatpush.bf16.msra.mxu0 %v7148
          %7330 = vmatpush.bf16.msra.mxu0 %v7147
          %7331 = vmatpush.bf16.msra.mxu0 %v7146
          %7332 = vmatpush.bf16.msra.mxu0 %v7145
          %7333 = vmatpush.bf16.msra.mxu0 %v7144
          %7334 = vmatpush.bf16.msra.mxu0 %v7143
          %7335 = vmatmul.bf16.gmra.mxu0 %v6781
          %v7336 = vpop.f32.mrf.mxu0
          %v7337 = vadd.f32 %v7324, %v7336
          %v7338 = vpop.f32.mrf.mxu0
          %7339 = vdwg.mxu0
          %v7340 = vadd.f32 %v6609, %v7337
          %7341 = vst [vmem:[#allocation2] sm:$0xff] %v7340
        $region119: #{tpu_custom_call.1} parent=102 // pred_fallthru
          _
        %p7342 = scmp.eq.s32.totalorder %s39, 1
        // Predicated region
        $region120: #{tpu_custom_call.1} parent=102 // pred_check
          %p7343 = pneg %p7342
        $region121: #{tpu_custom_call.1} parent=102 // pred_check_branch
          %7345 = sbr.rel (%p7343) target = $region123
        $region122: #{tpu_custom_call.1} parent=102 // pred_region
          %v7346 = vld [vmem:[#allocation2] sm:$0xff]
          %7347 = vst [vmem:[%s368] sm:$0xff] %v7346
        $region123: #{tpu_custom_call.1} parent=102 // pred_fallthru
          _
        %s7348 = sand.u32 %s145, 1
        %s7349 = scalar_lea.sflag [#allocation10], %s7348
        %s7350 = sand.u32 %s145, 1
        %s7351 = smul.addr %s7350, 8
        %s7352 = scalar_lea.vmem [#allocation9], %s7351
        // Predicated region
        $region124: #{tpu_custom_call.1} parent=102 // pred_check
          %p7353 = pneg %p155
        $region125: #{tpu_custom_call.1} parent=102 // pred_check_branch
          %7355 = sbr.rel (%p7353) target = $region127
        $region126: #{tpu_custom_call.1} parent=102 // pred_region
          %7357 = vsyncadd %s7349, 0
          %s7358 = smul.addr %s37, 2
          %s7359 = sadd.s32 %s38, %s7358
          %s7360 = smul.addr %s7359, 8
          %s7361 = scalar_lea.hbm %s5, %s7360
          %s7363 = sshll.u32 %s7352, 4
          %s7364 = int_to_ptr.vmem [resolvable:$true] %s7363
          %s7365 = sshll.u32 %s7361, 4
          %s7366 = int_to_ptr.hbm [resolvable:$true] %s7365
          %7368 = dma.vmem_to_hbm [thread:$0]  %s7364, 128, %s7366, %s7349
        $region127: #{tpu_custom_call.1} parent=102 // pred_fallthru
          _
      $region103: #{tpu_custom_call.1} parent=5 // pred_fallthru
        _
      %p7369 = scmp.le.s32.totalorder 2, %s27
      // Predicated region
      $region128: #{tpu_custom_call.1} parent=5 // pred_check
        %p7370 = pneg %p7369
      $region129: #{tpu_custom_call.1} parent=5 // pred_check_branch
        %7372 = sbr.rel (%p7370) target = $region131
      $region130: #{tpu_custom_call.1} parent=5 // pred_region
        %s7373 = ssub.s32 %s27, 2
        // Predicated region
        $region132: #{tpu_custom_call.1} parent=130 // pred_check
          %p7374 = pneg %p161
        $region133: #{tpu_custom_call.1} parent=130 // pred_check_branch
          %7376 = sbr.rel (%p7374) target = $region135
        $region134: #{tpu_custom_call.1} parent=130 // pred_region
          %s7377 = sand.u32 %s146, 1
          %s7378 = scalar_lea.sflag [#allocation10], %s7377
          %s7379 = sand.u32 %s146, 1
          %s7380 = smul.addr %s7379, 8
          %s7381 = scalar_lea.vmem [#allocation9], %s7380
          %7383 = dma.done %s7378, 128
        $region135: #{tpu_custom_call.1} parent=130 // pred_fallthru
          _
      $region131: #{tpu_custom_call.1} parent=5 // pred_fallthru
        _
    $region6: #{tpu_custom_call.1} parent=1 // loop_footer
      %s31 = sadd.s32 1, %s27
    $region7: #{tpu_custom_call.1} parent=1 // loop_footer_branch
      %26 = sbr.rel target = $region3
    $region8: #{tpu_custom_call.1} parent=1 // loop_exit
      _
    %7384 = vsyncpa [#allocation10], 1
    %s7385 = scalar_lea.sflag [#allocation10], 1
    %7386 = vsyncpa %s7385, 1

</llo_original>
